<compile_context>
chip_gen: v5e
topology: v5e:2x2
jax: 0.10.0
libtpu: 0.0.40
codegen_flags: <defaults>
</compile_context>

<pallas_src>
import jax
import jax.numpy as jnp
from jax import lax
from jax.experimental import pallas as pl
from jax.experimental.pallas import tpu as pltpu

H = W = 96                  # input spatial size implied by fc1.in_features = 48*48*4
HP = H // 2                 # 48 pooled rows / cols
CW = W                      # 96 conv output width (lane axis)
PW = CW - 1                 # 95: lane-dilated pooled width (valid values at even lanes)
C_OUT = 4
N_CLASS = 5
N_FEAT = C_OUT * HP * HP    # 9216
EPS = 1e-5


def cnn_fused_kernel(xr0_ref, xr1_ref, w_ref, g_ref, bt_ref, wfc_ref, bfc_ref,
                     out_ref, tr_ref):
    """Fused conv3x3(Cin=1) + BatchNorm2d(batch stats) + ReLU + maxpool2 + Linear.

    xr0_ref/xr1_ref: (B, 49, 98) row-parity planes of the zero-padded input (VMEM)
                     xr[r][b, m, v] == x_pad[b, 2m + r, v]
    w_ref:   (4, 9)  conv weights                                            (SMEM)
    g_ref/bt_ref: (1, 4) BN gamma / beta                                     (SMEM)
    wfc_ref: (4, 48, 5, 95) lane-dilated FC weight,
             [c, i, k, 2j] == fc_w[k, c*2304 + i*48 + j], zero at odd lanes  (VMEM)
    bfc_ref: (1, 5)  FC bias                                                 (VMEM)
    out_ref: (B, 5)  logits                                                  (VMEM)
    tr_ref:  (48, B, 95) scratch used to transpose the pooled plane          (VMEM)
    """
    B = out_ref.shape[0]
    inv_cnt = 1.0 / float(B * H * W)
    xr = (xr0_ref, xr1_ref)

    # ---- hoist the 12 distinct shifted input windows (shared by all channels and
    #      both output-row parities): win[(r,a,dx)][b,i,j] = xr[r][b, i+a, j+dx].
    wins = {}
    for r in range(2):
        for a in range(2):
            for dx in range(3):
                wins[(r, a, dx)] = xr[r][:, a:a + HP, dx:dx + CW]      # (B, 48, 96)

    fc_acc = jnp.zeros((B, N_CLASS), jnp.float32)

    for c in range(C_OUT):
        # ---- 3x3 conv decomposed over output-row parity p:
        #      acc[p][b,i,j] = bias-free conv output at row 2i+p, column j.
        acc = [None, None]
        for dy in range(3):
            for dx in range(3):
                wv = w_ref[c, dy * 3 + dx]            # SMEM scalar (splat is free)
                for p in range(2):
                    t = p + dy
                    term = wv * wins[(t % 2, t // 2, dx)]
                    acc[p] = term if acc[p] is None else acc[p] + term
        a0, a1 = acc

        # ---- BatchNorm2d training statistics, single pass (combine planes, then reduce).
        # NOTE: E[x^2]-E[x]^2 in f32; conv outputs here are zero-mean-ish so this is
        # well conditioned (conv bias is excluded, which also improves conditioning).
        ssum = jnp.sum(a0 + a1)
        ssq = jnp.sum(a0 * a0 + a1 * a1)
        mean = ssum * inv_cnt
        var = ssq * inv_cnt - mean * mean             # biased variance (BN training mode)
        a_s = g_ref[0, c] * lax.rsqrt(var + EPS)
        b_s = bt_ref[0, c] - mean * a_s               # conv bias cancels exactly

        # ---- normalize + ReLU; row half of the 2x2 max-pool == max of the two parities.
        y0 = jnp.maximum(a0 * a_s + b_s, 0.0)
        y1 = jnp.maximum(a1 * a_s + b_s, 0.0)
        rowp = jnp.maximum(y0, y1)                    # (B, 48, 96)
        # column half, kept lane-dilated: colp[b,i,2j] == pooled[b,i,j]; odd lanes are
        # garbage and are killed by the zero lanes of the dilated FC weight.
        colp = jnp.maximum(rowp[:, :, :PW], rowp[:, :, 1:])            # (B, 48, 95)

        # ---- fused Linear on the MXU: transpose (B,48,95)->(48,B,95) via scratch
        #      stores, then one batched matmul per channel (batch dim = pooled row i,
        #      contracting the lane-dilated column axis), accumulated into (B,5).
        for b in range(B):                            # B is small & static
            tr_ref[:, b:b + 1, :] = jnp.expand_dims(colp[b], axis=1)
        lhs = tr_ref[...]                             # (48, B, 95)
        contrib = lax.dot_general(
            lhs, wfc_ref[c],                          # (48, 5, 95)
            dimension_numbers=(((2,), (2,)), ((0,), (0,))),
            preferred_element_type=jnp.float32)       # (48, B, 5)
        fc_acc = fc_acc + jnp.sum(contrib, axis=0)

    out_ref[...] = fc_acc + bfc_ref[...]


def prepare_params(params):
    """One-time parameter re-layout for the fused kernel (do NOT repeat per call)."""
    w4 = params["fc_w"].reshape(N_CLASS, C_OUT, HP, HP)        # [k, c, i, j]
    w4 = jnp.transpose(w4, (1, 2, 0, 3)).astype(jnp.float32)   # [c, i, k, j] (4,48,5,48)
    wd = jnp.zeros((C_OUT, HP, N_CLASS, PW), jnp.float32)
    wd = wd.at[:, :, :, 0::2].set(w4)                          # dilate onto even lanes
    return {
        "conv_w": params["conv_w"].reshape(C_OUT, 9).astype(jnp.float32),
        # conv bias intentionally omitted: it cancels under training-mode BatchNorm.
        "bn_g": params["bn_g"].reshape(1, C_OUT).astype(jnp.float32),
        "bn_b": params["bn_b"].reshape(1, C_OUT).astype(jnp.float32),
        "fc_w": wd,                                            # (4, 48, 5, 95)
        "fc_b": params["fc_b"].reshape(1, N_CLASS).astype(jnp.float32),
    }


@jax.jit
def cnn_forward(x, prep):
    B = x.shape[0]
    assert x.shape[1:] == (1, H, W)
    x2 = x[:, 0]                                               # (B, 96, 96)
    xp = jnp.pad(x2, ((0, 0), (1, 1), (1, 1)))                 # (B, 98, 98)
    xr0 = xp[:, 0::2, :]                                       # (B, 49, 98) even rows
    xr1 = xp[:, 1::2, :]                                       # (B, 49, 98) odd rows

    return pl.pallas_call(
        cnn_fused_kernel,
        out_shape=jax.ShapeDtypeStruct((B, N_CLASS), jnp.float32),
        in_specs=[pl.BlockSpec(memory_space=pltpu.MemorySpace.VMEM),
                  pl.BlockSpec(memory_space=pltpu.MemorySpace.VMEM),
                  pl.BlockSpec(memory_space=pltpu.MemorySpace.SMEM),
                  pl.BlockSpec(memory_space=pltpu.MemorySpace.SMEM),
                  pl.BlockSpec(memory_space=pltpu.MemorySpace.SMEM),
                  pl.BlockSpec(memory_space=pltpu.MemorySpace.VMEM),
                  pl.BlockSpec(memory_space=pltpu.MemorySpace.VMEM)],
        out_specs=pl.BlockSpec(memory_space=pltpu.MemorySpace.VMEM),
        scratch_shapes=[pltpu.VMEM((HP, B, PW), jnp.float32)],
        compiler_params=pltpu.CompilerParams(vmem_limit_bytes=64 * 1024 * 1024),
    )(xr0, xr1, prep["conv_w"], prep["bn_g"], prep["bn_b"],
      prep["fc_w"], prep["fc_b"])


def cnn_reference(x, params):
    """Pure-JAX reference matching the PyTorch forward semantics (BN in training mode)."""
    y = lax.conv_general_dilated(x, params["conv_w"], (1, 1), [(1, 1), (1, 1)],
                                 dimension_numbers=("NCHW", "OIHW", "NCHW"))
    y = y + params["conv_b"][None, :, None, None]
    mean = y.mean(axis=(0, 2, 3), keepdims=True)
    var = y.var(axis=(0, 2, 3), keepdims=True)           # biased, like BN training mode
    y = (y - mean) / jnp.sqrt(var + EPS)
    y = y * params["bn_g"][None, :, None, None] + params["bn_b"][None, :, None, None]
    y = jnp.maximum(y, 0.0)
    B = x.shape[0]
    y = y.reshape(B, C_OUT, HP, 2, HP, 2).max(axis=(3, 5))
    flat = y.reshape(B, -1)
    return flat @ params["fc_w"].T + params["fc_b"]


if __name__ == "__main__":
    key = jax.random.PRNGKey(0)
    k = jax.random.split(key, 7)
    params = {
        "conv_w": jax.random.normal(k[0], (C_OUT, 1, 3, 3), jnp.float32) * 0.2,
        "conv_b": jax.random.normal(k[1], (C_OUT,), jnp.float32) * 0.05,
        "bn_g": 1.0 + 0.1 * jax.random.normal(k[2], (C_OUT,), jnp.float32),
        "bn_b": 0.1 * jax.random.normal(k[3], (C_OUT,), jnp.float32),
        "fc_w": jax.random.normal(k[4], (N_CLASS, N_FEAT), jnp.float32) * 0.01,
        "fc_b": jax.random.normal(k[5], (N_CLASS,), jnp.float32) * 0.05,
    }
    x = jax.random.normal(k[6], (2, 1, H, W), jnp.float32)

    prep = prepare_params(params)        # one-time weight re-layout
    out = jax.block_until_ready(cnn_forward(x, prep))
    ref = jax.block_until_ready(cnn_reference(x, params))
    assert out.shape == (2, N_CLASS), out.shape
    assert jnp.allclose(out, ref, rtol=1e-3, atol=1e-3), (out, ref)
    print("KERNEL_OK")
</pallas_src>

<mosaic_0001>
module attributes {stable_mosaic.version = 11 : i64} {
  func.func @cnn_fused_kernel(%arg0: memref<2x49x98xf32, #tpu.memory_space<vmem>>, %arg1: memref<2x49x98xf32, #tpu.memory_space<vmem>>, %arg2: memref<4x9xf32, #tpu.memory_space<smem>>, %arg3: memref<1x4xf32, #tpu.memory_space<smem>>, %arg4: memref<1x4xf32, #tpu.memory_space<smem>>, %arg5: memref<4x48x5x95xf32, #tpu.memory_space<vmem>>, %arg6: memref<1x5xf32, #tpu.memory_space<vmem>>, %arg7: memref<2x5xf32, #tpu.memory_space<vmem>>, %arg8: memref<48x2x95xf32, #tpu.memory_space<vmem>>) attributes {dimension_semantics = [], scalar_prefetch = 0 : i64, scratch_operands = 1 : i64, tpu.core_type = #tpu.core_type<tc>} {
    %c0 = arith.constant 0 : index
    %c0_0 = arith.constant 0 : index
    %c0_1 = arith.constant 0 : index
    %0 = vector.load %arg0[%c0, %c0_0, %c0_1] : memref<2x49x98xf32, #tpu.memory_space<vmem>>, vector<2x48x96xf32>
    %c0_2 = arith.constant 0 : index
    %c0_3 = arith.constant 0 : index
    %c1 = arith.constant 1 : index
    %1 = vector.load %arg0[%c0_2, %c0_3, %c1] : memref<2x49x98xf32, #tpu.memory_space<vmem>>, vector<2x48x96xf32>
    %c0_4 = arith.constant 0 : index
    %c0_5 = arith.constant 0 : index
    %c2 = arith.constant 2 : index
    %2 = vector.load %arg0[%c0_4, %c0_5, %c2] : memref<2x49x98xf32, #tpu.memory_space<vmem>>, vector<2x48x96xf32>
    %c0_6 = arith.constant 0 : index
    %c1_7 = arith.constant 1 : index
    %c0_8 = arith.constant 0 : index
    %3 = vector.load %arg0[%c0_6, %c1_7, %c0_8] : memref<2x49x98xf32, #tpu.memory_space<vmem>>, vector<2x48x96xf32>
    %c0_9 = arith.constant 0 : index
    %c1_10 = arith.constant 1 : index
    %c1_11 = arith.constant 1 : index
    %4 = vector.load %arg0[%c0_9, %c1_10, %c1_11] : memref<2x49x98xf32, #tpu.memory_space<vmem>>, vector<2x48x96xf32>
    %c0_12 = arith.constant 0 : index
    %c1_13 = arith.constant 1 : index
    %c2_14 = arith.constant 2 : index
    %5 = vector.load %arg0[%c0_12, %c1_13, %c2_14] : memref<2x49x98xf32, #tpu.memory_space<vmem>>, vector<2x48x96xf32>
    %c0_15 = arith.constant 0 : index
    %c0_16 = arith.constant 0 : index
    %c0_17 = arith.constant 0 : index
    %6 = vector.load %arg1[%c0_15, %c0_16, %c0_17] : memref<2x49x98xf32, #tpu.memory_space<vmem>>, vector<2x48x96xf32>
    %c0_18 = arith.constant 0 : index
    %c0_19 = arith.constant 0 : index
    %c1_20 = arith.constant 1 : index
    %7 = vector.load %arg1[%c0_18, %c0_19, %c1_20] : memref<2x49x98xf32, #tpu.memory_space<vmem>>, vector<2x48x96xf32>
    %c0_21 = arith.constant 0 : index
    %c0_22 = arith.constant 0 : index
    %c2_23 = arith.constant 2 : index
    %8 = vector.load %arg1[%c0_21, %c0_22, %c2_23] : memref<2x49x98xf32, #tpu.memory_space<vmem>>, vector<2x48x96xf32>
    %c0_24 = arith.constant 0 : index
    %c1_25 = arith.constant 1 : index
    %c0_26 = arith.constant 0 : index
    %9 = vector.load %arg1[%c0_24, %c1_25, %c0_26] : memref<2x49x98xf32, #tpu.memory_space<vmem>>, vector<2x48x96xf32>
    %c0_27 = arith.constant 0 : index
    %c1_28 = arith.constant 1 : index
    %c1_29 = arith.constant 1 : index
    %10 = vector.load %arg1[%c0_27, %c1_28, %c1_29] : memref<2x49x98xf32, #tpu.memory_space<vmem>>, vector<2x48x96xf32>
    %c0_30 = arith.constant 0 : index
    %c1_31 = arith.constant 1 : index
    %c2_32 = arith.constant 2 : index
    %11 = vector.load %arg1[%c0_30, %c1_31, %c2_32] : memref<2x49x98xf32, #tpu.memory_space<vmem>>, vector<2x48x96xf32>
    %cst = arith.constant 0.000000e+00 : f32
    %12 = vector.broadcast %cst : f32 to vector<2x5xf32>
    %c0_33 = arith.constant 0 : index
    %c0_34 = arith.constant 0 : index
    %13 = memref.load %arg2[%c0_33, %c0_34] : memref<4x9xf32, #tpu.memory_space<smem>>
    %14 = vector.broadcast %13 : f32 to vector<2x48x96xf32>
    %15 = arith.mulf %14, %0 : vector<2x48x96xf32>
    %16 = vector.broadcast %13 : f32 to vector<2x48x96xf32>
    %17 = arith.mulf %16, %6 : vector<2x48x96xf32>
    %c0_35 = arith.constant 0 : index
    %c1_36 = arith.constant 1 : index
    %18 = memref.load %arg2[%c0_35, %c1_36] : memref<4x9xf32, #tpu.memory_space<smem>>
    %19 = vector.broadcast %18 : f32 to vector<2x48x96xf32>
    %20 = arith.mulf %19, %1 : vector<2x48x96xf32>
    %21 = arith.addf %15, %20 : vector<2x48x96xf32>
    %22 = vector.broadcast %18 : f32 to vector<2x48x96xf32>
    %23 = arith.mulf %22, %7 : vector<2x48x96xf32>
    %24 = arith.addf %17, %23 : vector<2x48x96xf32>
    %c0_37 = arith.constant 0 : index
    %c2_38 = arith.constant 2 : index
    %25 = memref.load %arg2[%c0_37, %c2_38] : memref<4x9xf32, #tpu.memory_space<smem>>
    %26 = vector.broadcast %25 : f32 to vector<2x48x96xf32>
    %27 = arith.mulf %26, %2 : vector<2x48x96xf32>
    %28 = arith.addf %21, %27 : vector<2x48x96xf32>
    %29 = vector.broadcast %25 : f32 to vector<2x48x96xf32>
    %30 = arith.mulf %29, %8 : vector<2x48x96xf32>
    %31 = arith.addf %24, %30 : vector<2x48x96xf32>
    %c0_39 = arith.constant 0 : index
    %c3 = arith.constant 3 : index
    %32 = memref.load %arg2[%c0_39, %c3] : memref<4x9xf32, #tpu.memory_space<smem>>
    %33 = vector.broadcast %32 : f32 to vector<2x48x96xf32>
    %34 = arith.mulf %33, %6 : vector<2x48x96xf32>
    %35 = arith.addf %28, %34 : vector<2x48x96xf32>
    %36 = vector.broadcast %32 : f32 to vector<2x48x96xf32>
    %37 = arith.mulf %36, %3 : vector<2x48x96xf32>
    %38 = arith.addf %31, %37 : vector<2x48x96xf32>
    %c0_40 = arith.constant 0 : index
    %c4 = arith.constant 4 : index
    %39 = memref.load %arg2[%c0_40, %c4] : memref<4x9xf32, #tpu.memory_space<smem>>
    %40 = vector.broadcast %39 : f32 to vector<2x48x96xf32>
    %41 = arith.mulf %40, %7 : vector<2x48x96xf32>
    %42 = arith.addf %35, %41 : vector<2x48x96xf32>
    %43 = vector.broadcast %39 : f32 to vector<2x48x96xf32>
    %44 = arith.mulf %43, %4 : vector<2x48x96xf32>
    %45 = arith.addf %38, %44 : vector<2x48x96xf32>
    %c0_41 = arith.constant 0 : index
    %c5 = arith.constant 5 : index
    %46 = memref.load %arg2[%c0_41, %c5] : memref<4x9xf32, #tpu.memory_space<smem>>
    %47 = vector.broadcast %46 : f32 to vector<2x48x96xf32>
    %48 = arith.mulf %47, %8 : vector<2x48x96xf32>
    %49 = arith.addf %42, %48 : vector<2x48x96xf32>
    %50 = vector.broadcast %46 : f32 to vector<2x48x96xf32>
    %51 = arith.mulf %50, %5 : vector<2x48x96xf32>
    %52 = arith.addf %45, %51 : vector<2x48x96xf32>
    %c0_42 = arith.constant 0 : index
    %c6 = arith.constant 6 : index
    %53 = memref.load %arg2[%c0_42, %c6] : memref<4x9xf32, #tpu.memory_space<smem>>
    %54 = vector.broadcast %53 : f32 to vector<2x48x96xf32>
    %55 = arith.mulf %54, %3 : vector<2x48x96xf32>
    %56 = arith.addf %49, %55 : vector<2x48x96xf32>
    %57 = vector.broadcast %53 : f32 to vector<2x48x96xf32>
    %58 = arith.mulf %57, %9 : vector<2x48x96xf32>
    %59 = arith.addf %52, %58 : vector<2x48x96xf32>
    %c0_43 = arith.constant 0 : index
    %c7 = arith.constant 7 : index
    %60 = memref.load %arg2[%c0_43, %c7] : memref<4x9xf32, #tpu.memory_space<smem>>
    %61 = vector.broadcast %60 : f32 to vector<2x48x96xf32>
    %62 = arith.mulf %61, %4 : vector<2x48x96xf32>
    %63 = arith.addf %56, %62 : vector<2x48x96xf32>
    %64 = vector.broadcast %60 : f32 to vector<2x48x96xf32>
    %65 = arith.mulf %64, %10 : vector<2x48x96xf32>
    %66 = arith.addf %59, %65 : vector<2x48x96xf32>
    %c0_44 = arith.constant 0 : index
    %c8 = arith.constant 8 : index
    %67 = memref.load %arg2[%c0_44, %c8] : memref<4x9xf32, #tpu.memory_space<smem>>
    %68 = vector.broadcast %67 : f32 to vector<2x48x96xf32>
    %69 = arith.mulf %68, %5 : vector<2x48x96xf32>
    %70 = arith.addf %63, %69 : vector<2x48x96xf32>
    %71 = vector.broadcast %67 : f32 to vector<2x48x96xf32>
    %72 = arith.mulf %71, %11 : vector<2x48x96xf32>
    %73 = arith.addf %66, %72 : vector<2x48x96xf32>
    %74 = arith.addf %70, %73 : vector<2x48x96xf32>
    %75 = vector.shape_cast %74 : vector<2x48x96xf32> to vector<1x2x48x96xf32>
    %cst_45 = arith.constant dense<0.000000e+00> : vector<1xf32>
    %76 = vector.multi_reduction <add>, %75, %cst_45 [1, 2, 3] : vector<1x2x48x96xf32> to vector<1xf32>
    %77 = vector.shape_cast %76 : vector<1xf32> to vector<1x1x1x1xf32>
    %78 = vector.extract %77[0, 0, 0, 0] : f32 from vector<1x1x1x1xf32>
    %79 = arith.mulf %70, %70 : vector<2x48x96xf32>
    %80 = arith.mulf %73, %73 : vector<2x48x96xf32>
    %81 = arith.addf %79, %80 : vector<2x48x96xf32>
    %82 = vector.shape_cast %81 : vector<2x48x96xf32> to vector<1x2x48x96xf32>
    %cst_46 = arith.constant dense<0.000000e+00> : vector<1xf32>
    %83 = vector.multi_reduction <add>, %82, %cst_46 [1, 2, 3] : vector<1x2x48x96xf32> to vector<1xf32>
    %84 = vector.shape_cast %83 : vector<1xf32> to vector<1x1x1x1xf32>
    %85 = vector.extract %84[0, 0, 0, 0] : f32 from vector<1x1x1x1xf32>
    %cst_47 = arith.constant 5.42534726E-5 : f32
    %86 = arith.mulf %78, %cst_47 : f32
    %cst_48 = arith.constant 5.42534726E-5 : f32
    %87 = arith.mulf %85, %cst_48 : f32
    %88 = arith.mulf %86, %86 : f32
    %89 = arith.subf %87, %88 : f32
    %c0_49 = arith.constant 0 : index
    %c0_50 = arith.constant 0 : index
    %90 = memref.load %arg3[%c0_49, %c0_50] : memref<1x4xf32, #tpu.memory_space<smem>>
    %cst_51 = arith.constant 9.99999974E-6 : f32
    %91 = arith.addf %89, %cst_51 : f32
    %92 = math.rsqrt %91 : f32
    %93 = arith.mulf %90, %92 : f32
    %c0_52 = arith.constant 0 : index
    %c0_53 = arith.constant 0 : index
    %94 = memref.load %arg4[%c0_52, %c0_53] : memref<1x4xf32, #tpu.memory_space<smem>>
    %95 = arith.mulf %86, %93 : f32
    %96 = arith.subf %94, %95 : f32
    %97 = vector.broadcast %93 : f32 to vector<2x48x96xf32>
    %98 = arith.mulf %70, %97 : vector<2x48x96xf32>
    %99 = vector.broadcast %96 : f32 to vector<2x48x96xf32>
    %100 = arith.addf %98, %99 : vector<2x48x96xf32>
    %cst_54 = arith.constant 0.000000e+00 : f32
    %101 = vector.broadcast %cst_54 : f32 to vector<2x48x96xf32>
    %102 = arith.maximumf %100, %101 : vector<2x48x96xf32>
    %103 = vector.broadcast %93 : f32 to vector<2x48x96xf32>
    %104 = arith.mulf %73, %103 : vector<2x48x96xf32>
    %105 = vector.broadcast %96 : f32 to vector<2x48x96xf32>
    %106 = arith.addf %104, %105 : vector<2x48x96xf32>
    %cst_55 = arith.constant 0.000000e+00 : f32
    %107 = vector.broadcast %cst_55 : f32 to vector<2x48x96xf32>
    %108 = arith.maximumf %106, %107 : vector<2x48x96xf32>
    %109 = arith.maximumf %102, %108 : vector<2x48x96xf32>
    %110 = vector.extract_strided_slice %109 {offsets = [0, 0, 0], sizes = [2, 48, 95], strides = [1, 1, 1]} : vector<2x48x96xf32> to vector<2x48x95xf32>
    %111 = vector.extract_strided_slice %109 {offsets = [0, 0, 1], sizes = [2, 48, 95], strides = [1, 1, 1]} : vector<2x48x96xf32> to vector<2x48x95xf32>
    %112 = arith.maximumf %110, %111 : vector<2x48x95xf32>
    %113 = vector.extract_strided_slice %112 {offsets = [0, 0, 0], sizes = [1, 48, 95], strides = [1, 1, 1]} : vector<2x48x95xf32> to vector<1x48x95xf32>
    %114 = vector.shape_cast %113 : vector<1x48x95xf32> to vector<48x95xf32>
    %115 = vector.shape_cast %114 : vector<48x95xf32> to vector<48x1x95xf32>
    %c0_56 = arith.constant 0 : index
    %c0_57 = arith.constant 0 : index
    %c0_58 = arith.constant 0 : index
    %116 = vector.load %arg8[%c0_56, %c0_57, %c0_58] : memref<48x2x95xf32, #tpu.memory_space<vmem>>, vector<48x1x95xf32>
    tpu.vector_store %arg8[%c0_56, %c0_57, %c0_58], %115 {strides = array<i32>} : memref<48x2x95xf32, #tpu.memory_space<vmem>>, vector<48x1x95xf32>,
    %117 = vector.extract_strided_slice %112 {offsets = [1, 0, 0], sizes = [1, 48, 95], strides = [1, 1, 1]} : vector<2x48x95xf32> to vector<1x48x95xf32>
    %118 = vector.shape_cast %117 : vector<1x48x95xf32> to vector<48x95xf32>
    %119 = vector.shape_cast %118 : vector<48x95xf32> to vector<48x1x95xf32>
    %c0_59 = arith.constant 0 : index
    %c1_60 = arith.constant 1 : index
    %c0_61 = arith.constant 0 : index
    %120 = vector.load %arg8[%c0_59, %c1_60, %c0_61] : memref<48x2x95xf32, #tpu.memory_space<vmem>>, vector<48x1x95xf32>
    tpu.vector_store %arg8[%c0_59, %c1_60, %c0_61], %119 {strides = array<i32>} : memref<48x2x95xf32, #tpu.memory_space<vmem>>, vector<48x1x95xf32>,
    %c0_62 = arith.constant 0 : index
    %c0_63 = arith.constant 0 : index
    %c0_64 = arith.constant 0 : index
    %121 = vector.load %arg8[%c0_62, %c0_63, %c0_64] : memref<48x2x95xf32, #tpu.memory_space<vmem>>, vector<48x2x95xf32>
    %c0_65 = arith.constant 0 : index
    %c0_66 = arith.constant 0 : index
    %c0_67 = arith.constant 0 : index
    %c0_68 = arith.constant 0 : index
    %122 = vector.load %arg5[%c0_65, %c0_66, %c0_67, %c0_68] : memref<4x48x5x95xf32, #tpu.memory_space<vmem>>, vector<1x48x5x95xf32>
    %123 = vector.shape_cast %122 : vector<1x48x5x95xf32> to vector<48x5x95xf32>
    %cst_69 = arith.constant dense<0.000000e+00> : vector<48x2x5xf32>
    %124 = tpu.matmul %121, %123, %cst_69 {dimension_numbers = #tpu.dot_dimension_numbers<[2], [2], [1], [1], [0, 0, 0, 1, 1, 1], [0], [0]>} : vector<48x2x95xf32>, vector<48x5x95xf32>, vector<48x2x5xf32> -> vector<48x2x5xf32>
    %cst_70 = arith.constant dense<0.000000e+00> : vector<2x5xf32>
    %125 = vector.multi_reduction <add>, %124, %cst_70 [0] : vector<48x2x5xf32> to vector<2x5xf32>
    %126 = arith.addf %12, %125 : vector<2x5xf32>
    %c1_71 = arith.constant 1 : index
    %c0_72 = arith.constant 0 : index
    %127 = memref.load %arg2[%c1_71, %c0_72] : memref<4x9xf32, #tpu.memory_space<smem>>
    %128 = vector.broadcast %127 : f32 to vector<2x48x96xf32>
    %129 = arith.mulf %128, %0 : vector<2x48x96xf32>
    %130 = vector.broadcast %127 : f32 to vector<2x48x96xf32>
    %131 = arith.mulf %130, %6 : vector<2x48x96xf32>
    %c1_73 = arith.constant 1 : index
    %c1_74 = arith.constant 1 : index
    %132 = memref.load %arg2[%c1_73, %c1_74] : memref<4x9xf32, #tpu.memory_space<smem>>
    %133 = vector.broadcast %132 : f32 to vector<2x48x96xf32>
    %134 = arith.mulf %133, %1 : vector<2x48x96xf32>
    %135 = arith.addf %129, %134 : vector<2x48x96xf32>
    %136 = vector.broadcast %132 : f32 to vector<2x48x96xf32>
    %137 = arith.mulf %136, %7 : vector<2x48x96xf32>
    %138 = arith.addf %131, %137 : vector<2x48x96xf32>
    %c1_75 = arith.constant 1 : index
    %c2_76 = arith.constant 2 : index
    %139 = memref.load %arg2[%c1_75, %c2_76] : memref<4x9xf32, #tpu.memory_space<smem>>
    %140 = vector.broadcast %139 : f32 to vector<2x48x96xf32>
    %141 = arith.mulf %140, %2 : vector<2x48x96xf32>
    %142 = arith.addf %135, %141 : vector<2x48x96xf32>
    %143 = vector.broadcast %139 : f32 to vector<2x48x96xf32>
    %144 = arith.mulf %143, %8 : vector<2x48x96xf32>
    %145 = arith.addf %138, %144 : vector<2x48x96xf32>
    %c1_77 = arith.constant 1 : index
    %c3_78 = arith.constant 3 : index
    %146 = memref.load %arg2[%c1_77, %c3_78] : memref<4x9xf32, #tpu.memory_space<smem>>
    %147 = vector.broadcast %146 : f32 to vector<2x48x96xf32>
    %148 = arith.mulf %147, %6 : vector<2x48x96xf32>
    %149 = arith.addf %142, %148 : vector<2x48x96xf32>
    %150 = vector.broadcast %146 : f32 to vector<2x48x96xf32>
    %151 = arith.mulf %150, %3 : vector<2x48x96xf32>
    %152 = arith.addf %145, %151 : vector<2x48x96xf32>
    %c1_79 = arith.constant 1 : index
    %c4_80 = arith.constant 4 : index
    %153 = memref.load %arg2[%c1_79, %c4_80] : memref<4x9xf32, #tpu.memory_space<smem>>
    %154 = vector.broadcast %153 : f32 to vector<2x48x96xf32>
    %155 = arith.mulf %154, %7 : vector<2x48x96xf32>
    %156 = arith.addf %149, %155 : vector<2x48x96xf32>
    %157 = vector.broadcast %153 : f32 to vector<2x48x96xf32>
    %158 = arith.mulf %157, %4 : vector<2x48x96xf32>
    %159 = arith.addf %152, %158 : vector<2x48x96xf32>
    %c1_81 = arith.constant 1 : index
    %c5_82 = arith.constant 5 : index
    %160 = memref.load %arg2[%c1_81, %c5_82] : memref<4x9xf32, #tpu.memory_space<smem>>
    %161 = vector.broadcast %160 : f32 to vector<2x48x96xf32>
    %162 = arith.mulf %161, %8 : vector<2x48x96xf32>
    %163 = arith.addf %156, %162 : vector<2x48x96xf32>
    %164 = vector.broadcast %160 : f32 to vector<2x48x96xf32>
    %165 = arith.mulf %164, %5 : vector<2x48x96xf32>
    %166 = arith.addf %159, %165 : vector<2x48x96xf32>
    %c1_83 = arith.constant 1 : index
    %c6_84 = arith.constant 6 : index
    %167 = memref.load %arg2[%c1_83, %c6_84] : memref<4x9xf32, #tpu.memory_space<smem>>
    %168 = vector.broadcast %167 : f32 to vector<2x48x96xf32>
    %169 = arith.mulf %168, %3 : vector<2x48x96xf32>
    %170 = arith.addf %163, %169 : vector<2x48x96xf32>
    %171 = vector.broadcast %167 : f32 to vector<2x48x96xf32>
    %172 = arith.mulf %171, %9 : vector<2x48x96xf32>
    %173 = arith.addf %166, %172 : vector<2x48x96xf32>
    %c1_85 = arith.constant 1 : index
    %c7_86 = arith.constant 7 : index
    %174 = memref.load %arg2[%c1_85, %c7_86] : memref<4x9xf32, #tpu.memory_space<smem>>
    %175 = vector.broadcast %174 : f32 to vector<2x48x96xf32>
    %176 = arith.mulf %175, %4 : vector<2x48x96xf32>
    %177 = arith.addf %170, %176 : vector<2x48x96xf32>
    %178 = vector.broadcast %174 : f32 to vector<2x48x96xf32>
    %179 = arith.mulf %178, %10 : vector<2x48x96xf32>
    %180 = arith.addf %173, %179 : vector<2x48x96xf32>
    %c1_87 = arith.constant 1 : index
    %c8_88 = arith.constant 8 : index
    %181 = memref.load %arg2[%c1_87, %c8_88] : memref<4x9xf32, #tpu.memory_space<smem>>
    %182 = vector.broadcast %181 : f32 to vector<2x48x96xf32>
    %183 = arith.mulf %182, %5 : vector<2x48x96xf32>
    %184 = arith.addf %177, %183 : vector<2x48x96xf32>
    %185 = vector.broadcast %181 : f32 to vector<2x48x96xf32>
    %186 = arith.mulf %185, %11 : vector<2x48x96xf32>
    %187 = arith.addf %180, %186 : vector<2x48x96xf32>
    %188 = arith.addf %184, %187 : vector<2x48x96xf32>
    %189 = vector.shape_cast %188 : vector<2x48x96xf32> to vector<1x2x48x96xf32>
    %cst_89 = arith.constant dense<0.000000e+00> : vector<1xf32>
    %190 = vector.multi_reduction <add>, %189, %cst_89 [1, 2, 3] : vector<1x2x48x96xf32> to vector<1xf32>
    %191 = vector.shape_cast %190 : vector<1xf32> to vector<1x1x1x1xf32>
    %192 = vector.extract %191[0, 0, 0, 0] : f32 from vector<1x1x1x1xf32>
    %193 = arith.mulf %184, %184 : vector<2x48x96xf32>
    %194 = arith.mulf %187, %187 : vector<2x48x96xf32>
    %195 = arith.addf %193, %194 : vector<2x48x96xf32>
    %196 = vector.shape_cast %195 : vector<2x48x96xf32> to vector<1x2x48x96xf32>
    %cst_90 = arith.constant dense<0.000000e+00> : vector<1xf32>
    %197 = vector.multi_reduction <add>, %196, %cst_90 [1, 2, 3] : vector<1x2x48x96xf32> to vector<1xf32>
    %198 = vector.shape_cast %197 : vector<1xf32> to vector<1x1x1x1xf32>
    %199 = vector.extract %198[0, 0, 0, 0] : f32 from vector<1x1x1x1xf32>
    %cst_91 = arith.constant 5.42534726E-5 : f32
    %200 = arith.mulf %192, %cst_91 : f32
    %cst_92 = arith.constant 5.42534726E-5 : f32
    %201 = arith.mulf %199, %cst_92 : f32
    %202 = arith.mulf %200, %200 : f32
    %203 = arith.subf %201, %202 : f32
    %c0_93 = arith.constant 0 : index
    %c1_94 = arith.constant 1 : index
    %204 = memref.load %arg3[%c0_93, %c1_94] : memref<1x4xf32, #tpu.memory_space<smem>>
    %cst_95 = arith.constant 9.99999974E-6 : f32
    %205 = arith.addf %203, %cst_95 : f32
    %206 = math.rsqrt %205 : f32
    %207 = arith.mulf %204, %206 : f32
    %c0_96 = arith.constant 0 : index
    %c1_97 = arith.constant 1 : index
    %208 = memref.load %arg4[%c0_96, %c1_97] : memref<1x4xf32, #tpu.memory_space<smem>>
    %209 = arith.mulf %200, %207 : f32
    %210 = arith.subf %208, %209 : f32
    %211 = vector.broadcast %207 : f32 to vector<2x48x96xf32>
    %212 = arith.mulf %184, %211 : vector<2x48x96xf32>
    %213 = vector.broadcast %210 : f32 to vector<2x48x96xf32>
    %214 = arith.addf %212, %213 : vector<2x48x96xf32>
    %cst_98 = arith.constant 0.000000e+00 : f32
    %215 = vector.broadcast %cst_98 : f32 to vector<2x48x96xf32>
    %216 = arith.maximumf %214, %215 : vector<2x48x96xf32>
    %217 = vector.broadcast %207 : f32 to vector<2x48x96xf32>
    %218 = arith.mulf %187, %217 : vector<2x48x96xf32>
    %219 = vector.broadcast %210 : f32 to vector<2x48x96xf32>
    %220 = arith.addf %218, %219 : vector<2x48x96xf32>
    %cst_99 = arith.constant 0.000000e+00 : f32
    %221 = vector.broadcast %cst_99 : f32 to vector<2x48x96xf32>
    %222 = arith.maximumf %220, %221 : vector<2x48x96xf32>
    %223 = arith.maximumf %216, %222 : vector<2x48x96xf32>
    %224 = vector.extract_strided_slice %223 {offsets = [0, 0, 0], sizes = [2, 48, 95], strides = [1, 1, 1]} : vector<2x48x96xf32> to vector<2x48x95xf32>
    %225 = vector.extract_strided_slice %223 {offsets = [0, 0, 1], sizes = [2, 48, 95], strides = [1, 1, 1]} : vector<2x48x96xf32> to vector<2x48x95xf32>
    %226 = arith.maximumf %224, %225 : vector<2x48x95xf32>
    %227 = vector.extract_strided_slice %226 {offsets = [0, 0, 0], sizes = [1, 48, 95], strides = [1, 1, 1]} : vector<2x48x95xf32> to vector<1x48x95xf32>
    %228 = vector.shape_cast %227 : vector<1x48x95xf32> to vector<48x95xf32>
    %229 = vector.shape_cast %228 : vector<48x95xf32> to vector<48x1x95xf32>
    %c0_100 = arith.constant 0 : index
    %c0_101 = arith.constant 0 : index
    %c0_102 = arith.constant 0 : index
    %230 = vector.load %arg8[%c0_100, %c0_101, %c0_102] : memref<48x2x95xf32, #tpu.memory_space<vmem>>, vector<48x1x95xf32>
    tpu.vector_store %arg8[%c0_100, %c0_101, %c0_102], %229 {strides = array<i32>} : memref<48x2x95xf32, #tpu.memory_space<vmem>>, vector<48x1x95xf32>,
    %231 = vector.extract_strided_slice %226 {offsets = [1, 0, 0], sizes = [1, 48, 95], strides = [1, 1, 1]} : vector<2x48x95xf32> to vector<1x48x95xf32>
    %232 = vector.shape_cast %231 : vector<1x48x95xf32> to vector<48x95xf32>
    %233 = vector.shape_cast %232 : vector<48x95xf32> to vector<48x1x95xf32>
    %c0_103 = arith.constant 0 : index
    %c1_104 = arith.constant 1 : index
    %c0_105 = arith.constant 0 : index
    %234 = vector.load %arg8[%c0_103, %c1_104, %c0_105] : memref<48x2x95xf32, #tpu.memory_space<vmem>>, vector<48x1x95xf32>
    tpu.vector_store %arg8[%c0_103, %c1_104, %c0_105], %233 {strides = array<i32>} : memref<48x2x95xf32, #tpu.memory_space<vmem>>, vector<48x1x95xf32>,
    %c0_106 = arith.constant 0 : index
    %c0_107 = arith.constant 0 : index
    %c0_108 = arith.constant 0 : index
    %235 = vector.load %arg8[%c0_106, %c0_107, %c0_108] : memref<48x2x95xf32, #tpu.memory_space<vmem>>, vector<48x2x95xf32>
    %c1_109 = arith.constant 1 : index
    %c0_110 = arith.constant 0 : index
    %c0_111 = arith.constant 0 : index
    %c0_112 = arith.constant 0 : index
    %236 = vector.load %arg5[%c1_109, %c0_110, %c0_111, %c0_112] : memref<4x48x5x95xf32, #tpu.memory_space<vmem>>, vector<1x48x5x95xf32>
    %237 = vector.shape_cast %236 : vector<1x48x5x95xf32> to vector<48x5x95xf32>
    %cst_113 = arith.constant dense<0.000000e+00> : vector<48x2x5xf32>
    %238 = tpu.matmul %235, %237, %cst_113 {dimension_numbers = #tpu.dot_dimension_numbers<[2], [2], [1], [1], [0, 0, 0, 1, 1, 1], [0], [0]>} : vector<48x2x95xf32>, vector<48x5x95xf32>, vector<48x2x5xf32> -> vector<48x2x5xf32>
    %cst_114 = arith.constant dense<0.000000e+00> : vector<2x5xf32>
    %239 = vector.multi_reduction <add>, %238, %cst_114 [0] : vector<48x2x5xf32> to vector<2x5xf32>
    %240 = arith.addf %126, %239 : vector<2x5xf32>
    %c2_115 = arith.constant 2 : index
    %c0_116 = arith.constant 0 : index
    %241 = memref.load %arg2[%c2_115, %c0_116] : memref<4x9xf32, #tpu.memory_space<smem>>
    %242 = vector.broadcast %241 : f32 to vector<2x48x96xf32>
    %243 = arith.mulf %242, %0 : vector<2x48x96xf32>
    %244 = vector.broadcast %241 : f32 to vector<2x48x96xf32>
    %245 = arith.mulf %244, %6 : vector<2x48x96xf32>
    %c2_117 = arith.constant 2 : index
    %c1_118 = arith.constant 1 : index
    %246 = memref.load %arg2[%c2_117, %c1_118] : memref<4x9xf32, #tpu.memory_space<smem>>
    %247 = vector.broadcast %246 : f32 to vector<2x48x96xf32>
    %248 = arith.mulf %247, %1 : vector<2x48x96xf32>
    %249 = arith.addf %243, %248 : vector<2x48x96xf32>
    %250 = vector.broadcast %246 : f32 to vector<2x48x96xf32>
    %251 = arith.mulf %250, %7 : vector<2x48x96xf32>
    %252 = arith.addf %245, %251 : vector<2x48x96xf32>
    %c2_119 = arith.constant 2 : index
    %c2_120 = arith.constant 2 : index
    %253 = memref.load %arg2[%c2_119, %c2_120] : memref<4x9xf32, #tpu.memory_space<smem>>
    %254 = vector.broadcast %253 : f32 to vector<2x48x96xf32>
    %255 = arith.mulf %254, %2 : vector<2x48x96xf32>
    %256 = arith.addf %249, %255 : vector<2x48x96xf32>
    %257 = vector.broadcast %253 : f32 to vector<2x48x96xf32>
    %258 = arith.mulf %257, %8 : vector<2x48x96xf32>
    %259 = arith.addf %252, %258 : vector<2x48x96xf32>
    %c2_121 = arith.constant 2 : index
    %c3_122 = arith.constant 3 : index
    %260 = memref.load %arg2[%c2_121, %c3_122] : memref<4x9xf32, #tpu.memory_space<smem>>
    %261 = vector.broadcast %260 : f32 to vector<2x48x96xf32>
    %262 = arith.mulf %261, %6 : vector<2x48x96xf32>
    %263 = arith.addf %256, %262 : vector<2x48x96xf32>
    %264 = vector.broadcast %260 : f32 to vector<2x48x96xf32>
    %265 = arith.mulf %264, %3 : vector<2x48x96xf32>
    %266 = arith.addf %259, %265 : vector<2x48x96xf32>
    %c2_123 = arith.constant 2 : index
    %c4_124 = arith.constant 4 : index
    %267 = memref.load %arg2[%c2_123, %c4_124] : memref<4x9xf32, #tpu.memory_space<smem>>
    %268 = vector.broadcast %267 : f32 to vector<2x48x96xf32>
    %269 = arith.mulf %268, %7 : vector<2x48x96xf32>
    %270 = arith.addf %263, %269 : vector<2x48x96xf32>
    %271 = vector.broadcast %267 : f32 to vector<2x48x96xf32>
    %272 = arith.mulf %271, %4 : vector<2x48x96xf32>
    %273 = arith.addf %266, %272 : vector<2x48x96xf32>
    %c2_125 = arith.constant 2 : index
    %c5_126 = arith.constant 5 : index
    %274 = memref.load %arg2[%c2_125, %c5_126] : memref<4x9xf32, #tpu.memory_space<smem>>
    %275 = vector.broadcast %274 : f32 to vector<2x48x96xf32>
    %276 = arith.mulf %275, %8 : vector<2x48x96xf32>
    %277 = arith.addf %270, %276 : vector<2x48x96xf32>
    %278 = vector.broadcast %274 : f32 to vector<2x48x96xf32>
    %279 = arith.mulf %278, %5 : vector<2x48x96xf32>
    %280 = arith.addf %273, %279 : vector<2x48x96xf32>
    %c2_127 = arith.constant 2 : index
    %c6_128 = arith.constant 6 : index
    %281 = memref.load %arg2[%c2_127, %c6_128] : memref<4x9xf32, #tpu.memory_space<smem>>
    %282 = vector.broadcast %281 : f32 to vector<2x48x96xf32>
    %283 = arith.mulf %282, %3 : vector<2x48x96xf32>
    %284 = arith.addf %277, %283 : vector<2x48x96xf32>
    %285 = vector.broadcast %281 : f32 to vector<2x48x96xf32>
    %286 = arith.mulf %285, %9 : vector<2x48x96xf32>
    %287 = arith.addf %280, %286 : vector<2x48x96xf32>
    %c2_129 = arith.constant 2 : index
    %c7_130 = arith.constant 7 : index
    %288 = memref.load %arg2[%c2_129, %c7_130] : memref<4x9xf32, #tpu.memory_space<smem>>
    %289 = vector.broadcast %288 : f32 to vector<2x48x96xf32>
    %290 = arith.mulf %289, %4 : vector<2x48x96xf32>
    %291 = arith.addf %284, %290 : vector<2x48x96xf32>
    %292 = vector.broadcast %288 : f32 to vector<2x48x96xf32>
    %293 = arith.mulf %292, %10 : vector<2x48x96xf32>
    %294 = arith.addf %287, %293 : vector<2x48x96xf32>
    %c2_131 = arith.constant 2 : index
    %c8_132 = arith.constant 8 : index
    %295 = memref.load %arg2[%c2_131, %c8_132] : memref<4x9xf32, #tpu.memory_space<smem>>
    %296 = vector.broadcast %295 : f32 to vector<2x48x96xf32>
    %297 = arith.mulf %296, %5 : vector<2x48x96xf32>
    %298 = arith.addf %291, %297 : vector<2x48x96xf32>
    %299 = vector.broadcast %295 : f32 to vector<2x48x96xf32>
    %300 = arith.mulf %299, %11 : vector<2x48x96xf32>
    %301 = arith.addf %294, %300 : vector<2x48x96xf32>
    %302 = arith.addf %298, %301 : vector<2x48x96xf32>
    %303 = vector.shape_cast %302 : vector<2x48x96xf32> to vector<1x2x48x96xf32>
    %cst_133 = arith.constant dense<0.000000e+00> : vector<1xf32>
    %304 = vector.multi_reduction <add>, %303, %cst_133 [1, 2, 3] : vector<1x2x48x96xf32> to vector<1xf32>
    %305 = vector.shape_cast %304 : vector<1xf32> to vector<1x1x1x1xf32>
    %306 = vector.extract %305[0, 0, 0, 0] : f32 from vector<1x1x1x1xf32>
    %307 = arith.mulf %298, %298 : vector<2x48x96xf32>
    %308 = arith.mulf %301, %301 : vector<2x48x96xf32>
    %309 = arith.addf %307, %308 : vector<2x48x96xf32>
    %310 = vector.shape_cast %309 : vector<2x48x96xf32> to vector<1x2x48x96xf32>
    %cst_134 = arith.constant dense<0.000000e+00> : vector<1xf32>
    %311 = vector.multi_reduction <add>, %310, %cst_134 [1, 2, 3] : vector<1x2x48x96xf32> to vector<1xf32>
    %312 = vector.shape_cast %311 : vector<1xf32> to vector<1x1x1x1xf32>
    %313 = vector.extract %312[0, 0, 0, 0] : f32 from vector<1x1x1x1xf32>
    %cst_135 = arith.constant 5.42534726E-5 : f32
    %314 = arith.mulf %306, %cst_135 : f32
    %cst_136 = arith.constant 5.42534726E-5 : f32
    %315 = arith.mulf %313, %cst_136 : f32
    %316 = arith.mulf %314, %314 : f32
    %317 = arith.subf %315, %316 : f32
    %c0_137 = arith.constant 0 : index
    %c2_138 = arith.constant 2 : index
    %318 = memref.load %arg3[%c0_137, %c2_138] : memref<1x4xf32, #tpu.memory_space<smem>>
    %cst_139 = arith.constant 9.99999974E-6 : f32
    %319 = arith.addf %317, %cst_139 : f32
    %320 = math.rsqrt %319 : f32
    %321 = arith.mulf %318, %320 : f32
    %c0_140 = arith.constant 0 : index
    %c2_141 = arith.constant 2 : index
    %322 = memref.load %arg4[%c0_140, %c2_141] : memref<1x4xf32, #tpu.memory_space<smem>>
    %323 = arith.mulf %314, %321 : f32
    %324 = arith.subf %322, %323 : f32
    %325 = vector.broadcast %321 : f32 to vector<2x48x96xf32>
    %326 = arith.mulf %298, %325 : vector<2x48x96xf32>
    %327 = vector.broadcast %324 : f32 to vector<2x48x96xf32>
    %328 = arith.addf %326, %327 : vector<2x48x96xf32>
    %cst_142 = arith.constant 0.000000e+00 : f32
    %329 = vector.broadcast %cst_142 : f32 to vector<2x48x96xf32>
    %330 = arith.maximumf %328, %329 : vector<2x48x96xf32>
    %331 = vector.broadcast %321 : f32 to vector<2x48x96xf32>
    %332 = arith.mulf %301, %331 : vector<2x48x96xf32>
    %333 = vector.broadcast %324 : f32 to vector<2x48x96xf32>
    %334 = arith.addf %332, %333 : vector<2x48x96xf32>
    %cst_143 = arith.constant 0.000000e+00 : f32
    %335 = vector.broadcast %cst_143 : f32 to vector<2x48x96xf32>
    %336 = arith.maximumf %334, %335 : vector<2x48x96xf32>
    %337 = arith.maximumf %330, %336 : vector<2x48x96xf32>
    %338 = vector.extract_strided_slice %337 {offsets = [0, 0, 0], sizes = [2, 48, 95], strides = [1, 1, 1]} : vector<2x48x96xf32> to vector<2x48x95xf32>
    %339 = vector.extract_strided_slice %337 {offsets = [0, 0, 1], sizes = [2, 48, 95], strides = [1, 1, 1]} : vector<2x48x96xf32> to vector<2x48x95xf32>
    %340 = arith.maximumf %338, %339 : vector<2x48x95xf32>
    %341 = vector.extract_strided_slice %340 {offsets = [0, 0, 0], sizes = [1, 48, 95], strides = [1, 1, 1]} : vector<2x48x95xf32> to vector<1x48x95xf32>
    %342 = vector.shape_cast %341 : vector<1x48x95xf32> to vector<48x95xf32>
    %343 = vector.shape_cast %342 : vector<48x95xf32> to vector<48x1x95xf32>
    %c0_144 = arith.constant 0 : index
    %c0_145 = arith.constant 0 : index
    %c0_146 = arith.constant 0 : index
    %344 = vector.load %arg8[%c0_144, %c0_145, %c0_146] : memref<48x2x95xf32, #tpu.memory_space<vmem>>, vector<48x1x95xf32>
    tpu.vector_store %arg8[%c0_144, %c0_145, %c0_146], %343 {strides = array<i32>} : memref<48x2x95xf32, #tpu.memory_space<vmem>>, vector<48x1x95xf32>,
    %345 = vector.extract_strided_slice %340 {offsets = [1, 0, 0], sizes = [1, 48, 95], strides = [1, 1, 1]} : vector<2x48x95xf32> to vector<1x48x95xf32>
    %346 = vector.shape_cast %345 : vector<1x48x95xf32> to vector<48x95xf32>
    %347 = vector.shape_cast %346 : vector<48x95xf32> to vector<48x1x95xf32>
    %c0_147 = arith.constant 0 : index
    %c1_148 = arith.constant 1 : index
    %c0_149 = arith.constant 0 : index
    %348 = vector.load %arg8[%c0_147, %c1_148, %c0_149] : memref<48x2x95xf32, #tpu.memory_space<vmem>>, vector<48x1x95xf32>
    tpu.vector_store %arg8[%c0_147, %c1_148, %c0_149], %347 {strides = array<i32>} : memref<48x2x95xf32, #tpu.memory_space<vmem>>, vector<48x1x95xf32>,
    %c0_150 = arith.constant 0 : index
    %c0_151 = arith.constant 0 : index
    %c0_152 = arith.constant 0 : index
    %349 = vector.load %arg8[%c0_150, %c0_151, %c0_152] : memref<48x2x95xf32, #tpu.memory_space<vmem>>, vector<48x2x95xf32>
    %c2_153 = arith.constant 2 : index
    %c0_154 = arith.constant 0 : index
    %c0_155 = arith.constant 0 : index
    %c0_156 = arith.constant 0 : index
    %350 = vector.load %arg5[%c2_153, %c0_154, %c0_155, %c0_156] : memref<4x48x5x95xf32, #tpu.memory_space<vmem>>, vector<1x48x5x95xf32>
    %351 = vector.shape_cast %350 : vector<1x48x5x95xf32> to vector<48x5x95xf32>
    %cst_157 = arith.constant dense<0.000000e+00> : vector<48x2x5xf32>
    %352 = tpu.matmul %349, %351, %cst_157 {dimension_numbers = #tpu.dot_dimension_numbers<[2], [2], [1], [1], [0, 0, 0, 1, 1, 1], [0], [0]>} : vector<48x2x95xf32>, vector<48x5x95xf32>, vector<48x2x5xf32> -> vector<48x2x5xf32>
    %cst_158 = arith.constant dense<0.000000e+00> : vector<2x5xf32>
    %353 = vector.multi_reduction <add>, %352, %cst_158 [0] : vector<48x2x5xf32> to vector<2x5xf32>
    %354 = arith.addf %240, %353 : vector<2x5xf32>
    %c3_159 = arith.constant 3 : index
    %c0_160 = arith.constant 0 : index
    %355 = memref.load %arg2[%c3_159, %c0_160] : memref<4x9xf32, #tpu.memory_space<smem>>
    %356 = vector.broadcast %355 : f32 to vector<2x48x96xf32>
    %357 = arith.mulf %356, %0 : vector<2x48x96xf32>
    %358 = vector.broadcast %355 : f32 to vector<2x48x96xf32>
    %359 = arith.mulf %358, %6 : vector<2x48x96xf32>
    %c3_161 = arith.constant 3 : index
    %c1_162 = arith.constant 1 : index
    %360 = memref.load %arg2[%c3_161, %c1_162] : memref<4x9xf32, #tpu.memory_space<smem>>
    %361 = vector.broadcast %360 : f32 to vector<2x48x96xf32>
    %362 = arith.mulf %361, %1 : vector<2x48x96xf32>
    %363 = arith.addf %357, %362 : vector<2x48x96xf32>
    %364 = vector.broadcast %360 : f32 to vector<2x48x96xf32>
    %365 = arith.mulf %364, %7 : vector<2x48x96xf32>
    %366 = arith.addf %359, %365 : vector<2x48x96xf32>
    %c3_163 = arith.constant 3 : index
    %c2_164 = arith.constant 2 : index
    %367 = memref.load %arg2[%c3_163, %c2_164] : memref<4x9xf32, #tpu.memory_space<smem>>
    %368 = vector.broadcast %367 : f32 to vector<2x48x96xf32>
    %369 = arith.mulf %368, %2 : vector<2x48x96xf32>
    %370 = arith.addf %363, %369 : vector<2x48x96xf32>
    %371 = vector.broadcast %367 : f32 to vector<2x48x96xf32>
    %372 = arith.mulf %371, %8 : vector<2x48x96xf32>
    %373 = arith.addf %366, %372 : vector<2x48x96xf32>
    %c3_165 = arith.constant 3 : index
    %c3_166 = arith.constant 3 : index
    %374 = memref.load %arg2[%c3_165, %c3_166] : memref<4x9xf32, #tpu.memory_space<smem>>
    %375 = vector.broadcast %374 : f32 to vector<2x48x96xf32>
    %376 = arith.mulf %375, %6 : vector<2x48x96xf32>
    %377 = arith.addf %370, %376 : vector<2x48x96xf32>
    %378 = vector.broadcast %374 : f32 to vector<2x48x96xf32>
    %379 = arith.mulf %378, %3 : vector<2x48x96xf32>
    %380 = arith.addf %373, %379 : vector<2x48x96xf32>
    %c3_167 = arith.constant 3 : index
    %c4_168 = arith.constant 4 : index
    %381 = memref.load %arg2[%c3_167, %c4_168] : memref<4x9xf32, #tpu.memory_space<smem>>
    %382 = vector.broadcast %381 : f32 to vector<2x48x96xf32>
    %383 = arith.mulf %382, %7 : vector<2x48x96xf32>
    %384 = arith.addf %377, %383 : vector<2x48x96xf32>
    %385 = vector.broadcast %381 : f32 to vector<2x48x96xf32>
    %386 = arith.mulf %385, %4 : vector<2x48x96xf32>
    %387 = arith.addf %380, %386 : vector<2x48x96xf32>
    %c3_169 = arith.constant 3 : index
    %c5_170 = arith.constant 5 : index
    %388 = memref.load %arg2[%c3_169, %c5_170] : memref<4x9xf32, #tpu.memory_space<smem>>
    %389 = vector.broadcast %388 : f32 to vector<2x48x96xf32>
    %390 = arith.mulf %389, %8 : vector<2x48x96xf32>
    %391 = arith.addf %384, %390 : vector<2x48x96xf32>
    %392 = vector.broadcast %388 : f32 to vector<2x48x96xf32>
    %393 = arith.mulf %392, %5 : vector<2x48x96xf32>
    %394 = arith.addf %387, %393 : vector<2x48x96xf32>
    %c3_171 = arith.constant 3 : index
    %c6_172 = arith.constant 6 : index
    %395 = memref.load %arg2[%c3_171, %c6_172] : memref<4x9xf32, #tpu.memory_space<smem>>
    %396 = vector.broadcast %395 : f32 to vector<2x48x96xf32>
    %397 = arith.mulf %396, %3 : vector<2x48x96xf32>
    %398 = arith.addf %391, %397 : vector<2x48x96xf32>
    %399 = vector.broadcast %395 : f32 to vector<2x48x96xf32>
    %400 = arith.mulf %399, %9 : vector<2x48x96xf32>
    %401 = arith.addf %394, %400 : vector<2x48x96xf32>
    %c3_173 = arith.constant 3 : index
    %c7_174 = arith.constant 7 : index
    %402 = memref.load %arg2[%c3_173, %c7_174] : memref<4x9xf32, #tpu.memory_space<smem>>
    %403 = vector.broadcast %402 : f32 to vector<2x48x96xf32>
    %404 = arith.mulf %403, %4 : vector<2x48x96xf32>
    %405 = arith.addf %398, %404 : vector<2x48x96xf32>
    %406 = vector.broadcast %402 : f32 to vector<2x48x96xf32>
    %407 = arith.mulf %406, %10 : vector<2x48x96xf32>
    %408 = arith.addf %401, %407 : vector<2x48x96xf32>
    %c3_175 = arith.constant 3 : index
    %c8_176 = arith.constant 8 : index
    %409 = memref.load %arg2[%c3_175, %c8_176] : memref<4x9xf32, #tpu.memory_space<smem>>
    %410 = vector.broadcast %409 : f32 to vector<2x48x96xf32>
    %411 = arith.mulf %410, %5 : vector<2x48x96xf32>
    %412 = arith.addf %405, %411 : vector<2x48x96xf32>
    %413 = vector.broadcast %409 : f32 to vector<2x48x96xf32>
    %414 = arith.mulf %413, %11 : vector<2x48x96xf32>
    %415 = arith.addf %408, %414 : vector<2x48x96xf32>
    %416 = arith.addf %412, %415 : vector<2x48x96xf32>
    %417 = vector.shape_cast %416 : vector<2x48x96xf32> to vector<1x2x48x96xf32>
    %cst_177 = arith.constant dense<0.000000e+00> : vector<1xf32>
    %418 = vector.multi_reduction <add>, %417, %cst_177 [1, 2, 3] : vector<1x2x48x96xf32> to vector<1xf32>
    %419 = vector.shape_cast %418 : vector<1xf32> to vector<1x1x1x1xf32>
    %420 = vector.extract %419[0, 0, 0, 0] : f32 from vector<1x1x1x1xf32>
    %421 = arith.mulf %412, %412 : vector<2x48x96xf32>
    %422 = arith.mulf %415, %415 : vector<2x48x96xf32>
    %423 = arith.addf %421, %422 : vector<2x48x96xf32>
    %424 = vector.shape_cast %423 : vector<2x48x96xf32> to vector<1x2x48x96xf32>
    %cst_178 = arith.constant dense<0.000000e+00> : vector<1xf32>
    %425 = vector.multi_reduction <add>, %424, %cst_178 [1, 2, 3] : vector<1x2x48x96xf32> to vector<1xf32>
    %426 = vector.shape_cast %425 : vector<1xf32> to vector<1x1x1x1xf32>
    %427 = vector.extract %426[0, 0, 0, 0] : f32 from vector<1x1x1x1xf32>
    %cst_179 = arith.constant 5.42534726E-5 : f32
    %428 = arith.mulf %420, %cst_179 : f32
    %cst_180 = arith.constant 5.42534726E-5 : f32
    %429 = arith.mulf %427, %cst_180 : f32
    %430 = arith.mulf %428, %428 : f32
    %431 = arith.subf %429, %430 : f32
    %c0_181 = arith.constant 0 : index
    %c3_182 = arith.constant 3 : index
    %432 = memref.load %arg3[%c0_181, %c3_182] : memref<1x4xf32, #tpu.memory_space<smem>>
    %cst_183 = arith.constant 9.99999974E-6 : f32
    %433 = arith.addf %431, %cst_183 : f32
    %434 = math.rsqrt %433 : f32
    %435 = arith.mulf %432, %434 : f32
    %c0_184 = arith.constant 0 : index
    %c3_185 = arith.constant 3 : index
    %436 = memref.load %arg4[%c0_184, %c3_185] : memref<1x4xf32, #tpu.memory_space<smem>>
    %437 = arith.mulf %428, %435 : f32
    %438 = arith.subf %436, %437 : f32
    %439 = vector.broadcast %435 : f32 to vector<2x48x96xf32>
    %440 = arith.mulf %412, %439 : vector<2x48x96xf32>
    %441 = vector.broadcast %438 : f32 to vector<2x48x96xf32>
    %442 = arith.addf %440, %441 : vector<2x48x96xf32>
    %cst_186 = arith.constant 0.000000e+00 : f32
    %443 = vector.broadcast %cst_186 : f32 to vector<2x48x96xf32>
    %444 = arith.maximumf %442, %443 : vector<2x48x96xf32>
    %445 = vector.broadcast %435 : f32 to vector<2x48x96xf32>
    %446 = arith.mulf %415, %445 : vector<2x48x96xf32>
    %447 = vector.broadcast %438 : f32 to vector<2x48x96xf32>
    %448 = arith.addf %446, %447 : vector<2x48x96xf32>
    %cst_187 = arith.constant 0.000000e+00 : f32
    %449 = vector.broadcast %cst_187 : f32 to vector<2x48x96xf32>
    %450 = arith.maximumf %448, %449 : vector<2x48x96xf32>
    %451 = arith.maximumf %444, %450 : vector<2x48x96xf32>
    %452 = vector.extract_strided_slice %451 {offsets = [0, 0, 0], sizes = [2, 48, 95], strides = [1, 1, 1]} : vector<2x48x96xf32> to vector<2x48x95xf32>
    %453 = vector.extract_strided_slice %451 {offsets = [0, 0, 1], sizes = [2, 48, 95], strides = [1, 1, 1]} : vector<2x48x96xf32> to vector<2x48x95xf32>
    %454 = arith.maximumf %452, %453 : vector<2x48x95xf32>
    %455 = vector.extract_strided_slice %454 {offsets = [0, 0, 0], sizes = [1, 48, 95], strides = [1, 1, 1]} : vector<2x48x95xf32> to vector<1x48x95xf32>
    %456 = vector.shape_cast %455 : vector<1x48x95xf32> to vector<48x95xf32>
    %457 = vector.shape_cast %456 : vector<48x95xf32> to vector<48x1x95xf32>
    %c0_188 = arith.constant 0 : index
    %c0_189 = arith.constant 0 : index
    %c0_190 = arith.constant 0 : index
    %458 = vector.load %arg8[%c0_188, %c0_189, %c0_190] : memref<48x2x95xf32, #tpu.memory_space<vmem>>, vector<48x1x95xf32>
    tpu.vector_store %arg8[%c0_188, %c0_189, %c0_190], %457 {strides = array<i32>} : memref<48x2x95xf32, #tpu.memory_space<vmem>>, vector<48x1x95xf32>,
    %459 = vector.extract_strided_slice %454 {offsets = [1, 0, 0], sizes = [1, 48, 95], strides = [1, 1, 1]} : vector<2x48x95xf32> to vector<1x48x95xf32>
    %460 = vector.shape_cast %459 : vector<1x48x95xf32> to vector<48x95xf32>
    %461 = vector.shape_cast %460 : vector<48x95xf32> to vector<48x1x95xf32>
    %c0_191 = arith.constant 0 : index
    %c1_192 = arith.constant 1 : index
    %c0_193 = arith.constant 0 : index
    %462 = vector.load %arg8[%c0_191, %c1_192, %c0_193] : memref<48x2x95xf32, #tpu.memory_space<vmem>>, vector<48x1x95xf32>
    tpu.vector_store %arg8[%c0_191, %c1_192, %c0_193], %461 {strides = array<i32>} : memref<48x2x95xf32, #tpu.memory_space<vmem>>, vector<48x1x95xf32>,
    %c0_194 = arith.constant 0 : index
    %c0_195 = arith.constant 0 : index
    %c0_196 = arith.constant 0 : index
    %463 = vector.load %arg8[%c0_194, %c0_195, %c0_196] : memref<48x2x95xf32, #tpu.memory_space<vmem>>, vector<48x2x95xf32>
    %c3_197 = arith.constant 3 : index
    %c0_198 = arith.constant 0 : index
    %c0_199 = arith.constant 0 : index
    %c0_200 = arith.constant 0 : index
    %464 = vector.load %arg5[%c3_197, %c0_198, %c0_199, %c0_200] : memref<4x48x5x95xf32, #tpu.memory_space<vmem>>, vector<1x48x5x95xf32>
    %465 = vector.shape_cast %464 : vector<1x48x5x95xf32> to vector<48x5x95xf32>
    %cst_201 = arith.constant dense<0.000000e+00> : vector<48x2x5xf32>
    %466 = tpu.matmul %463, %465, %cst_201 {dimension_numbers = #tpu.dot_dimension_numbers<[2], [2], [1], [1], [0, 0, 0, 1, 1, 1], [0], [0]>} : vector<48x2x95xf32>, vector<48x5x95xf32>, vector<48x2x5xf32> -> vector<48x2x5xf32>
    %cst_202 = arith.constant dense<0.000000e+00> : vector<2x5xf32>
    %467 = vector.multi_reduction <add>, %466, %cst_202 [0] : vector<48x2x5xf32> to vector<2x5xf32>
    %468 = arith.addf %354, %467 : vector<2x5xf32>
    %c0_203 = arith.constant 0 : index
    %c0_204 = arith.constant 0 : index
    %469 = vector.load %arg6[%c0_203, %c0_204] : memref<1x5xf32, #tpu.memory_space<vmem>>, vector<1x5xf32>
    %470 = vector.broadcast %469 : vector<1x5xf32> to vector<2x5xf32>
    %471 = arith.addf %468, %470 : vector<2x5xf32>
    %c0_205 = arith.constant 0 : index
    %c0_206 = arith.constant 0 : index
    %472 = vector.load %arg7[%c0_205, %c0_206] : memref<2x5xf32, #tpu.memory_space<vmem>>, vector<2x5xf32>
    tpu.vector_store %arg7[%c0_205, %c0_206], %471 {strides = array<i32>} : memref<2x5xf32, #tpu.memory_space<vmem>>, vector<2x5xf32>,
    return
  }
}

</mosaic_0001>

<llo_original>
// kernel: cnn_forward.1
$region0: #{cnn_forward.1}
  #allocation0 [shape = 'u32[]', space=smem, size = 0x4, offset = 0x4, fixed_abs, tag = 'smem constant byte address 0x4 - core index']
  #allocation1 [shape = 'u32[72,128]{1,0:T(1,128)}', space=vmem, size = 0x9000, scoped, tag = 'internal scratch']
  #allocation2 [shape = 'f32[48,2,95]{2,1,0:T(2,128)}', space=vmem, size = 0xc000, scoped, tag = 'scratch operand']
  %s0 = inlined_call_operand.vmem [shape: f32[2,49,98], index: 0, kind: input, shape index: {}]
  %s1 = inlined_call_operand.vmem [shape: f32[2,49,98], index: 1, kind: input, shape index: {}]
  %s2 = inlined_call_operand.vmem [shape: f32[4,9], index: 2, kind: input, shape index: {}]
  %s3 = inlined_call_operand.vmem [shape: f32[1,4], index: 3, kind: input, shape index: {}]
  %s4 = inlined_call_operand.vmem [shape: f32[1,4], index: 4, kind: input, shape index: {}]
  %s5 = inlined_call_operand.vmem [shape: f32[4,48,5,95], index: 5, kind: input, shape index: {}]
  %s6 = inlined_call_operand.vmem [shape: f32[1,5], index: 6, kind: input, shape index: {}]
  %s7 = inlined_call_operand.hbm [shape: f32[2,5], index: 7, kind: output, shape index: {}]
  %s8 = sld [smem:[#allocation0]]
  $region50: #{cnn_forward.1} parent=0
    _
  %s10 = ssub.s32 1, %s8
  %s11 = scalar_select 0, %s10, %s8
  $region1: #{cnn_forward.1} parent=0
    #allocation3 [shape = 'u8[2048]{0}', space=smem, size = 0x800, scoped, tag = 'input window, operand 2, single buffered']
    #allocation4 [shape = 's32[1]{0}', space=sflag, size = 0x4, scoped, tag = 'scoped memory for cnn_forward.1']
    #allocation5 [shape = 's32[1]{0}', space=sflag, size = 0x4, scoped, tag = 'scoped memory for cnn_forward.1']
    #allocation6 [shape = 'u8[512]{0}', space=smem, size = 0x200, scoped, tag = 'input window, operand 3, single buffered']
    #allocation7 [shape = 's32[1]{0}', space=sflag, size = 0x4, scoped, tag = 'scoped memory for cnn_forward.1']
    #allocation8 [shape = 'u8[512]{0}', space=smem, size = 0x200, scoped, tag = 'input window, operand 4, single buffered']
    #allocation9 [shape = 'u8[1024]{0}', space=vmem, size = 0x400, scoped, tag = 'output window, operand 0, single buffered']
    %12 = vsyncpa [#allocation5], 0
    %13 = vsyncpa [#allocation7], 0
    %14 = vsyncpa [#allocation4], 0
    // Predicated region
    $region2: #{cnn_forward.1} parent=1 // pred_check
      _
    $region3: #{cnn_forward.1} parent=1 // pred_check_branch
      %16 = sbr.rel (0) target = $region5
    $region4: #{cnn_forward.1} parent=1 // pred_region
      _
    $region5: #{cnn_forward.1} parent=1 // pred_fallthru
      _
    // Predicated region
    $region6: #{cnn_forward.1} parent=1 // pred_check
      _
    $region7: #{cnn_forward.1} parent=1 // pred_check_branch
      %18 = sbr.rel (0) target = $region9
    $region8: #{cnn_forward.1} parent=1 // pred_region
      _
    $region9: #{cnn_forward.1} parent=1 // pred_fallthru
      _
    // Predicated region
    $region10: #{cnn_forward.1} parent=1 // pred_check
      _
    $region11: #{cnn_forward.1} parent=1 // pred_check_branch
      %20 = sbr.rel (0) target = $region13
    $region12: #{cnn_forward.1} parent=1 // pred_region
      %22 = vsyncadd [#allocation5], 0
      %s24 = sshll.u32 %s2, 4
      %s25 = int_to_ptr.vmem [resolvable:$true] %s24
      %27 = dma.vmem_to_smem %s25, 64, [#allocation3], [#allocation5]
    $region13: #{cnn_forward.1} parent=1 // pred_fallthru
      _
    // Predicated region
    $region14: #{cnn_forward.1} parent=1 // pred_check
      _
    $region15: #{cnn_forward.1} parent=1 // pred_check_branch
      %29 = sbr.rel (0) target = $region17
    $region16: #{cnn_forward.1} parent=1 // pred_region
      %31 = vsyncadd [#allocation7], 0
      %s33 = sshll.u32 %s3, 4
      %s34 = int_to_ptr.vmem [resolvable:$true] %s33
      %36 = dma.vmem_to_smem %s34, 16, [#allocation6], [#allocation7]
    $region17: #{cnn_forward.1} parent=1 // pred_fallthru
      _
    // Predicated region
    $region18: #{cnn_forward.1} parent=1 // pred_check
      _
    $region19: #{cnn_forward.1} parent=1 // pred_check_branch
      %38 = sbr.rel (0) target = $region21
    $region20: #{cnn_forward.1} parent=1 // pred_region
      %40 = vsyncadd [#allocation7], 0
      %s42 = sshll.u32 %s4, 4
      %s43 = int_to_ptr.vmem [resolvable:$true] %s42
      %45 = dma.vmem_to_smem %s43, 16, [#allocation8], [#allocation7]
    $region21: #{cnn_forward.1} parent=1 // pred_fallthru
      _
    // Predicated region
    $region22: #{cnn_forward.1} parent=1 // pred_check
      _
    $region23: #{cnn_forward.1} parent=1 // pred_check_branch
      %47 = sbr.rel (0) target = $region25
    $region24: #{cnn_forward.1} parent=1 // pred_region
      _
    $region25: #{cnn_forward.1} parent=1 // pred_fallthru
      _
    // Predicated region
    $region26: #{cnn_forward.1} parent=1 // pred_check
      _
    $region27: #{cnn_forward.1} parent=1 // pred_check_branch
      %49 = sbr.rel (0) target = $region29
    $region28: #{cnn_forward.1} parent=1 // pred_region
      _
    $region29: #{cnn_forward.1} parent=1 // pred_fallthru
      _
    // Predicated region
    $region30: #{cnn_forward.1} parent=1 // pred_check
      _
    $region31: #{cnn_forward.1} parent=1 // pred_check_branch
      %51 = sbr.rel (0) target = $region33
    $region32: #{cnn_forward.1} parent=1 // pred_region
      %53 = dma.done [#allocation5], 64
    $region33: #{cnn_forward.1} parent=1 // pred_fallthru
      _
    // Predicated region
    $region34: #{cnn_forward.1} parent=1 // pred_check
      _
    $region35: #{cnn_forward.1} parent=1 // pred_check_branch
      %55 = sbr.rel (0) target = $region37
    $region36: #{cnn_forward.1} parent=1 // pred_region
      %57 = dma.done [#allocation7], 16
    $region37: #{cnn_forward.1} parent=1 // pred_fallthru
      _
    // Predicated region
    $region38: #{cnn_forward.1} parent=1 // pred_check
      _
    $region39: #{cnn_forward.1} parent=1 // pred_check_branch
      %59 = sbr.rel (0) target = $region41
    $region40: #{cnn_forward.1} parent=1 // pred_region
      %61 = dma.done [#allocation7], 16
    $region41: #{cnn_forward.1} parent=1 // pred_fallthru
      _
    %62 = sfence
    %v63 = vld [vmem:[%s0] sm:$0xff]
    %v64 = vld [vmem:[%s0 + $0x8] sm:$0xff]
    %v65 = vld [vmem:[%s0 + $0x10] sm:$0xff]
    %v66 = vld [vmem:[%s0 + $0x18] sm:$0xff]
    %v67 = vld [vmem:[%s0 + $0x20] sm:$0xff]
    %v68 = vld [vmem:[%s0 + $0x28] sm:$0xff]
    %v69 = vld [vmem:[%s0 + $0x38] sm:$0xff]
    %v70 = vld [vmem:[%s0 + $0x40] sm:$0xff]
    %v71 = vld [vmem:[%s0 + $0x48] sm:$0xff]
    %v72 = vld [vmem:[%s0 + $0x50] sm:$0xff]
    %v73 = vld [vmem:[%s0 + $0x58] sm:$0xff]
    %v74 = vld [vmem:[%s0 + $0x60] sm:$0xff]
    %v75 = vld [vmem:[%s0 + $0x1] sm:$0xff]
    %v76 = vld [vmem:[%s0 + $0x9] sm:$0xff]
    %v77 = vld [vmem:[%s0 + $0x11] sm:$0xff]
    %v78 = vld [vmem:[%s0 + $0x19] sm:$0xff]
    %v79 = vld [vmem:[%s0 + $0x21] sm:$0xff]
    %v80 = vld [vmem:[%s0 + $0x29] sm:$0xff]
    %v81 = vld [vmem:[%s0 + $0x39] sm:$0xff]
    %v82 = vld [vmem:[%s0 + $0x41] sm:$0xff]
    %v83 = vld [vmem:[%s0 + $0x49] sm:$0xff]
    %v84 = vld [vmem:[%s0 + $0x51] sm:$0xff]
    %v85 = vld [vmem:[%s0 + $0x59] sm:$0xff]
    %v86 = vld [vmem:[%s0 + $0x61] sm:$0xff]
    %v87 = vld [vmem:[%s1] sm:$0xff]
    %v88 = vld [vmem:[%s1 + $0x8] sm:$0xff]
    %v89 = vld [vmem:[%s1 + $0x10] sm:$0xff]
    %v90 = vld [vmem:[%s1 + $0x18] sm:$0xff]
    %v91 = vld [vmem:[%s1 + $0x20] sm:$0xff]
    %v92 = vld [vmem:[%s1 + $0x28] sm:$0xff]
    %v93 = vld [vmem:[%s1 + $0x38] sm:$0xff]
    %v94 = vld [vmem:[%s1 + $0x40] sm:$0xff]
    %v95 = vld [vmem:[%s1 + $0x48] sm:$0xff]
    %v96 = vld [vmem:[%s1 + $0x50] sm:$0xff]
    %v97 = vld [vmem:[%s1 + $0x58] sm:$0xff]
    %v98 = vld [vmem:[%s1 + $0x60] sm:$0xff]
    %v99 = vld [vmem:[%s1 + $0x1] sm:$0xff]
    %v100 = vld [vmem:[%s1 + $0x9] sm:$0xff]
    %v101 = vld [vmem:[%s1 + $0x11] sm:$0xff]
    %v102 = vld [vmem:[%s1 + $0x19] sm:$0xff]
    %v103 = vld [vmem:[%s1 + $0x21] sm:$0xff]
    %v104 = vld [vmem:[%s1 + $0x29] sm:$0xff]
    %v105 = vld [vmem:[%s1 + $0x39] sm:$0xff]
    %v106 = vld [vmem:[%s1 + $0x41] sm:$0xff]
    %v107 = vld [vmem:[%s1 + $0x49] sm:$0xff]
    %v108 = vld [vmem:[%s1 + $0x51] sm:$0xff]
    %v109 = vld [vmem:[%s1 + $0x59] sm:$0xff]
    %v110 = vld [vmem:[%s1 + $0x61] sm:$0xff]
    %s111 = sld [smem:[#allocation3]]
    %v112 = vstv %s111
    %v113 = vmul.f32 %v112, %v63
    %v114 = vmul.f32 %v112, %v64
    %v115 = vmul.f32 %v112, %v65
    %v116 = vmul.f32 %v112, %v66
    %v117 = vmul.f32 %v112, %v67
    %v118 = vmul.f32 %v112, %v68
    %v119 = vmul.f32 %v112, %v69
    %v120 = vmul.f32 %v112, %v70
    %v121 = vmul.f32 %v112, %v71
    %v122 = vmul.f32 %v112, %v72
    %v123 = vmul.f32 %v112, %v73
    %v124 = vmul.f32 %v112, %v74
    %v125 = vmul.f32 %v112, %v87
    %v126 = vmul.f32 %v112, %v88
    %v127 = vmul.f32 %v112, %v89
    %v128 = vmul.f32 %v112, %v90
    %v129 = vmul.f32 %v112, %v91
    %v130 = vmul.f32 %v112, %v92
    %v131 = vmul.f32 %v112, %v93
    %v132 = vmul.f32 %v112, %v94
    %v133 = vmul.f32 %v112, %v95
    %v134 = vmul.f32 %v112, %v96
    %v135 = vmul.f32 %v112, %v97
    %v136 = vmul.f32 %v112, %v98
    %s137 = sld [smem:[#allocation3 + $0x1]]
    %v138 = vstv %s137
    %v139 = vmul.f32 %v138, %v63
    %v140 = vmul.f32 %v138, %v64
    %v141 = vmul.f32 %v138, %v65
    %v142 = vmul.f32 %v138, %v66
    %v143 = vmul.f32 %v138, %v67
    %v144 = vmul.f32 %v138, %v68
    %v145 = vmul.f32 %v138, %v69
    %v146 = vmul.f32 %v138, %v70
    %v147 = vmul.f32 %v138, %v71
    %v148 = vmul.f32 %v138, %v72
    %v149 = vmul.f32 %v138, %v73
    %v150 = vmul.f32 %v138, %v74
    %163 = vrot.lane.b32.xlu0 %v139, 127
    %v164 = vpop.permute.xlu0 %163
    %165 = vrot.lane.b32.xlu0 %v140, 127
    %v166 = vpop.permute.xlu0 %165
    %167 = vrot.lane.b32.xlu0 %v141, 127
    %v168 = vpop.permute.xlu0 %167
    %169 = vrot.lane.b32.xlu0 %v142, 127
    %v170 = vpop.permute.xlu0 %169
    %171 = vrot.lane.b32.xlu0 %v143, 127
    %v172 = vpop.permute.xlu0 %171
    %173 = vrot.lane.b32.xlu0 %v144, 127
    %v174 = vpop.permute.xlu0 %173
    %175 = vrot.lane.b32.xlu0 %v145, 127
    %v176 = vpop.permute.xlu0 %175
    %177 = vrot.lane.b32.xlu0 %v146, 127
    %v178 = vpop.permute.xlu0 %177
    %179 = vrot.lane.b32.xlu0 %v147, 127
    %v180 = vpop.permute.xlu0 %179
    %181 = vrot.lane.b32.xlu0 %v148, 127
    %v182 = vpop.permute.xlu0 %181
    %183 = vrot.lane.b32.xlu0 %v149, 127
    %v184 = vpop.permute.xlu0 %183
    %185 = vrot.lane.b32.xlu0 %v150, 127
    %v186 = vpop.permute.xlu0 %185
    %v199 = vadd.f32 %v113, %v164
    %v200 = vadd.f32 %v114, %v166
    %v201 = vadd.f32 %v115, %v168
    %v202 = vadd.f32 %v116, %v170
    %v203 = vadd.f32 %v117, %v172
    %v204 = vadd.f32 %v118, %v174
    %v205 = vadd.f32 %v119, %v176
    %v206 = vadd.f32 %v120, %v178
    %v207 = vadd.f32 %v121, %v180
    %v208 = vadd.f32 %v122, %v182
    %v209 = vadd.f32 %v123, %v184
    %v210 = vadd.f32 %v124, %v186
    %v211 = vmul.f32 %v138, %v87
    %v212 = vmul.f32 %v138, %v88
    %v213 = vmul.f32 %v138, %v89
    %v214 = vmul.f32 %v138, %v90
    %v215 = vmul.f32 %v138, %v91
    %v216 = vmul.f32 %v138, %v92
    %v217 = vmul.f32 %v138, %v93
    %v218 = vmul.f32 %v138, %v94
    %v219 = vmul.f32 %v138, %v95
    %v220 = vmul.f32 %v138, %v96
    %v221 = vmul.f32 %v138, %v97
    %v222 = vmul.f32 %v138, %v98
    %235 = vrot.lane.b32.xlu0 %v211, 127
    %v236 = vpop.permute.xlu0 %235
    %237 = vrot.lane.b32.xlu0 %v212, 127
    %v238 = vpop.permute.xlu0 %237
    %239 = vrot.lane.b32.xlu0 %v213, 127
    %v240 = vpop.permute.xlu0 %239
    %241 = vrot.lane.b32.xlu0 %v214, 127
    %v242 = vpop.permute.xlu0 %241
    %243 = vrot.lane.b32.xlu0 %v215, 127
    %v244 = vpop.permute.xlu0 %243
    %245 = vrot.lane.b32.xlu0 %v216, 127
    %v246 = vpop.permute.xlu0 %245
    %247 = vrot.lane.b32.xlu0 %v217, 127
    %v248 = vpop.permute.xlu0 %247
    %249 = vrot.lane.b32.xlu0 %v218, 127
    %v250 = vpop.permute.xlu0 %249
    %251 = vrot.lane.b32.xlu0 %v219, 127
    %v252 = vpop.permute.xlu0 %251
    %253 = vrot.lane.b32.xlu0 %v220, 127
    %v254 = vpop.permute.xlu0 %253
    %255 = vrot.lane.b32.xlu0 %v221, 127
    %v256 = vpop.permute.xlu0 %255
    %257 = vrot.lane.b32.xlu0 %v222, 127
    %v258 = vpop.permute.xlu0 %257
    %v271 = vadd.f32 %v125, %v236
    %v272 = vadd.f32 %v126, %v238
    %v273 = vadd.f32 %v127, %v240
    %v274 = vadd.f32 %v128, %v242
    %v275 = vadd.f32 %v129, %v244
    %v276 = vadd.f32 %v130, %v246
    %v277 = vadd.f32 %v131, %v248
    %v278 = vadd.f32 %v132, %v250
    %v279 = vadd.f32 %v133, %v252
    %v280 = vadd.f32 %v134, %v254
    %v281 = vadd.f32 %v135, %v256
    %v282 = vadd.f32 %v136, %v258
    %s283 = sld [smem:[#allocation3 + $0x2]]
    %v284 = vstv %s283
    %v285 = vmul.f32 %v284, %v63
    %v286 = vmul.f32 %v284, %v64
    %v287 = vmul.f32 %v284, %v65
    %v288 = vmul.f32 %v284, %v66
    %v289 = vmul.f32 %v284, %v67
    %v290 = vmul.f32 %v284, %v68
    %v291 = vmul.f32 %v284, %v69
    %v292 = vmul.f32 %v284, %v70
    %v293 = vmul.f32 %v284, %v71
    %v294 = vmul.f32 %v284, %v72
    %v295 = vmul.f32 %v284, %v73
    %v296 = vmul.f32 %v284, %v74
    %309 = vrot.lane.b32.xlu0 %v285, 126
    %v310 = vpop.permute.xlu0 %309
    %311 = vrot.lane.b32.xlu0 %v286, 126
    %v312 = vpop.permute.xlu0 %311
    %313 = vrot.lane.b32.xlu0 %v287, 126
    %v314 = vpop.permute.xlu0 %313
    %315 = vrot.lane.b32.xlu0 %v288, 126
    %v316 = vpop.permute.xlu0 %315
    %317 = vrot.lane.b32.xlu0 %v289, 126
    %v318 = vpop.permute.xlu0 %317
    %319 = vrot.lane.b32.xlu0 %v290, 126
    %v320 = vpop.permute.xlu0 %319
    %321 = vrot.lane.b32.xlu0 %v291, 126
    %v322 = vpop.permute.xlu0 %321
    %323 = vrot.lane.b32.xlu0 %v292, 126
    %v324 = vpop.permute.xlu0 %323
    %325 = vrot.lane.b32.xlu0 %v293, 126
    %v326 = vpop.permute.xlu0 %325
    %327 = vrot.lane.b32.xlu0 %v294, 126
    %v328 = vpop.permute.xlu0 %327
    %329 = vrot.lane.b32.xlu0 %v295, 126
    %v330 = vpop.permute.xlu0 %329
    %331 = vrot.lane.b32.xlu0 %v296, 126
    %v332 = vpop.permute.xlu0 %331
    %v345 = vadd.f32 %v199, %v310
    %v346 = vadd.f32 %v200, %v312
    %v347 = vadd.f32 %v201, %v314
    %v348 = vadd.f32 %v202, %v316
    %v349 = vadd.f32 %v203, %v318
    %v350 = vadd.f32 %v204, %v320
    %v351 = vadd.f32 %v205, %v322
    %v352 = vadd.f32 %v206, %v324
    %v353 = vadd.f32 %v207, %v326
    %v354 = vadd.f32 %v208, %v328
    %v355 = vadd.f32 %v209, %v330
    %v356 = vadd.f32 %v210, %v332
    %v357 = vmul.f32 %v284, %v87
    %v358 = vmul.f32 %v284, %v88
    %v359 = vmul.f32 %v284, %v89
    %v360 = vmul.f32 %v284, %v90
    %v361 = vmul.f32 %v284, %v91
    %v362 = vmul.f32 %v284, %v92
    %v363 = vmul.f32 %v284, %v93
    %v364 = vmul.f32 %v284, %v94
    %v365 = vmul.f32 %v284, %v95
    %v366 = vmul.f32 %v284, %v96
    %v367 = vmul.f32 %v284, %v97
    %v368 = vmul.f32 %v284, %v98
    %381 = vrot.lane.b32.xlu0 %v357, 126
    %v382 = vpop.permute.xlu0 %381
    %383 = vrot.lane.b32.xlu0 %v358, 126
    %v384 = vpop.permute.xlu0 %383
    %385 = vrot.lane.b32.xlu0 %v359, 126
    %v386 = vpop.permute.xlu0 %385
    %387 = vrot.lane.b32.xlu0 %v360, 126
    %v388 = vpop.permute.xlu0 %387
    %389 = vrot.lane.b32.xlu0 %v361, 126
    %v390 = vpop.permute.xlu0 %389
    %391 = vrot.lane.b32.xlu0 %v362, 126
    %v392 = vpop.permute.xlu0 %391
    %393 = vrot.lane.b32.xlu0 %v363, 126
    %v394 = vpop.permute.xlu0 %393
    %395 = vrot.lane.b32.xlu0 %v364, 126
    %v396 = vpop.permute.xlu0 %395
    %397 = vrot.lane.b32.xlu0 %v365, 126
    %v398 = vpop.permute.xlu0 %397
    %399 = vrot.lane.b32.xlu0 %v366, 126
    %v400 = vpop.permute.xlu0 %399
    %401 = vrot.lane.b32.xlu0 %v367, 126
    %v402 = vpop.permute.xlu0 %401
    %403 = vrot.lane.b32.xlu0 %v368, 126
    %v404 = vpop.permute.xlu0 %403
    %v417 = vadd.f32 %v271, %v382
    %v418 = vadd.f32 %v272, %v384
    %v419 = vadd.f32 %v273, %v386
    %v420 = vadd.f32 %v274, %v388
    %v421 = vadd.f32 %v275, %v390
    %v422 = vadd.f32 %v276, %v392
    %v423 = vadd.f32 %v277, %v394
    %v424 = vadd.f32 %v278, %v396
    %v425 = vadd.f32 %v279, %v398
    %v426 = vadd.f32 %v280, %v400
    %v427 = vadd.f32 %v281, %v402
    %v428 = vadd.f32 %v282, %v404
    %s429 = sld [smem:[#allocation3 + $0x3]]
    %v430 = vstv %s429
    %v431 = vmul.f32 %v430, %v87
    %v432 = vmul.f32 %v430, %v88
    %v433 = vmul.f32 %v430, %v89
    %v434 = vmul.f32 %v430, %v90
    %v435 = vmul.f32 %v430, %v91
    %v436 = vmul.f32 %v430, %v92
    %v437 = vmul.f32 %v430, %v93
    %v438 = vmul.f32 %v430, %v94
    %v439 = vmul.f32 %v430, %v95
    %v440 = vmul.f32 %v430, %v96
    %v441 = vmul.f32 %v430, %v97
    %v442 = vmul.f32 %v430, %v98
    %v443 = vadd.f32 %v345, %v431
    %v444 = vadd.f32 %v346, %v432
    %v445 = vadd.f32 %v347, %v433
    %v446 = vadd.f32 %v348, %v434
    %v447 = vadd.f32 %v349, %v435
    %v448 = vadd.f32 %v350, %v436
    %v449 = vadd.f32 %v351, %v437
    %v450 = vadd.f32 %v352, %v438
    %v451 = vadd.f32 %v353, %v439
    %v452 = vadd.f32 %v354, %v440
    %v453 = vadd.f32 %v355, %v441
    %v454 = vadd.f32 %v356, %v442
    %v455 = vmul.f32 %v430, %v75
    %v456 = vmul.f32 %v430, %v76
    %v457 = vmul.f32 %v430, %v77
    %v458 = vmul.f32 %v430, %v78
    %v459 = vmul.f32 %v430, %v79
    %v460 = vmul.f32 %v430, %v80
    %v461 = vmul.f32 %v430, %v81
    %v462 = vmul.f32 %v430, %v82
    %v463 = vmul.f32 %v430, %v83
    %v464 = vmul.f32 %v430, %v84
    %v465 = vmul.f32 %v430, %v85
    %v466 = vmul.f32 %v430, %v86
    %v467 = vadd.f32 %v417, %v455
    %v468 = vadd.f32 %v418, %v456
    %v469 = vadd.f32 %v419, %v457
    %v470 = vadd.f32 %v420, %v458
    %v471 = vadd.f32 %v421, %v459
    %v472 = vadd.f32 %v422, %v460
    %v473 = vadd.f32 %v423, %v461
    %v474 = vadd.f32 %v424, %v462
    %v475 = vadd.f32 %v425, %v463
    %v476 = vadd.f32 %v426, %v464
    %v477 = vadd.f32 %v427, %v465
    %v478 = vadd.f32 %v428, %v466
    %s479 = sld [smem:[#allocation3 + $0x4]]
    %v480 = vstv %s479
    %v481 = vmul.f32 %v480, %v87
    %v482 = vmul.f32 %v480, %v88
    %v483 = vmul.f32 %v480, %v89
    %v484 = vmul.f32 %v480, %v90
    %v485 = vmul.f32 %v480, %v91
    %v486 = vmul.f32 %v480, %v92
    %v487 = vmul.f32 %v480, %v93
    %v488 = vmul.f32 %v480, %v94
    %v489 = vmul.f32 %v480, %v95
    %v490 = vmul.f32 %v480, %v96
    %v491 = vmul.f32 %v480, %v97
    %v492 = vmul.f32 %v480, %v98
    %505 = vrot.lane.b32.xlu0 %v481, 127
    %v506 = vpop.permute.xlu0 %505
    %507 = vrot.lane.b32.xlu0 %v482, 127
    %v508 = vpop.permute.xlu0 %507
    %509 = vrot.lane.b32.xlu0 %v483, 127
    %v510 = vpop.permute.xlu0 %509
    %511 = vrot.lane.b32.xlu0 %v484, 127
    %v512 = vpop.permute.xlu0 %511
    %513 = vrot.lane.b32.xlu0 %v485, 127
    %v514 = vpop.permute.xlu0 %513
    %515 = vrot.lane.b32.xlu0 %v486, 127
    %v516 = vpop.permute.xlu0 %515
    %517 = vrot.lane.b32.xlu0 %v487, 127
    %v518 = vpop.permute.xlu0 %517
    %519 = vrot.lane.b32.xlu0 %v488, 127
    %v520 = vpop.permute.xlu0 %519
    %521 = vrot.lane.b32.xlu0 %v489, 127
    %v522 = vpop.permute.xlu0 %521
    %523 = vrot.lane.b32.xlu0 %v490, 127
    %v524 = vpop.permute.xlu0 %523
    %525 = vrot.lane.b32.xlu0 %v491, 127
    %v526 = vpop.permute.xlu0 %525
    %527 = vrot.lane.b32.xlu0 %v492, 127
    %v528 = vpop.permute.xlu0 %527
    %v541 = vadd.f32 %v443, %v506
    %v542 = vadd.f32 %v444, %v508
    %v543 = vadd.f32 %v445, %v510
    %v544 = vadd.f32 %v446, %v512
    %v545 = vadd.f32 %v447, %v514
    %v546 = vadd.f32 %v448, %v516
    %v547 = vadd.f32 %v449, %v518
    %v548 = vadd.f32 %v450, %v520
    %v549 = vadd.f32 %v451, %v522
    %v550 = vadd.f32 %v452, %v524
    %v551 = vadd.f32 %v453, %v526
    %v552 = vadd.f32 %v454, %v528
    %v553 = vmul.f32 %v480, %v75
    %v554 = vmul.f32 %v480, %v76
    %v555 = vmul.f32 %v480, %v77
    %v556 = vmul.f32 %v480, %v78
    %v557 = vmul.f32 %v480, %v79
    %v558 = vmul.f32 %v480, %v80
    %v559 = vmul.f32 %v480, %v81
    %v560 = vmul.f32 %v480, %v82
    %v561 = vmul.f32 %v480, %v83
    %v562 = vmul.f32 %v480, %v84
    %v563 = vmul.f32 %v480, %v85
    %v564 = vmul.f32 %v480, %v86
    %577 = vrot.lane.b32.xlu0 %v553, 127
    %v578 = vpop.permute.xlu0 %577
    %579 = vrot.lane.b32.xlu0 %v554, 127
    %v580 = vpop.permute.xlu0 %579
    %581 = vrot.lane.b32.xlu0 %v555, 127
    %v582 = vpop.permute.xlu0 %581
    %583 = vrot.lane.b32.xlu0 %v556, 127
    %v584 = vpop.permute.xlu0 %583
    %585 = vrot.lane.b32.xlu0 %v557, 127
    %v586 = vpop.permute.xlu0 %585
    %587 = vrot.lane.b32.xlu0 %v558, 127
    %v588 = vpop.permute.xlu0 %587
    %589 = vrot.lane.b32.xlu0 %v559, 127
    %v590 = vpop.permute.xlu0 %589
    %591 = vrot.lane.b32.xlu0 %v560, 127
    %v592 = vpop.permute.xlu0 %591
    %593 = vrot.lane.b32.xlu0 %v561, 127
    %v594 = vpop.permute.xlu0 %593
    %595 = vrot.lane.b32.xlu0 %v562, 127
    %v596 = vpop.permute.xlu0 %595
    %597 = vrot.lane.b32.xlu0 %v563, 127
    %v598 = vpop.permute.xlu0 %597
    %599 = vrot.lane.b32.xlu0 %v564, 127
    %v600 = vpop.permute.xlu0 %599
    %v613 = vadd.f32 %v467, %v578
    %v614 = vadd.f32 %v468, %v580
    %v615 = vadd.f32 %v469, %v582
    %v616 = vadd.f32 %v470, %v584
    %v617 = vadd.f32 %v471, %v586
    %v618 = vadd.f32 %v472, %v588
    %v619 = vadd.f32 %v473, %v590
    %v620 = vadd.f32 %v474, %v592
    %v621 = vadd.f32 %v475, %v594
    %v622 = vadd.f32 %v476, %v596
    %v623 = vadd.f32 %v477, %v598
    %v624 = vadd.f32 %v478, %v600
    %s625 = sld [smem:[#allocation3 + $0x5]]
    %v626 = vstv %s625
    %v627 = vmul.f32 %v626, %v87
    %v628 = vmul.f32 %v626, %v88
    %v629 = vmul.f32 %v626, %v89
    %v630 = vmul.f32 %v626, %v90
    %v631 = vmul.f32 %v626, %v91
    %v632 = vmul.f32 %v626, %v92
    %v633 = vmul.f32 %v626, %v93
    %v634 = vmul.f32 %v626, %v94
    %v635 = vmul.f32 %v626, %v95
    %v636 = vmul.f32 %v626, %v96
    %v637 = vmul.f32 %v626, %v97
    %v638 = vmul.f32 %v626, %v98
    %651 = vrot.lane.b32.xlu0 %v627, 126
    %v652 = vpop.permute.xlu0 %651
    %653 = vrot.lane.b32.xlu0 %v628, 126
    %v654 = vpop.permute.xlu0 %653
    %655 = vrot.lane.b32.xlu0 %v629, 126
    %v656 = vpop.permute.xlu0 %655
    %657 = vrot.lane.b32.xlu0 %v630, 126
    %v658 = vpop.permute.xlu0 %657
    %659 = vrot.lane.b32.xlu0 %v631, 126
    %v660 = vpop.permute.xlu0 %659
    %661 = vrot.lane.b32.xlu0 %v632, 126
    %v662 = vpop.permute.xlu0 %661
    %663 = vrot.lane.b32.xlu0 %v633, 126
    %v664 = vpop.permute.xlu0 %663
    %665 = vrot.lane.b32.xlu0 %v634, 126
    %v666 = vpop.permute.xlu0 %665
    %667 = vrot.lane.b32.xlu0 %v635, 126
    %v668 = vpop.permute.xlu0 %667
    %669 = vrot.lane.b32.xlu0 %v636, 126
    %v670 = vpop.permute.xlu0 %669
    %671 = vrot.lane.b32.xlu0 %v637, 126
    %v672 = vpop.permute.xlu0 %671
    %673 = vrot.lane.b32.xlu0 %v638, 126
    %v674 = vpop.permute.xlu0 %673
    %v687 = vadd.f32 %v541, %v652
    %v688 = vadd.f32 %v542, %v654
    %v689 = vadd.f32 %v543, %v656
    %v690 = vadd.f32 %v544, %v658
    %v691 = vadd.f32 %v545, %v660
    %v692 = vadd.f32 %v546, %v662
    %v693 = vadd.f32 %v547, %v664
    %v694 = vadd.f32 %v548, %v666
    %v695 = vadd.f32 %v549, %v668
    %v696 = vadd.f32 %v550, %v670
    %v697 = vadd.f32 %v551, %v672
    %v698 = vadd.f32 %v552, %v674
    %v699 = vmul.f32 %v626, %v75
    %v700 = vmul.f32 %v626, %v76
    %v701 = vmul.f32 %v626, %v77
    %v702 = vmul.f32 %v626, %v78
    %v703 = vmul.f32 %v626, %v79
    %v704 = vmul.f32 %v626, %v80
    %v705 = vmul.f32 %v626, %v81
    %v706 = vmul.f32 %v626, %v82
    %v707 = vmul.f32 %v626, %v83
    %v708 = vmul.f32 %v626, %v84
    %v709 = vmul.f32 %v626, %v85
    %v710 = vmul.f32 %v626, %v86
    %723 = vrot.lane.b32.xlu0 %v699, 126
    %v724 = vpop.permute.xlu0 %723
    %725 = vrot.lane.b32.xlu0 %v700, 126
    %v726 = vpop.permute.xlu0 %725
    %727 = vrot.lane.b32.xlu0 %v701, 126
    %v728 = vpop.permute.xlu0 %727
    %729 = vrot.lane.b32.xlu0 %v702, 126
    %v730 = vpop.permute.xlu0 %729
    %731 = vrot.lane.b32.xlu0 %v703, 126
    %v732 = vpop.permute.xlu0 %731
    %733 = vrot.lane.b32.xlu0 %v704, 126
    %v734 = vpop.permute.xlu0 %733
    %735 = vrot.lane.b32.xlu0 %v705, 126
    %v736 = vpop.permute.xlu0 %735
    %737 = vrot.lane.b32.xlu0 %v706, 126
    %v738 = vpop.permute.xlu0 %737
    %739 = vrot.lane.b32.xlu0 %v707, 126
    %v740 = vpop.permute.xlu0 %739
    %741 = vrot.lane.b32.xlu0 %v708, 126
    %v742 = vpop.permute.xlu0 %741
    %743 = vrot.lane.b32.xlu0 %v709, 126
    %v744 = vpop.permute.xlu0 %743
    %745 = vrot.lane.b32.xlu0 %v710, 126
    %v746 = vpop.permute.xlu0 %745
    %v759 = vadd.f32 %v613, %v724
    %v760 = vadd.f32 %v614, %v726
    %v761 = vadd.f32 %v615, %v728
    %v762 = vadd.f32 %v616, %v730
    %v763 = vadd.f32 %v617, %v732
    %v764 = vadd.f32 %v618, %v734
    %v765 = vadd.f32 %v619, %v736
    %v766 = vadd.f32 %v620, %v738
    %v767 = vadd.f32 %v621, %v740
    %v768 = vadd.f32 %v622, %v742
    %v769 = vadd.f32 %v623, %v744
    %v770 = vadd.f32 %v624, %v746
    %s771 = sld [smem:[#allocation3 + $0x6]]
    %v772 = vstv %s771
    %v773 = vmul.f32 %v772, %v75
    %v774 = vmul.f32 %v772, %v76
    %v775 = vmul.f32 %v772, %v77
    %v776 = vmul.f32 %v772, %v78
    %v777 = vmul.f32 %v772, %v79
    %v778 = vmul.f32 %v772, %v80
    %v779 = vmul.f32 %v772, %v81
    %v780 = vmul.f32 %v772, %v82
    %v781 = vmul.f32 %v772, %v83
    %v782 = vmul.f32 %v772, %v84
    %v783 = vmul.f32 %v772, %v85
    %v784 = vmul.f32 %v772, %v86
    %v785 = vadd.f32 %v687, %v773
    %v786 = vadd.f32 %v688, %v774
    %v787 = vadd.f32 %v689, %v775
    %v788 = vadd.f32 %v690, %v776
    %v789 = vadd.f32 %v691, %v777
    %v790 = vadd.f32 %v692, %v778
    %v791 = vadd.f32 %v693, %v779
    %v792 = vadd.f32 %v694, %v780
    %v793 = vadd.f32 %v695, %v781
    %v794 = vadd.f32 %v696, %v782
    %v795 = vadd.f32 %v697, %v783
    %v796 = vadd.f32 %v698, %v784
    %v797 = vmul.f32 %v772, %v99
    %v798 = vmul.f32 %v772, %v100
    %v799 = vmul.f32 %v772, %v101
    %v800 = vmul.f32 %v772, %v102
    %v801 = vmul.f32 %v772, %v103
    %v802 = vmul.f32 %v772, %v104
    %v803 = vmul.f32 %v772, %v105
    %v804 = vmul.f32 %v772, %v106
    %v805 = vmul.f32 %v772, %v107
    %v806 = vmul.f32 %v772, %v108
    %v807 = vmul.f32 %v772, %v109
    %v808 = vmul.f32 %v772, %v110
    %v809 = vadd.f32 %v759, %v797
    %v810 = vadd.f32 %v760, %v798
    %v811 = vadd.f32 %v761, %v799
    %v812 = vadd.f32 %v762, %v800
    %v813 = vadd.f32 %v763, %v801
    %v814 = vadd.f32 %v764, %v802
    %v815 = vadd.f32 %v765, %v803
    %v816 = vadd.f32 %v766, %v804
    %v817 = vadd.f32 %v767, %v805
    %v818 = vadd.f32 %v768, %v806
    %v819 = vadd.f32 %v769, %v807
    %v820 = vadd.f32 %v770, %v808
    %s821 = sld [smem:[#allocation3 + $0x7]]
    %v822 = vstv %s821
    %v823 = vmul.f32 %v822, %v75
    %v824 = vmul.f32 %v822, %v76
    %v825 = vmul.f32 %v822, %v77
    %v826 = vmul.f32 %v822, %v78
    %v827 = vmul.f32 %v822, %v79
    %v828 = vmul.f32 %v822, %v80
    %v829 = vmul.f32 %v822, %v81
    %v830 = vmul.f32 %v822, %v82
    %v831 = vmul.f32 %v822, %v83
    %v832 = vmul.f32 %v822, %v84
    %v833 = vmul.f32 %v822, %v85
    %v834 = vmul.f32 %v822, %v86
    %847 = vrot.lane.b32.xlu0 %v823, 127
    %v848 = vpop.permute.xlu0 %847
    %849 = vrot.lane.b32.xlu0 %v824, 127
    %v850 = vpop.permute.xlu0 %849
    %851 = vrot.lane.b32.xlu0 %v825, 127
    %v852 = vpop.permute.xlu0 %851
    %853 = vrot.lane.b32.xlu0 %v826, 127
    %v854 = vpop.permute.xlu0 %853
    %855 = vrot.lane.b32.xlu0 %v827, 127
    %v856 = vpop.permute.xlu0 %855
    %857 = vrot.lane.b32.xlu0 %v828, 127
    %v858 = vpop.permute.xlu0 %857
    %859 = vrot.lane.b32.xlu0 %v829, 127
    %v860 = vpop.permute.xlu0 %859
    %861 = vrot.lane.b32.xlu0 %v830, 127
    %v862 = vpop.permute.xlu0 %861
    %863 = vrot.lane.b32.xlu0 %v831, 127
    %v864 = vpop.permute.xlu0 %863
    %865 = vrot.lane.b32.xlu0 %v832, 127
    %v866 = vpop.permute.xlu0 %865
    %867 = vrot.lane.b32.xlu0 %v833, 127
    %v868 = vpop.permute.xlu0 %867
    %869 = vrot.lane.b32.xlu0 %v834, 127
    %v870 = vpop.permute.xlu0 %869
    %v883 = vadd.f32 %v785, %v848
    %v884 = vadd.f32 %v786, %v850
    %v885 = vadd.f32 %v787, %v852
    %v886 = vadd.f32 %v788, %v854
    %v887 = vadd.f32 %v789, %v856
    %v888 = vadd.f32 %v790, %v858
    %v889 = vadd.f32 %v791, %v860
    %v890 = vadd.f32 %v792, %v862
    %v891 = vadd.f32 %v793, %v864
    %v892 = vadd.f32 %v794, %v866
    %v893 = vadd.f32 %v795, %v868
    %v894 = vadd.f32 %v796, %v870
    %v895 = vmul.f32 %v822, %v99
    %v896 = vmul.f32 %v822, %v100
    %v897 = vmul.f32 %v822, %v101
    %v898 = vmul.f32 %v822, %v102
    %v899 = vmul.f32 %v822, %v103
    %v900 = vmul.f32 %v822, %v104
    %v901 = vmul.f32 %v822, %v105
    %v902 = vmul.f32 %v822, %v106
    %v903 = vmul.f32 %v822, %v107
    %v904 = vmul.f32 %v822, %v108
    %v905 = vmul.f32 %v822, %v109
    %v906 = vmul.f32 %v822, %v110
    %919 = vrot.lane.b32.xlu0 %v895, 127
    %v920 = vpop.permute.xlu0 %919
    %921 = vrot.lane.b32.xlu0 %v896, 127
    %v922 = vpop.permute.xlu0 %921
    %923 = vrot.lane.b32.xlu0 %v897, 127
    %v924 = vpop.permute.xlu0 %923
    %925 = vrot.lane.b32.xlu0 %v898, 127
    %v926 = vpop.permute.xlu0 %925
    %927 = vrot.lane.b32.xlu0 %v899, 127
    %v928 = vpop.permute.xlu0 %927
    %929 = vrot.lane.b32.xlu0 %v900, 127
    %v930 = vpop.permute.xlu0 %929
    %931 = vrot.lane.b32.xlu0 %v901, 127
    %v932 = vpop.permute.xlu0 %931
    %933 = vrot.lane.b32.xlu0 %v902, 127
    %v934 = vpop.permute.xlu0 %933
    %935 = vrot.lane.b32.xlu0 %v903, 127
    %v936 = vpop.permute.xlu0 %935
    %937 = vrot.lane.b32.xlu0 %v904, 127
    %v938 = vpop.permute.xlu0 %937
    %939 = vrot.lane.b32.xlu0 %v905, 127
    %v940 = vpop.permute.xlu0 %939
    %941 = vrot.lane.b32.xlu0 %v906, 127
    %v942 = vpop.permute.xlu0 %941
    %v955 = vadd.f32 %v809, %v920
    %v956 = vadd.f32 %v810, %v922
    %v957 = vadd.f32 %v811, %v924
    %v958 = vadd.f32 %v812, %v926
    %v959 = vadd.f32 %v813, %v928
    %v960 = vadd.f32 %v814, %v930
    %v961 = vadd.f32 %v815, %v932
    %v962 = vadd.f32 %v816, %v934
    %v963 = vadd.f32 %v817, %v936
    %v964 = vadd.f32 %v818, %v938
    %v965 = vadd.f32 %v819, %v940
    %v966 = vadd.f32 %v820, %v942
    %s967 = sld [smem:[#allocation3 + $0x8]]
    %v968 = vstv %s967
    %v969 = vmul.f32 %v968, %v75
    %v970 = vmul.f32 %v968, %v76
    %v971 = vmul.f32 %v968, %v77
    %v972 = vmul.f32 %v968, %v78
    %v973 = vmul.f32 %v968, %v79
    %v974 = vmul.f32 %v968, %v80
    %v975 = vmul.f32 %v968, %v81
    %v976 = vmul.f32 %v968, %v82
    %v977 = vmul.f32 %v968, %v83
    %v978 = vmul.f32 %v968, %v84
    %v979 = vmul.f32 %v968, %v85
    %v980 = vmul.f32 %v968, %v86
    %993 = vrot.lane.b32.xlu0 %v969, 126
    %v994 = vpop.permute.xlu0 %993
    %995 = vrot.lane.b32.xlu0 %v970, 126
    %v996 = vpop.permute.xlu0 %995
    %997 = vrot.lane.b32.xlu0 %v971, 126
    %v998 = vpop.permute.xlu0 %997
    %999 = vrot.lane.b32.xlu0 %v972, 126
    %v1000 = vpop.permute.xlu0 %999
    %1001 = vrot.lane.b32.xlu0 %v973, 126
    %v1002 = vpop.permute.xlu0 %1001
    %1003 = vrot.lane.b32.xlu0 %v974, 126
    %v1004 = vpop.permute.xlu0 %1003
    %1005 = vrot.lane.b32.xlu0 %v975, 126
    %v1006 = vpop.permute.xlu0 %1005
    %1007 = vrot.lane.b32.xlu0 %v976, 126
    %v1008 = vpop.permute.xlu0 %1007
    %1009 = vrot.lane.b32.xlu0 %v977, 126
    %v1010 = vpop.permute.xlu0 %1009
    %1011 = vrot.lane.b32.xlu0 %v978, 126
    %v1012 = vpop.permute.xlu0 %1011
    %1013 = vrot.lane.b32.xlu0 %v979, 126
    %v1014 = vpop.permute.xlu0 %1013
    %1015 = vrot.lane.b32.xlu0 %v980, 126
    %v1016 = vpop.permute.xlu0 %1015
    %v1029 = vadd.f32 %v883, %v994
    %v1030 = vadd.f32 %v884, %v996
    %v1031 = vadd.f32 %v885, %v998
    %v1032 = vadd.f32 %v886, %v1000
    %v1033 = vadd.f32 %v887, %v1002
    %v1034 = vadd.f32 %v888, %v1004
    %v1035 = vadd.f32 %v889, %v1006
    %v1036 = vadd.f32 %v890, %v1008
    %v1037 = vadd.f32 %v891, %v1010
    %v1038 = vadd.f32 %v892, %v1012
    %v1039 = vadd.f32 %v893, %v1014
    %v1040 = vadd.f32 %v894, %v1016
    %v1041 = vmul.f32 %v968, %v99
    %v1042 = vmul.f32 %v968, %v100
    %v1043 = vmul.f32 %v968, %v101
    %v1044 = vmul.f32 %v968, %v102
    %v1045 = vmul.f32 %v968, %v103
    %v1046 = vmul.f32 %v968, %v104
    %v1047 = vmul.f32 %v968, %v105
    %v1048 = vmul.f32 %v968, %v106
    %v1049 = vmul.f32 %v968, %v107
    %v1050 = vmul.f32 %v968, %v108
    %v1051 = vmul.f32 %v968, %v109
    %v1052 = vmul.f32 %v968, %v110
    %1065 = vrot.lane.b32.xlu0 %v1041, 126
    %v1066 = vpop.permute.xlu0 %1065
    %1067 = vrot.lane.b32.xlu0 %v1042, 126
    %v1068 = vpop.permute.xlu0 %1067
    %1069 = vrot.lane.b32.xlu0 %v1043, 126
    %v1070 = vpop.permute.xlu0 %1069
    %1071 = vrot.lane.b32.xlu0 %v1044, 126
    %v1072 = vpop.permute.xlu0 %1071
    %1073 = vrot.lane.b32.xlu0 %v1045, 126
    %v1074 = vpop.permute.xlu0 %1073
    %1075 = vrot.lane.b32.xlu0 %v1046, 126
    %v1076 = vpop.permute.xlu0 %1075
    %1077 = vrot.lane.b32.xlu0 %v1047, 126
    %v1078 = vpop.permute.xlu0 %1077
    %1079 = vrot.lane.b32.xlu0 %v1048, 126
    %v1080 = vpop.permute.xlu0 %1079
    %1081 = vrot.lane.b32.xlu0 %v1049, 126
    %v1082 = vpop.permute.xlu0 %1081
    %1083 = vrot.lane.b32.xlu0 %v1050, 126
    %v1084 = vpop.permute.xlu0 %1083
    %1085 = vrot.lane.b32.xlu0 %v1051, 126
    %v1086 = vpop.permute.xlu0 %1085
    %1087 = vrot.lane.b32.xlu0 %v1052, 126
    %v1088 = vpop.permute.xlu0 %1087
    %v1101 = vadd.f32 %v955, %v1066
    %v1102 = vadd.f32 %v956, %v1068
    %v1103 = vadd.f32 %v957, %v1070
    %v1104 = vadd.f32 %v958, %v1072
    %v1105 = vadd.f32 %v959, %v1074
    %v1106 = vadd.f32 %v960, %v1076
    %v1107 = vadd.f32 %v961, %v1078
    %v1108 = vadd.f32 %v962, %v1080
    %v1109 = vadd.f32 %v963, %v1082
    %v1110 = vadd.f32 %v964, %v1084
    %v1111 = vadd.f32 %v965, %v1086
    %v1112 = vadd.f32 %v966, %v1088
    %v1113 = vadd.f32 %v1029, %v1101
    %v1114 = vadd.f32 %v1030, %v1102
    %v1115 = vadd.f32 %v1031, %v1103
    %v1116 = vadd.f32 %v1032, %v1104
    %v1117 = vadd.f32 %v1033, %v1105
    %v1118 = vadd.f32 %v1034, %v1106
    %v1119 = vadd.f32 %v1035, %v1107
    %v1120 = vadd.f32 %v1036, %v1108
    %v1121 = vadd.f32 %v1037, %v1109
    %v1122 = vadd.f32 %v1038, %v1110
    %v1123 = vadd.f32 %v1039, %v1111
    %v1124 = vadd.f32 %v1040, %v1112
    %vm1125 = vcmask 785408
    %v1126 = vsel %vm1125, %v1113, 0.0
    %v1127 = vsel %vm1125, %v1114, 0.0
    %v1128 = vadd.f32 %v1126, %v1127
    %v1129 = vsel %vm1125, %v1115, 0.0
    %v1130 = vadd.f32 %v1128, %v1129
    %v1131 = vsel %vm1125, %v1116, 0.0
    %v1132 = vadd.f32 %v1130, %v1131
    %v1133 = vsel %vm1125, %v1117, 0.0
    %v1134 = vadd.f32 %v1132, %v1133
    %v1135 = vsel %vm1125, %v1118, 0.0
    %v1136 = vadd.f32 %v1134, %v1135
    %v1137 = vsel %vm1125, %v1119, 0.0
    %v1138 = vadd.f32 %v1136, %v1137
    %v1139 = vsel %vm1125, %v1120, 0.0
    %v1140 = vadd.f32 %v1138, %v1139
    %v1141 = vsel %vm1125, %v1121, 0.0
    %v1142 = vadd.f32 %v1140, %v1141
    %v1143 = vsel %vm1125, %v1122, 0.0
    %v1144 = vadd.f32 %v1142, %v1143
    %v1145 = vsel %vm1125, %v1123, 0.0
    %v1146 = vadd.f32 %v1144, %v1145
    %v1147 = vsel %vm1125, %v1124, 0.0
    %v1148 = vadd.f32 %v1146, %v1147
    %1149 = vadd.xlane.f32.xlu0 %v1148
    %v1150 = vpop.xlane.xlu0 %1149
    %v1151 = vrot.slane %v1150, 4
    %v1152 = vadd.f32 %v1150, %v1151
    %v1153 = vrot.slane %v1152, 2
    %v1154 = vadd.f32 %v1152, %v1153
    %v1155 = vrot.slane %v1154, 1
    %v1156 = vadd.f32 %v1154, %v1155
    %s1157 = vtos %v1156
    %v1158 = vmul.f32 %v1029, %v1029
    %v1159 = vmul.f32 %v1030, %v1030
    %v1160 = vmul.f32 %v1031, %v1031
    %v1161 = vmul.f32 %v1032, %v1032
    %v1162 = vmul.f32 %v1033, %v1033
    %v1163 = vmul.f32 %v1034, %v1034
    %v1164 = vmul.f32 %v1035, %v1035
    %v1165 = vmul.f32 %v1036, %v1036
    %v1166 = vmul.f32 %v1037, %v1037
    %v1167 = vmul.f32 %v1038, %v1038
    %v1168 = vmul.f32 %v1039, %v1039
    %v1169 = vmul.f32 %v1040, %v1040
    %v1170 = vmul.f32 %v1101, %v1101
    %v1171 = vmul.f32 %v1102, %v1102
    %v1172 = vmul.f32 %v1103, %v1103
    %v1173 = vmul.f32 %v1104, %v1104
    %v1174 = vmul.f32 %v1105, %v1105
    %v1175 = vmul.f32 %v1106, %v1106
    %v1176 = vmul.f32 %v1107, %v1107
    %v1177 = vmul.f32 %v1108, %v1108
    %v1178 = vmul.f32 %v1109, %v1109
    %v1179 = vmul.f32 %v1110, %v1110
    %v1180 = vmul.f32 %v1111, %v1111
    %v1181 = vmul.f32 %v1112, %v1112
    %v1182 = vadd.f32 %v1158, %v1170
    %v1183 = vadd.f32 %v1159, %v1171
    %v1184 = vadd.f32 %v1160, %v1172
    %v1185 = vadd.f32 %v1161, %v1173
    %v1186 = vadd.f32 %v1162, %v1174
    %v1187 = vadd.f32 %v1163, %v1175
    %v1188 = vadd.f32 %v1164, %v1176
    %v1189 = vadd.f32 %v1165, %v1177
    %v1190 = vadd.f32 %v1166, %v1178
    %v1191 = vadd.f32 %v1167, %v1179
    %v1192 = vadd.f32 %v1168, %v1180
    %v1193 = vadd.f32 %v1169, %v1181
    %v1194 = vsel %vm1125, %v1182, 0.0
    %v1195 = vsel %vm1125, %v1183, 0.0
    %v1196 = vadd.f32 %v1194, %v1195
    %v1197 = vsel %vm1125, %v1184, 0.0
    %v1198 = vadd.f32 %v1196, %v1197
    %v1199 = vsel %vm1125, %v1185, 0.0
    %v1200 = vadd.f32 %v1198, %v1199
    %v1201 = vsel %vm1125, %v1186, 0.0
    %v1202 = vadd.f32 %v1200, %v1201
    %v1203 = vsel %vm1125, %v1187, 0.0
    %v1204 = vadd.f32 %v1202, %v1203
    %v1205 = vsel %vm1125, %v1188, 0.0
    %v1206 = vadd.f32 %v1204, %v1205
    %v1207 = vsel %vm1125, %v1189, 0.0
    %v1208 = vadd.f32 %v1206, %v1207
    %v1209 = vsel %vm1125, %v1190, 0.0
    %v1210 = vadd.f32 %v1208, %v1209
    %v1211 = vsel %vm1125, %v1191, 0.0
    %v1212 = vadd.f32 %v1210, %v1211
    %v1213 = vsel %vm1125, %v1192, 0.0
    %v1214 = vadd.f32 %v1212, %v1213
    %v1215 = vsel %vm1125, %v1193, 0.0
    %v1216 = vadd.f32 %v1214, %v1215
    %1217 = vadd.xlane.f32.xlu0 %v1216
    %v1218 = vpop.xlane.xlu0 %1217
    %v1219 = vrot.slane %v1218, 4
    %v1220 = vadd.f32 %v1218, %v1219
    %v1221 = vrot.slane %v1220, 2
    %v1222 = vadd.f32 %v1220, %v1221
    %v1223 = vrot.slane %v1222, 1
    %v1224 = vadd.f32 %v1222, %v1223
    %s1225 = vtos %v1224
    %s1226 = smul.f32 %s1157, 5.4253473e-05
    %s1227 = smul.f32 %s1225, 5.4253473e-05
    %s1228 = smul.f32 %s1226, %s1226
    %s1229 = ssub.f32 %s1227, %s1228
    %s1230 = sld [smem:[#allocation6]]
    %s1231 = sadd.f32 %s1229, 1e-05
    %v1232 = vstv %s1231
    %v1233 = vrsqrt.pop %v1232
    %v1234 = vmul.f32 %v1233, %v1232
    %v1235 = vmul.f32 %v1234, %v1233
    %v1236 = vmul.f32 0.5, %v1235
    %v1237 = vsub.f32 1.5, %v1236
    %v1238 = vmul.f32 %v1233, %v1237
    %vm1239 = vweird.f32 %v1232
    %vm1240 = vweird.f32 %v1233
    %vm1241 = vmor %vm1239, %vm1240
    %v1242 = vsel %vm1241, %v1233, %v1238
    %s1243 = vtos %v1242
    %s1244 = smul.f32 %s1230, %s1243
    %s1245 = sld [smem:[#allocation8]]
    %s1246 = smul.f32 %s1226, %s1244
    %s1247 = ssub.f32 %s1245, %s1246
    %v1248 = vstv %s1244
    %v1249 = vmul.f32 %v1029, %v1248
    %v1250 = vmul.f32 %v1030, %v1248
    %v1251 = vmul.f32 %v1031, %v1248
    %v1252 = vmul.f32 %v1032, %v1248
    %v1253 = vmul.f32 %v1033, %v1248
    %v1254 = vmul.f32 %v1034, %v1248
    %v1255 = vmul.f32 %v1035, %v1248
    %v1256 = vmul.f32 %v1036, %v1248
    %v1257 = vmul.f32 %v1037, %v1248
    %v1258 = vmul.f32 %v1038, %v1248
    %v1259 = vmul.f32 %v1039, %v1248
    %v1260 = vmul.f32 %v1040, %v1248
    %v1261 = vstv %s1247
    %v1262 = vadd.f32 %v1249, %v1261
    %v1263 = vadd.f32 %v1250, %v1261
    %v1264 = vadd.f32 %v1251, %v1261
    %v1265 = vadd.f32 %v1252, %v1261
    %v1266 = vadd.f32 %v1253, %v1261
    %v1267 = vadd.f32 %v1254, %v1261
    %v1268 = vadd.f32 %v1255, %v1261
    %v1269 = vadd.f32 %v1256, %v1261
    %v1270 = vadd.f32 %v1257, %v1261
    %v1271 = vadd.f32 %v1258, %v1261
    %v1272 = vadd.f32 %v1259, %v1261
    %v1273 = vadd.f32 %v1260, %v1261
    %v1274 = vmax.f32 %v1262, 0.0
    %v1275 = vmax.f32 %v1263, 0.0
    %v1276 = vmax.f32 %v1264, 0.0
    %v1277 = vmax.f32 %v1265, 0.0
    %v1278 = vmax.f32 %v1266, 0.0
    %v1279 = vmax.f32 %v1267, 0.0
    %v1280 = vmax.f32 %v1268, 0.0
    %v1281 = vmax.f32 %v1269, 0.0
    %v1282 = vmax.f32 %v1270, 0.0
    %v1283 = vmax.f32 %v1271, 0.0
    %v1284 = vmax.f32 %v1272, 0.0
    %v1285 = vmax.f32 %v1273, 0.0
    %v1286 = vmul.f32 %v1101, %v1248
    %v1287 = vmul.f32 %v1102, %v1248
    %v1288 = vmul.f32 %v1103, %v1248
    %v1289 = vmul.f32 %v1104, %v1248
    %v1290 = vmul.f32 %v1105, %v1248
    %v1291 = vmul.f32 %v1106, %v1248
    %v1292 = vmul.f32 %v1107, %v1248
    %v1293 = vmul.f32 %v1108, %v1248
    %v1294 = vmul.f32 %v1109, %v1248
    %v1295 = vmul.f32 %v1110, %v1248
    %v1296 = vmul.f32 %v1111, %v1248
    %v1297 = vmul.f32 %v1112, %v1248
    %v1298 = vadd.f32 %v1286, %v1261
    %v1299 = vadd.f32 %v1287, %v1261
    %v1300 = vadd.f32 %v1288, %v1261
    %v1301 = vadd.f32 %v1289, %v1261
    %v1302 = vadd.f32 %v1290, %v1261
    %v1303 = vadd.f32 %v1291, %v1261
    %v1304 = vadd.f32 %v1292, %v1261
    %v1305 = vadd.f32 %v1293, %v1261
    %v1306 = vadd.f32 %v1294, %v1261
    %v1307 = vadd.f32 %v1295, %v1261
    %v1308 = vadd.f32 %v1296, %v1261
    %v1309 = vadd.f32 %v1297, %v1261
    %v1310 = vmax.f32 %v1298, 0.0
    %v1311 = vmax.f32 %v1299, 0.0
    %v1312 = vmax.f32 %v1300, 0.0
    %v1313 = vmax.f32 %v1301, 0.0
    %v1314 = vmax.f32 %v1302, 0.0
    %v1315 = vmax.f32 %v1303, 0.0
    %v1316 = vmax.f32 %v1304, 0.0
    %v1317 = vmax.f32 %v1305, 0.0
    %v1318 = vmax.f32 %v1306, 0.0
    %v1319 = vmax.f32 %v1307, 0.0
    %v1320 = vmax.f32 %v1308, 0.0
    %v1321 = vmax.f32 %v1309, 0.0
    %v1322 = vmax.f32 %v1274, %v1310
    %v1323 = vmax.f32 %v1275, %v1311
    %v1324 = vmax.f32 %v1276, %v1312
    %v1325 = vmax.f32 %v1277, %v1313
    %v1326 = vmax.f32 %v1278, %v1314
    %v1327 = vmax.f32 %v1279, %v1315
    %v1328 = vmax.f32 %v1280, %v1316
    %v1329 = vmax.f32 %v1281, %v1317
    %v1330 = vmax.f32 %v1282, %v1318
    %v1331 = vmax.f32 %v1283, %v1319
    %v1332 = vmax.f32 %v1284, %v1320
    %v1333 = vmax.f32 %v1285, %v1321
    %1346 = vrot.lane.b32.xlu0 %v1322, 127
    %v1347 = vpop.permute.xlu0 %1346
    %1348 = vrot.lane.b32.xlu0 %v1323, 127
    %v1349 = vpop.permute.xlu0 %1348
    %1350 = vrot.lane.b32.xlu0 %v1324, 127
    %v1351 = vpop.permute.xlu0 %1350
    %1352 = vrot.lane.b32.xlu0 %v1325, 127
    %v1353 = vpop.permute.xlu0 %1352
    %1354 = vrot.lane.b32.xlu0 %v1326, 127
    %v1355 = vpop.permute.xlu0 %1354
    %1356 = vrot.lane.b32.xlu0 %v1327, 127
    %v1357 = vpop.permute.xlu0 %1356
    %1358 = vrot.lane.b32.xlu0 %v1328, 127
    %v1359 = vpop.permute.xlu0 %1358
    %1360 = vrot.lane.b32.xlu0 %v1329, 127
    %v1361 = vpop.permute.xlu0 %1360
    %1362 = vrot.lane.b32.xlu0 %v1330, 127
    %v1363 = vpop.permute.xlu0 %1362
    %1364 = vrot.lane.b32.xlu0 %v1331, 127
    %v1365 = vpop.permute.xlu0 %1364
    %1366 = vrot.lane.b32.xlu0 %v1332, 127
    %v1367 = vpop.permute.xlu0 %1366
    %1368 = vrot.lane.b32.xlu0 %v1333, 127
    %v1369 = vpop.permute.xlu0 %1368
    %v1382 = vmax.f32 %v1322, %v1347
    %v1383 = vmax.f32 %v1323, %v1349
    %v1384 = vmax.f32 %v1324, %v1351
    %v1385 = vmax.f32 %v1325, %v1353
    %v1386 = vmax.f32 %v1326, %v1355
    %v1387 = vmax.f32 %v1327, %v1357
    %v1388 = vmax.f32 %v1328, %v1359
    %v1389 = vmax.f32 %v1329, %v1361
    %v1390 = vmax.f32 %v1330, %v1363
    %v1391 = vmax.f32 %v1331, %v1365
    %v1392 = vmax.f32 %v1332, %v1367
    %v1393 = vmax.f32 %v1333, %v1369
    %v1400 = vrot.slane %v1382, 1
    %v1401 = vrot.slane %v1382, 2
    %v1402 = vrot.slane %v1382, 3
    %v1403 = vrot.slane %v1382, 4
    %v1404 = vrot.slane %v1382, 5
    %v1405 = vrot.slane %v1382, 6
    %v1406 = vrot.slane %v1382, 7
    %v1407 = vrot.slane %v1383, 1
    %v1408 = vrot.slane %v1383, 2
    %v1409 = vrot.slane %v1383, 3
    %v1410 = vrot.slane %v1383, 4
    %v1411 = vrot.slane %v1383, 5
    %v1412 = vrot.slane %v1383, 6
    %v1413 = vrot.slane %v1383, 7
    %v1414 = vrot.slane %v1384, 1
    %v1415 = vrot.slane %v1384, 2
    %v1416 = vrot.slane %v1384, 3
    %v1417 = vrot.slane %v1384, 4
    %v1418 = vrot.slane %v1384, 5
    %v1419 = vrot.slane %v1384, 6
    %v1420 = vrot.slane %v1384, 7
    %v1421 = vrot.slane %v1385, 1
    %v1422 = vrot.slane %v1385, 2
    %v1423 = vrot.slane %v1385, 3
    %v1424 = vrot.slane %v1385, 4
    %v1425 = vrot.slane %v1385, 5
    %v1426 = vrot.slane %v1385, 6
    %v1427 = vrot.slane %v1385, 7
    %v1428 = vrot.slane %v1386, 1
    %v1429 = vrot.slane %v1386, 2
    %v1430 = vrot.slane %v1386, 3
    %v1431 = vrot.slane %v1386, 4
    %v1432 = vrot.slane %v1386, 5
    %v1433 = vrot.slane %v1386, 6
    %v1434 = vrot.slane %v1386, 7
    %v1435 = vrot.slane %v1387, 1
    %v1436 = vrot.slane %v1387, 2
    %v1437 = vrot.slane %v1387, 3
    %v1438 = vrot.slane %v1387, 4
    %v1439 = vrot.slane %v1387, 5
    %v1440 = vrot.slane %v1387, 6
    %v1441 = vrot.slane %v1387, 7
    %vm1484 = vcmask 770048
    %1485 = vst.msk [vmem:[#allocation2] sm:$0x1] %vm1484, %v1382
    %1486 = vst.msk [vmem:[#allocation2 + $0x2] sm:$0x1] %vm1484, %v1400
    %1487 = vst.msk [vmem:[#allocation2 + $0x4] sm:$0x1] %vm1484, %v1401
    %1488 = vst.msk [vmem:[#allocation2 + $0x6] sm:$0x1] %vm1484, %v1402
    %1489 = vst.msk [vmem:[#allocation2 + $0x8] sm:$0x1] %vm1484, %v1403
    %1490 = vst.msk [vmem:[#allocation2 + $0xa] sm:$0x1] %vm1484, %v1404
    %1491 = vst.msk [vmem:[#allocation2 + $0xc] sm:$0x1] %vm1484, %v1405
    %1492 = vst.msk [vmem:[#allocation2 + $0xe] sm:$0x1] %vm1484, %v1406
    %1493 = vst.msk [vmem:[#allocation2 + $0x10] sm:$0x1] %vm1484, %v1383
    %1494 = vst.msk [vmem:[#allocation2 + $0x12] sm:$0x1] %vm1484, %v1407
    %1495 = vst.msk [vmem:[#allocation2 + $0x14] sm:$0x1] %vm1484, %v1408
    %1496 = vst.msk [vmem:[#allocation2 + $0x16] sm:$0x1] %vm1484, %v1409
    %1497 = vst.msk [vmem:[#allocation2 + $0x18] sm:$0x1] %vm1484, %v1410
    %1498 = vst.msk [vmem:[#allocation2 + $0x1a] sm:$0x1] %vm1484, %v1411
    %1499 = vst.msk [vmem:[#allocation2 + $0x1c] sm:$0x1] %vm1484, %v1412
    %1500 = vst.msk [vmem:[#allocation2 + $0x1e] sm:$0x1] %vm1484, %v1413
    %1501 = vst.msk [vmem:[#allocation2 + $0x20] sm:$0x1] %vm1484, %v1384
    %1502 = vst.msk [vmem:[#allocation2 + $0x22] sm:$0x1] %vm1484, %v1414
    %1503 = vst.msk [vmem:[#allocation2 + $0x24] sm:$0x1] %vm1484, %v1415
    %1504 = vst.msk [vmem:[#allocation2 + $0x26] sm:$0x1] %vm1484, %v1416
    %1505 = vst.msk [vmem:[#allocation2 + $0x28] sm:$0x1] %vm1484, %v1417
    %1506 = vst.msk [vmem:[#allocation2 + $0x2a] sm:$0x1] %vm1484, %v1418
    %1507 = vst.msk [vmem:[#allocation2 + $0x2c] sm:$0x1] %vm1484, %v1419
    %1508 = vst.msk [vmem:[#allocation2 + $0x2e] sm:$0x1] %vm1484, %v1420
    %1509 = vst.msk [vmem:[#allocation2 + $0x30] sm:$0x1] %vm1484, %v1385
    %1510 = vst.msk [vmem:[#allocation2 + $0x32] sm:$0x1] %vm1484, %v1421
    %1511 = vst.msk [vmem:[#allocation2 + $0x34] sm:$0x1] %vm1484, %v1422
    %1512 = vst.msk [vmem:[#allocation2 + $0x36] sm:$0x1] %vm1484, %v1423
    %1513 = vst.msk [vmem:[#allocation2 + $0x38] sm:$0x1] %vm1484, %v1424
    %1514 = vst.msk [vmem:[#allocation2 + $0x3a] sm:$0x1] %vm1484, %v1425
    %1515 = vst.msk [vmem:[#allocation2 + $0x3c] sm:$0x1] %vm1484, %v1426
    %1516 = vst.msk [vmem:[#allocation2 + $0x3e] sm:$0x1] %vm1484, %v1427
    %1517 = vst.msk [vmem:[#allocation2 + $0x40] sm:$0x1] %vm1484, %v1386
    %1518 = vst.msk [vmem:[#allocation2 + $0x42] sm:$0x1] %vm1484, %v1428
    %1519 = vst.msk [vmem:[#allocation2 + $0x44] sm:$0x1] %vm1484, %v1429
    %1520 = vst.msk [vmem:[#allocation2 + $0x46] sm:$0x1] %vm1484, %v1430
    %1521 = vst.msk [vmem:[#allocation2 + $0x48] sm:$0x1] %vm1484, %v1431
    %1522 = vst.msk [vmem:[#allocation2 + $0x4a] sm:$0x1] %vm1484, %v1432
    %1523 = vst.msk [vmem:[#allocation2 + $0x4c] sm:$0x1] %vm1484, %v1433
    %1524 = vst.msk [vmem:[#allocation2 + $0x4e] sm:$0x1] %vm1484, %v1434
    %1525 = vst.msk [vmem:[#allocation2 + $0x50] sm:$0x1] %vm1484, %v1387
    %1526 = vst.msk [vmem:[#allocation2 + $0x52] sm:$0x1] %vm1484, %v1435
    %1527 = vst.msk [vmem:[#allocation2 + $0x54] sm:$0x1] %vm1484, %v1436
    %1528 = vst.msk [vmem:[#allocation2 + $0x56] sm:$0x1] %vm1484, %v1437
    %1529 = vst.msk [vmem:[#allocation2 + $0x58] sm:$0x1] %vm1484, %v1438
    %1530 = vst.msk [vmem:[#allocation2 + $0x5a] sm:$0x1] %vm1484, %v1439
    %1531 = vst.msk [vmem:[#allocation2 + $0x5c] sm:$0x1] %vm1484, %v1440
    %1532 = vst.msk [vmem:[#allocation2 + $0x5e] sm:$0x1] %vm1484, %v1441
    %v1539 = vrot.slane %v1388, 1
    %v1540 = vrot.slane %v1388, 2
    %v1541 = vrot.slane %v1388, 3
    %v1542 = vrot.slane %v1388, 4
    %v1543 = vrot.slane %v1388, 5
    %v1544 = vrot.slane %v1388, 6
    %v1545 = vrot.slane %v1388, 7
    %v1546 = vrot.slane %v1389, 1
    %v1547 = vrot.slane %v1389, 2
    %v1548 = vrot.slane %v1389, 3
    %v1549 = vrot.slane %v1389, 4
    %v1550 = vrot.slane %v1389, 5
    %v1551 = vrot.slane %v1389, 6
    %v1552 = vrot.slane %v1389, 7
    %v1553 = vrot.slane %v1390, 1
    %v1554 = vrot.slane %v1390, 2
    %v1555 = vrot.slane %v1390, 3
    %v1556 = vrot.slane %v1390, 4
    %v1557 = vrot.slane %v1390, 5
    %v1558 = vrot.slane %v1390, 6
    %v1559 = vrot.slane %v1390, 7
    %v1560 = vrot.slane %v1391, 1
    %v1561 = vrot.slane %v1391, 2
    %v1562 = vrot.slane %v1391, 3
    %v1563 = vrot.slane %v1391, 4
    %v1564 = vrot.slane %v1391, 5
    %v1565 = vrot.slane %v1391, 6
    %v1566 = vrot.slane %v1391, 7
    %v1567 = vrot.slane %v1392, 1
    %v1568 = vrot.slane %v1392, 2
    %v1569 = vrot.slane %v1392, 3
    %v1570 = vrot.slane %v1392, 4
    %v1571 = vrot.slane %v1392, 5
    %v1572 = vrot.slane %v1392, 6
    %v1573 = vrot.slane %v1392, 7
    %v1574 = vrot.slane %v1393, 1
    %v1575 = vrot.slane %v1393, 2
    %v1576 = vrot.slane %v1393, 3
    %v1577 = vrot.slane %v1393, 4
    %v1578 = vrot.slane %v1393, 5
    %v1579 = vrot.slane %v1393, 6
    %v1580 = vrot.slane %v1393, 7
    %1623 = vst.msk [vmem:[#allocation2 + $0x1] sm:$0x1] %vm1484, %v1388
    %1624 = vst.msk [vmem:[#allocation2 + $0x3] sm:$0x1] %vm1484, %v1539
    %1625 = vst.msk [vmem:[#allocation2 + $0x5] sm:$0x1] %vm1484, %v1540
    %1626 = vst.msk [vmem:[#allocation2 + $0x7] sm:$0x1] %vm1484, %v1541
    %1627 = vst.msk [vmem:[#allocation2 + $0x9] sm:$0x1] %vm1484, %v1542
    %1628 = vst.msk [vmem:[#allocation2 + $0xb] sm:$0x1] %vm1484, %v1543
    %1629 = vst.msk [vmem:[#allocation2 + $0xd] sm:$0x1] %vm1484, %v1544
    %1630 = vst.msk [vmem:[#allocation2 + $0xf] sm:$0x1] %vm1484, %v1545
    %1631 = vst.msk [vmem:[#allocation2 + $0x11] sm:$0x1] %vm1484, %v1389
    %1632 = vst.msk [vmem:[#allocation2 + $0x13] sm:$0x1] %vm1484, %v1546
    %1633 = vst.msk [vmem:[#allocation2 + $0x15] sm:$0x1] %vm1484, %v1547
    %1634 = vst.msk [vmem:[#allocation2 + $0x17] sm:$0x1] %vm1484, %v1548
    %1635 = vst.msk [vmem:[#allocation2 + $0x19] sm:$0x1] %vm1484, %v1549
    %1636 = vst.msk [vmem:[#allocation2 + $0x1b] sm:$0x1] %vm1484, %v1550
    %1637 = vst.msk [vmem:[#allocation2 + $0x1d] sm:$0x1] %vm1484, %v1551
    %1638 = vst.msk [vmem:[#allocation2 + $0x1f] sm:$0x1] %vm1484, %v1552
    %1639 = vst.msk [vmem:[#allocation2 + $0x21] sm:$0x1] %vm1484, %v1390
    %1640 = vst.msk [vmem:[#allocation2 + $0x23] sm:$0x1] %vm1484, %v1553
    %1641 = vst.msk [vmem:[#allocation2 + $0x25] sm:$0x1] %vm1484, %v1554
    %1642 = vst.msk [vmem:[#allocation2 + $0x27] sm:$0x1] %vm1484, %v1555
    %1643 = vst.msk [vmem:[#allocation2 + $0x29] sm:$0x1] %vm1484, %v1556
    %1644 = vst.msk [vmem:[#allocation2 + $0x2b] sm:$0x1] %vm1484, %v1557
    %1645 = vst.msk [vmem:[#allocation2 + $0x2d] sm:$0x1] %vm1484, %v1558
    %1646 = vst.msk [vmem:[#allocation2 + $0x2f] sm:$0x1] %vm1484, %v1559
    %1647 = vst.msk [vmem:[#allocation2 + $0x31] sm:$0x1] %vm1484, %v1391
    %1648 = vst.msk [vmem:[#allocation2 + $0x33] sm:$0x1] %vm1484, %v1560
    %1649 = vst.msk [vmem:[#allocation2 + $0x35] sm:$0x1] %vm1484, %v1561
    %1650 = vst.msk [vmem:[#allocation2 + $0x37] sm:$0x1] %vm1484, %v1562
    %1651 = vst.msk [vmem:[#allocation2 + $0x39] sm:$0x1] %vm1484, %v1563
    %1652 = vst.msk [vmem:[#allocation2 + $0x3b] sm:$0x1] %vm1484, %v1564
    %1653 = vst.msk [vmem:[#allocation2 + $0x3d] sm:$0x1] %vm1484, %v1565
    %1654 = vst.msk [vmem:[#allocation2 + $0x3f] sm:$0x1] %vm1484, %v1566
    %1655 = vst.msk [vmem:[#allocation2 + $0x41] sm:$0x1] %vm1484, %v1392
    %1656 = vst.msk [vmem:[#allocation2 + $0x43] sm:$0x1] %vm1484, %v1567
    %1657 = vst.msk [vmem:[#allocation2 + $0x45] sm:$0x1] %vm1484, %v1568
    %1658 = vst.msk [vmem:[#allocation2 + $0x47] sm:$0x1] %vm1484, %v1569
    %1659 = vst.msk [vmem:[#allocation2 + $0x49] sm:$0x1] %vm1484, %v1570
    %1660 = vst.msk [vmem:[#allocation2 + $0x4b] sm:$0x1] %vm1484, %v1571
    %1661 = vst.msk [vmem:[#allocation2 + $0x4d] sm:$0x1] %vm1484, %v1572
    %1662 = vst.msk [vmem:[#allocation2 + $0x4f] sm:$0x1] %vm1484, %v1573
    %1663 = vst.msk [vmem:[#allocation2 + $0x51] sm:$0x1] %vm1484, %v1393
    %1664 = vst.msk [vmem:[#allocation2 + $0x53] sm:$0x1] %vm1484, %v1574
    %1665 = vst.msk [vmem:[#allocation2 + $0x55] sm:$0x1] %vm1484, %v1575
    %1666 = vst.msk [vmem:[#allocation2 + $0x57] sm:$0x1] %vm1484, %v1576
    %1667 = vst.msk [vmem:[#allocation2 + $0x59] sm:$0x1] %vm1484, %v1577
    %1668 = vst.msk [vmem:[#allocation2 + $0x5b] sm:$0x1] %vm1484, %v1578
    %1669 = vst.msk [vmem:[#allocation2 + $0x5d] sm:$0x1] %vm1484, %v1579
    %1670 = vst.msk [vmem:[#allocation2 + $0x5f] sm:$0x1] %vm1484, %v1580
    %v1671 = vld [vmem:[#allocation2] sm:$0x3]
    %v1672 = vld [vmem:[#allocation2 + $0x2] sm:$0x3]
    %v1673 = vld [vmem:[#allocation2 + $0x4] sm:$0x3]
    %v1674 = vld [vmem:[#allocation2 + $0x6] sm:$0x3]
    %v1675 = vld [vmem:[#allocation2 + $0x8] sm:$0x3]
    %v1676 = vld [vmem:[#allocation2 + $0xa] sm:$0x3]
    %v1677 = vld [vmem:[#allocation2 + $0xc] sm:$0x3]
    %v1678 = vld [vmem:[#allocation2 + $0xe] sm:$0x3]
    %v1679 = vld [vmem:[#allocation2 + $0x10] sm:$0x3]
    %v1680 = vld [vmem:[#allocation2 + $0x12] sm:$0x3]
    %v1681 = vld [vmem:[#allocation2 + $0x14] sm:$0x3]
    %v1682 = vld [vmem:[#allocation2 + $0x16] sm:$0x3]
    %v1683 = vld [vmem:[#allocation2 + $0x18] sm:$0x3]
    %v1684 = vld [vmem:[#allocation2 + $0x1a] sm:$0x3]
    %v1685 = vld [vmem:[#allocation2 + $0x1c] sm:$0x3]
    %v1686 = vld [vmem:[#allocation2 + $0x1e] sm:$0x3]
    %v1687 = vld [vmem:[#allocation2 + $0x20] sm:$0x3]
    %v1688 = vld [vmem:[#allocation2 + $0x22] sm:$0x3]
    %v1689 = vld [vmem:[#allocation2 + $0x24] sm:$0x3]
    %v1690 = vld [vmem:[#allocation2 + $0x26] sm:$0x3]
    %v1691 = vld [vmem:[#allocation2 + $0x28] sm:$0x3]
    %v1692 = vld [vmem:[#allocation2 + $0x2a] sm:$0x3]
    %v1693 = vld [vmem:[#allocation2 + $0x2c] sm:$0x3]
    %v1694 = vld [vmem:[#allocation2 + $0x2e] sm:$0x3]
    %v1695 = vld [vmem:[#allocation2 + $0x30] sm:$0x3]
    %v1696 = vld [vmem:[#allocation2 + $0x32] sm:$0x3]
    %v1697 = vld [vmem:[#allocation2 + $0x34] sm:$0x3]
    %v1698 = vld [vmem:[#allocation2 + $0x36] sm:$0x3]
    %v1699 = vld [vmem:[#allocation2 + $0x38] sm:$0x3]
    %v1700 = vld [vmem:[#allocation2 + $0x3a] sm:$0x3]
    %v1701 = vld [vmem:[#allocation2 + $0x3c] sm:$0x3]
    %v1702 = vld [vmem:[#allocation2 + $0x3e] sm:$0x3]
    %v1703 = vld [vmem:[#allocation2 + $0x40] sm:$0x3]
    %v1704 = vld [vmem:[#allocation2 + $0x42] sm:$0x3]
    %v1705 = vld [vmem:[#allocation2 + $0x44] sm:$0x3]
    %v1706 = vld [vmem:[#allocation2 + $0x46] sm:$0x3]
    %v1707 = vld [vmem:[#allocation2 + $0x48] sm:$0x3]
    %v1708 = vld [vmem:[#allocation2 + $0x4a] sm:$0x3]
    %v1709 = vld [vmem:[#allocation2 + $0x4c] sm:$0x3]
    %v1710 = vld [vmem:[#allocation2 + $0x4e] sm:$0x3]
    %v1711 = vld [vmem:[#allocation2 + $0x50] sm:$0x3]
    %v1712 = vld [vmem:[#allocation2 + $0x52] sm:$0x3]
    %v1713 = vld [vmem:[#allocation2 + $0x54] sm:$0x3]
    %v1714 = vld [vmem:[#allocation2 + $0x56] sm:$0x3]
    %v1715 = vld [vmem:[#allocation2 + $0x58] sm:$0x3]
    %v1716 = vld [vmem:[#allocation2 + $0x5a] sm:$0x3]
    %v1717 = vld [vmem:[#allocation2 + $0x5c] sm:$0x3]
    %v1718 = vld [vmem:[#allocation2 + $0x5e] sm:$0x3]
    %v1719 = vld [vmem:[%s5] sm:$0x1f]
    %v1720 = vld [vmem:[%s5 + $0x8] sm:$0x1f]
    %v1721 = vld [vmem:[%s5 + $0x10] sm:$0x1f]
    %v1722 = vld [vmem:[%s5 + $0x18] sm:$0x1f]
    %v1723 = vld [vmem:[%s5 + $0x20] sm:$0x1f]
    %v1724 = vld [vmem:[%s5 + $0x28] sm:$0x1f]
    %v1725 = vld [vmem:[%s5 + $0x30] sm:$0x1f]
    %v1726 = vld [vmem:[%s5 + $0x38] sm:$0x1f]
    %v1727 = vld [vmem:[%s5 + $0x40] sm:$0x1f]
    %v1728 = vld [vmem:[%s5 + $0x48] sm:$0x1f]
    %v1729 = vld [vmem:[%s5 + $0x50] sm:$0x1f]
    %v1730 = vld [vmem:[%s5 + $0x58] sm:$0x1f]
    %v1731 = vld [vmem:[%s5 + $0x60] sm:$0x1f]
    %v1732 = vld [vmem:[%s5 + $0x68] sm:$0x1f]
    %v1733 = vld [vmem:[%s5 + $0x70] sm:$0x1f]
    %v1734 = vld [vmem:[%s5 + $0x78] sm:$0x1f]
    %v1735 = vld [vmem:[%s5 + $0x80] sm:$0x1f]
    %v1736 = vld [vmem:[%s5 + $0x88] sm:$0x1f]
    %v1737 = vld [vmem:[%s5 + $0x90] sm:$0x1f]
    %v1738 = vld [vmem:[%s5 + $0x98] sm:$0x1f]
    %v1739 = vld [vmem:[%s5 + $0xa0] sm:$0x1f]
    %v1740 = vld [vmem:[%s5 + $0xa8] sm:$0x1f]
    %v1741 = vld [vmem:[%s5 + $0xb0] sm:$0x1f]
    %v1742 = vld [vmem:[%s5 + $0xb8] sm:$0x1f]
    %v1743 = vld [vmem:[%s5 + $0xc0] sm:$0x1f]
    %v1744 = vld [vmem:[%s5 + $0xc8] sm:$0x1f]
    %v1745 = vld [vmem:[%s5 + $0xd0] sm:$0x1f]
    %v1746 = vld [vmem:[%s5 + $0xd8] sm:$0x1f]
    %v1747 = vld [vmem:[%s5 + $0xe0] sm:$0x1f]
    %v1748 = vld [vmem:[%s5 + $0xe8] sm:$0x1f]
    %v1749 = vld [vmem:[%s5 + $0xf0] sm:$0x1f]
    %v1750 = vld [vmem:[%s5 + $0xf8] sm:$0x1f]
    %v1751 = vld [vmem:[%s5 + $0x100] sm:$0x1f]
    %v1752 = vld [vmem:[%s5 + $0x108] sm:$0x1f]
    %v1753 = vld [vmem:[%s5 + $0x110] sm:$0x1f]
    %v1754 = vld [vmem:[%s5 + $0x118] sm:$0x1f]
    %v1755 = vld [vmem:[%s5 + $0x120] sm:$0x1f]
    %v1756 = vld [vmem:[%s5 + $0x128] sm:$0x1f]
    %v1757 = vld [vmem:[%s5 + $0x130] sm:$0x1f]
    %v1758 = vld [vmem:[%s5 + $0x138] sm:$0x1f]
    %v1759 = vld [vmem:[%s5 + $0x140] sm:$0x1f]
    %v1760 = vld [vmem:[%s5 + $0x148] sm:$0x1f]
    %v1761 = vld [vmem:[%s5 + $0x150] sm:$0x1f]
    %v1762 = vld [vmem:[%s5 + $0x158] sm:$0x1f]
    %v1763 = vld [vmem:[%s5 + $0x160] sm:$0x1f]
    %v1764 = vld [vmem:[%s5 + $0x168] sm:$0x1f]
    %v1765 = vld [vmem:[%s5 + $0x170] sm:$0x1f]
    %v1766 = vld [vmem:[%s5 + $0x178] sm:$0x1f]
    %vm1767 = vcmask 777216
    %v1769 = vsel %vm1767, %v1671, 0
    %v1772 = vsel %vm1767, %v1719, 0
    %1774 = vmatpush.xpose.msra.mxu0 0.0
    %1775 = vmatpush.xpose.msra.mxu0 0.0
    %1776 = vmatpush.xpose.msra.mxu0 0.0
    %1777 = vmatpush.xpose.msra.mxu0 0.0
    %1778 = vmatpush.xpose.msra.mxu0 0.0
    %1779 = vmatpush.xpose.msra.mxu0 0.0
    %1780 = vmatpush.xpose.msra.mxu0 0.0
    %1781 = vmatpush.xpose.msra.mxu0 0.0
    %1782 = vmatpush.xpose.msra.mxu0 0.0
    %1783 = vmatpush.xpose.msra.mxu0 0.0
    %1784 = vmatpush.xpose.msra.mxu0 0.0
    %1785 = vmatpush.xpose.msra.mxu0 0.0
    %1786 = vmatpush.xpose.msra.mxu0 0.0
    %1787 = vmatpush.xpose.msra.mxu0 0.0
    %1788 = vmatpush.xpose.msra.mxu0 0.0
    %1789 = vmatpush.xpose.msra.mxu0 %v1772
    %1790 = vmatmul.f32.gmra.mxu0 %v1769
    %v1791 = vpop.f32.mrf.mxu0
    %v1792 = vadd.f32 0.0, %v1791
    %1793 = vdwg.mxu0
    %v1795 = vsel %vm1767, %v1672, 0
    %v1798 = vsel %vm1767, %v1720, 0
    %1800 = vmatpush.xpose.msra.mxu0 0.0
    %1801 = vmatpush.xpose.msra.mxu0 0.0
    %1802 = vmatpush.xpose.msra.mxu0 0.0
    %1803 = vmatpush.xpose.msra.mxu0 0.0
    %1804 = vmatpush.xpose.msra.mxu0 0.0
    %1805 = vmatpush.xpose.msra.mxu0 0.0
    %1806 = vmatpush.xpose.msra.mxu0 0.0
    %1807 = vmatpush.xpose.msra.mxu0 0.0
    %1808 = vmatpush.xpose.msra.mxu0 0.0
    %1809 = vmatpush.xpose.msra.mxu0 0.0
    %1810 = vmatpush.xpose.msra.mxu0 0.0
    %1811 = vmatpush.xpose.msra.mxu0 0.0
    %1812 = vmatpush.xpose.msra.mxu0 0.0
    %1813 = vmatpush.xpose.msra.mxu0 0.0
    %1814 = vmatpush.xpose.msra.mxu0 0.0
    %1815 = vmatpush.xpose.msra.mxu0 %v1798
    %1816 = vmatmul.f32.gmra.mxu0 %v1795
    %v1817 = vpop.f32.mrf.mxu0
    %v1818 = vadd.f32 0.0, %v1817
    %1819 = vdwg.mxu0
    %v1821 = vsel %vm1767, %v1673, 0
    %v1824 = vsel %vm1767, %v1721, 0
    %1826 = vmatpush.xpose.msra.mxu0 0.0
    %1827 = vmatpush.xpose.msra.mxu0 0.0
    %1828 = vmatpush.xpose.msra.mxu0 0.0
    %1829 = vmatpush.xpose.msra.mxu0 0.0
    %1830 = vmatpush.xpose.msra.mxu0 0.0
    %1831 = vmatpush.xpose.msra.mxu0 0.0
    %1832 = vmatpush.xpose.msra.mxu0 0.0
    %1833 = vmatpush.xpose.msra.mxu0 0.0
    %1834 = vmatpush.xpose.msra.mxu0 0.0
    %1835 = vmatpush.xpose.msra.mxu0 0.0
    %1836 = vmatpush.xpose.msra.mxu0 0.0
    %1837 = vmatpush.xpose.msra.mxu0 0.0
    %1838 = vmatpush.xpose.msra.mxu0 0.0
    %1839 = vmatpush.xpose.msra.mxu0 0.0
    %1840 = vmatpush.xpose.msra.mxu0 0.0
    %1841 = vmatpush.xpose.msra.mxu0 %v1824
    %1842 = vmatmul.f32.gmra.mxu0 %v1821
    %v1843 = vpop.f32.mrf.mxu0
    %v1844 = vadd.f32 0.0, %v1843
    %1845 = vdwg.mxu0
    %v1847 = vsel %vm1767, %v1674, 0
    %v1850 = vsel %vm1767, %v1722, 0
    %1852 = vmatpush.xpose.msra.mxu0 0.0
    %1853 = vmatpush.xpose.msra.mxu0 0.0
    %1854 = vmatpush.xpose.msra.mxu0 0.0
    %1855 = vmatpush.xpose.msra.mxu0 0.0
    %1856 = vmatpush.xpose.msra.mxu0 0.0
    %1857 = vmatpush.xpose.msra.mxu0 0.0
    %1858 = vmatpush.xpose.msra.mxu0 0.0
    %1859 = vmatpush.xpose.msra.mxu0 0.0
    %1860 = vmatpush.xpose.msra.mxu0 0.0
    %1861 = vmatpush.xpose.msra.mxu0 0.0
    %1862 = vmatpush.xpose.msra.mxu0 0.0
    %1863 = vmatpush.xpose.msra.mxu0 0.0
    %1864 = vmatpush.xpose.msra.mxu0 0.0
    %1865 = vmatpush.xpose.msra.mxu0 0.0
    %1866 = vmatpush.xpose.msra.mxu0 0.0
    %1867 = vmatpush.xpose.msra.mxu0 %v1850
    %1868 = vmatmul.f32.gmra.mxu0 %v1847
    %v1869 = vpop.f32.mrf.mxu0
    %v1870 = vadd.f32 0.0, %v1869
    %1871 = vdwg.mxu0
    %v1873 = vsel %vm1767, %v1675, 0
    %v1876 = vsel %vm1767, %v1723, 0
    %1878 = vmatpush.xpose.msra.mxu0 0.0
    %1879 = vmatpush.xpose.msra.mxu0 0.0
    %1880 = vmatpush.xpose.msra.mxu0 0.0
    %1881 = vmatpush.xpose.msra.mxu0 0.0
    %1882 = vmatpush.xpose.msra.mxu0 0.0
    %1883 = vmatpush.xpose.msra.mxu0 0.0
    %1884 = vmatpush.xpose.msra.mxu0 0.0
    %1885 = vmatpush.xpose.msra.mxu0 0.0
    %1886 = vmatpush.xpose.msra.mxu0 0.0
    %1887 = vmatpush.xpose.msra.mxu0 0.0
    %1888 = vmatpush.xpose.msra.mxu0 0.0
    %1889 = vmatpush.xpose.msra.mxu0 0.0
    %1890 = vmatpush.xpose.msra.mxu0 0.0
    %1891 = vmatpush.xpose.msra.mxu0 0.0
    %1892 = vmatpush.xpose.msra.mxu0 0.0
    %1893 = vmatpush.xpose.msra.mxu0 %v1876
    %1894 = vmatmul.f32.gmra.mxu0 %v1873
    %v1895 = vpop.f32.mrf.mxu0
    %v1896 = vadd.f32 0.0, %v1895
    %1897 = vdwg.mxu0
    %v1899 = vsel %vm1767, %v1676, 0
    %v1902 = vsel %vm1767, %v1724, 0
    %1904 = vmatpush.xpose.msra.mxu0 0.0
    %1905 = vmatpush.xpose.msra.mxu0 0.0
    %1906 = vmatpush.xpose.msra.mxu0 0.0
    %1907 = vmatpush.xpose.msra.mxu0 0.0
    %1908 = vmatpush.xpose.msra.mxu0 0.0
    %1909 = vmatpush.xpose.msra.mxu0 0.0
    %1910 = vmatpush.xpose.msra.mxu0 0.0
    %1911 = vmatpush.xpose.msra.mxu0 0.0
    %1912 = vmatpush.xpose.msra.mxu0 0.0
    %1913 = vmatpush.xpose.msra.mxu0 0.0
    %1914 = vmatpush.xpose.msra.mxu0 0.0
    %1915 = vmatpush.xpose.msra.mxu0 0.0
    %1916 = vmatpush.xpose.msra.mxu0 0.0
    %1917 = vmatpush.xpose.msra.mxu0 0.0
    %1918 = vmatpush.xpose.msra.mxu0 0.0
    %1919 = vmatpush.xpose.msra.mxu0 %v1902
    %1920 = vmatmul.f32.gmra.mxu0 %v1899
    %v1921 = vpop.f32.mrf.mxu0
    %v1922 = vadd.f32 0.0, %v1921
    %1923 = vdwg.mxu0
    %v1925 = vsel %vm1767, %v1677, 0
    %v1928 = vsel %vm1767, %v1725, 0
    %1930 = vmatpush.xpose.msra.mxu0 0.0
    %1931 = vmatpush.xpose.msra.mxu0 0.0
    %1932 = vmatpush.xpose.msra.mxu0 0.0
    %1933 = vmatpush.xpose.msra.mxu0 0.0
    %1934 = vmatpush.xpose.msra.mxu0 0.0
    %1935 = vmatpush.xpose.msra.mxu0 0.0
    %1936 = vmatpush.xpose.msra.mxu0 0.0
    %1937 = vmatpush.xpose.msra.mxu0 0.0
    %1938 = vmatpush.xpose.msra.mxu0 0.0
    %1939 = vmatpush.xpose.msra.mxu0 0.0
    %1940 = vmatpush.xpose.msra.mxu0 0.0
    %1941 = vmatpush.xpose.msra.mxu0 0.0
    %1942 = vmatpush.xpose.msra.mxu0 0.0
    %1943 = vmatpush.xpose.msra.mxu0 0.0
    %1944 = vmatpush.xpose.msra.mxu0 0.0
    %1945 = vmatpush.xpose.msra.mxu0 %v1928
    %1946 = vmatmul.f32.gmra.mxu0 %v1925
    %v1947 = vpop.f32.mrf.mxu0
    %v1948 = vadd.f32 0.0, %v1947
    %1949 = vdwg.mxu0
    %v1951 = vsel %vm1767, %v1678, 0
    %v1954 = vsel %vm1767, %v1726, 0
    %1956 = vmatpush.xpose.msra.mxu0 0.0
    %1957 = vmatpush.xpose.msra.mxu0 0.0
    %1958 = vmatpush.xpose.msra.mxu0 0.0
    %1959 = vmatpush.xpose.msra.mxu0 0.0
    %1960 = vmatpush.xpose.msra.mxu0 0.0
    %1961 = vmatpush.xpose.msra.mxu0 0.0
    %1962 = vmatpush.xpose.msra.mxu0 0.0
    %1963 = vmatpush.xpose.msra.mxu0 0.0
    %1964 = vmatpush.xpose.msra.mxu0 0.0
    %1965 = vmatpush.xpose.msra.mxu0 0.0
    %1966 = vmatpush.xpose.msra.mxu0 0.0
    %1967 = vmatpush.xpose.msra.mxu0 0.0
    %1968 = vmatpush.xpose.msra.mxu0 0.0
    %1969 = vmatpush.xpose.msra.mxu0 0.0
    %1970 = vmatpush.xpose.msra.mxu0 0.0
    %1971 = vmatpush.xpose.msra.mxu0 %v1954
    %1972 = vmatmul.f32.gmra.mxu0 %v1951
    %v1973 = vpop.f32.mrf.mxu0
    %v1974 = vadd.f32 0.0, %v1973
    %1975 = vdwg.mxu0
    %v1977 = vsel %vm1767, %v1679, 0
    %v1980 = vsel %vm1767, %v1727, 0
    %1982 = vmatpush.xpose.msra.mxu0 0.0
    %1983 = vmatpush.xpose.msra.mxu0 0.0
    %1984 = vmatpush.xpose.msra.mxu0 0.0
    %1985 = vmatpush.xpose.msra.mxu0 0.0
    %1986 = vmatpush.xpose.msra.mxu0 0.0
    %1987 = vmatpush.xpose.msra.mxu0 0.0
    %1988 = vmatpush.xpose.msra.mxu0 0.0
    %1989 = vmatpush.xpose.msra.mxu0 0.0
    %1990 = vmatpush.xpose.msra.mxu0 0.0
    %1991 = vmatpush.xpose.msra.mxu0 0.0
    %1992 = vmatpush.xpose.msra.mxu0 0.0
    %1993 = vmatpush.xpose.msra.mxu0 0.0
    %1994 = vmatpush.xpose.msra.mxu0 0.0
    %1995 = vmatpush.xpose.msra.mxu0 0.0
    %1996 = vmatpush.xpose.msra.mxu0 0.0
    %1997 = vmatpush.xpose.msra.mxu0 %v1980
    %1998 = vmatmul.f32.gmra.mxu0 %v1977
    %v1999 = vpop.f32.mrf.mxu0
    %v2000 = vadd.f32 0.0, %v1999
    %2001 = vdwg.mxu0
    %v2003 = vsel %vm1767, %v1680, 0
    %v2006 = vsel %vm1767, %v1728, 0
    %2008 = vmatpush.xpose.msra.mxu0 0.0
    %2009 = vmatpush.xpose.msra.mxu0 0.0
    %2010 = vmatpush.xpose.msra.mxu0 0.0
    %2011 = vmatpush.xpose.msra.mxu0 0.0
    %2012 = vmatpush.xpose.msra.mxu0 0.0
    %2013 = vmatpush.xpose.msra.mxu0 0.0
    %2014 = vmatpush.xpose.msra.mxu0 0.0
    %2015 = vmatpush.xpose.msra.mxu0 0.0
    %2016 = vmatpush.xpose.msra.mxu0 0.0
    %2017 = vmatpush.xpose.msra.mxu0 0.0
    %2018 = vmatpush.xpose.msra.mxu0 0.0
    %2019 = vmatpush.xpose.msra.mxu0 0.0
    %2020 = vmatpush.xpose.msra.mxu0 0.0
    %2021 = vmatpush.xpose.msra.mxu0 0.0
    %2022 = vmatpush.xpose.msra.mxu0 0.0
    %2023 = vmatpush.xpose.msra.mxu0 %v2006
    %2024 = vmatmul.f32.gmra.mxu0 %v2003
    %v2025 = vpop.f32.mrf.mxu0
    %v2026 = vadd.f32 0.0, %v2025
    %2027 = vdwg.mxu0
    %v2029 = vsel %vm1767, %v1681, 0
    %v2032 = vsel %vm1767, %v1729, 0
    %2034 = vmatpush.xpose.msra.mxu0 0.0
    %2035 = vmatpush.xpose.msra.mxu0 0.0
    %2036 = vmatpush.xpose.msra.mxu0 0.0
    %2037 = vmatpush.xpose.msra.mxu0 0.0
    %2038 = vmatpush.xpose.msra.mxu0 0.0
    %2039 = vmatpush.xpose.msra.mxu0 0.0
    %2040 = vmatpush.xpose.msra.mxu0 0.0
    %2041 = vmatpush.xpose.msra.mxu0 0.0
    %2042 = vmatpush.xpose.msra.mxu0 0.0
    %2043 = vmatpush.xpose.msra.mxu0 0.0
    %2044 = vmatpush.xpose.msra.mxu0 0.0
    %2045 = vmatpush.xpose.msra.mxu0 0.0
    %2046 = vmatpush.xpose.msra.mxu0 0.0
    %2047 = vmatpush.xpose.msra.mxu0 0.0
    %2048 = vmatpush.xpose.msra.mxu0 0.0
    %2049 = vmatpush.xpose.msra.mxu0 %v2032
    %2050 = vmatmul.f32.gmra.mxu0 %v2029
    %v2051 = vpop.f32.mrf.mxu0
    %v2052 = vadd.f32 0.0, %v2051
    %2053 = vdwg.mxu0
    %v2055 = vsel %vm1767, %v1682, 0
    %v2058 = vsel %vm1767, %v1730, 0
    %2060 = vmatpush.xpose.msra.mxu0 0.0
    %2061 = vmatpush.xpose.msra.mxu0 0.0
    %2062 = vmatpush.xpose.msra.mxu0 0.0
    %2063 = vmatpush.xpose.msra.mxu0 0.0
    %2064 = vmatpush.xpose.msra.mxu0 0.0
    %2065 = vmatpush.xpose.msra.mxu0 0.0
    %2066 = vmatpush.xpose.msra.mxu0 0.0
    %2067 = vmatpush.xpose.msra.mxu0 0.0
    %2068 = vmatpush.xpose.msra.mxu0 0.0
    %2069 = vmatpush.xpose.msra.mxu0 0.0
    %2070 = vmatpush.xpose.msra.mxu0 0.0
    %2071 = vmatpush.xpose.msra.mxu0 0.0
    %2072 = vmatpush.xpose.msra.mxu0 0.0
    %2073 = vmatpush.xpose.msra.mxu0 0.0
    %2074 = vmatpush.xpose.msra.mxu0 0.0
    %2075 = vmatpush.xpose.msra.mxu0 %v2058
    %2076 = vmatmul.f32.gmra.mxu0 %v2055
    %v2077 = vpop.f32.mrf.mxu0
    %v2078 = vadd.f32 0.0, %v2077
    %2079 = vdwg.mxu0
    %v2081 = vsel %vm1767, %v1683, 0
    %v2084 = vsel %vm1767, %v1731, 0
    %2086 = vmatpush.xpose.msra.mxu0 0.0
    %2087 = vmatpush.xpose.msra.mxu0 0.0
    %2088 = vmatpush.xpose.msra.mxu0 0.0
    %2089 = vmatpush.xpose.msra.mxu0 0.0
    %2090 = vmatpush.xpose.msra.mxu0 0.0
    %2091 = vmatpush.xpose.msra.mxu0 0.0
    %2092 = vmatpush.xpose.msra.mxu0 0.0
    %2093 = vmatpush.xpose.msra.mxu0 0.0
    %2094 = vmatpush.xpose.msra.mxu0 0.0
    %2095 = vmatpush.xpose.msra.mxu0 0.0
    %2096 = vmatpush.xpose.msra.mxu0 0.0
    %2097 = vmatpush.xpose.msra.mxu0 0.0
    %2098 = vmatpush.xpose.msra.mxu0 0.0
    %2099 = vmatpush.xpose.msra.mxu0 0.0
    %2100 = vmatpush.xpose.msra.mxu0 0.0
    %2101 = vmatpush.xpose.msra.mxu0 %v2084
    %2102 = vmatmul.f32.gmra.mxu0 %v2081
    %v2103 = vpop.f32.mrf.mxu0
    %v2104 = vadd.f32 0.0, %v2103
    %2105 = vdwg.mxu0
    %v2107 = vsel %vm1767, %v1684, 0
    %v2110 = vsel %vm1767, %v1732, 0
    %2112 = vmatpush.xpose.msra.mxu0 0.0
    %2113 = vmatpush.xpose.msra.mxu0 0.0
    %2114 = vmatpush.xpose.msra.mxu0 0.0
    %2115 = vmatpush.xpose.msra.mxu0 0.0
    %2116 = vmatpush.xpose.msra.mxu0 0.0
    %2117 = vmatpush.xpose.msra.mxu0 0.0
    %2118 = vmatpush.xpose.msra.mxu0 0.0
    %2119 = vmatpush.xpose.msra.mxu0 0.0
    %2120 = vmatpush.xpose.msra.mxu0 0.0
    %2121 = vmatpush.xpose.msra.mxu0 0.0
    %2122 = vmatpush.xpose.msra.mxu0 0.0
    %2123 = vmatpush.xpose.msra.mxu0 0.0
    %2124 = vmatpush.xpose.msra.mxu0 0.0
    %2125 = vmatpush.xpose.msra.mxu0 0.0
    %2126 = vmatpush.xpose.msra.mxu0 0.0
    %2127 = vmatpush.xpose.msra.mxu0 %v2110
    %2128 = vmatmul.f32.gmra.mxu0 %v2107
    %v2129 = vpop.f32.mrf.mxu0
    %v2130 = vadd.f32 0.0, %v2129
    %2131 = vdwg.mxu0
    %v2133 = vsel %vm1767, %v1685, 0
    %v2136 = vsel %vm1767, %v1733, 0
    %2138 = vmatpush.xpose.msra.mxu0 0.0
    %2139 = vmatpush.xpose.msra.mxu0 0.0
    %2140 = vmatpush.xpose.msra.mxu0 0.0
    %2141 = vmatpush.xpose.msra.mxu0 0.0
    %2142 = vmatpush.xpose.msra.mxu0 0.0
    %2143 = vmatpush.xpose.msra.mxu0 0.0
    %2144 = vmatpush.xpose.msra.mxu0 0.0
    %2145 = vmatpush.xpose.msra.mxu0 0.0
    %2146 = vmatpush.xpose.msra.mxu0 0.0
    %2147 = vmatpush.xpose.msra.mxu0 0.0
    %2148 = vmatpush.xpose.msra.mxu0 0.0
    %2149 = vmatpush.xpose.msra.mxu0 0.0
    %2150 = vmatpush.xpose.msra.mxu0 0.0
    %2151 = vmatpush.xpose.msra.mxu0 0.0
    %2152 = vmatpush.xpose.msra.mxu0 0.0
    %2153 = vmatpush.xpose.msra.mxu0 %v2136
    %2154 = vmatmul.f32.gmra.mxu0 %v2133
    %v2155 = vpop.f32.mrf.mxu0
    %v2156 = vadd.f32 0.0, %v2155
    %2157 = vdwg.mxu0
    %v2159 = vsel %vm1767, %v1686, 0
    %v2162 = vsel %vm1767, %v1734, 0
    %2164 = vmatpush.xpose.msra.mxu0 0.0
    %2165 = vmatpush.xpose.msra.mxu0 0.0
    %2166 = vmatpush.xpose.msra.mxu0 0.0
    %2167 = vmatpush.xpose.msra.mxu0 0.0
    %2168 = vmatpush.xpose.msra.mxu0 0.0
    %2169 = vmatpush.xpose.msra.mxu0 0.0
    %2170 = vmatpush.xpose.msra.mxu0 0.0
    %2171 = vmatpush.xpose.msra.mxu0 0.0
    %2172 = vmatpush.xpose.msra.mxu0 0.0
    %2173 = vmatpush.xpose.msra.mxu0 0.0
    %2174 = vmatpush.xpose.msra.mxu0 0.0
    %2175 = vmatpush.xpose.msra.mxu0 0.0
    %2176 = vmatpush.xpose.msra.mxu0 0.0
    %2177 = vmatpush.xpose.msra.mxu0 0.0
    %2178 = vmatpush.xpose.msra.mxu0 0.0
    %2179 = vmatpush.xpose.msra.mxu0 %v2162
    %2180 = vmatmul.f32.gmra.mxu0 %v2159
    %v2181 = vpop.f32.mrf.mxu0
    %v2182 = vadd.f32 0.0, %v2181
    %2183 = vdwg.mxu0
    %v2185 = vsel %vm1767, %v1687, 0
    %v2188 = vsel %vm1767, %v1735, 0
    %2190 = vmatpush.xpose.msra.mxu0 0.0
    %2191 = vmatpush.xpose.msra.mxu0 0.0
    %2192 = vmatpush.xpose.msra.mxu0 0.0
    %2193 = vmatpush.xpose.msra.mxu0 0.0
    %2194 = vmatpush.xpose.msra.mxu0 0.0
    %2195 = vmatpush.xpose.msra.mxu0 0.0
    %2196 = vmatpush.xpose.msra.mxu0 0.0
    %2197 = vmatpush.xpose.msra.mxu0 0.0
    %2198 = vmatpush.xpose.msra.mxu0 0.0
    %2199 = vmatpush.xpose.msra.mxu0 0.0
    %2200 = vmatpush.xpose.msra.mxu0 0.0
    %2201 = vmatpush.xpose.msra.mxu0 0.0
    %2202 = vmatpush.xpose.msra.mxu0 0.0
    %2203 = vmatpush.xpose.msra.mxu0 0.0
    %2204 = vmatpush.xpose.msra.mxu0 0.0
    %2205 = vmatpush.xpose.msra.mxu0 %v2188
    %2206 = vmatmul.f32.gmra.mxu0 %v2185
    %v2207 = vpop.f32.mrf.mxu0
    %v2208 = vadd.f32 0.0, %v2207
    %2209 = vdwg.mxu0
    %v2211 = vsel %vm1767, %v1688, 0
    %v2214 = vsel %vm1767, %v1736, 0
    %2216 = vmatpush.xpose.msra.mxu0 0.0
    %2217 = vmatpush.xpose.msra.mxu0 0.0
    %2218 = vmatpush.xpose.msra.mxu0 0.0
    %2219 = vmatpush.xpose.msra.mxu0 0.0
    %2220 = vmatpush.xpose.msra.mxu0 0.0
    %2221 = vmatpush.xpose.msra.mxu0 0.0
    %2222 = vmatpush.xpose.msra.mxu0 0.0
    %2223 = vmatpush.xpose.msra.mxu0 0.0
    %2224 = vmatpush.xpose.msra.mxu0 0.0
    %2225 = vmatpush.xpose.msra.mxu0 0.0
    %2226 = vmatpush.xpose.msra.mxu0 0.0
    %2227 = vmatpush.xpose.msra.mxu0 0.0
    %2228 = vmatpush.xpose.msra.mxu0 0.0
    %2229 = vmatpush.xpose.msra.mxu0 0.0
    %2230 = vmatpush.xpose.msra.mxu0 0.0
    %2231 = vmatpush.xpose.msra.mxu0 %v2214
    %2232 = vmatmul.f32.gmra.mxu0 %v2211
    %v2233 = vpop.f32.mrf.mxu0
    %v2234 = vadd.f32 0.0, %v2233
    %2235 = vdwg.mxu0
    %v2237 = vsel %vm1767, %v1689, 0
    %v2240 = vsel %vm1767, %v1737, 0
    %2242 = vmatpush.xpose.msra.mxu0 0.0
    %2243 = vmatpush.xpose.msra.mxu0 0.0
    %2244 = vmatpush.xpose.msra.mxu0 0.0
    %2245 = vmatpush.xpose.msra.mxu0 0.0
    %2246 = vmatpush.xpose.msra.mxu0 0.0
    %2247 = vmatpush.xpose.msra.mxu0 0.0
    %2248 = vmatpush.xpose.msra.mxu0 0.0
    %2249 = vmatpush.xpose.msra.mxu0 0.0
    %2250 = vmatpush.xpose.msra.mxu0 0.0
    %2251 = vmatpush.xpose.msra.mxu0 0.0
    %2252 = vmatpush.xpose.msra.mxu0 0.0
    %2253 = vmatpush.xpose.msra.mxu0 0.0
    %2254 = vmatpush.xpose.msra.mxu0 0.0
    %2255 = vmatpush.xpose.msra.mxu0 0.0
    %2256 = vmatpush.xpose.msra.mxu0 0.0
    %2257 = vmatpush.xpose.msra.mxu0 %v2240
    %2258 = vmatmul.f32.gmra.mxu0 %v2237
    %v2259 = vpop.f32.mrf.mxu0
    %v2260 = vadd.f32 0.0, %v2259
    %2261 = vdwg.mxu0
    %v2263 = vsel %vm1767, %v1690, 0
    %v2266 = vsel %vm1767, %v1738, 0
    %2268 = vmatpush.xpose.msra.mxu0 0.0
    %2269 = vmatpush.xpose.msra.mxu0 0.0
    %2270 = vmatpush.xpose.msra.mxu0 0.0
    %2271 = vmatpush.xpose.msra.mxu0 0.0
    %2272 = vmatpush.xpose.msra.mxu0 0.0
    %2273 = vmatpush.xpose.msra.mxu0 0.0
    %2274 = vmatpush.xpose.msra.mxu0 0.0
    %2275 = vmatpush.xpose.msra.mxu0 0.0
    %2276 = vmatpush.xpose.msra.mxu0 0.0
    %2277 = vmatpush.xpose.msra.mxu0 0.0
    %2278 = vmatpush.xpose.msra.mxu0 0.0
    %2279 = vmatpush.xpose.msra.mxu0 0.0
    %2280 = vmatpush.xpose.msra.mxu0 0.0
    %2281 = vmatpush.xpose.msra.mxu0 0.0
    %2282 = vmatpush.xpose.msra.mxu0 0.0
    %2283 = vmatpush.xpose.msra.mxu0 %v2266
    %2284 = vmatmul.f32.gmra.mxu0 %v2263
    %v2285 = vpop.f32.mrf.mxu0
    %v2286 = vadd.f32 0.0, %v2285
    %2287 = vdwg.mxu0
    %v2289 = vsel %vm1767, %v1691, 0
    %v2292 = vsel %vm1767, %v1739, 0
    %2294 = vmatpush.xpose.msra.mxu0 0.0
    %2295 = vmatpush.xpose.msra.mxu0 0.0
    %2296 = vmatpush.xpose.msra.mxu0 0.0
    %2297 = vmatpush.xpose.msra.mxu0 0.0
    %2298 = vmatpush.xpose.msra.mxu0 0.0
    %2299 = vmatpush.xpose.msra.mxu0 0.0
    %2300 = vmatpush.xpose.msra.mxu0 0.0
    %2301 = vmatpush.xpose.msra.mxu0 0.0
    %2302 = vmatpush.xpose.msra.mxu0 0.0
    %2303 = vmatpush.xpose.msra.mxu0 0.0
    %2304 = vmatpush.xpose.msra.mxu0 0.0
    %2305 = vmatpush.xpose.msra.mxu0 0.0
    %2306 = vmatpush.xpose.msra.mxu0 0.0
    %2307 = vmatpush.xpose.msra.mxu0 0.0
    %2308 = vmatpush.xpose.msra.mxu0 0.0
    %2309 = vmatpush.xpose.msra.mxu0 %v2292
    %2310 = vmatmul.f32.gmra.mxu0 %v2289
    %v2311 = vpop.f32.mrf.mxu0
    %v2312 = vadd.f32 0.0, %v2311
    %2313 = vdwg.mxu0
    %v2315 = vsel %vm1767, %v1692, 0
    %v2318 = vsel %vm1767, %v1740, 0
    %2320 = vmatpush.xpose.msra.mxu0 0.0
    %2321 = vmatpush.xpose.msra.mxu0 0.0
    %2322 = vmatpush.xpose.msra.mxu0 0.0
    %2323 = vmatpush.xpose.msra.mxu0 0.0
    %2324 = vmatpush.xpose.msra.mxu0 0.0
    %2325 = vmatpush.xpose.msra.mxu0 0.0
    %2326 = vmatpush.xpose.msra.mxu0 0.0
    %2327 = vmatpush.xpose.msra.mxu0 0.0
    %2328 = vmatpush.xpose.msra.mxu0 0.0
    %2329 = vmatpush.xpose.msra.mxu0 0.0
    %2330 = vmatpush.xpose.msra.mxu0 0.0
    %2331 = vmatpush.xpose.msra.mxu0 0.0
    %2332 = vmatpush.xpose.msra.mxu0 0.0
    %2333 = vmatpush.xpose.msra.mxu0 0.0
    %2334 = vmatpush.xpose.msra.mxu0 0.0
    %2335 = vmatpush.xpose.msra.mxu0 %v2318
    %2336 = vmatmul.f32.gmra.mxu0 %v2315
    %v2337 = vpop.f32.mrf.mxu0
    %v2338 = vadd.f32 0.0, %v2337
    %2339 = vdwg.mxu0
    %v2341 = vsel %vm1767, %v1693, 0
    %v2344 = vsel %vm1767, %v1741, 0
    %2346 = vmatpush.xpose.msra.mxu0 0.0
    %2347 = vmatpush.xpose.msra.mxu0 0.0
    %2348 = vmatpush.xpose.msra.mxu0 0.0
    %2349 = vmatpush.xpose.msra.mxu0 0.0
    %2350 = vmatpush.xpose.msra.mxu0 0.0
    %2351 = vmatpush.xpose.msra.mxu0 0.0
    %2352 = vmatpush.xpose.msra.mxu0 0.0
    %2353 = vmatpush.xpose.msra.mxu0 0.0
    %2354 = vmatpush.xpose.msra.mxu0 0.0
    %2355 = vmatpush.xpose.msra.mxu0 0.0
    %2356 = vmatpush.xpose.msra.mxu0 0.0
    %2357 = vmatpush.xpose.msra.mxu0 0.0
    %2358 = vmatpush.xpose.msra.mxu0 0.0
    %2359 = vmatpush.xpose.msra.mxu0 0.0
    %2360 = vmatpush.xpose.msra.mxu0 0.0
    %2361 = vmatpush.xpose.msra.mxu0 %v2344
    %2362 = vmatmul.f32.gmra.mxu0 %v2341
    %v2363 = vpop.f32.mrf.mxu0
    %v2364 = vadd.f32 0.0, %v2363
    %2365 = vdwg.mxu0
    %v2367 = vsel %vm1767, %v1694, 0
    %v2370 = vsel %vm1767, %v1742, 0
    %2372 = vmatpush.xpose.msra.mxu0 0.0
    %2373 = vmatpush.xpose.msra.mxu0 0.0
    %2374 = vmatpush.xpose.msra.mxu0 0.0
    %2375 = vmatpush.xpose.msra.mxu0 0.0
    %2376 = vmatpush.xpose.msra.mxu0 0.0
    %2377 = vmatpush.xpose.msra.mxu0 0.0
    %2378 = vmatpush.xpose.msra.mxu0 0.0
    %2379 = vmatpush.xpose.msra.mxu0 0.0
    %2380 = vmatpush.xpose.msra.mxu0 0.0
    %2381 = vmatpush.xpose.msra.mxu0 0.0
    %2382 = vmatpush.xpose.msra.mxu0 0.0
    %2383 = vmatpush.xpose.msra.mxu0 0.0
    %2384 = vmatpush.xpose.msra.mxu0 0.0
    %2385 = vmatpush.xpose.msra.mxu0 0.0
    %2386 = vmatpush.xpose.msra.mxu0 0.0
    %2387 = vmatpush.xpose.msra.mxu0 %v2370
    %2388 = vmatmul.f32.gmra.mxu0 %v2367
    %v2389 = vpop.f32.mrf.mxu0
    %v2390 = vadd.f32 0.0, %v2389
    %2391 = vdwg.mxu0
    %v2393 = vsel %vm1767, %v1695, 0
    %v2396 = vsel %vm1767, %v1743, 0
    %2398 = vmatpush.xpose.msra.mxu0 0.0
    %2399 = vmatpush.xpose.msra.mxu0 0.0
    %2400 = vmatpush.xpose.msra.mxu0 0.0
    %2401 = vmatpush.xpose.msra.mxu0 0.0
    %2402 = vmatpush.xpose.msra.mxu0 0.0
    %2403 = vmatpush.xpose.msra.mxu0 0.0
    %2404 = vmatpush.xpose.msra.mxu0 0.0
    %2405 = vmatpush.xpose.msra.mxu0 0.0
    %2406 = vmatpush.xpose.msra.mxu0 0.0
    %2407 = vmatpush.xpose.msra.mxu0 0.0
    %2408 = vmatpush.xpose.msra.mxu0 0.0
    %2409 = vmatpush.xpose.msra.mxu0 0.0
    %2410 = vmatpush.xpose.msra.mxu0 0.0
    %2411 = vmatpush.xpose.msra.mxu0 0.0
    %2412 = vmatpush.xpose.msra.mxu0 0.0
    %2413 = vmatpush.xpose.msra.mxu0 %v2396
    %2414 = vmatmul.f32.gmra.mxu0 %v2393
    %v2415 = vpop.f32.mrf.mxu0
    %v2416 = vadd.f32 0.0, %v2415
    %2417 = vdwg.mxu0
    %v2419 = vsel %vm1767, %v1696, 0
    %v2422 = vsel %vm1767, %v1744, 0
    %2424 = vmatpush.xpose.msra.mxu0 0.0
    %2425 = vmatpush.xpose.msra.mxu0 0.0
    %2426 = vmatpush.xpose.msra.mxu0 0.0
    %2427 = vmatpush.xpose.msra.mxu0 0.0
    %2428 = vmatpush.xpose.msra.mxu0 0.0
    %2429 = vmatpush.xpose.msra.mxu0 0.0
    %2430 = vmatpush.xpose.msra.mxu0 0.0
    %2431 = vmatpush.xpose.msra.mxu0 0.0
    %2432 = vmatpush.xpose.msra.mxu0 0.0
    %2433 = vmatpush.xpose.msra.mxu0 0.0
    %2434 = vmatpush.xpose.msra.mxu0 0.0
    %2435 = vmatpush.xpose.msra.mxu0 0.0
    %2436 = vmatpush.xpose.msra.mxu0 0.0
    %2437 = vmatpush.xpose.msra.mxu0 0.0
    %2438 = vmatpush.xpose.msra.mxu0 0.0
    %2439 = vmatpush.xpose.msra.mxu0 %v2422
    %2440 = vmatmul.f32.gmra.mxu0 %v2419
    %v2441 = vpop.f32.mrf.mxu0
    %v2442 = vadd.f32 0.0, %v2441
    %2443 = vdwg.mxu0
    %v2445 = vsel %vm1767, %v1697, 0
    %v2448 = vsel %vm1767, %v1745, 0
    %2450 = vmatpush.xpose.msra.mxu0 0.0
    %2451 = vmatpush.xpose.msra.mxu0 0.0
    %2452 = vmatpush.xpose.msra.mxu0 0.0
    %2453 = vmatpush.xpose.msra.mxu0 0.0
    %2454 = vmatpush.xpose.msra.mxu0 0.0
    %2455 = vmatpush.xpose.msra.mxu0 0.0
    %2456 = vmatpush.xpose.msra.mxu0 0.0
    %2457 = vmatpush.xpose.msra.mxu0 0.0
    %2458 = vmatpush.xpose.msra.mxu0 0.0
    %2459 = vmatpush.xpose.msra.mxu0 0.0
    %2460 = vmatpush.xpose.msra.mxu0 0.0
    %2461 = vmatpush.xpose.msra.mxu0 0.0
    %2462 = vmatpush.xpose.msra.mxu0 0.0
    %2463 = vmatpush.xpose.msra.mxu0 0.0
    %2464 = vmatpush.xpose.msra.mxu0 0.0
    %2465 = vmatpush.xpose.msra.mxu0 %v2448
    %2466 = vmatmul.f32.gmra.mxu0 %v2445
    %v2467 = vpop.f32.mrf.mxu0
    %v2468 = vadd.f32 0.0, %v2467
    %2469 = vdwg.mxu0
    %v2471 = vsel %vm1767, %v1698, 0
    %v2474 = vsel %vm1767, %v1746, 0
    %2476 = vmatpush.xpose.msra.mxu0 0.0
    %2477 = vmatpush.xpose.msra.mxu0 0.0
    %2478 = vmatpush.xpose.msra.mxu0 0.0
    %2479 = vmatpush.xpose.msra.mxu0 0.0
    %2480 = vmatpush.xpose.msra.mxu0 0.0
    %2481 = vmatpush.xpose.msra.mxu0 0.0
    %2482 = vmatpush.xpose.msra.mxu0 0.0
    %2483 = vmatpush.xpose.msra.mxu0 0.0
    %2484 = vmatpush.xpose.msra.mxu0 0.0
    %2485 = vmatpush.xpose.msra.mxu0 0.0
    %2486 = vmatpush.xpose.msra.mxu0 0.0
    %2487 = vmatpush.xpose.msra.mxu0 0.0
    %2488 = vmatpush.xpose.msra.mxu0 0.0
    %2489 = vmatpush.xpose.msra.mxu0 0.0
    %2490 = vmatpush.xpose.msra.mxu0 0.0
    %2491 = vmatpush.xpose.msra.mxu0 %v2474
    %2492 = vmatmul.f32.gmra.mxu0 %v2471
    %v2493 = vpop.f32.mrf.mxu0
    %v2494 = vadd.f32 0.0, %v2493
    %2495 = vdwg.mxu0
    %v2497 = vsel %vm1767, %v1699, 0
    %v2500 = vsel %vm1767, %v1747, 0
    %2502 = vmatpush.xpose.msra.mxu0 0.0
    %2503 = vmatpush.xpose.msra.mxu0 0.0
    %2504 = vmatpush.xpose.msra.mxu0 0.0
    %2505 = vmatpush.xpose.msra.mxu0 0.0
    %2506 = vmatpush.xpose.msra.mxu0 0.0
    %2507 = vmatpush.xpose.msra.mxu0 0.0
    %2508 = vmatpush.xpose.msra.mxu0 0.0
    %2509 = vmatpush.xpose.msra.mxu0 0.0
    %2510 = vmatpush.xpose.msra.mxu0 0.0
    %2511 = vmatpush.xpose.msra.mxu0 0.0
    %2512 = vmatpush.xpose.msra.mxu0 0.0
    %2513 = vmatpush.xpose.msra.mxu0 0.0
    %2514 = vmatpush.xpose.msra.mxu0 0.0
    %2515 = vmatpush.xpose.msra.mxu0 0.0
    %2516 = vmatpush.xpose.msra.mxu0 0.0
    %2517 = vmatpush.xpose.msra.mxu0 %v2500
    %2518 = vmatmul.f32.gmra.mxu0 %v2497
    %v2519 = vpop.f32.mrf.mxu0
    %v2520 = vadd.f32 0.0, %v2519
    %2521 = vdwg.mxu0
    %v2523 = vsel %vm1767, %v1700, 0
    %v2526 = vsel %vm1767, %v1748, 0
    %2528 = vmatpush.xpose.msra.mxu0 0.0
    %2529 = vmatpush.xpose.msra.mxu0 0.0
    %2530 = vmatpush.xpose.msra.mxu0 0.0
    %2531 = vmatpush.xpose.msra.mxu0 0.0
    %2532 = vmatpush.xpose.msra.mxu0 0.0
    %2533 = vmatpush.xpose.msra.mxu0 0.0
    %2534 = vmatpush.xpose.msra.mxu0 0.0
    %2535 = vmatpush.xpose.msra.mxu0 0.0
    %2536 = vmatpush.xpose.msra.mxu0 0.0
    %2537 = vmatpush.xpose.msra.mxu0 0.0
    %2538 = vmatpush.xpose.msra.mxu0 0.0
    %2539 = vmatpush.xpose.msra.mxu0 0.0
    %2540 = vmatpush.xpose.msra.mxu0 0.0
    %2541 = vmatpush.xpose.msra.mxu0 0.0
    %2542 = vmatpush.xpose.msra.mxu0 0.0
    %2543 = vmatpush.xpose.msra.mxu0 %v2526
    %2544 = vmatmul.f32.gmra.mxu0 %v2523
    %v2545 = vpop.f32.mrf.mxu0
    %v2546 = vadd.f32 0.0, %v2545
    %2547 = vdwg.mxu0
    %v2549 = vsel %vm1767, %v1701, 0
    %v2552 = vsel %vm1767, %v1749, 0
    %2554 = vmatpush.xpose.msra.mxu0 0.0
    %2555 = vmatpush.xpose.msra.mxu0 0.0
    %2556 = vmatpush.xpose.msra.mxu0 0.0
    %2557 = vmatpush.xpose.msra.mxu0 0.0
    %2558 = vmatpush.xpose.msra.mxu0 0.0
    %2559 = vmatpush.xpose.msra.mxu0 0.0
    %2560 = vmatpush.xpose.msra.mxu0 0.0
    %2561 = vmatpush.xpose.msra.mxu0 0.0
    %2562 = vmatpush.xpose.msra.mxu0 0.0
    %2563 = vmatpush.xpose.msra.mxu0 0.0
    %2564 = vmatpush.xpose.msra.mxu0 0.0
    %2565 = vmatpush.xpose.msra.mxu0 0.0
    %2566 = vmatpush.xpose.msra.mxu0 0.0
    %2567 = vmatpush.xpose.msra.mxu0 0.0
    %2568 = vmatpush.xpose.msra.mxu0 0.0
    %2569 = vmatpush.xpose.msra.mxu0 %v2552
    %2570 = vmatmul.f32.gmra.mxu0 %v2549
    %v2571 = vpop.f32.mrf.mxu0
    %v2572 = vadd.f32 0.0, %v2571
    %2573 = vdwg.mxu0
    %v2575 = vsel %vm1767, %v1702, 0
    %v2578 = vsel %vm1767, %v1750, 0
    %2580 = vmatpush.xpose.msra.mxu0 0.0
    %2581 = vmatpush.xpose.msra.mxu0 0.0
    %2582 = vmatpush.xpose.msra.mxu0 0.0
    %2583 = vmatpush.xpose.msra.mxu0 0.0
    %2584 = vmatpush.xpose.msra.mxu0 0.0
    %2585 = vmatpush.xpose.msra.mxu0 0.0
    %2586 = vmatpush.xpose.msra.mxu0 0.0
    %2587 = vmatpush.xpose.msra.mxu0 0.0
    %2588 = vmatpush.xpose.msra.mxu0 0.0
    %2589 = vmatpush.xpose.msra.mxu0 0.0
    %2590 = vmatpush.xpose.msra.mxu0 0.0
    %2591 = vmatpush.xpose.msra.mxu0 0.0
    %2592 = vmatpush.xpose.msra.mxu0 0.0
    %2593 = vmatpush.xpose.msra.mxu0 0.0
    %2594 = vmatpush.xpose.msra.mxu0 0.0
    %2595 = vmatpush.xpose.msra.mxu0 %v2578
    %2596 = vmatmul.f32.gmra.mxu0 %v2575
    %v2597 = vpop.f32.mrf.mxu0
    %v2598 = vadd.f32 0.0, %v2597
    %2599 = vdwg.mxu0
    %v2601 = vsel %vm1767, %v1703, 0
    %v2604 = vsel %vm1767, %v1751, 0
    %2606 = vmatpush.xpose.msra.mxu0 0.0
    %2607 = vmatpush.xpose.msra.mxu0 0.0
    %2608 = vmatpush.xpose.msra.mxu0 0.0
    %2609 = vmatpush.xpose.msra.mxu0 0.0
    %2610 = vmatpush.xpose.msra.mxu0 0.0
    %2611 = vmatpush.xpose.msra.mxu0 0.0
    %2612 = vmatpush.xpose.msra.mxu0 0.0
    %2613 = vmatpush.xpose.msra.mxu0 0.0
    %2614 = vmatpush.xpose.msra.mxu0 0.0
    %2615 = vmatpush.xpose.msra.mxu0 0.0
    %2616 = vmatpush.xpose.msra.mxu0 0.0
    %2617 = vmatpush.xpose.msra.mxu0 0.0
    %2618 = vmatpush.xpose.msra.mxu0 0.0
    %2619 = vmatpush.xpose.msra.mxu0 0.0
    %2620 = vmatpush.xpose.msra.mxu0 0.0
    %2621 = vmatpush.xpose.msra.mxu0 %v2604
    %2622 = vmatmul.f32.gmra.mxu0 %v2601
    %v2623 = vpop.f32.mrf.mxu0
    %v2624 = vadd.f32 0.0, %v2623
    %2625 = vdwg.mxu0
    %v2627 = vsel %vm1767, %v1704, 0
    %v2630 = vsel %vm1767, %v1752, 0
    %2632 = vmatpush.xpose.msra.mxu0 0.0
    %2633 = vmatpush.xpose.msra.mxu0 0.0
    %2634 = vmatpush.xpose.msra.mxu0 0.0
    %2635 = vmatpush.xpose.msra.mxu0 0.0
    %2636 = vmatpush.xpose.msra.mxu0 0.0
    %2637 = vmatpush.xpose.msra.mxu0 0.0
    %2638 = vmatpush.xpose.msra.mxu0 0.0
    %2639 = vmatpush.xpose.msra.mxu0 0.0
    %2640 = vmatpush.xpose.msra.mxu0 0.0
    %2641 = vmatpush.xpose.msra.mxu0 0.0
    %2642 = vmatpush.xpose.msra.mxu0 0.0
    %2643 = vmatpush.xpose.msra.mxu0 0.0
    %2644 = vmatpush.xpose.msra.mxu0 0.0
    %2645 = vmatpush.xpose.msra.mxu0 0.0
    %2646 = vmatpush.xpose.msra.mxu0 0.0
    %2647 = vmatpush.xpose.msra.mxu0 %v2630
    %2648 = vmatmul.f32.gmra.mxu0 %v2627
    %v2649 = vpop.f32.mrf.mxu0
    %v2650 = vadd.f32 0.0, %v2649
    %2651 = vdwg.mxu0
    %v2653 = vsel %vm1767, %v1705, 0
    %v2656 = vsel %vm1767, %v1753, 0
    %2658 = vmatpush.xpose.msra.mxu0 0.0
    %2659 = vmatpush.xpose.msra.mxu0 0.0
    %2660 = vmatpush.xpose.msra.mxu0 0.0
    %2661 = vmatpush.xpose.msra.mxu0 0.0
    %2662 = vmatpush.xpose.msra.mxu0 0.0
    %2663 = vmatpush.xpose.msra.mxu0 0.0
    %2664 = vmatpush.xpose.msra.mxu0 0.0
    %2665 = vmatpush.xpose.msra.mxu0 0.0
    %2666 = vmatpush.xpose.msra.mxu0 0.0
    %2667 = vmatpush.xpose.msra.mxu0 0.0
    %2668 = vmatpush.xpose.msra.mxu0 0.0
    %2669 = vmatpush.xpose.msra.mxu0 0.0
    %2670 = vmatpush.xpose.msra.mxu0 0.0
    %2671 = vmatpush.xpose.msra.mxu0 0.0
    %2672 = vmatpush.xpose.msra.mxu0 0.0
    %2673 = vmatpush.xpose.msra.mxu0 %v2656
    %2674 = vmatmul.f32.gmra.mxu0 %v2653
    %v2675 = vpop.f32.mrf.mxu0
    %v2676 = vadd.f32 0.0, %v2675
    %2677 = vdwg.mxu0
    %v2679 = vsel %vm1767, %v1706, 0
    %v2682 = vsel %vm1767, %v1754, 0
    %2684 = vmatpush.xpose.msra.mxu0 0.0
    %2685 = vmatpush.xpose.msra.mxu0 0.0
    %2686 = vmatpush.xpose.msra.mxu0 0.0
    %2687 = vmatpush.xpose.msra.mxu0 0.0
    %2688 = vmatpush.xpose.msra.mxu0 0.0
    %2689 = vmatpush.xpose.msra.mxu0 0.0
    %2690 = vmatpush.xpose.msra.mxu0 0.0
    %2691 = vmatpush.xpose.msra.mxu0 0.0
    %2692 = vmatpush.xpose.msra.mxu0 0.0
    %2693 = vmatpush.xpose.msra.mxu0 0.0
    %2694 = vmatpush.xpose.msra.mxu0 0.0
    %2695 = vmatpush.xpose.msra.mxu0 0.0
    %2696 = vmatpush.xpose.msra.mxu0 0.0
    %2697 = vmatpush.xpose.msra.mxu0 0.0
    %2698 = vmatpush.xpose.msra.mxu0 0.0
    %2699 = vmatpush.xpose.msra.mxu0 %v2682
    %2700 = vmatmul.f32.gmra.mxu0 %v2679
    %v2701 = vpop.f32.mrf.mxu0
    %v2702 = vadd.f32 0.0, %v2701
    %2703 = vdwg.mxu0
    %v2705 = vsel %vm1767, %v1707, 0
    %v2708 = vsel %vm1767, %v1755, 0
    %2710 = vmatpush.xpose.msra.mxu0 0.0
    %2711 = vmatpush.xpose.msra.mxu0 0.0
    %2712 = vmatpush.xpose.msra.mxu0 0.0
    %2713 = vmatpush.xpose.msra.mxu0 0.0
    %2714 = vmatpush.xpose.msra.mxu0 0.0
    %2715 = vmatpush.xpose.msra.mxu0 0.0
    %2716 = vmatpush.xpose.msra.mxu0 0.0
    %2717 = vmatpush.xpose.msra.mxu0 0.0
    %2718 = vmatpush.xpose.msra.mxu0 0.0
    %2719 = vmatpush.xpose.msra.mxu0 0.0
    %2720 = vmatpush.xpose.msra.mxu0 0.0
    %2721 = vmatpush.xpose.msra.mxu0 0.0
    %2722 = vmatpush.xpose.msra.mxu0 0.0
    %2723 = vmatpush.xpose.msra.mxu0 0.0
    %2724 = vmatpush.xpose.msra.mxu0 0.0
    %2725 = vmatpush.xpose.msra.mxu0 %v2708
    %2726 = vmatmul.f32.gmra.mxu0 %v2705
    %v2727 = vpop.f32.mrf.mxu0
    %v2728 = vadd.f32 0.0, %v2727
    %2729 = vdwg.mxu0
    %v2731 = vsel %vm1767, %v1708, 0
    %v2734 = vsel %vm1767, %v1756, 0
    %2736 = vmatpush.xpose.msra.mxu0 0.0
    %2737 = vmatpush.xpose.msra.mxu0 0.0
    %2738 = vmatpush.xpose.msra.mxu0 0.0
    %2739 = vmatpush.xpose.msra.mxu0 0.0
    %2740 = vmatpush.xpose.msra.mxu0 0.0
    %2741 = vmatpush.xpose.msra.mxu0 0.0
    %2742 = vmatpush.xpose.msra.mxu0 0.0
    %2743 = vmatpush.xpose.msra.mxu0 0.0
    %2744 = vmatpush.xpose.msra.mxu0 0.0
    %2745 = vmatpush.xpose.msra.mxu0 0.0
    %2746 = vmatpush.xpose.msra.mxu0 0.0
    %2747 = vmatpush.xpose.msra.mxu0 0.0
    %2748 = vmatpush.xpose.msra.mxu0 0.0
    %2749 = vmatpush.xpose.msra.mxu0 0.0
    %2750 = vmatpush.xpose.msra.mxu0 0.0
    %2751 = vmatpush.xpose.msra.mxu0 %v2734
    %2752 = vmatmul.f32.gmra.mxu0 %v2731
    %v2753 = vpop.f32.mrf.mxu0
    %v2754 = vadd.f32 0.0, %v2753
    %2755 = vdwg.mxu0
    %v2757 = vsel %vm1767, %v1709, 0
    %v2760 = vsel %vm1767, %v1757, 0
    %2762 = vmatpush.xpose.msra.mxu0 0.0
    %2763 = vmatpush.xpose.msra.mxu0 0.0
    %2764 = vmatpush.xpose.msra.mxu0 0.0
    %2765 = vmatpush.xpose.msra.mxu0 0.0
    %2766 = vmatpush.xpose.msra.mxu0 0.0
    %2767 = vmatpush.xpose.msra.mxu0 0.0
    %2768 = vmatpush.xpose.msra.mxu0 0.0
    %2769 = vmatpush.xpose.msra.mxu0 0.0
    %2770 = vmatpush.xpose.msra.mxu0 0.0
    %2771 = vmatpush.xpose.msra.mxu0 0.0
    %2772 = vmatpush.xpose.msra.mxu0 0.0
    %2773 = vmatpush.xpose.msra.mxu0 0.0
    %2774 = vmatpush.xpose.msra.mxu0 0.0
    %2775 = vmatpush.xpose.msra.mxu0 0.0
    %2776 = vmatpush.xpose.msra.mxu0 0.0
    %2777 = vmatpush.xpose.msra.mxu0 %v2760
    %2778 = vmatmul.f32.gmra.mxu0 %v2757
    %v2779 = vpop.f32.mrf.mxu0
    %v2780 = vadd.f32 0.0, %v2779
    %2781 = vdwg.mxu0
    %v2783 = vsel %vm1767, %v1710, 0
    %v2786 = vsel %vm1767, %v1758, 0
    %2788 = vmatpush.xpose.msra.mxu0 0.0
    %2789 = vmatpush.xpose.msra.mxu0 0.0
    %2790 = vmatpush.xpose.msra.mxu0 0.0
    %2791 = vmatpush.xpose.msra.mxu0 0.0
    %2792 = vmatpush.xpose.msra.mxu0 0.0
    %2793 = vmatpush.xpose.msra.mxu0 0.0
    %2794 = vmatpush.xpose.msra.mxu0 0.0
    %2795 = vmatpush.xpose.msra.mxu0 0.0
    %2796 = vmatpush.xpose.msra.mxu0 0.0
    %2797 = vmatpush.xpose.msra.mxu0 0.0
    %2798 = vmatpush.xpose.msra.mxu0 0.0
    %2799 = vmatpush.xpose.msra.mxu0 0.0
    %2800 = vmatpush.xpose.msra.mxu0 0.0
    %2801 = vmatpush.xpose.msra.mxu0 0.0
    %2802 = vmatpush.xpose.msra.mxu0 0.0
    %2803 = vmatpush.xpose.msra.mxu0 %v2786
    %2804 = vmatmul.f32.gmra.mxu0 %v2783
    %v2805 = vpop.f32.mrf.mxu0
    %v2806 = vadd.f32 0.0, %v2805
    %2807 = vdwg.mxu0
    %v2809 = vsel %vm1767, %v1711, 0
    %v2812 = vsel %vm1767, %v1759, 0
    %2814 = vmatpush.xpose.msra.mxu0 0.0
    %2815 = vmatpush.xpose.msra.mxu0 0.0
    %2816 = vmatpush.xpose.msra.mxu0 0.0
    %2817 = vmatpush.xpose.msra.mxu0 0.0
    %2818 = vmatpush.xpose.msra.mxu0 0.0
    %2819 = vmatpush.xpose.msra.mxu0 0.0
    %2820 = vmatpush.xpose.msra.mxu0 0.0
    %2821 = vmatpush.xpose.msra.mxu0 0.0
    %2822 = vmatpush.xpose.msra.mxu0 0.0
    %2823 = vmatpush.xpose.msra.mxu0 0.0
    %2824 = vmatpush.xpose.msra.mxu0 0.0
    %2825 = vmatpush.xpose.msra.mxu0 0.0
    %2826 = vmatpush.xpose.msra.mxu0 0.0
    %2827 = vmatpush.xpose.msra.mxu0 0.0
    %2828 = vmatpush.xpose.msra.mxu0 0.0
    %2829 = vmatpush.xpose.msra.mxu0 %v2812
    %2830 = vmatmul.f32.gmra.mxu0 %v2809
    %v2831 = vpop.f32.mrf.mxu0
    %v2832 = vadd.f32 0.0, %v2831
    %2833 = vdwg.mxu0
    %v2835 = vsel %vm1767, %v1712, 0
    %v2838 = vsel %vm1767, %v1760, 0
    %2840 = vmatpush.xpose.msra.mxu0 0.0
    %2841 = vmatpush.xpose.msra.mxu0 0.0
    %2842 = vmatpush.xpose.msra.mxu0 0.0
    %2843 = vmatpush.xpose.msra.mxu0 0.0
    %2844 = vmatpush.xpose.msra.mxu0 0.0
    %2845 = vmatpush.xpose.msra.mxu0 0.0
    %2846 = vmatpush.xpose.msra.mxu0 0.0
    %2847 = vmatpush.xpose.msra.mxu0 0.0
    %2848 = vmatpush.xpose.msra.mxu0 0.0
    %2849 = vmatpush.xpose.msra.mxu0 0.0
    %2850 = vmatpush.xpose.msra.mxu0 0.0
    %2851 = vmatpush.xpose.msra.mxu0 0.0
    %2852 = vmatpush.xpose.msra.mxu0 0.0
    %2853 = vmatpush.xpose.msra.mxu0 0.0
    %2854 = vmatpush.xpose.msra.mxu0 0.0
    %2855 = vmatpush.xpose.msra.mxu0 %v2838
    %2856 = vmatmul.f32.gmra.mxu0 %v2835
    %v2857 = vpop.f32.mrf.mxu0
    %v2858 = vadd.f32 0.0, %v2857
    %2859 = vdwg.mxu0
    %v2861 = vsel %vm1767, %v1713, 0
    %v2864 = vsel %vm1767, %v1761, 0
    %2866 = vmatpush.xpose.msra.mxu0 0.0
    %2867 = vmatpush.xpose.msra.mxu0 0.0
    %2868 = vmatpush.xpose.msra.mxu0 0.0
    %2869 = vmatpush.xpose.msra.mxu0 0.0
    %2870 = vmatpush.xpose.msra.mxu0 0.0
    %2871 = vmatpush.xpose.msra.mxu0 0.0
    %2872 = vmatpush.xpose.msra.mxu0 0.0
    %2873 = vmatpush.xpose.msra.mxu0 0.0
    %2874 = vmatpush.xpose.msra.mxu0 0.0
    %2875 = vmatpush.xpose.msra.mxu0 0.0
    %2876 = vmatpush.xpose.msra.mxu0 0.0
    %2877 = vmatpush.xpose.msra.mxu0 0.0
    %2878 = vmatpush.xpose.msra.mxu0 0.0
    %2879 = vmatpush.xpose.msra.mxu0 0.0
    %2880 = vmatpush.xpose.msra.mxu0 0.0
    %2881 = vmatpush.xpose.msra.mxu0 %v2864
    %2882 = vmatmul.f32.gmra.mxu0 %v2861
    %v2883 = vpop.f32.mrf.mxu0
    %v2884 = vadd.f32 0.0, %v2883
    %2885 = vdwg.mxu0
    %v2887 = vsel %vm1767, %v1714, 0
    %v2890 = vsel %vm1767, %v1762, 0
    %2892 = vmatpush.xpose.msra.mxu0 0.0
    %2893 = vmatpush.xpose.msra.mxu0 0.0
    %2894 = vmatpush.xpose.msra.mxu0 0.0
    %2895 = vmatpush.xpose.msra.mxu0 0.0
    %2896 = vmatpush.xpose.msra.mxu0 0.0
    %2897 = vmatpush.xpose.msra.mxu0 0.0
    %2898 = vmatpush.xpose.msra.mxu0 0.0
    %2899 = vmatpush.xpose.msra.mxu0 0.0
    %2900 = vmatpush.xpose.msra.mxu0 0.0
    %2901 = vmatpush.xpose.msra.mxu0 0.0
    %2902 = vmatpush.xpose.msra.mxu0 0.0
    %2903 = vmatpush.xpose.msra.mxu0 0.0
    %2904 = vmatpush.xpose.msra.mxu0 0.0
    %2905 = vmatpush.xpose.msra.mxu0 0.0
    %2906 = vmatpush.xpose.msra.mxu0 0.0
    %2907 = vmatpush.xpose.msra.mxu0 %v2890
    %2908 = vmatmul.f32.gmra.mxu0 %v2887
    %v2909 = vpop.f32.mrf.mxu0
    %v2910 = vadd.f32 0.0, %v2909
    %2911 = vdwg.mxu0
    %v2913 = vsel %vm1767, %v1715, 0
    %v2916 = vsel %vm1767, %v1763, 0
    %2918 = vmatpush.xpose.msra.mxu0 0.0
    %2919 = vmatpush.xpose.msra.mxu0 0.0
    %2920 = vmatpush.xpose.msra.mxu0 0.0
    %2921 = vmatpush.xpose.msra.mxu0 0.0
    %2922 = vmatpush.xpose.msra.mxu0 0.0
    %2923 = vmatpush.xpose.msra.mxu0 0.0
    %2924 = vmatpush.xpose.msra.mxu0 0.0
    %2925 = vmatpush.xpose.msra.mxu0 0.0
    %2926 = vmatpush.xpose.msra.mxu0 0.0
    %2927 = vmatpush.xpose.msra.mxu0 0.0
    %2928 = vmatpush.xpose.msra.mxu0 0.0
    %2929 = vmatpush.xpose.msra.mxu0 0.0
    %2930 = vmatpush.xpose.msra.mxu0 0.0
    %2931 = vmatpush.xpose.msra.mxu0 0.0
    %2932 = vmatpush.xpose.msra.mxu0 0.0
    %2933 = vmatpush.xpose.msra.mxu0 %v2916
    %2934 = vmatmul.f32.gmra.mxu0 %v2913
    %v2935 = vpop.f32.mrf.mxu0
    %v2936 = vadd.f32 0.0, %v2935
    %2937 = vdwg.mxu0
    %v2939 = vsel %vm1767, %v1716, 0
    %v2942 = vsel %vm1767, %v1764, 0
    %2944 = vmatpush.xpose.msra.mxu0 0.0
    %2945 = vmatpush.xpose.msra.mxu0 0.0
    %2946 = vmatpush.xpose.msra.mxu0 0.0
    %2947 = vmatpush.xpose.msra.mxu0 0.0
    %2948 = vmatpush.xpose.msra.mxu0 0.0
    %2949 = vmatpush.xpose.msra.mxu0 0.0
    %2950 = vmatpush.xpose.msra.mxu0 0.0
    %2951 = vmatpush.xpose.msra.mxu0 0.0
    %2952 = vmatpush.xpose.msra.mxu0 0.0
    %2953 = vmatpush.xpose.msra.mxu0 0.0
    %2954 = vmatpush.xpose.msra.mxu0 0.0
    %2955 = vmatpush.xpose.msra.mxu0 0.0
    %2956 = vmatpush.xpose.msra.mxu0 0.0
    %2957 = vmatpush.xpose.msra.mxu0 0.0
    %2958 = vmatpush.xpose.msra.mxu0 0.0
    %2959 = vmatpush.xpose.msra.mxu0 %v2942
    %2960 = vmatmul.f32.gmra.mxu0 %v2939
    %v2961 = vpop.f32.mrf.mxu0
    %v2962 = vadd.f32 0.0, %v2961
    %2963 = vdwg.mxu0
    %v2965 = vsel %vm1767, %v1717, 0
    %v2968 = vsel %vm1767, %v1765, 0
    %2970 = vmatpush.xpose.msra.mxu0 0.0
    %2971 = vmatpush.xpose.msra.mxu0 0.0
    %2972 = vmatpush.xpose.msra.mxu0 0.0
    %2973 = vmatpush.xpose.msra.mxu0 0.0
    %2974 = vmatpush.xpose.msra.mxu0 0.0
    %2975 = vmatpush.xpose.msra.mxu0 0.0
    %2976 = vmatpush.xpose.msra.mxu0 0.0
    %2977 = vmatpush.xpose.msra.mxu0 0.0
    %2978 = vmatpush.xpose.msra.mxu0 0.0
    %2979 = vmatpush.xpose.msra.mxu0 0.0
    %2980 = vmatpush.xpose.msra.mxu0 0.0
    %2981 = vmatpush.xpose.msra.mxu0 0.0
    %2982 = vmatpush.xpose.msra.mxu0 0.0
    %2983 = vmatpush.xpose.msra.mxu0 0.0
    %2984 = vmatpush.xpose.msra.mxu0 0.0
    %2985 = vmatpush.xpose.msra.mxu0 %v2968
    %2986 = vmatmul.f32.gmra.mxu0 %v2965
    %v2987 = vpop.f32.mrf.mxu0
    %v2988 = vadd.f32 0.0, %v2987
    %2989 = vdwg.mxu0
    %v2991 = vsel %vm1767, %v1718, 0
    %v2994 = vsel %vm1767, %v1766, 0
    %2996 = vmatpush.xpose.msra.mxu0 0.0
    %2997 = vmatpush.xpose.msra.mxu0 0.0
    %2998 = vmatpush.xpose.msra.mxu0 0.0
    %2999 = vmatpush.xpose.msra.mxu0 0.0
    %3000 = vmatpush.xpose.msra.mxu0 0.0
    %3001 = vmatpush.xpose.msra.mxu0 0.0
    %3002 = vmatpush.xpose.msra.mxu0 0.0
    %3003 = vmatpush.xpose.msra.mxu0 0.0
    %3004 = vmatpush.xpose.msra.mxu0 0.0
    %3005 = vmatpush.xpose.msra.mxu0 0.0
    %3006 = vmatpush.xpose.msra.mxu0 0.0
    %3007 = vmatpush.xpose.msra.mxu0 0.0
    %3008 = vmatpush.xpose.msra.mxu0 0.0
    %3009 = vmatpush.xpose.msra.mxu0 0.0
    %3010 = vmatpush.xpose.msra.mxu0 0.0
    %3011 = vmatpush.xpose.msra.mxu0 %v2994
    %3012 = vmatmul.f32.gmra.mxu0 %v2991
    %v3013 = vpop.f32.mrf.mxu0
    %v3014 = vadd.f32 0.0, %v3013
    %3015 = vdwg.mxu0
    %vm3016 = vcmask 33792
    %v3017 = vsel %vm3016, %v1792, 0.0
    %v3018 = vsel %vm3016, %v1818, 0.0
    %v3019 = vadd.f32 %v3017, %v3018
    %v3020 = vsel %vm3016, %v1844, 0.0
    %v3021 = vadd.f32 %v3019, %v3020
    %v3022 = vsel %vm3016, %v1870, 0.0
    %v3023 = vadd.f32 %v3021, %v3022
    %v3024 = vsel %vm3016, %v1896, 0.0
    %v3025 = vadd.f32 %v3023, %v3024
    %v3026 = vsel %vm3016, %v1922, 0.0
    %v3027 = vadd.f32 %v3025, %v3026
    %v3028 = vsel %vm3016, %v1948, 0.0
    %v3029 = vadd.f32 %v3027, %v3028
    %v3030 = vsel %vm3016, %v1974, 0.0
    %v3031 = vadd.f32 %v3029, %v3030
    %v3032 = vsel %vm3016, %v2000, 0.0
    %v3033 = vadd.f32 %v3031, %v3032
    %v3034 = vsel %vm3016, %v2026, 0.0
    %v3035 = vadd.f32 %v3033, %v3034
    %v3036 = vsel %vm3016, %v2052, 0.0
    %v3037 = vadd.f32 %v3035, %v3036
    %v3038 = vsel %vm3016, %v2078, 0.0
    %v3039 = vadd.f32 %v3037, %v3038
    %v3040 = vsel %vm3016, %v2104, 0.0
    %v3041 = vadd.f32 %v3039, %v3040
    %v3042 = vsel %vm3016, %v2130, 0.0
    %v3043 = vadd.f32 %v3041, %v3042
    %v3044 = vsel %vm3016, %v2156, 0.0
    %v3045 = vadd.f32 %v3043, %v3044
    %v3046 = vsel %vm3016, %v2182, 0.0
    %v3047 = vadd.f32 %v3045, %v3046
    %v3048 = vsel %vm3016, %v2208, 0.0
    %v3049 = vadd.f32 %v3047, %v3048
    %v3050 = vsel %vm3016, %v2234, 0.0
    %v3051 = vadd.f32 %v3049, %v3050
    %v3052 = vsel %vm3016, %v2260, 0.0
    %v3053 = vadd.f32 %v3051, %v3052
    %v3054 = vsel %vm3016, %v2286, 0.0
    %v3055 = vadd.f32 %v3053, %v3054
    %v3056 = vsel %vm3016, %v2312, 0.0
    %v3057 = vadd.f32 %v3055, %v3056
    %v3058 = vsel %vm3016, %v2338, 0.0
    %v3059 = vadd.f32 %v3057, %v3058
    %v3060 = vsel %vm3016, %v2364, 0.0
    %v3061 = vadd.f32 %v3059, %v3060
    %v3062 = vsel %vm3016, %v2390, 0.0
    %v3063 = vadd.f32 %v3061, %v3062
    %v3064 = vsel %vm3016, %v2416, 0.0
    %v3065 = vadd.f32 %v3063, %v3064
    %v3066 = vsel %vm3016, %v2442, 0.0
    %v3067 = vadd.f32 %v3065, %v3066
    %v3068 = vsel %vm3016, %v2468, 0.0
    %v3069 = vadd.f32 %v3067, %v3068
    %v3070 = vsel %vm3016, %v2494, 0.0
    %v3071 = vadd.f32 %v3069, %v3070
    %v3072 = vsel %vm3016, %v2520, 0.0
    %v3073 = vadd.f32 %v3071, %v3072
    %v3074 = vsel %vm3016, %v2546, 0.0
    %v3075 = vadd.f32 %v3073, %v3074
    %v3076 = vsel %vm3016, %v2572, 0.0
    %v3077 = vadd.f32 %v3075, %v3076
    %v3078 = vsel %vm3016, %v2598, 0.0
    %v3079 = vadd.f32 %v3077, %v3078
    %v3080 = vsel %vm3016, %v2624, 0.0
    %v3081 = vadd.f32 %v3079, %v3080
    %v3082 = vsel %vm3016, %v2650, 0.0
    %v3083 = vadd.f32 %v3081, %v3082
    %v3084 = vsel %vm3016, %v2676, 0.0
    %v3085 = vadd.f32 %v3083, %v3084
    %v3086 = vsel %vm3016, %v2702, 0.0
    %v3087 = vadd.f32 %v3085, %v3086
    %v3088 = vsel %vm3016, %v2728, 0.0
    %v3089 = vadd.f32 %v3087, %v3088
    %v3090 = vsel %vm3016, %v2754, 0.0
    %v3091 = vadd.f32 %v3089, %v3090
    %v3092 = vsel %vm3016, %v2780, 0.0
    %v3093 = vadd.f32 %v3091, %v3092
    %v3094 = vsel %vm3016, %v2806, 0.0
    %v3095 = vadd.f32 %v3093, %v3094
    %v3096 = vsel %vm3016, %v2832, 0.0
    %v3097 = vadd.f32 %v3095, %v3096
    %v3098 = vsel %vm3016, %v2858, 0.0
    %v3099 = vadd.f32 %v3097, %v3098
    %v3100 = vsel %vm3016, %v2884, 0.0
    %v3101 = vadd.f32 %v3099, %v3100
    %v3102 = vsel %vm3016, %v2910, 0.0
    %v3103 = vadd.f32 %v3101, %v3102
    %v3104 = vsel %vm3016, %v2936, 0.0
    %v3105 = vadd.f32 %v3103, %v3104
    %v3106 = vsel %vm3016, %v2962, 0.0
    %v3107 = vadd.f32 %v3105, %v3106
    %v3108 = vsel %vm3016, %v2988, 0.0
    %v3109 = vadd.f32 %v3107, %v3108
    %v3110 = vsel %vm3016, %v3014, 0.0
    %v3111 = vadd.f32 %v3109, %v3110
    %v3112 = vadd.f32 %v3111, 0.0
    %s3113 = sld [smem:[#allocation3 + $0x80]]
    %v3114 = vstv %s3113
    %v3115 = vmul.f32 %v3114, %v63
    %v3116 = vmul.f32 %v3114, %v64
    %v3117 = vmul.f32 %v3114, %v65
    %v3118 = vmul.f32 %v3114, %v66
    %v3119 = vmul.f32 %v3114, %v67
    %v3120 = vmul.f32 %v3114, %v68
    %v3121 = vmul.f32 %v3114, %v69
    %v3122 = vmul.f32 %v3114, %v70
    %v3123 = vmul.f32 %v3114, %v71
    %v3124 = vmul.f32 %v3114, %v72
    %v3125 = vmul.f32 %v3114, %v73
    %v3126 = vmul.f32 %v3114, %v74
    %v3127 = vmul.f32 %v3114, %v87
    %v3128 = vmul.f32 %v3114, %v88
    %v3129 = vmul.f32 %v3114, %v89
    %v3130 = vmul.f32 %v3114, %v90
    %v3131 = vmul.f32 %v3114, %v91
    %v3132 = vmul.f32 %v3114, %v92
    %v3133 = vmul.f32 %v3114, %v93
    %v3134 = vmul.f32 %v3114, %v94
    %v3135 = vmul.f32 %v3114, %v95
    %v3136 = vmul.f32 %v3114, %v96
    %v3137 = vmul.f32 %v3114, %v97
    %v3138 = vmul.f32 %v3114, %v98
    %s3139 = sld [smem:[#allocation3 + $0x81]]
    %v3140 = vstv %s3139
    %v3141 = vmul.f32 %v3140, %v63
    %v3142 = vmul.f32 %v3140, %v64
    %v3143 = vmul.f32 %v3140, %v65
    %v3144 = vmul.f32 %v3140, %v66
    %v3145 = vmul.f32 %v3140, %v67
    %v3146 = vmul.f32 %v3140, %v68
    %v3147 = vmul.f32 %v3140, %v69
    %v3148 = vmul.f32 %v3140, %v70
    %v3149 = vmul.f32 %v3140, %v71
    %v3150 = vmul.f32 %v3140, %v72
    %v3151 = vmul.f32 %v3140, %v73
    %v3152 = vmul.f32 %v3140, %v74
    %3165 = vrot.lane.b32.xlu0 %v3141, 127
    %v3166 = vpop.permute.xlu0 %3165
    %3167 = vrot.lane.b32.xlu0 %v3142, 127
    %v3168 = vpop.permute.xlu0 %3167
    %3169 = vrot.lane.b32.xlu0 %v3143, 127
    %v3170 = vpop.permute.xlu0 %3169
    %3171 = vrot.lane.b32.xlu0 %v3144, 127
    %v3172 = vpop.permute.xlu0 %3171
    %3173 = vrot.lane.b32.xlu0 %v3145, 127
    %v3174 = vpop.permute.xlu0 %3173
    %3175 = vrot.lane.b32.xlu0 %v3146, 127
    %v3176 = vpop.permute.xlu0 %3175
    %3177 = vrot.lane.b32.xlu0 %v3147, 127
    %v3178 = vpop.permute.xlu0 %3177
    %3179 = vrot.lane.b32.xlu0 %v3148, 127
    %v3180 = vpop.permute.xlu0 %3179
    %3181 = vrot.lane.b32.xlu0 %v3149, 127
    %v3182 = vpop.permute.xlu0 %3181
    %3183 = vrot.lane.b32.xlu0 %v3150, 127
    %v3184 = vpop.permute.xlu0 %3183
    %3185 = vrot.lane.b32.xlu0 %v3151, 127
    %v3186 = vpop.permute.xlu0 %3185
    %3187 = vrot.lane.b32.xlu0 %v3152, 127
    %v3188 = vpop.permute.xlu0 %3187
    %v3201 = vadd.f32 %v3115, %v3166
    %v3202 = vadd.f32 %v3116, %v3168
    %v3203 = vadd.f32 %v3117, %v3170
    %v3204 = vadd.f32 %v3118, %v3172
    %v3205 = vadd.f32 %v3119, %v3174
    %v3206 = vadd.f32 %v3120, %v3176
    %v3207 = vadd.f32 %v3121, %v3178
    %v3208 = vadd.f32 %v3122, %v3180
    %v3209 = vadd.f32 %v3123, %v3182
    %v3210 = vadd.f32 %v3124, %v3184
    %v3211 = vadd.f32 %v3125, %v3186
    %v3212 = vadd.f32 %v3126, %v3188
    %v3213 = vmul.f32 %v3140, %v87
    %v3214 = vmul.f32 %v3140, %v88
    %v3215 = vmul.f32 %v3140, %v89
    %v3216 = vmul.f32 %v3140, %v90
    %v3217 = vmul.f32 %v3140, %v91
    %v3218 = vmul.f32 %v3140, %v92
    %v3219 = vmul.f32 %v3140, %v93
    %v3220 = vmul.f32 %v3140, %v94
    %v3221 = vmul.f32 %v3140, %v95
    %v3222 = vmul.f32 %v3140, %v96
    %v3223 = vmul.f32 %v3140, %v97
    %v3224 = vmul.f32 %v3140, %v98
    %3237 = vrot.lane.b32.xlu0 %v3213, 127
    %v3238 = vpop.permute.xlu0 %3237
    %3239 = vrot.lane.b32.xlu0 %v3214, 127
    %v3240 = vpop.permute.xlu0 %3239
    %3241 = vrot.lane.b32.xlu0 %v3215, 127
    %v3242 = vpop.permute.xlu0 %3241
    %3243 = vrot.lane.b32.xlu0 %v3216, 127
    %v3244 = vpop.permute.xlu0 %3243
    %3245 = vrot.lane.b32.xlu0 %v3217, 127
    %v3246 = vpop.permute.xlu0 %3245
    %3247 = vrot.lane.b32.xlu0 %v3218, 127
    %v3248 = vpop.permute.xlu0 %3247
    %3249 = vrot.lane.b32.xlu0 %v3219, 127
    %v3250 = vpop.permute.xlu0 %3249
    %3251 = vrot.lane.b32.xlu0 %v3220, 127
    %v3252 = vpop.permute.xlu0 %3251
    %3253 = vrot.lane.b32.xlu0 %v3221, 127
    %v3254 = vpop.permute.xlu0 %3253
    %3255 = vrot.lane.b32.xlu0 %v3222, 127
    %v3256 = vpop.permute.xlu0 %3255
    %3257 = vrot.lane.b32.xlu0 %v3223, 127
    %v3258 = vpop.permute.xlu0 %3257
    %3259 = vrot.lane.b32.xlu0 %v3224, 127
    %v3260 = vpop.permute.xlu0 %3259
    %v3273 = vadd.f32 %v3127, %v3238
    %v3274 = vadd.f32 %v3128, %v3240
    %v3275 = vadd.f32 %v3129, %v3242
    %v3276 = vadd.f32 %v3130, %v3244
    %v3277 = vadd.f32 %v3131, %v3246
    %v3278 = vadd.f32 %v3132, %v3248
    %v3279 = vadd.f32 %v3133, %v3250
    %v3280 = vadd.f32 %v3134, %v3252
    %v3281 = vadd.f32 %v3135, %v3254
    %v3282 = vadd.f32 %v3136, %v3256
    %v3283 = vadd.f32 %v3137, %v3258
    %v3284 = vadd.f32 %v3138, %v3260
    %s3285 = sld [smem:[#allocation3 + $0x82]]
    %v3286 = vstv %s3285
    %v3287 = vmul.f32 %v3286, %v63
    %v3288 = vmul.f32 %v3286, %v64
    %v3289 = vmul.f32 %v3286, %v65
    %v3290 = vmul.f32 %v3286, %v66
    %v3291 = vmul.f32 %v3286, %v67
    %v3292 = vmul.f32 %v3286, %v68
    %v3293 = vmul.f32 %v3286, %v69
    %v3294 = vmul.f32 %v3286, %v70
    %v3295 = vmul.f32 %v3286, %v71
    %v3296 = vmul.f32 %v3286, %v72
    %v3297 = vmul.f32 %v3286, %v73
    %v3298 = vmul.f32 %v3286, %v74
    %3311 = vrot.lane.b32.xlu0 %v3287, 126
    %v3312 = vpop.permute.xlu0 %3311
    %3313 = vrot.lane.b32.xlu0 %v3288, 126
    %v3314 = vpop.permute.xlu0 %3313
    %3315 = vrot.lane.b32.xlu0 %v3289, 126
    %v3316 = vpop.permute.xlu0 %3315
    %3317 = vrot.lane.b32.xlu0 %v3290, 126
    %v3318 = vpop.permute.xlu0 %3317
    %3319 = vrot.lane.b32.xlu0 %v3291, 126
    %v3320 = vpop.permute.xlu0 %3319
    %3321 = vrot.lane.b32.xlu0 %v3292, 126
    %v3322 = vpop.permute.xlu0 %3321
    %3323 = vrot.lane.b32.xlu0 %v3293, 126
    %v3324 = vpop.permute.xlu0 %3323
    %3325 = vrot.lane.b32.xlu0 %v3294, 126
    %v3326 = vpop.permute.xlu0 %3325
    %3327 = vrot.lane.b32.xlu0 %v3295, 126
    %v3328 = vpop.permute.xlu0 %3327
    %3329 = vrot.lane.b32.xlu0 %v3296, 126
    %v3330 = vpop.permute.xlu0 %3329
    %3331 = vrot.lane.b32.xlu0 %v3297, 126
    %v3332 = vpop.permute.xlu0 %3331
    %3333 = vrot.lane.b32.xlu0 %v3298, 126
    %v3334 = vpop.permute.xlu0 %3333
    %v3347 = vadd.f32 %v3201, %v3312
    %v3348 = vadd.f32 %v3202, %v3314
    %v3349 = vadd.f32 %v3203, %v3316
    %v3350 = vadd.f32 %v3204, %v3318
    %v3351 = vadd.f32 %v3205, %v3320
    %v3352 = vadd.f32 %v3206, %v3322
    %v3353 = vadd.f32 %v3207, %v3324
    %v3354 = vadd.f32 %v3208, %v3326
    %v3355 = vadd.f32 %v3209, %v3328
    %v3356 = vadd.f32 %v3210, %v3330
    %v3357 = vadd.f32 %v3211, %v3332
    %v3358 = vadd.f32 %v3212, %v3334
    %v3359 = vmul.f32 %v3286, %v87
    %v3360 = vmul.f32 %v3286, %v88
    %v3361 = vmul.f32 %v3286, %v89
    %v3362 = vmul.f32 %v3286, %v90
    %v3363 = vmul.f32 %v3286, %v91
    %v3364 = vmul.f32 %v3286, %v92
    %v3365 = vmul.f32 %v3286, %v93
    %v3366 = vmul.f32 %v3286, %v94
    %v3367 = vmul.f32 %v3286, %v95
    %v3368 = vmul.f32 %v3286, %v96
    %v3369 = vmul.f32 %v3286, %v97
    %v3370 = vmul.f32 %v3286, %v98
    %3383 = vrot.lane.b32.xlu0 %v3359, 126
    %v3384 = vpop.permute.xlu0 %3383
    %3385 = vrot.lane.b32.xlu0 %v3360, 126
    %v3386 = vpop.permute.xlu0 %3385
    %3387 = vrot.lane.b32.xlu0 %v3361, 126
    %v3388 = vpop.permute.xlu0 %3387
    %3389 = vrot.lane.b32.xlu0 %v3362, 126
    %v3390 = vpop.permute.xlu0 %3389
    %3391 = vrot.lane.b32.xlu0 %v3363, 126
    %v3392 = vpop.permute.xlu0 %3391
    %3393 = vrot.lane.b32.xlu0 %v3364, 126
    %v3394 = vpop.permute.xlu0 %3393
    %3395 = vrot.lane.b32.xlu0 %v3365, 126
    %v3396 = vpop.permute.xlu0 %3395
    %3397 = vrot.lane.b32.xlu0 %v3366, 126
    %v3398 = vpop.permute.xlu0 %3397
    %3399 = vrot.lane.b32.xlu0 %v3367, 126
    %v3400 = vpop.permute.xlu0 %3399
    %3401 = vrot.lane.b32.xlu0 %v3368, 126
    %v3402 = vpop.permute.xlu0 %3401
    %3403 = vrot.lane.b32.xlu0 %v3369, 126
    %v3404 = vpop.permute.xlu0 %3403
    %3405 = vrot.lane.b32.xlu0 %v3370, 126
    %v3406 = vpop.permute.xlu0 %3405
    %v3419 = vadd.f32 %v3273, %v3384
    %v3420 = vadd.f32 %v3274, %v3386
    %v3421 = vadd.f32 %v3275, %v3388
    %v3422 = vadd.f32 %v3276, %v3390
    %v3423 = vadd.f32 %v3277, %v3392
    %v3424 = vadd.f32 %v3278, %v3394
    %v3425 = vadd.f32 %v3279, %v3396
    %v3426 = vadd.f32 %v3280, %v3398
    %v3427 = vadd.f32 %v3281, %v3400
    %v3428 = vadd.f32 %v3282, %v3402
    %v3429 = vadd.f32 %v3283, %v3404
    %v3430 = vadd.f32 %v3284, %v3406
    %s3431 = sld [smem:[#allocation3 + $0x83]]
    %v3432 = vstv %s3431
    %v3433 = vmul.f32 %v3432, %v87
    %v3434 = vmul.f32 %v3432, %v88
    %v3435 = vmul.f32 %v3432, %v89
    %v3436 = vmul.f32 %v3432, %v90
    %v3437 = vmul.f32 %v3432, %v91
    %v3438 = vmul.f32 %v3432, %v92
    %v3439 = vmul.f32 %v3432, %v93
    %v3440 = vmul.f32 %v3432, %v94
    %v3441 = vmul.f32 %v3432, %v95
    %v3442 = vmul.f32 %v3432, %v96
    %v3443 = vmul.f32 %v3432, %v97
    %v3444 = vmul.f32 %v3432, %v98
    %v3445 = vadd.f32 %v3347, %v3433
    %v3446 = vadd.f32 %v3348, %v3434
    %v3447 = vadd.f32 %v3349, %v3435
    %v3448 = vadd.f32 %v3350, %v3436
    %v3449 = vadd.f32 %v3351, %v3437
    %v3450 = vadd.f32 %v3352, %v3438
    %v3451 = vadd.f32 %v3353, %v3439
    %v3452 = vadd.f32 %v3354, %v3440
    %v3453 = vadd.f32 %v3355, %v3441
    %v3454 = vadd.f32 %v3356, %v3442
    %v3455 = vadd.f32 %v3357, %v3443
    %v3456 = vadd.f32 %v3358, %v3444
    %v3457 = vmul.f32 %v3432, %v75
    %v3458 = vmul.f32 %v3432, %v76
    %v3459 = vmul.f32 %v3432, %v77
    %v3460 = vmul.f32 %v3432, %v78
    %v3461 = vmul.f32 %v3432, %v79
    %v3462 = vmul.f32 %v3432, %v80
    %v3463 = vmul.f32 %v3432, %v81
    %v3464 = vmul.f32 %v3432, %v82
    %v3465 = vmul.f32 %v3432, %v83
    %v3466 = vmul.f32 %v3432, %v84
    %v3467 = vmul.f32 %v3432, %v85
    %v3468 = vmul.f32 %v3432, %v86
    %v3469 = vadd.f32 %v3419, %v3457
    %v3470 = vadd.f32 %v3420, %v3458
    %v3471 = vadd.f32 %v3421, %v3459
    %v3472 = vadd.f32 %v3422, %v3460
    %v3473 = vadd.f32 %v3423, %v3461
    %v3474 = vadd.f32 %v3424, %v3462
    %v3475 = vadd.f32 %v3425, %v3463
    %v3476 = vadd.f32 %v3426, %v3464
    %v3477 = vadd.f32 %v3427, %v3465
    %v3478 = vadd.f32 %v3428, %v3466
    %v3479 = vadd.f32 %v3429, %v3467
    %v3480 = vadd.f32 %v3430, %v3468
    %s3481 = sld [smem:[#allocation3 + $0x84]]
    %v3482 = vstv %s3481
    %v3483 = vmul.f32 %v3482, %v87
    %v3484 = vmul.f32 %v3482, %v88
    %v3485 = vmul.f32 %v3482, %v89
    %v3486 = vmul.f32 %v3482, %v90
    %v3487 = vmul.f32 %v3482, %v91
    %v3488 = vmul.f32 %v3482, %v92
    %v3489 = vmul.f32 %v3482, %v93
    %v3490 = vmul.f32 %v3482, %v94
    %v3491 = vmul.f32 %v3482, %v95
    %v3492 = vmul.f32 %v3482, %v96
    %v3493 = vmul.f32 %v3482, %v97
    %v3494 = vmul.f32 %v3482, %v98
    %3507 = vrot.lane.b32.xlu0 %v3483, 127
    %v3508 = vpop.permute.xlu0 %3507
    %3509 = vrot.lane.b32.xlu0 %v3484, 127
    %v3510 = vpop.permute.xlu0 %3509
    %3511 = vrot.lane.b32.xlu0 %v3485, 127
    %v3512 = vpop.permute.xlu0 %3511
    %3513 = vrot.lane.b32.xlu0 %v3486, 127
    %v3514 = vpop.permute.xlu0 %3513
    %3515 = vrot.lane.b32.xlu0 %v3487, 127
    %v3516 = vpop.permute.xlu0 %3515
    %3517 = vrot.lane.b32.xlu0 %v3488, 127
    %v3518 = vpop.permute.xlu0 %3517
    %3519 = vrot.lane.b32.xlu0 %v3489, 127
    %v3520 = vpop.permute.xlu0 %3519
    %3521 = vrot.lane.b32.xlu0 %v3490, 127
    %v3522 = vpop.permute.xlu0 %3521
    %3523 = vrot.lane.b32.xlu0 %v3491, 127
    %v3524 = vpop.permute.xlu0 %3523
    %3525 = vrot.lane.b32.xlu0 %v3492, 127
    %v3526 = vpop.permute.xlu0 %3525
    %3527 = vrot.lane.b32.xlu0 %v3493, 127
    %v3528 = vpop.permute.xlu0 %3527
    %3529 = vrot.lane.b32.xlu0 %v3494, 127
    %v3530 = vpop.permute.xlu0 %3529
    %v3543 = vadd.f32 %v3445, %v3508
    %v3544 = vadd.f32 %v3446, %v3510
    %v3545 = vadd.f32 %v3447, %v3512
    %v3546 = vadd.f32 %v3448, %v3514
    %v3547 = vadd.f32 %v3449, %v3516
    %v3548 = vadd.f32 %v3450, %v3518
    %v3549 = vadd.f32 %v3451, %v3520
    %v3550 = vadd.f32 %v3452, %v3522
    %v3551 = vadd.f32 %v3453, %v3524
    %v3552 = vadd.f32 %v3454, %v3526
    %v3553 = vadd.f32 %v3455, %v3528
    %v3554 = vadd.f32 %v3456, %v3530
    %v3555 = vmul.f32 %v3482, %v75
    %v3556 = vmul.f32 %v3482, %v76
    %v3557 = vmul.f32 %v3482, %v77
    %v3558 = vmul.f32 %v3482, %v78
    %v3559 = vmul.f32 %v3482, %v79
    %v3560 = vmul.f32 %v3482, %v80
    %v3561 = vmul.f32 %v3482, %v81
    %v3562 = vmul.f32 %v3482, %v82
    %v3563 = vmul.f32 %v3482, %v83
    %v3564 = vmul.f32 %v3482, %v84
    %v3565 = vmul.f32 %v3482, %v85
    %v3566 = vmul.f32 %v3482, %v86
    %3579 = vrot.lane.b32.xlu0 %v3555, 127
    %v3580 = vpop.permute.xlu0 %3579
    %3581 = vrot.lane.b32.xlu0 %v3556, 127
    %v3582 = vpop.permute.xlu0 %3581
    %3583 = vrot.lane.b32.xlu0 %v3557, 127
    %v3584 = vpop.permute.xlu0 %3583
    %3585 = vrot.lane.b32.xlu0 %v3558, 127
    %v3586 = vpop.permute.xlu0 %3585
    %3587 = vrot.lane.b32.xlu0 %v3559, 127
    %v3588 = vpop.permute.xlu0 %3587
    %3589 = vrot.lane.b32.xlu0 %v3560, 127
    %v3590 = vpop.permute.xlu0 %3589
    %3591 = vrot.lane.b32.xlu0 %v3561, 127
    %v3592 = vpop.permute.xlu0 %3591
    %3593 = vrot.lane.b32.xlu0 %v3562, 127
    %v3594 = vpop.permute.xlu0 %3593
    %3595 = vrot.lane.b32.xlu0 %v3563, 127
    %v3596 = vpop.permute.xlu0 %3595
    %3597 = vrot.lane.b32.xlu0 %v3564, 127
    %v3598 = vpop.permute.xlu0 %3597
    %3599 = vrot.lane.b32.xlu0 %v3565, 127
    %v3600 = vpop.permute.xlu0 %3599
    %3601 = vrot.lane.b32.xlu0 %v3566, 127
    %v3602 = vpop.permute.xlu0 %3601
    %v3615 = vadd.f32 %v3469, %v3580
    %v3616 = vadd.f32 %v3470, %v3582
    %v3617 = vadd.f32 %v3471, %v3584
    %v3618 = vadd.f32 %v3472, %v3586
    %v3619 = vadd.f32 %v3473, %v3588
    %v3620 = vadd.f32 %v3474, %v3590
    %v3621 = vadd.f32 %v3475, %v3592
    %v3622 = vadd.f32 %v3476, %v3594
    %v3623 = vadd.f32 %v3477, %v3596
    %v3624 = vadd.f32 %v3478, %v3598
    %v3625 = vadd.f32 %v3479, %v3600
    %v3626 = vadd.f32 %v3480, %v3602
    %s3627 = sld [smem:[#allocation3 + $0x85]]
    %v3628 = vstv %s3627
    %v3629 = vmul.f32 %v3628, %v87
    %v3630 = vmul.f32 %v3628, %v88
    %v3631 = vmul.f32 %v3628, %v89
    %v3632 = vmul.f32 %v3628, %v90
    %v3633 = vmul.f32 %v3628, %v91
    %v3634 = vmul.f32 %v3628, %v92
    %v3635 = vmul.f32 %v3628, %v93
    %v3636 = vmul.f32 %v3628, %v94
    %v3637 = vmul.f32 %v3628, %v95
    %v3638 = vmul.f32 %v3628, %v96
    %v3639 = vmul.f32 %v3628, %v97
    %v3640 = vmul.f32 %v3628, %v98
    %3653 = vrot.lane.b32.xlu0 %v3629, 126
    %v3654 = vpop.permute.xlu0 %3653
    %3655 = vrot.lane.b32.xlu0 %v3630, 126
    %v3656 = vpop.permute.xlu0 %3655
    %3657 = vrot.lane.b32.xlu0 %v3631, 126
    %v3658 = vpop.permute.xlu0 %3657
    %3659 = vrot.lane.b32.xlu0 %v3632, 126
    %v3660 = vpop.permute.xlu0 %3659
    %3661 = vrot.lane.b32.xlu0 %v3633, 126
    %v3662 = vpop.permute.xlu0 %3661
    %3663 = vrot.lane.b32.xlu0 %v3634, 126
    %v3664 = vpop.permute.xlu0 %3663
    %3665 = vrot.lane.b32.xlu0 %v3635, 126
    %v3666 = vpop.permute.xlu0 %3665
    %3667 = vrot.lane.b32.xlu0 %v3636, 126
    %v3668 = vpop.permute.xlu0 %3667
    %3669 = vrot.lane.b32.xlu0 %v3637, 126
    %v3670 = vpop.permute.xlu0 %3669
    %3671 = vrot.lane.b32.xlu0 %v3638, 126
    %v3672 = vpop.permute.xlu0 %3671
    %3673 = vrot.lane.b32.xlu0 %v3639, 126
    %v3674 = vpop.permute.xlu0 %3673
    %3675 = vrot.lane.b32.xlu0 %v3640, 126
    %v3676 = vpop.permute.xlu0 %3675
    %v3689 = vadd.f32 %v3543, %v3654
    %v3690 = vadd.f32 %v3544, %v3656
    %v3691 = vadd.f32 %v3545, %v3658
    %v3692 = vadd.f32 %v3546, %v3660
    %v3693 = vadd.f32 %v3547, %v3662
    %v3694 = vadd.f32 %v3548, %v3664
    %v3695 = vadd.f32 %v3549, %v3666
    %v3696 = vadd.f32 %v3550, %v3668
    %v3697 = vadd.f32 %v3551, %v3670
    %v3698 = vadd.f32 %v3552, %v3672
    %v3699 = vadd.f32 %v3553, %v3674
    %v3700 = vadd.f32 %v3554, %v3676
    %v3701 = vmul.f32 %v3628, %v75
    %v3702 = vmul.f32 %v3628, %v76
    %v3703 = vmul.f32 %v3628, %v77
    %v3704 = vmul.f32 %v3628, %v78
    %v3705 = vmul.f32 %v3628, %v79
    %v3706 = vmul.f32 %v3628, %v80
    %v3707 = vmul.f32 %v3628, %v81
    %v3708 = vmul.f32 %v3628, %v82
    %v3709 = vmul.f32 %v3628, %v83
    %v3710 = vmul.f32 %v3628, %v84
    %v3711 = vmul.f32 %v3628, %v85
    %v3712 = vmul.f32 %v3628, %v86
    %3725 = vrot.lane.b32.xlu0 %v3701, 126
    %v3726 = vpop.permute.xlu0 %3725
    %3727 = vrot.lane.b32.xlu0 %v3702, 126
    %v3728 = vpop.permute.xlu0 %3727
    %3729 = vrot.lane.b32.xlu0 %v3703, 126
    %v3730 = vpop.permute.xlu0 %3729
    %3731 = vrot.lane.b32.xlu0 %v3704, 126
    %v3732 = vpop.permute.xlu0 %3731
    %3733 = vrot.lane.b32.xlu0 %v3705, 126
    %v3734 = vpop.permute.xlu0 %3733
    %3735 = vrot.lane.b32.xlu0 %v3706, 126
    %v3736 = vpop.permute.xlu0 %3735
    %3737 = vrot.lane.b32.xlu0 %v3707, 126
    %v3738 = vpop.permute.xlu0 %3737
    %3739 = vrot.lane.b32.xlu0 %v3708, 126
    %v3740 = vpop.permute.xlu0 %3739
    %3741 = vrot.lane.b32.xlu0 %v3709, 126
    %v3742 = vpop.permute.xlu0 %3741
    %3743 = vrot.lane.b32.xlu0 %v3710, 126
    %v3744 = vpop.permute.xlu0 %3743
    %3745 = vrot.lane.b32.xlu0 %v3711, 126
    %v3746 = vpop.permute.xlu0 %3745
    %3747 = vrot.lane.b32.xlu0 %v3712, 126
    %v3748 = vpop.permute.xlu0 %3747
    %v3761 = vadd.f32 %v3615, %v3726
    %v3762 = vadd.f32 %v3616, %v3728
    %v3763 = vadd.f32 %v3617, %v3730
    %v3764 = vadd.f32 %v3618, %v3732
    %v3765 = vadd.f32 %v3619, %v3734
    %v3766 = vadd.f32 %v3620, %v3736
    %v3767 = vadd.f32 %v3621, %v3738
    %v3768 = vadd.f32 %v3622, %v3740
    %v3769 = vadd.f32 %v3623, %v3742
    %v3770 = vadd.f32 %v3624, %v3744
    %v3771 = vadd.f32 %v3625, %v3746
    %v3772 = vadd.f32 %v3626, %v3748
    %s3773 = sld [smem:[#allocation3 + $0x86]]
    %v3774 = vstv %s3773
    %v3775 = vmul.f32 %v3774, %v75
    %v3776 = vmul.f32 %v3774, %v76
    %v3777 = vmul.f32 %v3774, %v77
    %v3778 = vmul.f32 %v3774, %v78
    %v3779 = vmul.f32 %v3774, %v79
    %v3780 = vmul.f32 %v3774, %v80
    %v3781 = vmul.f32 %v3774, %v81
    %v3782 = vmul.f32 %v3774, %v82
    %v3783 = vmul.f32 %v3774, %v83
    %v3784 = vmul.f32 %v3774, %v84
    %v3785 = vmul.f32 %v3774, %v85
    %v3786 = vmul.f32 %v3774, %v86
    %v3787 = vadd.f32 %v3689, %v3775
    %v3788 = vadd.f32 %v3690, %v3776
    %v3789 = vadd.f32 %v3691, %v3777
    %v3790 = vadd.f32 %v3692, %v3778
    %v3791 = vadd.f32 %v3693, %v3779
    %v3792 = vadd.f32 %v3694, %v3780
    %v3793 = vadd.f32 %v3695, %v3781
    %v3794 = vadd.f32 %v3696, %v3782
    %v3795 = vadd.f32 %v3697, %v3783
    %v3796 = vadd.f32 %v3698, %v3784
    %v3797 = vadd.f32 %v3699, %v3785
    %v3798 = vadd.f32 %v3700, %v3786
    %v3799 = vmul.f32 %v3774, %v99
    %v3800 = vmul.f32 %v3774, %v100
    %v3801 = vmul.f32 %v3774, %v101
    %v3802 = vmul.f32 %v3774, %v102
    %v3803 = vmul.f32 %v3774, %v103
    %v3804 = vmul.f32 %v3774, %v104
    %v3805 = vmul.f32 %v3774, %v105
    %v3806 = vmul.f32 %v3774, %v106
    %v3807 = vmul.f32 %v3774, %v107
    %v3808 = vmul.f32 %v3774, %v108
    %v3809 = vmul.f32 %v3774, %v109
    %v3810 = vmul.f32 %v3774, %v110
    %v3811 = vadd.f32 %v3761, %v3799
    %v3812 = vadd.f32 %v3762, %v3800
    %v3813 = vadd.f32 %v3763, %v3801
    %v3814 = vadd.f32 %v3764, %v3802
    %v3815 = vadd.f32 %v3765, %v3803
    %v3816 = vadd.f32 %v3766, %v3804
    %v3817 = vadd.f32 %v3767, %v3805
    %v3818 = vadd.f32 %v3768, %v3806
    %v3819 = vadd.f32 %v3769, %v3807
    %v3820 = vadd.f32 %v3770, %v3808
    %v3821 = vadd.f32 %v3771, %v3809
    %v3822 = vadd.f32 %v3772, %v3810
    %s3823 = sld [smem:[#allocation3 + $0x87]]
    %v3824 = vstv %s3823
    %v3825 = vmul.f32 %v3824, %v75
    %v3826 = vmul.f32 %v3824, %v76
    %v3827 = vmul.f32 %v3824, %v77
    %v3828 = vmul.f32 %v3824, %v78
    %v3829 = vmul.f32 %v3824, %v79
    %v3830 = vmul.f32 %v3824, %v80
    %v3831 = vmul.f32 %v3824, %v81
    %v3832 = vmul.f32 %v3824, %v82
    %v3833 = vmul.f32 %v3824, %v83
    %v3834 = vmul.f32 %v3824, %v84
    %v3835 = vmul.f32 %v3824, %v85
    %v3836 = vmul.f32 %v3824, %v86
    %3849 = vrot.lane.b32.xlu0 %v3825, 127
    %v3850 = vpop.permute.xlu0 %3849
    %3851 = vrot.lane.b32.xlu0 %v3826, 127
    %v3852 = vpop.permute.xlu0 %3851
    %3853 = vrot.lane.b32.xlu0 %v3827, 127
    %v3854 = vpop.permute.xlu0 %3853
    %3855 = vrot.lane.b32.xlu0 %v3828, 127
    %v3856 = vpop.permute.xlu0 %3855
    %3857 = vrot.lane.b32.xlu0 %v3829, 127
    %v3858 = vpop.permute.xlu0 %3857
    %3859 = vrot.lane.b32.xlu0 %v3830, 127
    %v3860 = vpop.permute.xlu0 %3859
    %3861 = vrot.lane.b32.xlu0 %v3831, 127
    %v3862 = vpop.permute.xlu0 %3861
    %3863 = vrot.lane.b32.xlu0 %v3832, 127
    %v3864 = vpop.permute.xlu0 %3863
    %3865 = vrot.lane.b32.xlu0 %v3833, 127
    %v3866 = vpop.permute.xlu0 %3865
    %3867 = vrot.lane.b32.xlu0 %v3834, 127
    %v3868 = vpop.permute.xlu0 %3867
    %3869 = vrot.lane.b32.xlu0 %v3835, 127
    %v3870 = vpop.permute.xlu0 %3869
    %3871 = vrot.lane.b32.xlu0 %v3836, 127
    %v3872 = vpop.permute.xlu0 %3871
    %v3885 = vadd.f32 %v3787, %v3850
    %v3886 = vadd.f32 %v3788, %v3852
    %v3887 = vadd.f32 %v3789, %v3854
    %v3888 = vadd.f32 %v3790, %v3856
    %v3889 = vadd.f32 %v3791, %v3858
    %v3890 = vadd.f32 %v3792, %v3860
    %v3891 = vadd.f32 %v3793, %v3862
    %v3892 = vadd.f32 %v3794, %v3864
    %v3893 = vadd.f32 %v3795, %v3866
    %v3894 = vadd.f32 %v3796, %v3868
    %v3895 = vadd.f32 %v3797, %v3870
    %v3896 = vadd.f32 %v3798, %v3872
    %v3897 = vmul.f32 %v3824, %v99
    %v3898 = vmul.f32 %v3824, %v100
    %v3899 = vmul.f32 %v3824, %v101
    %v3900 = vmul.f32 %v3824, %v102
    %v3901 = vmul.f32 %v3824, %v103
    %v3902 = vmul.f32 %v3824, %v104
    %v3903 = vmul.f32 %v3824, %v105
    %v3904 = vmul.f32 %v3824, %v106
    %v3905 = vmul.f32 %v3824, %v107
    %v3906 = vmul.f32 %v3824, %v108
    %v3907 = vmul.f32 %v3824, %v109
    %v3908 = vmul.f32 %v3824, %v110
    %3921 = vrot.lane.b32.xlu0 %v3897, 127
    %v3922 = vpop.permute.xlu0 %3921
    %3923 = vrot.lane.b32.xlu0 %v3898, 127
    %v3924 = vpop.permute.xlu0 %3923
    %3925 = vrot.lane.b32.xlu0 %v3899, 127
    %v3926 = vpop.permute.xlu0 %3925
    %3927 = vrot.lane.b32.xlu0 %v3900, 127
    %v3928 = vpop.permute.xlu0 %3927
    %3929 = vrot.lane.b32.xlu0 %v3901, 127
    %v3930 = vpop.permute.xlu0 %3929
    %3931 = vrot.lane.b32.xlu0 %v3902, 127
    %v3932 = vpop.permute.xlu0 %3931
    %3933 = vrot.lane.b32.xlu0 %v3903, 127
    %v3934 = vpop.permute.xlu0 %3933
    %3935 = vrot.lane.b32.xlu0 %v3904, 127
    %v3936 = vpop.permute.xlu0 %3935
    %3937 = vrot.lane.b32.xlu0 %v3905, 127
    %v3938 = vpop.permute.xlu0 %3937
    %3939 = vrot.lane.b32.xlu0 %v3906, 127
    %v3940 = vpop.permute.xlu0 %3939
    %3941 = vrot.lane.b32.xlu0 %v3907, 127
    %v3942 = vpop.permute.xlu0 %3941
    %3943 = vrot.lane.b32.xlu0 %v3908, 127
    %v3944 = vpop.permute.xlu0 %3943
    %v3957 = vadd.f32 %v3811, %v3922
    %v3958 = vadd.f32 %v3812, %v3924
    %v3959 = vadd.f32 %v3813, %v3926
    %v3960 = vadd.f32 %v3814, %v3928
    %v3961 = vadd.f32 %v3815, %v3930
    %v3962 = vadd.f32 %v3816, %v3932
    %v3963 = vadd.f32 %v3817, %v3934
    %v3964 = vadd.f32 %v3818, %v3936
    %v3965 = vadd.f32 %v3819, %v3938
    %v3966 = vadd.f32 %v3820, %v3940
    %v3967 = vadd.f32 %v3821, %v3942
    %v3968 = vadd.f32 %v3822, %v3944
    %s3969 = sld [smem:[#allocation3 + $0x88]]
    %v3970 = vstv %s3969
    %v3971 = vmul.f32 %v3970, %v75
    %v3972 = vmul.f32 %v3970, %v76
    %v3973 = vmul.f32 %v3970, %v77
    %v3974 = vmul.f32 %v3970, %v78
    %v3975 = vmul.f32 %v3970, %v79
    %v3976 = vmul.f32 %v3970, %v80
    %v3977 = vmul.f32 %v3970, %v81
    %v3978 = vmul.f32 %v3970, %v82
    %v3979 = vmul.f32 %v3970, %v83
    %v3980 = vmul.f32 %v3970, %v84
    %v3981 = vmul.f32 %v3970, %v85
    %v3982 = vmul.f32 %v3970, %v86
    %3995 = vrot.lane.b32.xlu0 %v3971, 126
    %v3996 = vpop.permute.xlu0 %3995
    %3997 = vrot.lane.b32.xlu0 %v3972, 126
    %v3998 = vpop.permute.xlu0 %3997
    %3999 = vrot.lane.b32.xlu0 %v3973, 126
    %v4000 = vpop.permute.xlu0 %3999
    %4001 = vrot.lane.b32.xlu0 %v3974, 126
    %v4002 = vpop.permute.xlu0 %4001
    %4003 = vrot.lane.b32.xlu0 %v3975, 126
    %v4004 = vpop.permute.xlu0 %4003
    %4005 = vrot.lane.b32.xlu0 %v3976, 126
    %v4006 = vpop.permute.xlu0 %4005
    %4007 = vrot.lane.b32.xlu0 %v3977, 126
    %v4008 = vpop.permute.xlu0 %4007
    %4009 = vrot.lane.b32.xlu0 %v3978, 126
    %v4010 = vpop.permute.xlu0 %4009
    %4011 = vrot.lane.b32.xlu0 %v3979, 126
    %v4012 = vpop.permute.xlu0 %4011
    %4013 = vrot.lane.b32.xlu0 %v3980, 126
    %v4014 = vpop.permute.xlu0 %4013
    %4015 = vrot.lane.b32.xlu0 %v3981, 126
    %v4016 = vpop.permute.xlu0 %4015
    %4017 = vrot.lane.b32.xlu0 %v3982, 126
    %v4018 = vpop.permute.xlu0 %4017
    %v4031 = vadd.f32 %v3885, %v3996
    %v4032 = vadd.f32 %v3886, %v3998
    %v4033 = vadd.f32 %v3887, %v4000
    %v4034 = vadd.f32 %v3888, %v4002
    %v4035 = vadd.f32 %v3889, %v4004
    %v4036 = vadd.f32 %v3890, %v4006
    %v4037 = vadd.f32 %v3891, %v4008
    %v4038 = vadd.f32 %v3892, %v4010
    %v4039 = vadd.f32 %v3893, %v4012
    %v4040 = vadd.f32 %v3894, %v4014
    %v4041 = vadd.f32 %v3895, %v4016
    %v4042 = vadd.f32 %v3896, %v4018
    %v4043 = vmul.f32 %v3970, %v99
    %v4044 = vmul.f32 %v3970, %v100
    %v4045 = vmul.f32 %v3970, %v101
    %v4046 = vmul.f32 %v3970, %v102
    %v4047 = vmul.f32 %v3970, %v103
    %v4048 = vmul.f32 %v3970, %v104
    %v4049 = vmul.f32 %v3970, %v105
    %v4050 = vmul.f32 %v3970, %v106
    %v4051 = vmul.f32 %v3970, %v107
    %v4052 = vmul.f32 %v3970, %v108
    %v4053 = vmul.f32 %v3970, %v109
    %v4054 = vmul.f32 %v3970, %v110
    %4067 = vrot.lane.b32.xlu0 %v4043, 126
    %v4068 = vpop.permute.xlu0 %4067
    %4069 = vrot.lane.b32.xlu0 %v4044, 126
    %v4070 = vpop.permute.xlu0 %4069
    %4071 = vrot.lane.b32.xlu0 %v4045, 126
    %v4072 = vpop.permute.xlu0 %4071
    %4073 = vrot.lane.b32.xlu0 %v4046, 126
    %v4074 = vpop.permute.xlu0 %4073
    %4075 = vrot.lane.b32.xlu0 %v4047, 126
    %v4076 = vpop.permute.xlu0 %4075
    %4077 = vrot.lane.b32.xlu0 %v4048, 126
    %v4078 = vpop.permute.xlu0 %4077
    %4079 = vrot.lane.b32.xlu0 %v4049, 126
    %v4080 = vpop.permute.xlu0 %4079
    %4081 = vrot.lane.b32.xlu0 %v4050, 126
    %v4082 = vpop.permute.xlu0 %4081
    %4083 = vrot.lane.b32.xlu0 %v4051, 126
    %v4084 = vpop.permute.xlu0 %4083
    %4085 = vrot.lane.b32.xlu0 %v4052, 126
    %v4086 = vpop.permute.xlu0 %4085
    %4087 = vrot.lane.b32.xlu0 %v4053, 126
    %v4088 = vpop.permute.xlu0 %4087
    %4089 = vrot.lane.b32.xlu0 %v4054, 126
    %v4090 = vpop.permute.xlu0 %4089
    %v4103 = vadd.f32 %v3957, %v4068
    %v4104 = vadd.f32 %v3958, %v4070
    %v4105 = vadd.f32 %v3959, %v4072
    %v4106 = vadd.f32 %v3960, %v4074
    %v4107 = vadd.f32 %v3961, %v4076
    %v4108 = vadd.f32 %v3962, %v4078
    %v4109 = vadd.f32 %v3963, %v4080
    %v4110 = vadd.f32 %v3964, %v4082
    %v4111 = vadd.f32 %v3965, %v4084
    %v4112 = vadd.f32 %v3966, %v4086
    %v4113 = vadd.f32 %v3967, %v4088
    %v4114 = vadd.f32 %v3968, %v4090
    %v4115 = vadd.f32 %v4031, %v4103
    %v4116 = vadd.f32 %v4032, %v4104
    %v4117 = vadd.f32 %v4033, %v4105
    %v4118 = vadd.f32 %v4034, %v4106
    %v4119 = vadd.f32 %v4035, %v4107
    %v4120 = vadd.f32 %v4036, %v4108
    %v4121 = vadd.f32 %v4037, %v4109
    %v4122 = vadd.f32 %v4038, %v4110
    %v4123 = vadd.f32 %v4039, %v4111
    %v4124 = vadd.f32 %v4040, %v4112
    %v4125 = vadd.f32 %v4041, %v4113
    %v4126 = vadd.f32 %v4042, %v4114
    %v4127 = vsel %vm1125, %v4115, 0.0
    %v4128 = vsel %vm1125, %v4116, 0.0
    %v4129 = vadd.f32 %v4127, %v4128
    %v4130 = vsel %vm1125, %v4117, 0.0
    %v4131 = vadd.f32 %v4129, %v4130
    %v4132 = vsel %vm1125, %v4118, 0.0
    %v4133 = vadd.f32 %v4131, %v4132
    %v4134 = vsel %vm1125, %v4119, 0.0
    %v4135 = vadd.f32 %v4133, %v4134
    %v4136 = vsel %vm1125, %v4120, 0.0
    %v4137 = vadd.f32 %v4135, %v4136
    %v4138 = vsel %vm1125, %v4121, 0.0
    %v4139 = vadd.f32 %v4137, %v4138
    %v4140 = vsel %vm1125, %v4122, 0.0
    %v4141 = vadd.f32 %v4139, %v4140
    %v4142 = vsel %vm1125, %v4123, 0.0
    %v4143 = vadd.f32 %v4141, %v4142
    %v4144 = vsel %vm1125, %v4124, 0.0
    %v4145 = vadd.f32 %v4143, %v4144
    %v4146 = vsel %vm1125, %v4125, 0.0
    %v4147 = vadd.f32 %v4145, %v4146
    %v4148 = vsel %vm1125, %v4126, 0.0
    %v4149 = vadd.f32 %v4147, %v4148
    %4150 = vadd.xlane.f32.xlu0 %v4149
    %v4151 = vpop.xlane.xlu0 %4150
    %v4152 = vrot.slane %v4151, 4
    %v4153 = vadd.f32 %v4151, %v4152
    %v4154 = vrot.slane %v4153, 2
    %v4155 = vadd.f32 %v4153, %v4154
    %v4156 = vrot.slane %v4155, 1
    %v4157 = vadd.f32 %v4155, %v4156
    %s4158 = vtos %v4157
    %v4159 = vmul.f32 %v4031, %v4031
    %v4160 = vmul.f32 %v4032, %v4032
    %v4161 = vmul.f32 %v4033, %v4033
    %v4162 = vmul.f32 %v4034, %v4034
    %v4163 = vmul.f32 %v4035, %v4035
    %v4164 = vmul.f32 %v4036, %v4036
    %v4165 = vmul.f32 %v4037, %v4037
    %v4166 = vmul.f32 %v4038, %v4038
    %v4167 = vmul.f32 %v4039, %v4039
    %v4168 = vmul.f32 %v4040, %v4040
    %v4169 = vmul.f32 %v4041, %v4041
    %v4170 = vmul.f32 %v4042, %v4042
    %v4171 = vmul.f32 %v4103, %v4103
    %v4172 = vmul.f32 %v4104, %v4104
    %v4173 = vmul.f32 %v4105, %v4105
    %v4174 = vmul.f32 %v4106, %v4106
    %v4175 = vmul.f32 %v4107, %v4107
    %v4176 = vmul.f32 %v4108, %v4108
    %v4177 = vmul.f32 %v4109, %v4109
    %v4178 = vmul.f32 %v4110, %v4110
    %v4179 = vmul.f32 %v4111, %v4111
    %v4180 = vmul.f32 %v4112, %v4112
    %v4181 = vmul.f32 %v4113, %v4113
    %v4182 = vmul.f32 %v4114, %v4114
    %v4183 = vadd.f32 %v4159, %v4171
    %v4184 = vadd.f32 %v4160, %v4172
    %v4185 = vadd.f32 %v4161, %v4173
    %v4186 = vadd.f32 %v4162, %v4174
    %v4187 = vadd.f32 %v4163, %v4175
    %v4188 = vadd.f32 %v4164, %v4176
    %v4189 = vadd.f32 %v4165, %v4177
    %v4190 = vadd.f32 %v4166, %v4178
    %v4191 = vadd.f32 %v4167, %v4179
    %v4192 = vadd.f32 %v4168, %v4180
    %v4193 = vadd.f32 %v4169, %v4181
    %v4194 = vadd.f32 %v4170, %v4182
    %v4195 = vsel %vm1125, %v4183, 0.0
    %v4196 = vsel %vm1125, %v4184, 0.0
    %v4197 = vadd.f32 %v4195, %v4196
    %v4198 = vsel %vm1125, %v4185, 0.0
    %v4199 = vadd.f32 %v4197, %v4198
    %v4200 = vsel %vm1125, %v4186, 0.0
    %v4201 = vadd.f32 %v4199, %v4200
    %v4202 = vsel %vm1125, %v4187, 0.0
    %v4203 = vadd.f32 %v4201, %v4202
    %v4204 = vsel %vm1125, %v4188, 0.0
    %v4205 = vadd.f32 %v4203, %v4204
    %v4206 = vsel %vm1125, %v4189, 0.0
    %v4207 = vadd.f32 %v4205, %v4206
    %v4208 = vsel %vm1125, %v4190, 0.0
    %v4209 = vadd.f32 %v4207, %v4208
    %v4210 = vsel %vm1125, %v4191, 0.0
    %v4211 = vadd.f32 %v4209, %v4210
    %v4212 = vsel %vm1125, %v4192, 0.0
    %v4213 = vadd.f32 %v4211, %v4212
    %v4214 = vsel %vm1125, %v4193, 0.0
    %v4215 = vadd.f32 %v4213, %v4214
    %v4216 = vsel %vm1125, %v4194, 0.0
    %v4217 = vadd.f32 %v4215, %v4216
    %4218 = vadd.xlane.f32.xlu0 %v4217
    %v4219 = vpop.xlane.xlu0 %4218
    %v4220 = vrot.slane %v4219, 4
    %v4221 = vadd.f32 %v4219, %v4220
    %v4222 = vrot.slane %v4221, 2
    %v4223 = vadd.f32 %v4221, %v4222
    %v4224 = vrot.slane %v4223, 1
    %v4225 = vadd.f32 %v4223, %v4224
    %s4226 = vtos %v4225
    %s4227 = smul.f32 %s4158, 5.4253473e-05
    %s4228 = smul.f32 %s4226, 5.4253473e-05
    %s4229 = smul.f32 %s4227, %s4227
    %s4230 = ssub.f32 %s4228, %s4229
    %s4231 = sld [smem:[#allocation6 + $0x1]]
    %s4232 = sadd.f32 %s4230, 1e-05
    %v4233 = vstv %s4232
    %v4234 = vrsqrt.pop %v4233
    %v4235 = vmul.f32 %v4234, %v4233
    %v4236 = vmul.f32 %v4235, %v4234
    %v4237 = vmul.f32 0.5, %v4236
    %v4238 = vsub.f32 1.5, %v4237
    %v4239 = vmul.f32 %v4234, %v4238
    %vm4240 = vweird.f32 %v4233
    %vm4241 = vweird.f32 %v4234
    %vm4242 = vmor %vm4240, %vm4241
    %v4243 = vsel %vm4242, %v4234, %v4239
    %s4244 = vtos %v4243
    %s4245 = smul.f32 %s4231, %s4244
    %s4246 = sld [smem:[#allocation8 + $0x1]]
    %s4247 = smul.f32 %s4227, %s4245
    %s4248 = ssub.f32 %s4246, %s4247
    %v4249 = vstv %s4245
    %v4250 = vmul.f32 %v4031, %v4249
    %v4251 = vmul.f32 %v4032, %v4249
    %v4252 = vmul.f32 %v4033, %v4249
    %v4253 = vmul.f32 %v4034, %v4249
    %v4254 = vmul.f32 %v4035, %v4249
    %v4255 = vmul.f32 %v4036, %v4249
    %v4256 = vmul.f32 %v4037, %v4249
    %v4257 = vmul.f32 %v4038, %v4249
    %v4258 = vmul.f32 %v4039, %v4249
    %v4259 = vmul.f32 %v4040, %v4249
    %v4260 = vmul.f32 %v4041, %v4249
    %v4261 = vmul.f32 %v4042, %v4249
    %v4262 = vstv %s4248
    %v4263 = vadd.f32 %v4250, %v4262
    %v4264 = vadd.f32 %v4251, %v4262
    %v4265 = vadd.f32 %v4252, %v4262
    %v4266 = vadd.f32 %v4253, %v4262
    %v4267 = vadd.f32 %v4254, %v4262
    %v4268 = vadd.f32 %v4255, %v4262
    %v4269 = vadd.f32 %v4256, %v4262
    %v4270 = vadd.f32 %v4257, %v4262
    %v4271 = vadd.f32 %v4258, %v4262
    %v4272 = vadd.f32 %v4259, %v4262
    %v4273 = vadd.f32 %v4260, %v4262
    %v4274 = vadd.f32 %v4261, %v4262
    %v4275 = vmax.f32 %v4263, 0.0
    %v4276 = vmax.f32 %v4264, 0.0
    %v4277 = vmax.f32 %v4265, 0.0
    %v4278 = vmax.f32 %v4266, 0.0
    %v4279 = vmax.f32 %v4267, 0.0
    %v4280 = vmax.f32 %v4268, 0.0
    %v4281 = vmax.f32 %v4269, 0.0
    %v4282 = vmax.f32 %v4270, 0.0
    %v4283 = vmax.f32 %v4271, 0.0
    %v4284 = vmax.f32 %v4272, 0.0
    %v4285 = vmax.f32 %v4273, 0.0
    %v4286 = vmax.f32 %v4274, 0.0
    %v4287 = vmul.f32 %v4103, %v4249
    %v4288 = vmul.f32 %v4104, %v4249
    %v4289 = vmul.f32 %v4105, %v4249
    %v4290 = vmul.f32 %v4106, %v4249
    %v4291 = vmul.f32 %v4107, %v4249
    %v4292 = vmul.f32 %v4108, %v4249
    %v4293 = vmul.f32 %v4109, %v4249
    %v4294 = vmul.f32 %v4110, %v4249
    %v4295 = vmul.f32 %v4111, %v4249
    %v4296 = vmul.f32 %v4112, %v4249
    %v4297 = vmul.f32 %v4113, %v4249
    %v4298 = vmul.f32 %v4114, %v4249
    %v4299 = vadd.f32 %v4287, %v4262
    %v4300 = vadd.f32 %v4288, %v4262
    %v4301 = vadd.f32 %v4289, %v4262
    %v4302 = vadd.f32 %v4290, %v4262
    %v4303 = vadd.f32 %v4291, %v4262
    %v4304 = vadd.f32 %v4292, %v4262
    %v4305 = vadd.f32 %v4293, %v4262
    %v4306 = vadd.f32 %v4294, %v4262
    %v4307 = vadd.f32 %v4295, %v4262
    %v4308 = vadd.f32 %v4296, %v4262
    %v4309 = vadd.f32 %v4297, %v4262
    %v4310 = vadd.f32 %v4298, %v4262
    %v4311 = vmax.f32 %v4299, 0.0
    %v4312 = vmax.f32 %v4300, 0.0
    %v4313 = vmax.f32 %v4301, 0.0
    %v4314 = vmax.f32 %v4302, 0.0
    %v4315 = vmax.f32 %v4303, 0.0
    %v4316 = vmax.f32 %v4304, 0.0
    %v4317 = vmax.f32 %v4305, 0.0
    %v4318 = vmax.f32 %v4306, 0.0
    %v4319 = vmax.f32 %v4307, 0.0
    %v4320 = vmax.f32 %v4308, 0.0
    %v4321 = vmax.f32 %v4309, 0.0
    %v4322 = vmax.f32 %v4310, 0.0
    %v4323 = vmax.f32 %v4275, %v4311
    %v4324 = vmax.f32 %v4276, %v4312
    %v4325 = vmax.f32 %v4277, %v4313
    %v4326 = vmax.f32 %v4278, %v4314
    %v4327 = vmax.f32 %v4279, %v4315
    %v4328 = vmax.f32 %v4280, %v4316
    %v4329 = vmax.f32 %v4281, %v4317
    %v4330 = vmax.f32 %v4282, %v4318
    %v4331 = vmax.f32 %v4283, %v4319
    %v4332 = vmax.f32 %v4284, %v4320
    %v4333 = vmax.f32 %v4285, %v4321
    %v4334 = vmax.f32 %v4286, %v4322
    %4347 = vrot.lane.b32.xlu0 %v4323, 127
    %v4348 = vpop.permute.xlu0 %4347
    %4349 = vrot.lane.b32.xlu0 %v4324, 127
    %v4350 = vpop.permute.xlu0 %4349
    %4351 = vrot.lane.b32.xlu0 %v4325, 127
    %v4352 = vpop.permute.xlu0 %4351
    %4353 = vrot.lane.b32.xlu0 %v4326, 127
    %v4354 = vpop.permute.xlu0 %4353
    %4355 = vrot.lane.b32.xlu0 %v4327, 127
    %v4356 = vpop.permute.xlu0 %4355
    %4357 = vrot.lane.b32.xlu0 %v4328, 127
    %v4358 = vpop.permute.xlu0 %4357
    %4359 = vrot.lane.b32.xlu0 %v4329, 127
    %v4360 = vpop.permute.xlu0 %4359
    %4361 = vrot.lane.b32.xlu0 %v4330, 127
    %v4362 = vpop.permute.xlu0 %4361
    %4363 = vrot.lane.b32.xlu0 %v4331, 127
    %v4364 = vpop.permute.xlu0 %4363
    %4365 = vrot.lane.b32.xlu0 %v4332, 127
    %v4366 = vpop.permute.xlu0 %4365
    %4367 = vrot.lane.b32.xlu0 %v4333, 127
    %v4368 = vpop.permute.xlu0 %4367
    %4369 = vrot.lane.b32.xlu0 %v4334, 127
    %v4370 = vpop.permute.xlu0 %4369
    %v4383 = vmax.f32 %v4323, %v4348
    %v4384 = vmax.f32 %v4324, %v4350
    %v4385 = vmax.f32 %v4325, %v4352
    %v4386 = vmax.f32 %v4326, %v4354
    %v4387 = vmax.f32 %v4327, %v4356
    %v4388 = vmax.f32 %v4328, %v4358
    %v4389 = vmax.f32 %v4329, %v4360
    %v4390 = vmax.f32 %v4330, %v4362
    %v4391 = vmax.f32 %v4331, %v4364
    %v4392 = vmax.f32 %v4332, %v4366
    %v4393 = vmax.f32 %v4333, %v4368
    %v4394 = vmax.f32 %v4334, %v4370
    %v4401 = vrot.slane %v4383, 1
    %v4402 = vrot.slane %v4383, 2
    %v4403 = vrot.slane %v4383, 3
    %v4404 = vrot.slane %v4383, 4
    %v4405 = vrot.slane %v4383, 5
    %v4406 = vrot.slane %v4383, 6
    %v4407 = vrot.slane %v4383, 7
    %v4408 = vrot.slane %v4384, 1
    %v4409 = vrot.slane %v4384, 2
    %v4410 = vrot.slane %v4384, 3
    %v4411 = vrot.slane %v4384, 4
    %v4412 = vrot.slane %v4384, 5
    %v4413 = vrot.slane %v4384, 6
    %v4414 = vrot.slane %v4384, 7
    %v4415 = vrot.slane %v4385, 1
    %v4416 = vrot.slane %v4385, 2
    %v4417 = vrot.slane %v4385, 3
    %v4418 = vrot.slane %v4385, 4
    %v4419 = vrot.slane %v4385, 5
    %v4420 = vrot.slane %v4385, 6
    %v4421 = vrot.slane %v4385, 7
    %v4422 = vrot.slane %v4386, 1
    %v4423 = vrot.slane %v4386, 2
    %v4424 = vrot.slane %v4386, 3
    %v4425 = vrot.slane %v4386, 4
    %v4426 = vrot.slane %v4386, 5
    %v4427 = vrot.slane %v4386, 6
    %v4428 = vrot.slane %v4386, 7
    %v4429 = vrot.slane %v4387, 1
    %v4430 = vrot.slane %v4387, 2
    %v4431 = vrot.slane %v4387, 3
    %v4432 = vrot.slane %v4387, 4
    %v4433 = vrot.slane %v4387, 5
    %v4434 = vrot.slane %v4387, 6
    %v4435 = vrot.slane %v4387, 7
    %v4436 = vrot.slane %v4388, 1
    %v4437 = vrot.slane %v4388, 2
    %v4438 = vrot.slane %v4388, 3
    %v4439 = vrot.slane %v4388, 4
    %v4440 = vrot.slane %v4388, 5
    %v4441 = vrot.slane %v4388, 6
    %v4442 = vrot.slane %v4388, 7
    %4485 = vst.msk [vmem:[#allocation2] sm:$0x1] %vm1484, %v4383
    %4486 = vst.msk [vmem:[#allocation2 + $0x2] sm:$0x1] %vm1484, %v4401
    %4487 = vst.msk [vmem:[#allocation2 + $0x4] sm:$0x1] %vm1484, %v4402
    %4488 = vst.msk [vmem:[#allocation2 + $0x6] sm:$0x1] %vm1484, %v4403
    %4489 = vst.msk [vmem:[#allocation2 + $0x8] sm:$0x1] %vm1484, %v4404
    %4490 = vst.msk [vmem:[#allocation2 + $0xa] sm:$0x1] %vm1484, %v4405
    %4491 = vst.msk [vmem:[#allocation2 + $0xc] sm:$0x1] %vm1484, %v4406
    %4492 = vst.msk [vmem:[#allocation2 + $0xe] sm:$0x1] %vm1484, %v4407
    %4493 = vst.msk [vmem:[#allocation2 + $0x10] sm:$0x1] %vm1484, %v4384
    %4494 = vst.msk [vmem:[#allocation2 + $0x12] sm:$0x1] %vm1484, %v4408
    %4495 = vst.msk [vmem:[#allocation2 + $0x14] sm:$0x1] %vm1484, %v4409
    %4496 = vst.msk [vmem:[#allocation2 + $0x16] sm:$0x1] %vm1484, %v4410
    %4497 = vst.msk [vmem:[#allocation2 + $0x18] sm:$0x1] %vm1484, %v4411
    %4498 = vst.msk [vmem:[#allocation2 + $0x1a] sm:$0x1] %vm1484, %v4412
    %4499 = vst.msk [vmem:[#allocation2 + $0x1c] sm:$0x1] %vm1484, %v4413
    %4500 = vst.msk [vmem:[#allocation2 + $0x1e] sm:$0x1] %vm1484, %v4414
    %4501 = vst.msk [vmem:[#allocation2 + $0x20] sm:$0x1] %vm1484, %v4385
    %4502 = vst.msk [vmem:[#allocation2 + $0x22] sm:$0x1] %vm1484, %v4415
    %4503 = vst.msk [vmem:[#allocation2 + $0x24] sm:$0x1] %vm1484, %v4416
    %4504 = vst.msk [vmem:[#allocation2 + $0x26] sm:$0x1] %vm1484, %v4417
    %4505 = vst.msk [vmem:[#allocation2 + $0x28] sm:$0x1] %vm1484, %v4418
    %4506 = vst.msk [vmem:[#allocation2 + $0x2a] sm:$0x1] %vm1484, %v4419
    %4507 = vst.msk [vmem:[#allocation2 + $0x2c] sm:$0x1] %vm1484, %v4420
    %4508 = vst.msk [vmem:[#allocation2 + $0x2e] sm:$0x1] %vm1484, %v4421
    %4509 = vst.msk [vmem:[#allocation2 + $0x30] sm:$0x1] %vm1484, %v4386
    %4510 = vst.msk [vmem:[#allocation2 + $0x32] sm:$0x1] %vm1484, %v4422
    %4511 = vst.msk [vmem:[#allocation2 + $0x34] sm:$0x1] %vm1484, %v4423
    %4512 = vst.msk [vmem:[#allocation2 + $0x36] sm:$0x1] %vm1484, %v4424
    %4513 = vst.msk [vmem:[#allocation2 + $0x38] sm:$0x1] %vm1484, %v4425
    %4514 = vst.msk [vmem:[#allocation2 + $0x3a] sm:$0x1] %vm1484, %v4426
    %4515 = vst.msk [vmem:[#allocation2 + $0x3c] sm:$0x1] %vm1484, %v4427
    %4516 = vst.msk [vmem:[#allocation2 + $0x3e] sm:$0x1] %vm1484, %v4428
    %4517 = vst.msk [vmem:[#allocation2 + $0x40] sm:$0x1] %vm1484, %v4387
    %4518 = vst.msk [vmem:[#allocation2 + $0x42] sm:$0x1] %vm1484, %v4429
    %4519 = vst.msk [vmem:[#allocation2 + $0x44] sm:$0x1] %vm1484, %v4430
    %4520 = vst.msk [vmem:[#allocation2 + $0x46] sm:$0x1] %vm1484, %v4431
    %4521 = vst.msk [vmem:[#allocation2 + $0x48] sm:$0x1] %vm1484, %v4432
    %4522 = vst.msk [vmem:[#allocation2 + $0x4a] sm:$0x1] %vm1484, %v4433
    %4523 = vst.msk [vmem:[#allocation2 + $0x4c] sm:$0x1] %vm1484, %v4434
    %4524 = vst.msk [vmem:[#allocation2 + $0x4e] sm:$0x1] %vm1484, %v4435
    %4525 = vst.msk [vmem:[#allocation2 + $0x50] sm:$0x1] %vm1484, %v4388
    %4526 = vst.msk [vmem:[#allocation2 + $0x52] sm:$0x1] %vm1484, %v4436
    %4527 = vst.msk [vmem:[#allocation2 + $0x54] sm:$0x1] %vm1484, %v4437
    %4528 = vst.msk [vmem:[#allocation2 + $0x56] sm:$0x1] %vm1484, %v4438
    %4529 = vst.msk [vmem:[#allocation2 + $0x58] sm:$0x1] %vm1484, %v4439
    %4530 = vst.msk [vmem:[#allocation2 + $0x5a] sm:$0x1] %vm1484, %v4440
    %4531 = vst.msk [vmem:[#allocation2 + $0x5c] sm:$0x1] %vm1484, %v4441
    %4532 = vst.msk [vmem:[#allocation2 + $0x5e] sm:$0x1] %vm1484, %v4442
    %v4539 = vrot.slane %v4389, 1
    %v4540 = vrot.slane %v4389, 2
    %v4541 = vrot.slane %v4389, 3
    %v4542 = vrot.slane %v4389, 4
    %v4543 = vrot.slane %v4389, 5
    %v4544 = vrot.slane %v4389, 6
    %v4545 = vrot.slane %v4389, 7
    %v4546 = vrot.slane %v4390, 1
    %v4547 = vrot.slane %v4390, 2
    %v4548 = vrot.slane %v4390, 3
    %v4549 = vrot.slane %v4390, 4
    %v4550 = vrot.slane %v4390, 5
    %v4551 = vrot.slane %v4390, 6
    %v4552 = vrot.slane %v4390, 7
    %v4553 = vrot.slane %v4391, 1
    %v4554 = vrot.slane %v4391, 2
    %v4555 = vrot.slane %v4391, 3
    %v4556 = vrot.slane %v4391, 4
    %v4557 = vrot.slane %v4391, 5
    %v4558 = vrot.slane %v4391, 6
    %v4559 = vrot.slane %v4391, 7
    %v4560 = vrot.slane %v4392, 1
    %v4561 = vrot.slane %v4392, 2
    %v4562 = vrot.slane %v4392, 3
    %v4563 = vrot.slane %v4392, 4
    %v4564 = vrot.slane %v4392, 5
    %v4565 = vrot.slane %v4392, 6
    %v4566 = vrot.slane %v4392, 7
    %v4567 = vrot.slane %v4393, 1
    %v4568 = vrot.slane %v4393, 2
    %v4569 = vrot.slane %v4393, 3
    %v4570 = vrot.slane %v4393, 4
    %v4571 = vrot.slane %v4393, 5
    %v4572 = vrot.slane %v4393, 6
    %v4573 = vrot.slane %v4393, 7
    %v4574 = vrot.slane %v4394, 1
    %v4575 = vrot.slane %v4394, 2
    %v4576 = vrot.slane %v4394, 3
    %v4577 = vrot.slane %v4394, 4
    %v4578 = vrot.slane %v4394, 5
    %v4579 = vrot.slane %v4394, 6
    %v4580 = vrot.slane %v4394, 7
    %4623 = vst.msk [vmem:[#allocation2 + $0x1] sm:$0x1] %vm1484, %v4389
    %4624 = vst.msk [vmem:[#allocation2 + $0x3] sm:$0x1] %vm1484, %v4539
    %4625 = vst.msk [vmem:[#allocation2 + $0x5] sm:$0x1] %vm1484, %v4540
    %4626 = vst.msk [vmem:[#allocation2 + $0x7] sm:$0x1] %vm1484, %v4541
    %4627 = vst.msk [vmem:[#allocation2 + $0x9] sm:$0x1] %vm1484, %v4542
    %4628 = vst.msk [vmem:[#allocation2 + $0xb] sm:$0x1] %vm1484, %v4543
    %4629 = vst.msk [vmem:[#allocation2 + $0xd] sm:$0x1] %vm1484, %v4544
    %4630 = vst.msk [vmem:[#allocation2 + $0xf] sm:$0x1] %vm1484, %v4545
    %4631 = vst.msk [vmem:[#allocation2 + $0x11] sm:$0x1] %vm1484, %v4390
    %4632 = vst.msk [vmem:[#allocation2 + $0x13] sm:$0x1] %vm1484, %v4546
    %4633 = vst.msk [vmem:[#allocation2 + $0x15] sm:$0x1] %vm1484, %v4547
    %4634 = vst.msk [vmem:[#allocation2 + $0x17] sm:$0x1] %vm1484, %v4548
    %4635 = vst.msk [vmem:[#allocation2 + $0x19] sm:$0x1] %vm1484, %v4549
    %4636 = vst.msk [vmem:[#allocation2 + $0x1b] sm:$0x1] %vm1484, %v4550
    %4637 = vst.msk [vmem:[#allocation2 + $0x1d] sm:$0x1] %vm1484, %v4551
    %4638 = vst.msk [vmem:[#allocation2 + $0x1f] sm:$0x1] %vm1484, %v4552
    %4639 = vst.msk [vmem:[#allocation2 + $0x21] sm:$0x1] %vm1484, %v4391
    %4640 = vst.msk [vmem:[#allocation2 + $0x23] sm:$0x1] %vm1484, %v4553
    %4641 = vst.msk [vmem:[#allocation2 + $0x25] sm:$0x1] %vm1484, %v4554
    %4642 = vst.msk [vmem:[#allocation2 + $0x27] sm:$0x1] %vm1484, %v4555
    %4643 = vst.msk [vmem:[#allocation2 + $0x29] sm:$0x1] %vm1484, %v4556
    %4644 = vst.msk [vmem:[#allocation2 + $0x2b] sm:$0x1] %vm1484, %v4557
    %4645 = vst.msk [vmem:[#allocation2 + $0x2d] sm:$0x1] %vm1484, %v4558
    %4646 = vst.msk [vmem:[#allocation2 + $0x2f] sm:$0x1] %vm1484, %v4559
    %4647 = vst.msk [vmem:[#allocation2 + $0x31] sm:$0x1] %vm1484, %v4392
    %4648 = vst.msk [vmem:[#allocation2 + $0x33] sm:$0x1] %vm1484, %v4560
    %4649 = vst.msk [vmem:[#allocation2 + $0x35] sm:$0x1] %vm1484, %v4561
    %4650 = vst.msk [vmem:[#allocation2 + $0x37] sm:$0x1] %vm1484, %v4562
    %4651 = vst.msk [vmem:[#allocation2 + $0x39] sm:$0x1] %vm1484, %v4563
    %4652 = vst.msk [vmem:[#allocation2 + $0x3b] sm:$0x1] %vm1484, %v4564
    %4653 = vst.msk [vmem:[#allocation2 + $0x3d] sm:$0x1] %vm1484, %v4565
    %4654 = vst.msk [vmem:[#allocation2 + $0x3f] sm:$0x1] %vm1484, %v4566
    %4655 = vst.msk [vmem:[#allocation2 + $0x41] sm:$0x1] %vm1484, %v4393
    %4656 = vst.msk [vmem:[#allocation2 + $0x43] sm:$0x1] %vm1484, %v4567
    %4657 = vst.msk [vmem:[#allocation2 + $0x45] sm:$0x1] %vm1484, %v4568
    %4658 = vst.msk [vmem:[#allocation2 + $0x47] sm:$0x1] %vm1484, %v4569
    %4659 = vst.msk [vmem:[#allocation2 + $0x49] sm:$0x1] %vm1484, %v4570
    %4660 = vst.msk [vmem:[#allocation2 + $0x4b] sm:$0x1] %vm1484, %v4571
    %4661 = vst.msk [vmem:[#allocation2 + $0x4d] sm:$0x1] %vm1484, %v4572
    %4662 = vst.msk [vmem:[#allocation2 + $0x4f] sm:$0x1] %vm1484, %v4573
    %4663 = vst.msk [vmem:[#allocation2 + $0x51] sm:$0x1] %vm1484, %v4394
    %4664 = vst.msk [vmem:[#allocation2 + $0x53] sm:$0x1] %vm1484, %v4574
    %4665 = vst.msk [vmem:[#allocation2 + $0x55] sm:$0x1] %vm1484, %v4575
    %4666 = vst.msk [vmem:[#allocation2 + $0x57] sm:$0x1] %vm1484, %v4576
    %4667 = vst.msk [vmem:[#allocation2 + $0x59] sm:$0x1] %vm1484, %v4577
    %4668 = vst.msk [vmem:[#allocation2 + $0x5b] sm:$0x1] %vm1484, %v4578
    %4669 = vst.msk [vmem:[#allocation2 + $0x5d] sm:$0x1] %vm1484, %v4579
    %4670 = vst.msk [vmem:[#allocation2 + $0x5f] sm:$0x1] %vm1484, %v4580
    %v4671 = vld [vmem:[#allocation2] sm:$0x3]
    %v4672 = vld [vmem:[#allocation2 + $0x2] sm:$0x3]
    %v4673 = vld [vmem:[#allocation2 + $0x4] sm:$0x3]
    %v4674 = vld [vmem:[#allocation2 + $0x6] sm:$0x3]
    %v4675 = vld [vmem:[#allocation2 + $0x8] sm:$0x3]
    %v4676 = vld [vmem:[#allocation2 + $0xa] sm:$0x3]
    %v4677 = vld [vmem:[#allocation2 + $0xc] sm:$0x3]
    %v4678 = vld [vmem:[#allocation2 + $0xe] sm:$0x3]
    %v4679 = vld [vmem:[#allocation2 + $0x10] sm:$0x3]
    %v4680 = vld [vmem:[#allocation2 + $0x12] sm:$0x3]
    %v4681 = vld [vmem:[#allocation2 + $0x14] sm:$0x3]
    %v4682 = vld [vmem:[#allocation2 + $0x16] sm:$0x3]
    %v4683 = vld [vmem:[#allocation2 + $0x18] sm:$0x3]
    %v4684 = vld [vmem:[#allocation2 + $0x1a] sm:$0x3]
    %v4685 = vld [vmem:[#allocation2 + $0x1c] sm:$0x3]
    %v4686 = vld [vmem:[#allocation2 + $0x1e] sm:$0x3]
    %v4687 = vld [vmem:[#allocation2 + $0x20] sm:$0x3]
    %v4688 = vld [vmem:[#allocation2 + $0x22] sm:$0x3]
    %v4689 = vld [vmem:[#allocation2 + $0x24] sm:$0x3]
    %v4690 = vld [vmem:[#allocation2 + $0x26] sm:$0x3]
    %v4691 = vld [vmem:[#allocation2 + $0x28] sm:$0x3]
    %v4692 = vld [vmem:[#allocation2 + $0x2a] sm:$0x3]
    %v4693 = vld [vmem:[#allocation2 + $0x2c] sm:$0x3]
    %v4694 = vld [vmem:[#allocation2 + $0x2e] sm:$0x3]
    %v4695 = vld [vmem:[#allocation2 + $0x30] sm:$0x3]
    %v4696 = vld [vmem:[#allocation2 + $0x32] sm:$0x3]
    %v4697 = vld [vmem:[#allocation2 + $0x34] sm:$0x3]
    %v4698 = vld [vmem:[#allocation2 + $0x36] sm:$0x3]
    %v4699 = vld [vmem:[#allocation2 + $0x38] sm:$0x3]
    %v4700 = vld [vmem:[#allocation2 + $0x3a] sm:$0x3]
    %v4701 = vld [vmem:[#allocation2 + $0x3c] sm:$0x3]
    %v4702 = vld [vmem:[#allocation2 + $0x3e] sm:$0x3]
    %v4703 = vld [vmem:[#allocation2 + $0x40] sm:$0x3]
    %v4704 = vld [vmem:[#allocation2 + $0x42] sm:$0x3]
    %v4705 = vld [vmem:[#allocation2 + $0x44] sm:$0x3]
    %v4706 = vld [vmem:[#allocation2 + $0x46] sm:$0x3]
    %v4707 = vld [vmem:[#allocation2 + $0x48] sm:$0x3]
    %v4708 = vld [vmem:[#allocation2 + $0x4a] sm:$0x3]
    %v4709 = vld [vmem:[#allocation2 + $0x4c] sm:$0x3]
    %v4710 = vld [vmem:[#allocation2 + $0x4e] sm:$0x3]
    %v4711 = vld [vmem:[#allocation2 + $0x50] sm:$0x3]
    %v4712 = vld [vmem:[#allocation2 + $0x52] sm:$0x3]
    %v4713 = vld [vmem:[#allocation2 + $0x54] sm:$0x3]
    %v4714 = vld [vmem:[#allocation2 + $0x56] sm:$0x3]
    %v4715 = vld [vmem:[#allocation2 + $0x58] sm:$0x3]
    %v4716 = vld [vmem:[#allocation2 + $0x5a] sm:$0x3]
    %v4717 = vld [vmem:[#allocation2 + $0x5c] sm:$0x3]
    %v4718 = vld [vmem:[#allocation2 + $0x5e] sm:$0x3]
    %s4719 = scalar_lea.vmem %s5, 384
    %v4720 = vld [vmem:[%s4719] sm:$0x1f]
    %v4721 = vld [vmem:[%s4719 + $0x8] sm:$0x1f]
    %v4722 = vld [vmem:[%s4719 + $0x10] sm:$0x1f]
    %v4723 = vld [vmem:[%s4719 + $0x18] sm:$0x1f]
    %v4724 = vld [vmem:[%s4719 + $0x20] sm:$0x1f]
    %v4725 = vld [vmem:[%s4719 + $0x28] sm:$0x1f]
    %v4726 = vld [vmem:[%s4719 + $0x30] sm:$0x1f]
    %v4727 = vld [vmem:[%s4719 + $0x38] sm:$0x1f]
    %v4728 = vld [vmem:[%s4719 + $0x40] sm:$0x1f]
    %v4729 = vld [vmem:[%s4719 + $0x48] sm:$0x1f]
    %v4730 = vld [vmem:[%s4719 + $0x50] sm:$0x1f]
    %v4731 = vld [vmem:[%s4719 + $0x58] sm:$0x1f]
    %v4732 = vld [vmem:[%s4719 + $0x60] sm:$0x1f]
    %v4733 = vld [vmem:[%s4719 + $0x68] sm:$0x1f]
    %v4734 = vld [vmem:[%s4719 + $0x70] sm:$0x1f]
    %v4735 = vld [vmem:[%s4719 + $0x78] sm:$0x1f]
    %v4736 = vld [vmem:[%s4719 + $0x80] sm:$0x1f]
    %v4737 = vld [vmem:[%s4719 + $0x88] sm:$0x1f]
    %v4738 = vld [vmem:[%s4719 + $0x90] sm:$0x1f]
    %v4739 = vld [vmem:[%s4719 + $0x98] sm:$0x1f]
    %v4740 = vld [vmem:[%s4719 + $0xa0] sm:$0x1f]
    %v4741 = vld [vmem:[%s4719 + $0xa8] sm:$0x1f]
    %v4742 = vld [vmem:[%s4719 + $0xb0] sm:$0x1f]
    %v4743 = vld [vmem:[%s4719 + $0xb8] sm:$0x1f]
    %v4744 = vld [vmem:[%s4719 + $0xc0] sm:$0x1f]
    %v4745 = vld [vmem:[%s4719 + $0xc8] sm:$0x1f]
    %v4746 = vld [vmem:[%s4719 + $0xd0] sm:$0x1f]
    %v4747 = vld [vmem:[%s4719 + $0xd8] sm:$0x1f]
    %v4748 = vld [vmem:[%s4719 + $0xe0] sm:$0x1f]
    %v4749 = vld [vmem:[%s4719 + $0xe8] sm:$0x1f]
    %v4750 = vld [vmem:[%s4719 + $0xf0] sm:$0x1f]
    %v4751 = vld [vmem:[%s4719 + $0xf8] sm:$0x1f]
    %v4752 = vld [vmem:[%s4719 + $0x100] sm:$0x1f]
    %v4753 = vld [vmem:[%s4719 + $0x108] sm:$0x1f]
    %v4754 = vld [vmem:[%s4719 + $0x110] sm:$0x1f]
    %v4755 = vld [vmem:[%s4719 + $0x118] sm:$0x1f]
    %v4756 = vld [vmem:[%s4719 + $0x120] sm:$0x1f]
    %v4757 = vld [vmem:[%s4719 + $0x128] sm:$0x1f]
    %v4758 = vld [vmem:[%s4719 + $0x130] sm:$0x1f]
    %v4759 = vld [vmem:[%s4719 + $0x138] sm:$0x1f]
    %v4760 = vld [vmem:[%s4719 + $0x140] sm:$0x1f]
    %v4761 = vld [vmem:[%s4719 + $0x148] sm:$0x1f]
    %v4762 = vld [vmem:[%s4719 + $0x150] sm:$0x1f]
    %v4763 = vld [vmem:[%s4719 + $0x158] sm:$0x1f]
    %v4764 = vld [vmem:[%s4719 + $0x160] sm:$0x1f]
    %v4765 = vld [vmem:[%s4719 + $0x168] sm:$0x1f]
    %v4766 = vld [vmem:[%s4719 + $0x170] sm:$0x1f]
    %v4767 = vld [vmem:[%s4719 + $0x178] sm:$0x1f]
    %v4769 = vsel %vm1767, %v4671, 0
    %v4772 = vsel %vm1767, %v4720, 0
    %4774 = vmatpush.xpose.msra.mxu0 0.0
    %4775 = vmatpush.xpose.msra.mxu0 0.0
    %4776 = vmatpush.xpose.msra.mxu0 0.0
    %4777 = vmatpush.xpose.msra.mxu0 0.0
    %4778 = vmatpush.xpose.msra.mxu0 0.0
    %4779 = vmatpush.xpose.msra.mxu0 0.0
    %4780 = vmatpush.xpose.msra.mxu0 0.0
    %4781 = vmatpush.xpose.msra.mxu0 0.0
    %4782 = vmatpush.xpose.msra.mxu0 0.0
    %4783 = vmatpush.xpose.msra.mxu0 0.0
    %4784 = vmatpush.xpose.msra.mxu0 0.0
    %4785 = vmatpush.xpose.msra.mxu0 0.0
    %4786 = vmatpush.xpose.msra.mxu0 0.0
    %4787 = vmatpush.xpose.msra.mxu0 0.0
    %4788 = vmatpush.xpose.msra.mxu0 0.0
    %4789 = vmatpush.xpose.msra.mxu0 %v4772
    %4790 = vmatmul.f32.gmra.mxu0 %v4769
    %v4791 = vpop.f32.mrf.mxu0
    %v4792 = vadd.f32 0.0, %v4791
    %4793 = vdwg.mxu0
    %v4795 = vsel %vm1767, %v4672, 0
    %v4798 = vsel %vm1767, %v4721, 0
    %4800 = vmatpush.xpose.msra.mxu0 0.0
    %4801 = vmatpush.xpose.msra.mxu0 0.0
    %4802 = vmatpush.xpose.msra.mxu0 0.0
    %4803 = vmatpush.xpose.msra.mxu0 0.0
    %4804 = vmatpush.xpose.msra.mxu0 0.0
    %4805 = vmatpush.xpose.msra.mxu0 0.0
    %4806 = vmatpush.xpose.msra.mxu0 0.0
    %4807 = vmatpush.xpose.msra.mxu0 0.0
    %4808 = vmatpush.xpose.msra.mxu0 0.0
    %4809 = vmatpush.xpose.msra.mxu0 0.0
    %4810 = vmatpush.xpose.msra.mxu0 0.0
    %4811 = vmatpush.xpose.msra.mxu0 0.0
    %4812 = vmatpush.xpose.msra.mxu0 0.0
    %4813 = vmatpush.xpose.msra.mxu0 0.0
    %4814 = vmatpush.xpose.msra.mxu0 0.0
    %4815 = vmatpush.xpose.msra.mxu0 %v4798
    %4816 = vmatmul.f32.gmra.mxu0 %v4795
    %v4817 = vpop.f32.mrf.mxu0
    %v4818 = vadd.f32 0.0, %v4817
    %4819 = vdwg.mxu0
    %v4821 = vsel %vm1767, %v4673, 0
    %v4824 = vsel %vm1767, %v4722, 0
    %4826 = vmatpush.xpose.msra.mxu0 0.0
    %4827 = vmatpush.xpose.msra.mxu0 0.0
    %4828 = vmatpush.xpose.msra.mxu0 0.0
    %4829 = vmatpush.xpose.msra.mxu0 0.0
    %4830 = vmatpush.xpose.msra.mxu0 0.0
    %4831 = vmatpush.xpose.msra.mxu0 0.0
    %4832 = vmatpush.xpose.msra.mxu0 0.0
    %4833 = vmatpush.xpose.msra.mxu0 0.0
    %4834 = vmatpush.xpose.msra.mxu0 0.0
    %4835 = vmatpush.xpose.msra.mxu0 0.0
    %4836 = vmatpush.xpose.msra.mxu0 0.0
    %4837 = vmatpush.xpose.msra.mxu0 0.0
    %4838 = vmatpush.xpose.msra.mxu0 0.0
    %4839 = vmatpush.xpose.msra.mxu0 0.0
    %4840 = vmatpush.xpose.msra.mxu0 0.0
    %4841 = vmatpush.xpose.msra.mxu0 %v4824
    %4842 = vmatmul.f32.gmra.mxu0 %v4821
    %v4843 = vpop.f32.mrf.mxu0
    %v4844 = vadd.f32 0.0, %v4843
    %4845 = vdwg.mxu0
    %v4847 = vsel %vm1767, %v4674, 0
    %v4850 = vsel %vm1767, %v4723, 0
    %4852 = vmatpush.xpose.msra.mxu0 0.0
    %4853 = vmatpush.xpose.msra.mxu0 0.0
    %4854 = vmatpush.xpose.msra.mxu0 0.0
    %4855 = vmatpush.xpose.msra.mxu0 0.0
    %4856 = vmatpush.xpose.msra.mxu0 0.0
    %4857 = vmatpush.xpose.msra.mxu0 0.0
    %4858 = vmatpush.xpose.msra.mxu0 0.0
    %4859 = vmatpush.xpose.msra.mxu0 0.0
    %4860 = vmatpush.xpose.msra.mxu0 0.0
    %4861 = vmatpush.xpose.msra.mxu0 0.0
    %4862 = vmatpush.xpose.msra.mxu0 0.0
    %4863 = vmatpush.xpose.msra.mxu0 0.0
    %4864 = vmatpush.xpose.msra.mxu0 0.0
    %4865 = vmatpush.xpose.msra.mxu0 0.0
    %4866 = vmatpush.xpose.msra.mxu0 0.0
    %4867 = vmatpush.xpose.msra.mxu0 %v4850
    %4868 = vmatmul.f32.gmra.mxu0 %v4847
    %v4869 = vpop.f32.mrf.mxu0
    %v4870 = vadd.f32 0.0, %v4869
    %4871 = vdwg.mxu0
    %v4873 = vsel %vm1767, %v4675, 0
    %v4876 = vsel %vm1767, %v4724, 0
    %4878 = vmatpush.xpose.msra.mxu0 0.0
    %4879 = vmatpush.xpose.msra.mxu0 0.0
    %4880 = vmatpush.xpose.msra.mxu0 0.0
    %4881 = vmatpush.xpose.msra.mxu0 0.0
    %4882 = vmatpush.xpose.msra.mxu0 0.0
    %4883 = vmatpush.xpose.msra.mxu0 0.0
    %4884 = vmatpush.xpose.msra.mxu0 0.0
    %4885 = vmatpush.xpose.msra.mxu0 0.0
    %4886 = vmatpush.xpose.msra.mxu0 0.0
    %4887 = vmatpush.xpose.msra.mxu0 0.0
    %4888 = vmatpush.xpose.msra.mxu0 0.0
    %4889 = vmatpush.xpose.msra.mxu0 0.0
    %4890 = vmatpush.xpose.msra.mxu0 0.0
    %4891 = vmatpush.xpose.msra.mxu0 0.0
    %4892 = vmatpush.xpose.msra.mxu0 0.0
    %4893 = vmatpush.xpose.msra.mxu0 %v4876
    %4894 = vmatmul.f32.gmra.mxu0 %v4873
    %v4895 = vpop.f32.mrf.mxu0
    %v4896 = vadd.f32 0.0, %v4895
    %4897 = vdwg.mxu0
    %v4899 = vsel %vm1767, %v4676, 0
    %v4902 = vsel %vm1767, %v4725, 0
    %4904 = vmatpush.xpose.msra.mxu0 0.0
    %4905 = vmatpush.xpose.msra.mxu0 0.0
    %4906 = vmatpush.xpose.msra.mxu0 0.0
    %4907 = vmatpush.xpose.msra.mxu0 0.0
    %4908 = vmatpush.xpose.msra.mxu0 0.0
    %4909 = vmatpush.xpose.msra.mxu0 0.0
    %4910 = vmatpush.xpose.msra.mxu0 0.0
    %4911 = vmatpush.xpose.msra.mxu0 0.0
    %4912 = vmatpush.xpose.msra.mxu0 0.0
    %4913 = vmatpush.xpose.msra.mxu0 0.0
    %4914 = vmatpush.xpose.msra.mxu0 0.0
    %4915 = vmatpush.xpose.msra.mxu0 0.0
    %4916 = vmatpush.xpose.msra.mxu0 0.0
    %4917 = vmatpush.xpose.msra.mxu0 0.0
    %4918 = vmatpush.xpose.msra.mxu0 0.0
    %4919 = vmatpush.xpose.msra.mxu0 %v4902
    %4920 = vmatmul.f32.gmra.mxu0 %v4899
    %v4921 = vpop.f32.mrf.mxu0
    %v4922 = vadd.f32 0.0, %v4921
    %4923 = vdwg.mxu0
    %v4925 = vsel %vm1767, %v4677, 0
    %v4928 = vsel %vm1767, %v4726, 0
    %4930 = vmatpush.xpose.msra.mxu0 0.0
    %4931 = vmatpush.xpose.msra.mxu0 0.0
    %4932 = vmatpush.xpose.msra.mxu0 0.0
    %4933 = vmatpush.xpose.msra.mxu0 0.0
    %4934 = vmatpush.xpose.msra.mxu0 0.0
    %4935 = vmatpush.xpose.msra.mxu0 0.0
    %4936 = vmatpush.xpose.msra.mxu0 0.0
    %4937 = vmatpush.xpose.msra.mxu0 0.0
    %4938 = vmatpush.xpose.msra.mxu0 0.0
    %4939 = vmatpush.xpose.msra.mxu0 0.0
    %4940 = vmatpush.xpose.msra.mxu0 0.0
    %4941 = vmatpush.xpose.msra.mxu0 0.0
    %4942 = vmatpush.xpose.msra.mxu0 0.0
    %4943 = vmatpush.xpose.msra.mxu0 0.0
    %4944 = vmatpush.xpose.msra.mxu0 0.0
    %4945 = vmatpush.xpose.msra.mxu0 %v4928
    %4946 = vmatmul.f32.gmra.mxu0 %v4925
    %v4947 = vpop.f32.mrf.mxu0
    %v4948 = vadd.f32 0.0, %v4947
    %4949 = vdwg.mxu0
    %v4951 = vsel %vm1767, %v4678, 0
    %v4954 = vsel %vm1767, %v4727, 0
    %4956 = vmatpush.xpose.msra.mxu0 0.0
    %4957 = vmatpush.xpose.msra.mxu0 0.0
    %4958 = vmatpush.xpose.msra.mxu0 0.0
    %4959 = vmatpush.xpose.msra.mxu0 0.0
    %4960 = vmatpush.xpose.msra.mxu0 0.0
    %4961 = vmatpush.xpose.msra.mxu0 0.0
    %4962 = vmatpush.xpose.msra.mxu0 0.0
    %4963 = vmatpush.xpose.msra.mxu0 0.0
    %4964 = vmatpush.xpose.msra.mxu0 0.0
    %4965 = vmatpush.xpose.msra.mxu0 0.0
    %4966 = vmatpush.xpose.msra.mxu0 0.0
    %4967 = vmatpush.xpose.msra.mxu0 0.0
    %4968 = vmatpush.xpose.msra.mxu0 0.0
    %4969 = vmatpush.xpose.msra.mxu0 0.0
    %4970 = vmatpush.xpose.msra.mxu0 0.0
    %4971 = vmatpush.xpose.msra.mxu0 %v4954
    %4972 = vmatmul.f32.gmra.mxu0 %v4951
    %v4973 = vpop.f32.mrf.mxu0
    %v4974 = vadd.f32 0.0, %v4973
    %4975 = vdwg.mxu0
    %v4977 = vsel %vm1767, %v4679, 0
    %v4980 = vsel %vm1767, %v4728, 0
    %4982 = vmatpush.xpose.msra.mxu0 0.0
    %4983 = vmatpush.xpose.msra.mxu0 0.0
    %4984 = vmatpush.xpose.msra.mxu0 0.0
    %4985 = vmatpush.xpose.msra.mxu0 0.0
    %4986 = vmatpush.xpose.msra.mxu0 0.0
    %4987 = vmatpush.xpose.msra.mxu0 0.0
    %4988 = vmatpush.xpose.msra.mxu0 0.0
    %4989 = vmatpush.xpose.msra.mxu0 0.0
    %4990 = vmatpush.xpose.msra.mxu0 0.0
    %4991 = vmatpush.xpose.msra.mxu0 0.0
    %4992 = vmatpush.xpose.msra.mxu0 0.0
    %4993 = vmatpush.xpose.msra.mxu0 0.0
    %4994 = vmatpush.xpose.msra.mxu0 0.0
    %4995 = vmatpush.xpose.msra.mxu0 0.0
    %4996 = vmatpush.xpose.msra.mxu0 0.0
    %4997 = vmatpush.xpose.msra.mxu0 %v4980
    %4998 = vmatmul.f32.gmra.mxu0 %v4977
    %v4999 = vpop.f32.mrf.mxu0
    %v5000 = vadd.f32 0.0, %v4999
    %5001 = vdwg.mxu0
    %v5003 = vsel %vm1767, %v4680, 0
    %v5006 = vsel %vm1767, %v4729, 0
    %5008 = vmatpush.xpose.msra.mxu0 0.0
    %5009 = vmatpush.xpose.msra.mxu0 0.0
    %5010 = vmatpush.xpose.msra.mxu0 0.0
    %5011 = vmatpush.xpose.msra.mxu0 0.0
    %5012 = vmatpush.xpose.msra.mxu0 0.0
    %5013 = vmatpush.xpose.msra.mxu0 0.0
    %5014 = vmatpush.xpose.msra.mxu0 0.0
    %5015 = vmatpush.xpose.msra.mxu0 0.0
    %5016 = vmatpush.xpose.msra.mxu0 0.0
    %5017 = vmatpush.xpose.msra.mxu0 0.0
    %5018 = vmatpush.xpose.msra.mxu0 0.0
    %5019 = vmatpush.xpose.msra.mxu0 0.0
    %5020 = vmatpush.xpose.msra.mxu0 0.0
    %5021 = vmatpush.xpose.msra.mxu0 0.0
    %5022 = vmatpush.xpose.msra.mxu0 0.0
    %5023 = vmatpush.xpose.msra.mxu0 %v5006
    %5024 = vmatmul.f32.gmra.mxu0 %v5003
    %v5025 = vpop.f32.mrf.mxu0
    %v5026 = vadd.f32 0.0, %v5025
    %5027 = vdwg.mxu0
    %v5029 = vsel %vm1767, %v4681, 0
    %v5032 = vsel %vm1767, %v4730, 0
    %5034 = vmatpush.xpose.msra.mxu0 0.0
    %5035 = vmatpush.xpose.msra.mxu0 0.0
    %5036 = vmatpush.xpose.msra.mxu0 0.0
    %5037 = vmatpush.xpose.msra.mxu0 0.0
    %5038 = vmatpush.xpose.msra.mxu0 0.0
    %5039 = vmatpush.xpose.msra.mxu0 0.0
    %5040 = vmatpush.xpose.msra.mxu0 0.0
    %5041 = vmatpush.xpose.msra.mxu0 0.0
    %5042 = vmatpush.xpose.msra.mxu0 0.0
    %5043 = vmatpush.xpose.msra.mxu0 0.0
    %5044 = vmatpush.xpose.msra.mxu0 0.0
    %5045 = vmatpush.xpose.msra.mxu0 0.0
    %5046 = vmatpush.xpose.msra.mxu0 0.0
    %5047 = vmatpush.xpose.msra.mxu0 0.0
    %5048 = vmatpush.xpose.msra.mxu0 0.0
    %5049 = vmatpush.xpose.msra.mxu0 %v5032
    %5050 = vmatmul.f32.gmra.mxu0 %v5029
    %v5051 = vpop.f32.mrf.mxu0
    %v5052 = vadd.f32 0.0, %v5051
    %5053 = vdwg.mxu0
    %v5055 = vsel %vm1767, %v4682, 0
    %v5058 = vsel %vm1767, %v4731, 0
    %5060 = vmatpush.xpose.msra.mxu0 0.0
    %5061 = vmatpush.xpose.msra.mxu0 0.0
    %5062 = vmatpush.xpose.msra.mxu0 0.0
    %5063 = vmatpush.xpose.msra.mxu0 0.0
    %5064 = vmatpush.xpose.msra.mxu0 0.0
    %5065 = vmatpush.xpose.msra.mxu0 0.0
    %5066 = vmatpush.xpose.msra.mxu0 0.0
    %5067 = vmatpush.xpose.msra.mxu0 0.0
    %5068 = vmatpush.xpose.msra.mxu0 0.0
    %5069 = vmatpush.xpose.msra.mxu0 0.0
    %5070 = vmatpush.xpose.msra.mxu0 0.0
    %5071 = vmatpush.xpose.msra.mxu0 0.0
    %5072 = vmatpush.xpose.msra.mxu0 0.0
    %5073 = vmatpush.xpose.msra.mxu0 0.0
    %5074 = vmatpush.xpose.msra.mxu0 0.0
    %5075 = vmatpush.xpose.msra.mxu0 %v5058
    %5076 = vmatmul.f32.gmra.mxu0 %v5055
    %v5077 = vpop.f32.mrf.mxu0
    %v5078 = vadd.f32 0.0, %v5077
    %5079 = vdwg.mxu0
    %v5081 = vsel %vm1767, %v4683, 0
    %v5084 = vsel %vm1767, %v4732, 0
    %5086 = vmatpush.xpose.msra.mxu0 0.0
    %5087 = vmatpush.xpose.msra.mxu0 0.0
    %5088 = vmatpush.xpose.msra.mxu0 0.0
    %5089 = vmatpush.xpose.msra.mxu0 0.0
    %5090 = vmatpush.xpose.msra.mxu0 0.0
    %5091 = vmatpush.xpose.msra.mxu0 0.0
    %5092 = vmatpush.xpose.msra.mxu0 0.0
    %5093 = vmatpush.xpose.msra.mxu0 0.0
    %5094 = vmatpush.xpose.msra.mxu0 0.0
    %5095 = vmatpush.xpose.msra.mxu0 0.0
    %5096 = vmatpush.xpose.msra.mxu0 0.0
    %5097 = vmatpush.xpose.msra.mxu0 0.0
    %5098 = vmatpush.xpose.msra.mxu0 0.0
    %5099 = vmatpush.xpose.msra.mxu0 0.0
    %5100 = vmatpush.xpose.msra.mxu0 0.0
    %5101 = vmatpush.xpose.msra.mxu0 %v5084
    %5102 = vmatmul.f32.gmra.mxu0 %v5081
    %v5103 = vpop.f32.mrf.mxu0
    %v5104 = vadd.f32 0.0, %v5103
    %5105 = vdwg.mxu0
    %v5107 = vsel %vm1767, %v4684, 0
    %v5110 = vsel %vm1767, %v4733, 0
    %5112 = vmatpush.xpose.msra.mxu0 0.0
    %5113 = vmatpush.xpose.msra.mxu0 0.0
    %5114 = vmatpush.xpose.msra.mxu0 0.0
    %5115 = vmatpush.xpose.msra.mxu0 0.0
    %5116 = vmatpush.xpose.msra.mxu0 0.0
    %5117 = vmatpush.xpose.msra.mxu0 0.0
    %5118 = vmatpush.xpose.msra.mxu0 0.0
    %5119 = vmatpush.xpose.msra.mxu0 0.0
    %5120 = vmatpush.xpose.msra.mxu0 0.0
    %5121 = vmatpush.xpose.msra.mxu0 0.0
    %5122 = vmatpush.xpose.msra.mxu0 0.0
    %5123 = vmatpush.xpose.msra.mxu0 0.0
    %5124 = vmatpush.xpose.msra.mxu0 0.0
    %5125 = vmatpush.xpose.msra.mxu0 0.0
    %5126 = vmatpush.xpose.msra.mxu0 0.0
    %5127 = vmatpush.xpose.msra.mxu0 %v5110
    %5128 = vmatmul.f32.gmra.mxu0 %v5107
    %v5129 = vpop.f32.mrf.mxu0
    %v5130 = vadd.f32 0.0, %v5129
    %5131 = vdwg.mxu0
    %v5133 = vsel %vm1767, %v4685, 0
    %v5136 = vsel %vm1767, %v4734, 0
    %5138 = vmatpush.xpose.msra.mxu0 0.0
    %5139 = vmatpush.xpose.msra.mxu0 0.0
    %5140 = vmatpush.xpose.msra.mxu0 0.0
    %5141 = vmatpush.xpose.msra.mxu0 0.0
    %5142 = vmatpush.xpose.msra.mxu0 0.0
    %5143 = vmatpush.xpose.msra.mxu0 0.0
    %5144 = vmatpush.xpose.msra.mxu0 0.0
    %5145 = vmatpush.xpose.msra.mxu0 0.0
    %5146 = vmatpush.xpose.msra.mxu0 0.0
    %5147 = vmatpush.xpose.msra.mxu0 0.0
    %5148 = vmatpush.xpose.msra.mxu0 0.0
    %5149 = vmatpush.xpose.msra.mxu0 0.0
    %5150 = vmatpush.xpose.msra.mxu0 0.0
    %5151 = vmatpush.xpose.msra.mxu0 0.0
    %5152 = vmatpush.xpose.msra.mxu0 0.0
    %5153 = vmatpush.xpose.msra.mxu0 %v5136
    %5154 = vmatmul.f32.gmra.mxu0 %v5133
    %v5155 = vpop.f32.mrf.mxu0
    %v5156 = vadd.f32 0.0, %v5155
    %5157 = vdwg.mxu0
    %v5159 = vsel %vm1767, %v4686, 0
    %v5162 = vsel %vm1767, %v4735, 0
    %5164 = vmatpush.xpose.msra.mxu0 0.0
    %5165 = vmatpush.xpose.msra.mxu0 0.0
    %5166 = vmatpush.xpose.msra.mxu0 0.0
    %5167 = vmatpush.xpose.msra.mxu0 0.0
    %5168 = vmatpush.xpose.msra.mxu0 0.0
    %5169 = vmatpush.xpose.msra.mxu0 0.0
    %5170 = vmatpush.xpose.msra.mxu0 0.0
    %5171 = vmatpush.xpose.msra.mxu0 0.0
    %5172 = vmatpush.xpose.msra.mxu0 0.0
    %5173 = vmatpush.xpose.msra.mxu0 0.0
    %5174 = vmatpush.xpose.msra.mxu0 0.0
    %5175 = vmatpush.xpose.msra.mxu0 0.0
    %5176 = vmatpush.xpose.msra.mxu0 0.0
    %5177 = vmatpush.xpose.msra.mxu0 0.0
    %5178 = vmatpush.xpose.msra.mxu0 0.0
    %5179 = vmatpush.xpose.msra.mxu0 %v5162
    %5180 = vmatmul.f32.gmra.mxu0 %v5159
    %v5181 = vpop.f32.mrf.mxu0
    %v5182 = vadd.f32 0.0, %v5181
    %5183 = vdwg.mxu0
    %v5185 = vsel %vm1767, %v4687, 0
    %v5188 = vsel %vm1767, %v4736, 0
    %5190 = vmatpush.xpose.msra.mxu0 0.0
    %5191 = vmatpush.xpose.msra.mxu0 0.0
    %5192 = vmatpush.xpose.msra.mxu0 0.0
    %5193 = vmatpush.xpose.msra.mxu0 0.0
    %5194 = vmatpush.xpose.msra.mxu0 0.0
    %5195 = vmatpush.xpose.msra.mxu0 0.0
    %5196 = vmatpush.xpose.msra.mxu0 0.0
    %5197 = vmatpush.xpose.msra.mxu0 0.0
    %5198 = vmatpush.xpose.msra.mxu0 0.0
    %5199 = vmatpush.xpose.msra.mxu0 0.0
    %5200 = vmatpush.xpose.msra.mxu0 0.0
    %5201 = vmatpush.xpose.msra.mxu0 0.0
    %5202 = vmatpush.xpose.msra.mxu0 0.0
    %5203 = vmatpush.xpose.msra.mxu0 0.0
    %5204 = vmatpush.xpose.msra.mxu0 0.0
    %5205 = vmatpush.xpose.msra.mxu0 %v5188
    %5206 = vmatmul.f32.gmra.mxu0 %v5185
    %v5207 = vpop.f32.mrf.mxu0
    %v5208 = vadd.f32 0.0, %v5207
    %5209 = vdwg.mxu0
    %v5211 = vsel %vm1767, %v4688, 0
    %v5214 = vsel %vm1767, %v4737, 0
    %5216 = vmatpush.xpose.msra.mxu0 0.0
    %5217 = vmatpush.xpose.msra.mxu0 0.0
    %5218 = vmatpush.xpose.msra.mxu0 0.0
    %5219 = vmatpush.xpose.msra.mxu0 0.0
    %5220 = vmatpush.xpose.msra.mxu0 0.0
    %5221 = vmatpush.xpose.msra.mxu0 0.0
    %5222 = vmatpush.xpose.msra.mxu0 0.0
    %5223 = vmatpush.xpose.msra.mxu0 0.0
    %5224 = vmatpush.xpose.msra.mxu0 0.0
    %5225 = vmatpush.xpose.msra.mxu0 0.0
    %5226 = vmatpush.xpose.msra.mxu0 0.0
    %5227 = vmatpush.xpose.msra.mxu0 0.0
    %5228 = vmatpush.xpose.msra.mxu0 0.0
    %5229 = vmatpush.xpose.msra.mxu0 0.0
    %5230 = vmatpush.xpose.msra.mxu0 0.0
    %5231 = vmatpush.xpose.msra.mxu0 %v5214
    %5232 = vmatmul.f32.gmra.mxu0 %v5211
    %v5233 = vpop.f32.mrf.mxu0
    %v5234 = vadd.f32 0.0, %v5233
    %5235 = vdwg.mxu0
    %v5237 = vsel %vm1767, %v4689, 0
    %v5240 = vsel %vm1767, %v4738, 0
    %5242 = vmatpush.xpose.msra.mxu0 0.0
    %5243 = vmatpush.xpose.msra.mxu0 0.0
    %5244 = vmatpush.xpose.msra.mxu0 0.0
    %5245 = vmatpush.xpose.msra.mxu0 0.0
    %5246 = vmatpush.xpose.msra.mxu0 0.0
    %5247 = vmatpush.xpose.msra.mxu0 0.0
    %5248 = vmatpush.xpose.msra.mxu0 0.0
    %5249 = vmatpush.xpose.msra.mxu0 0.0
    %5250 = vmatpush.xpose.msra.mxu0 0.0
    %5251 = vmatpush.xpose.msra.mxu0 0.0
    %5252 = vmatpush.xpose.msra.mxu0 0.0
    %5253 = vmatpush.xpose.msra.mxu0 0.0
    %5254 = vmatpush.xpose.msra.mxu0 0.0
    %5255 = vmatpush.xpose.msra.mxu0 0.0
    %5256 = vmatpush.xpose.msra.mxu0 0.0
    %5257 = vmatpush.xpose.msra.mxu0 %v5240
    %5258 = vmatmul.f32.gmra.mxu0 %v5237
    %v5259 = vpop.f32.mrf.mxu0
    %v5260 = vadd.f32 0.0, %v5259
    %5261 = vdwg.mxu0
    %v5263 = vsel %vm1767, %v4690, 0
    %v5266 = vsel %vm1767, %v4739, 0
    %5268 = vmatpush.xpose.msra.mxu0 0.0
    %5269 = vmatpush.xpose.msra.mxu0 0.0
    %5270 = vmatpush.xpose.msra.mxu0 0.0
    %5271 = vmatpush.xpose.msra.mxu0 0.0
    %5272 = vmatpush.xpose.msra.mxu0 0.0
    %5273 = vmatpush.xpose.msra.mxu0 0.0
    %5274 = vmatpush.xpose.msra.mxu0 0.0
    %5275 = vmatpush.xpose.msra.mxu0 0.0
    %5276 = vmatpush.xpose.msra.mxu0 0.0
    %5277 = vmatpush.xpose.msra.mxu0 0.0
    %5278 = vmatpush.xpose.msra.mxu0 0.0
    %5279 = vmatpush.xpose.msra.mxu0 0.0
    %5280 = vmatpush.xpose.msra.mxu0 0.0
    %5281 = vmatpush.xpose.msra.mxu0 0.0
    %5282 = vmatpush.xpose.msra.mxu0 0.0
    %5283 = vmatpush.xpose.msra.mxu0 %v5266
    %5284 = vmatmul.f32.gmra.mxu0 %v5263
    %v5285 = vpop.f32.mrf.mxu0
    %v5286 = vadd.f32 0.0, %v5285
    %5287 = vdwg.mxu0
    %v5289 = vsel %vm1767, %v4691, 0
    %v5292 = vsel %vm1767, %v4740, 0
    %5294 = vmatpush.xpose.msra.mxu0 0.0
    %5295 = vmatpush.xpose.msra.mxu0 0.0
    %5296 = vmatpush.xpose.msra.mxu0 0.0
    %5297 = vmatpush.xpose.msra.mxu0 0.0
    %5298 = vmatpush.xpose.msra.mxu0 0.0
    %5299 = vmatpush.xpose.msra.mxu0 0.0
    %5300 = vmatpush.xpose.msra.mxu0 0.0
    %5301 = vmatpush.xpose.msra.mxu0 0.0
    %5302 = vmatpush.xpose.msra.mxu0 0.0
    %5303 = vmatpush.xpose.msra.mxu0 0.0
    %5304 = vmatpush.xpose.msra.mxu0 0.0
    %5305 = vmatpush.xpose.msra.mxu0 0.0
    %5306 = vmatpush.xpose.msra.mxu0 0.0
    %5307 = vmatpush.xpose.msra.mxu0 0.0
    %5308 = vmatpush.xpose.msra.mxu0 0.0
    %5309 = vmatpush.xpose.msra.mxu0 %v5292
    %5310 = vmatmul.f32.gmra.mxu0 %v5289
    %v5311 = vpop.f32.mrf.mxu0
    %v5312 = vadd.f32 0.0, %v5311
    %5313 = vdwg.mxu0
    %v5315 = vsel %vm1767, %v4692, 0
    %v5318 = vsel %vm1767, %v4741, 0
    %5320 = vmatpush.xpose.msra.mxu0 0.0
    %5321 = vmatpush.xpose.msra.mxu0 0.0
    %5322 = vmatpush.xpose.msra.mxu0 0.0
    %5323 = vmatpush.xpose.msra.mxu0 0.0
    %5324 = vmatpush.xpose.msra.mxu0 0.0
    %5325 = vmatpush.xpose.msra.mxu0 0.0
    %5326 = vmatpush.xpose.msra.mxu0 0.0
    %5327 = vmatpush.xpose.msra.mxu0 0.0
    %5328 = vmatpush.xpose.msra.mxu0 0.0
    %5329 = vmatpush.xpose.msra.mxu0 0.0
    %5330 = vmatpush.xpose.msra.mxu0 0.0
    %5331 = vmatpush.xpose.msra.mxu0 0.0
    %5332 = vmatpush.xpose.msra.mxu0 0.0
    %5333 = vmatpush.xpose.msra.mxu0 0.0
    %5334 = vmatpush.xpose.msra.mxu0 0.0
    %5335 = vmatpush.xpose.msra.mxu0 %v5318
    %5336 = vmatmul.f32.gmra.mxu0 %v5315
    %v5337 = vpop.f32.mrf.mxu0
    %v5338 = vadd.f32 0.0, %v5337
    %5339 = vdwg.mxu0
    %v5341 = vsel %vm1767, %v4693, 0
    %v5344 = vsel %vm1767, %v4742, 0
    %5346 = vmatpush.xpose.msra.mxu0 0.0
    %5347 = vmatpush.xpose.msra.mxu0 0.0
    %5348 = vmatpush.xpose.msra.mxu0 0.0
    %5349 = vmatpush.xpose.msra.mxu0 0.0
    %5350 = vmatpush.xpose.msra.mxu0 0.0
    %5351 = vmatpush.xpose.msra.mxu0 0.0
    %5352 = vmatpush.xpose.msra.mxu0 0.0
    %5353 = vmatpush.xpose.msra.mxu0 0.0
    %5354 = vmatpush.xpose.msra.mxu0 0.0
    %5355 = vmatpush.xpose.msra.mxu0 0.0
    %5356 = vmatpush.xpose.msra.mxu0 0.0
    %5357 = vmatpush.xpose.msra.mxu0 0.0
    %5358 = vmatpush.xpose.msra.mxu0 0.0
    %5359 = vmatpush.xpose.msra.mxu0 0.0
    %5360 = vmatpush.xpose.msra.mxu0 0.0
    %5361 = vmatpush.xpose.msra.mxu0 %v5344
    %5362 = vmatmul.f32.gmra.mxu0 %v5341
    %v5363 = vpop.f32.mrf.mxu0
    %v5364 = vadd.f32 0.0, %v5363
    %5365 = vdwg.mxu0
    %v5367 = vsel %vm1767, %v4694, 0
    %v5370 = vsel %vm1767, %v4743, 0
    %5372 = vmatpush.xpose.msra.mxu0 0.0
    %5373 = vmatpush.xpose.msra.mxu0 0.0
    %5374 = vmatpush.xpose.msra.mxu0 0.0
    %5375 = vmatpush.xpose.msra.mxu0 0.0
    %5376 = vmatpush.xpose.msra.mxu0 0.0
    %5377 = vmatpush.xpose.msra.mxu0 0.0
    %5378 = vmatpush.xpose.msra.mxu0 0.0
    %5379 = vmatpush.xpose.msra.mxu0 0.0
    %5380 = vmatpush.xpose.msra.mxu0 0.0
    %5381 = vmatpush.xpose.msra.mxu0 0.0
    %5382 = vmatpush.xpose.msra.mxu0 0.0
    %5383 = vmatpush.xpose.msra.mxu0 0.0
    %5384 = vmatpush.xpose.msra.mxu0 0.0
    %5385 = vmatpush.xpose.msra.mxu0 0.0
    %5386 = vmatpush.xpose.msra.mxu0 0.0
    %5387 = vmatpush.xpose.msra.mxu0 %v5370
    %5388 = vmatmul.f32.gmra.mxu0 %v5367
    %v5389 = vpop.f32.mrf.mxu0
    %v5390 = vadd.f32 0.0, %v5389
    %5391 = vdwg.mxu0
    %v5393 = vsel %vm1767, %v4695, 0
    %v5396 = vsel %vm1767, %v4744, 0
    %5398 = vmatpush.xpose.msra.mxu0 0.0
    %5399 = vmatpush.xpose.msra.mxu0 0.0
    %5400 = vmatpush.xpose.msra.mxu0 0.0
    %5401 = vmatpush.xpose.msra.mxu0 0.0
    %5402 = vmatpush.xpose.msra.mxu0 0.0
    %5403 = vmatpush.xpose.msra.mxu0 0.0
    %5404 = vmatpush.xpose.msra.mxu0 0.0
    %5405 = vmatpush.xpose.msra.mxu0 0.0
    %5406 = vmatpush.xpose.msra.mxu0 0.0
    %5407 = vmatpush.xpose.msra.mxu0 0.0
    %5408 = vmatpush.xpose.msra.mxu0 0.0
    %5409 = vmatpush.xpose.msra.mxu0 0.0
    %5410 = vmatpush.xpose.msra.mxu0 0.0
    %5411 = vmatpush.xpose.msra.mxu0 0.0
    %5412 = vmatpush.xpose.msra.mxu0 0.0
    %5413 = vmatpush.xpose.msra.mxu0 %v5396
    %5414 = vmatmul.f32.gmra.mxu0 %v5393
    %v5415 = vpop.f32.mrf.mxu0
    %v5416 = vadd.f32 0.0, %v5415
    %5417 = vdwg.mxu0
    %v5419 = vsel %vm1767, %v4696, 0
    %v5422 = vsel %vm1767, %v4745, 0
    %5424 = vmatpush.xpose.msra.mxu0 0.0
    %5425 = vmatpush.xpose.msra.mxu0 0.0
    %5426 = vmatpush.xpose.msra.mxu0 0.0
    %5427 = vmatpush.xpose.msra.mxu0 0.0
    %5428 = vmatpush.xpose.msra.mxu0 0.0
    %5429 = vmatpush.xpose.msra.mxu0 0.0
    %5430 = vmatpush.xpose.msra.mxu0 0.0
    %5431 = vmatpush.xpose.msra.mxu0 0.0
    %5432 = vmatpush.xpose.msra.mxu0 0.0
    %5433 = vmatpush.xpose.msra.mxu0 0.0
    %5434 = vmatpush.xpose.msra.mxu0 0.0
    %5435 = vmatpush.xpose.msra.mxu0 0.0
    %5436 = vmatpush.xpose.msra.mxu0 0.0
    %5437 = vmatpush.xpose.msra.mxu0 0.0
    %5438 = vmatpush.xpose.msra.mxu0 0.0
    %5439 = vmatpush.xpose.msra.mxu0 %v5422
    %5440 = vmatmul.f32.gmra.mxu0 %v5419
    %v5441 = vpop.f32.mrf.mxu0
    %v5442 = vadd.f32 0.0, %v5441
    %5443 = vdwg.mxu0
    %v5445 = vsel %vm1767, %v4697, 0
    %v5448 = vsel %vm1767, %v4746, 0
    %5450 = vmatpush.xpose.msra.mxu0 0.0
    %5451 = vmatpush.xpose.msra.mxu0 0.0
    %5452 = vmatpush.xpose.msra.mxu0 0.0
    %5453 = vmatpush.xpose.msra.mxu0 0.0
    %5454 = vmatpush.xpose.msra.mxu0 0.0
    %5455 = vmatpush.xpose.msra.mxu0 0.0
    %5456 = vmatpush.xpose.msra.mxu0 0.0
    %5457 = vmatpush.xpose.msra.mxu0 0.0
    %5458 = vmatpush.xpose.msra.mxu0 0.0
    %5459 = vmatpush.xpose.msra.mxu0 0.0
    %5460 = vmatpush.xpose.msra.mxu0 0.0
    %5461 = vmatpush.xpose.msra.mxu0 0.0
    %5462 = vmatpush.xpose.msra.mxu0 0.0
    %5463 = vmatpush.xpose.msra.mxu0 0.0
    %5464 = vmatpush.xpose.msra.mxu0 0.0
    %5465 = vmatpush.xpose.msra.mxu0 %v5448
    %5466 = vmatmul.f32.gmra.mxu0 %v5445
    %v5467 = vpop.f32.mrf.mxu0
    %v5468 = vadd.f32 0.0, %v5467
    %5469 = vdwg.mxu0
    %v5471 = vsel %vm1767, %v4698, 0
    %v5474 = vsel %vm1767, %v4747, 0
    %5476 = vmatpush.xpose.msra.mxu0 0.0
    %5477 = vmatpush.xpose.msra.mxu0 0.0
    %5478 = vmatpush.xpose.msra.mxu0 0.0
    %5479 = vmatpush.xpose.msra.mxu0 0.0
    %5480 = vmatpush.xpose.msra.mxu0 0.0
    %5481 = vmatpush.xpose.msra.mxu0 0.0
    %5482 = vmatpush.xpose.msra.mxu0 0.0
    %5483 = vmatpush.xpose.msra.mxu0 0.0
    %5484 = vmatpush.xpose.msra.mxu0 0.0
    %5485 = vmatpush.xpose.msra.mxu0 0.0
    %5486 = vmatpush.xpose.msra.mxu0 0.0
    %5487 = vmatpush.xpose.msra.mxu0 0.0
    %5488 = vmatpush.xpose.msra.mxu0 0.0
    %5489 = vmatpush.xpose.msra.mxu0 0.0
    %5490 = vmatpush.xpose.msra.mxu0 0.0
    %5491 = vmatpush.xpose.msra.mxu0 %v5474
    %5492 = vmatmul.f32.gmra.mxu0 %v5471
    %v5493 = vpop.f32.mrf.mxu0
    %v5494 = vadd.f32 0.0, %v5493
    %5495 = vdwg.mxu0
    %v5497 = vsel %vm1767, %v4699, 0
    %v5500 = vsel %vm1767, %v4748, 0
    %5502 = vmatpush.xpose.msra.mxu0 0.0
    %5503 = vmatpush.xpose.msra.mxu0 0.0
    %5504 = vmatpush.xpose.msra.mxu0 0.0
    %5505 = vmatpush.xpose.msra.mxu0 0.0
    %5506 = vmatpush.xpose.msra.mxu0 0.0
    %5507 = vmatpush.xpose.msra.mxu0 0.0
    %5508 = vmatpush.xpose.msra.mxu0 0.0
    %5509 = vmatpush.xpose.msra.mxu0 0.0
    %5510 = vmatpush.xpose.msra.mxu0 0.0
    %5511 = vmatpush.xpose.msra.mxu0 0.0
    %5512 = vmatpush.xpose.msra.mxu0 0.0
    %5513 = vmatpush.xpose.msra.mxu0 0.0
    %5514 = vmatpush.xpose.msra.mxu0 0.0
    %5515 = vmatpush.xpose.msra.mxu0 0.0
    %5516 = vmatpush.xpose.msra.mxu0 0.0
    %5517 = vmatpush.xpose.msra.mxu0 %v5500
    %5518 = vmatmul.f32.gmra.mxu0 %v5497
    %v5519 = vpop.f32.mrf.mxu0
    %v5520 = vadd.f32 0.0, %v5519
    %5521 = vdwg.mxu0
    %v5523 = vsel %vm1767, %v4700, 0
    %v5526 = vsel %vm1767, %v4749, 0
    %5528 = vmatpush.xpose.msra.mxu0 0.0
    %5529 = vmatpush.xpose.msra.mxu0 0.0
    %5530 = vmatpush.xpose.msra.mxu0 0.0
    %5531 = vmatpush.xpose.msra.mxu0 0.0
    %5532 = vmatpush.xpose.msra.mxu0 0.0
    %5533 = vmatpush.xpose.msra.mxu0 0.0
    %5534 = vmatpush.xpose.msra.mxu0 0.0
    %5535 = vmatpush.xpose.msra.mxu0 0.0
    %5536 = vmatpush.xpose.msra.mxu0 0.0
    %5537 = vmatpush.xpose.msra.mxu0 0.0
    %5538 = vmatpush.xpose.msra.mxu0 0.0
    %5539 = vmatpush.xpose.msra.mxu0 0.0
    %5540 = vmatpush.xpose.msra.mxu0 0.0
    %5541 = vmatpush.xpose.msra.mxu0 0.0
    %5542 = vmatpush.xpose.msra.mxu0 0.0
    %5543 = vmatpush.xpose.msra.mxu0 %v5526
    %5544 = vmatmul.f32.gmra.mxu0 %v5523
    %v5545 = vpop.f32.mrf.mxu0
    %v5546 = vadd.f32 0.0, %v5545
    %5547 = vdwg.mxu0
    %v5549 = vsel %vm1767, %v4701, 0
    %v5552 = vsel %vm1767, %v4750, 0
    %5554 = vmatpush.xpose.msra.mxu0 0.0
    %5555 = vmatpush.xpose.msra.mxu0 0.0
    %5556 = vmatpush.xpose.msra.mxu0 0.0
    %5557 = vmatpush.xpose.msra.mxu0 0.0
    %5558 = vmatpush.xpose.msra.mxu0 0.0
    %5559 = vmatpush.xpose.msra.mxu0 0.0
    %5560 = vmatpush.xpose.msra.mxu0 0.0
    %5561 = vmatpush.xpose.msra.mxu0 0.0
    %5562 = vmatpush.xpose.msra.mxu0 0.0
    %5563 = vmatpush.xpose.msra.mxu0 0.0
    %5564 = vmatpush.xpose.msra.mxu0 0.0
    %5565 = vmatpush.xpose.msra.mxu0 0.0
    %5566 = vmatpush.xpose.msra.mxu0 0.0
    %5567 = vmatpush.xpose.msra.mxu0 0.0
    %5568 = vmatpush.xpose.msra.mxu0 0.0
    %5569 = vmatpush.xpose.msra.mxu0 %v5552
    %5570 = vmatmul.f32.gmra.mxu0 %v5549
    %v5571 = vpop.f32.mrf.mxu0
    %v5572 = vadd.f32 0.0, %v5571
    %5573 = vdwg.mxu0
    %v5575 = vsel %vm1767, %v4702, 0
    %v5578 = vsel %vm1767, %v4751, 0
    %5580 = vmatpush.xpose.msra.mxu0 0.0
    %5581 = vmatpush.xpose.msra.mxu0 0.0
    %5582 = vmatpush.xpose.msra.mxu0 0.0
    %5583 = vmatpush.xpose.msra.mxu0 0.0
    %5584 = vmatpush.xpose.msra.mxu0 0.0
    %5585 = vmatpush.xpose.msra.mxu0 0.0
    %5586 = vmatpush.xpose.msra.mxu0 0.0
    %5587 = vmatpush.xpose.msra.mxu0 0.0
    %5588 = vmatpush.xpose.msra.mxu0 0.0
    %5589 = vmatpush.xpose.msra.mxu0 0.0
    %5590 = vmatpush.xpose.msra.mxu0 0.0
    %5591 = vmatpush.xpose.msra.mxu0 0.0
    %5592 = vmatpush.xpose.msra.mxu0 0.0
    %5593 = vmatpush.xpose.msra.mxu0 0.0
    %5594 = vmatpush.xpose.msra.mxu0 0.0
    %5595 = vmatpush.xpose.msra.mxu0 %v5578
    %5596 = vmatmul.f32.gmra.mxu0 %v5575
    %v5597 = vpop.f32.mrf.mxu0
    %v5598 = vadd.f32 0.0, %v5597
    %5599 = vdwg.mxu0
    %v5601 = vsel %vm1767, %v4703, 0
    %v5604 = vsel %vm1767, %v4752, 0
    %5606 = vmatpush.xpose.msra.mxu0 0.0
    %5607 = vmatpush.xpose.msra.mxu0 0.0
    %5608 = vmatpush.xpose.msra.mxu0 0.0
    %5609 = vmatpush.xpose.msra.mxu0 0.0
    %5610 = vmatpush.xpose.msra.mxu0 0.0
    %5611 = vmatpush.xpose.msra.mxu0 0.0
    %5612 = vmatpush.xpose.msra.mxu0 0.0
    %5613 = vmatpush.xpose.msra.mxu0 0.0
    %5614 = vmatpush.xpose.msra.mxu0 0.0
    %5615 = vmatpush.xpose.msra.mxu0 0.0
    %5616 = vmatpush.xpose.msra.mxu0 0.0
    %5617 = vmatpush.xpose.msra.mxu0 0.0
    %5618 = vmatpush.xpose.msra.mxu0 0.0
    %5619 = vmatpush.xpose.msra.mxu0 0.0
    %5620 = vmatpush.xpose.msra.mxu0 0.0
    %5621 = vmatpush.xpose.msra.mxu0 %v5604
    %5622 = vmatmul.f32.gmra.mxu0 %v5601
    %v5623 = vpop.f32.mrf.mxu0
    %v5624 = vadd.f32 0.0, %v5623
    %5625 = vdwg.mxu0
    %v5627 = vsel %vm1767, %v4704, 0
    %v5630 = vsel %vm1767, %v4753, 0
    %5632 = vmatpush.xpose.msra.mxu0 0.0
    %5633 = vmatpush.xpose.msra.mxu0 0.0
    %5634 = vmatpush.xpose.msra.mxu0 0.0
    %5635 = vmatpush.xpose.msra.mxu0 0.0
    %5636 = vmatpush.xpose.msra.mxu0 0.0
    %5637 = vmatpush.xpose.msra.mxu0 0.0
    %5638 = vmatpush.xpose.msra.mxu0 0.0
    %5639 = vmatpush.xpose.msra.mxu0 0.0
    %5640 = vmatpush.xpose.msra.mxu0 0.0
    %5641 = vmatpush.xpose.msra.mxu0 0.0
    %5642 = vmatpush.xpose.msra.mxu0 0.0
    %5643 = vmatpush.xpose.msra.mxu0 0.0
    %5644 = vmatpush.xpose.msra.mxu0 0.0
    %5645 = vmatpush.xpose.msra.mxu0 0.0
    %5646 = vmatpush.xpose.msra.mxu0 0.0
    %5647 = vmatpush.xpose.msra.mxu0 %v5630
    %5648 = vmatmul.f32.gmra.mxu0 %v5627
    %v5649 = vpop.f32.mrf.mxu0
    %v5650 = vadd.f32 0.0, %v5649
    %5651 = vdwg.mxu0
    %v5653 = vsel %vm1767, %v4705, 0
    %v5656 = vsel %vm1767, %v4754, 0
    %5658 = vmatpush.xpose.msra.mxu0 0.0
    %5659 = vmatpush.xpose.msra.mxu0 0.0
    %5660 = vmatpush.xpose.msra.mxu0 0.0
    %5661 = vmatpush.xpose.msra.mxu0 0.0
    %5662 = vmatpush.xpose.msra.mxu0 0.0
    %5663 = vmatpush.xpose.msra.mxu0 0.0
    %5664 = vmatpush.xpose.msra.mxu0 0.0
    %5665 = vmatpush.xpose.msra.mxu0 0.0
    %5666 = vmatpush.xpose.msra.mxu0 0.0
    %5667 = vmatpush.xpose.msra.mxu0 0.0
    %5668 = vmatpush.xpose.msra.mxu0 0.0
    %5669 = vmatpush.xpose.msra.mxu0 0.0
    %5670 = vmatpush.xpose.msra.mxu0 0.0
    %5671 = vmatpush.xpose.msra.mxu0 0.0
    %5672 = vmatpush.xpose.msra.mxu0 0.0
    %5673 = vmatpush.xpose.msra.mxu0 %v5656
    %5674 = vmatmul.f32.gmra.mxu0 %v5653
    %v5675 = vpop.f32.mrf.mxu0
    %v5676 = vadd.f32 0.0, %v5675
    %5677 = vdwg.mxu0
    %v5679 = vsel %vm1767, %v4706, 0
    %v5682 = vsel %vm1767, %v4755, 0
    %5684 = vmatpush.xpose.msra.mxu0 0.0
    %5685 = vmatpush.xpose.msra.mxu0 0.0
    %5686 = vmatpush.xpose.msra.mxu0 0.0
    %5687 = vmatpush.xpose.msra.mxu0 0.0
    %5688 = vmatpush.xpose.msra.mxu0 0.0
    %5689 = vmatpush.xpose.msra.mxu0 0.0
    %5690 = vmatpush.xpose.msra.mxu0 0.0
    %5691 = vmatpush.xpose.msra.mxu0 0.0
    %5692 = vmatpush.xpose.msra.mxu0 0.0
    %5693 = vmatpush.xpose.msra.mxu0 0.0
    %5694 = vmatpush.xpose.msra.mxu0 0.0
    %5695 = vmatpush.xpose.msra.mxu0 0.0
    %5696 = vmatpush.xpose.msra.mxu0 0.0
    %5697 = vmatpush.xpose.msra.mxu0 0.0
    %5698 = vmatpush.xpose.msra.mxu0 0.0
    %5699 = vmatpush.xpose.msra.mxu0 %v5682
    %5700 = vmatmul.f32.gmra.mxu0 %v5679
    %v5701 = vpop.f32.mrf.mxu0
    %v5702 = vadd.f32 0.0, %v5701
    %5703 = vdwg.mxu0
    %v5705 = vsel %vm1767, %v4707, 0
    %v5708 = vsel %vm1767, %v4756, 0
    %5710 = vmatpush.xpose.msra.mxu0 0.0
    %5711 = vmatpush.xpose.msra.mxu0 0.0
    %5712 = vmatpush.xpose.msra.mxu0 0.0
    %5713 = vmatpush.xpose.msra.mxu0 0.0
    %5714 = vmatpush.xpose.msra.mxu0 0.0
    %5715 = vmatpush.xpose.msra.mxu0 0.0
    %5716 = vmatpush.xpose.msra.mxu0 0.0
    %5717 = vmatpush.xpose.msra.mxu0 0.0
    %5718 = vmatpush.xpose.msra.mxu0 0.0
    %5719 = vmatpush.xpose.msra.mxu0 0.0
    %5720 = vmatpush.xpose.msra.mxu0 0.0
    %5721 = vmatpush.xpose.msra.mxu0 0.0
    %5722 = vmatpush.xpose.msra.mxu0 0.0
    %5723 = vmatpush.xpose.msra.mxu0 0.0
    %5724 = vmatpush.xpose.msra.mxu0 0.0
    %5725 = vmatpush.xpose.msra.mxu0 %v5708
    %5726 = vmatmul.f32.gmra.mxu0 %v5705
    %v5727 = vpop.f32.mrf.mxu0
    %v5728 = vadd.f32 0.0, %v5727
    %5729 = vdwg.mxu0
    %v5731 = vsel %vm1767, %v4708, 0
    %v5734 = vsel %vm1767, %v4757, 0
    %5736 = vmatpush.xpose.msra.mxu0 0.0
    %5737 = vmatpush.xpose.msra.mxu0 0.0
    %5738 = vmatpush.xpose.msra.mxu0 0.0
    %5739 = vmatpush.xpose.msra.mxu0 0.0
    %5740 = vmatpush.xpose.msra.mxu0 0.0
    %5741 = vmatpush.xpose.msra.mxu0 0.0
    %5742 = vmatpush.xpose.msra.mxu0 0.0
    %5743 = vmatpush.xpose.msra.mxu0 0.0
    %5744 = vmatpush.xpose.msra.mxu0 0.0
    %5745 = vmatpush.xpose.msra.mxu0 0.0
    %5746 = vmatpush.xpose.msra.mxu0 0.0
    %5747 = vmatpush.xpose.msra.mxu0 0.0
    %5748 = vmatpush.xpose.msra.mxu0 0.0
    %5749 = vmatpush.xpose.msra.mxu0 0.0
    %5750 = vmatpush.xpose.msra.mxu0 0.0
    %5751 = vmatpush.xpose.msra.mxu0 %v5734
    %5752 = vmatmul.f32.gmra.mxu0 %v5731
    %v5753 = vpop.f32.mrf.mxu0
    %v5754 = vadd.f32 0.0, %v5753
    %5755 = vdwg.mxu0
    %v5757 = vsel %vm1767, %v4709, 0
    %v5760 = vsel %vm1767, %v4758, 0
    %5762 = vmatpush.xpose.msra.mxu0 0.0
    %5763 = vmatpush.xpose.msra.mxu0 0.0
    %5764 = vmatpush.xpose.msra.mxu0 0.0
    %5765 = vmatpush.xpose.msra.mxu0 0.0
    %5766 = vmatpush.xpose.msra.mxu0 0.0
    %5767 = vmatpush.xpose.msra.mxu0 0.0
    %5768 = vmatpush.xpose.msra.mxu0 0.0
    %5769 = vmatpush.xpose.msra.mxu0 0.0
    %5770 = vmatpush.xpose.msra.mxu0 0.0
    %5771 = vmatpush.xpose.msra.mxu0 0.0
    %5772 = vmatpush.xpose.msra.mxu0 0.0
    %5773 = vmatpush.xpose.msra.mxu0 0.0
    %5774 = vmatpush.xpose.msra.mxu0 0.0
    %5775 = vmatpush.xpose.msra.mxu0 0.0
    %5776 = vmatpush.xpose.msra.mxu0 0.0
    %5777 = vmatpush.xpose.msra.mxu0 %v5760
    %5778 = vmatmul.f32.gmra.mxu0 %v5757
    %v5779 = vpop.f32.mrf.mxu0
    %v5780 = vadd.f32 0.0, %v5779
    %5781 = vdwg.mxu0
    %v5783 = vsel %vm1767, %v4710, 0
    %v5786 = vsel %vm1767, %v4759, 0
    %5788 = vmatpush.xpose.msra.mxu0 0.0
    %5789 = vmatpush.xpose.msra.mxu0 0.0
    %5790 = vmatpush.xpose.msra.mxu0 0.0
    %5791 = vmatpush.xpose.msra.mxu0 0.0
    %5792 = vmatpush.xpose.msra.mxu0 0.0
    %5793 = vmatpush.xpose.msra.mxu0 0.0
    %5794 = vmatpush.xpose.msra.mxu0 0.0
    %5795 = vmatpush.xpose.msra.mxu0 0.0
    %5796 = vmatpush.xpose.msra.mxu0 0.0
    %5797 = vmatpush.xpose.msra.mxu0 0.0
    %5798 = vmatpush.xpose.msra.mxu0 0.0
    %5799 = vmatpush.xpose.msra.mxu0 0.0
    %5800 = vmatpush.xpose.msra.mxu0 0.0
    %5801 = vmatpush.xpose.msra.mxu0 0.0
    %5802 = vmatpush.xpose.msra.mxu0 0.0
    %5803 = vmatpush.xpose.msra.mxu0 %v5786
    %5804 = vmatmul.f32.gmra.mxu0 %v5783
    %v5805 = vpop.f32.mrf.mxu0
    %v5806 = vadd.f32 0.0, %v5805
    %5807 = vdwg.mxu0
    %v5809 = vsel %vm1767, %v4711, 0
    %v5812 = vsel %vm1767, %v4760, 0
    %5814 = vmatpush.xpose.msra.mxu0 0.0
    %5815 = vmatpush.xpose.msra.mxu0 0.0
    %5816 = vmatpush.xpose.msra.mxu0 0.0
    %5817 = vmatpush.xpose.msra.mxu0 0.0
    %5818 = vmatpush.xpose.msra.mxu0 0.0
    %5819 = vmatpush.xpose.msra.mxu0 0.0
    %5820 = vmatpush.xpose.msra.mxu0 0.0
    %5821 = vmatpush.xpose.msra.mxu0 0.0
    %5822 = vmatpush.xpose.msra.mxu0 0.0
    %5823 = vmatpush.xpose.msra.mxu0 0.0
    %5824 = vmatpush.xpose.msra.mxu0 0.0
    %5825 = vmatpush.xpose.msra.mxu0 0.0
    %5826 = vmatpush.xpose.msra.mxu0 0.0
    %5827 = vmatpush.xpose.msra.mxu0 0.0
    %5828 = vmatpush.xpose.msra.mxu0 0.0
    %5829 = vmatpush.xpose.msra.mxu0 %v5812
    %5830 = vmatmul.f32.gmra.mxu0 %v5809
    %v5831 = vpop.f32.mrf.mxu0
    %v5832 = vadd.f32 0.0, %v5831
    %5833 = vdwg.mxu0
    %v5835 = vsel %vm1767, %v4712, 0
    %v5838 = vsel %vm1767, %v4761, 0
    %5840 = vmatpush.xpose.msra.mxu0 0.0
    %5841 = vmatpush.xpose.msra.mxu0 0.0
    %5842 = vmatpush.xpose.msra.mxu0 0.0
    %5843 = vmatpush.xpose.msra.mxu0 0.0
    %5844 = vmatpush.xpose.msra.mxu0 0.0
    %5845 = vmatpush.xpose.msra.mxu0 0.0
    %5846 = vmatpush.xpose.msra.mxu0 0.0
    %5847 = vmatpush.xpose.msra.mxu0 0.0
    %5848 = vmatpush.xpose.msra.mxu0 0.0
    %5849 = vmatpush.xpose.msra.mxu0 0.0
    %5850 = vmatpush.xpose.msra.mxu0 0.0
    %5851 = vmatpush.xpose.msra.mxu0 0.0
    %5852 = vmatpush.xpose.msra.mxu0 0.0
    %5853 = vmatpush.xpose.msra.mxu0 0.0
    %5854 = vmatpush.xpose.msra.mxu0 0.0
    %5855 = vmatpush.xpose.msra.mxu0 %v5838
    %5856 = vmatmul.f32.gmra.mxu0 %v5835
    %v5857 = vpop.f32.mrf.mxu0
    %v5858 = vadd.f32 0.0, %v5857
    %5859 = vdwg.mxu0
    %v5861 = vsel %vm1767, %v4713, 0
    %v5864 = vsel %vm1767, %v4762, 0
    %5866 = vmatpush.xpose.msra.mxu0 0.0
    %5867 = vmatpush.xpose.msra.mxu0 0.0
    %5868 = vmatpush.xpose.msra.mxu0 0.0
    %5869 = vmatpush.xpose.msra.mxu0 0.0
    %5870 = vmatpush.xpose.msra.mxu0 0.0
    %5871 = vmatpush.xpose.msra.mxu0 0.0
    %5872 = vmatpush.xpose.msra.mxu0 0.0
    %5873 = vmatpush.xpose.msra.mxu0 0.0
    %5874 = vmatpush.xpose.msra.mxu0 0.0
    %5875 = vmatpush.xpose.msra.mxu0 0.0
    %5876 = vmatpush.xpose.msra.mxu0 0.0
    %5877 = vmatpush.xpose.msra.mxu0 0.0
    %5878 = vmatpush.xpose.msra.mxu0 0.0
    %5879 = vmatpush.xpose.msra.mxu0 0.0
    %5880 = vmatpush.xpose.msra.mxu0 0.0
    %5881 = vmatpush.xpose.msra.mxu0 %v5864
    %5882 = vmatmul.f32.gmra.mxu0 %v5861
    %v5883 = vpop.f32.mrf.mxu0
    %v5884 = vadd.f32 0.0, %v5883
    %5885 = vdwg.mxu0
    %v5887 = vsel %vm1767, %v4714, 0
    %v5890 = vsel %vm1767, %v4763, 0
    %5892 = vmatpush.xpose.msra.mxu0 0.0
    %5893 = vmatpush.xpose.msra.mxu0 0.0
    %5894 = vmatpush.xpose.msra.mxu0 0.0
    %5895 = vmatpush.xpose.msra.mxu0 0.0
    %5896 = vmatpush.xpose.msra.mxu0 0.0
    %5897 = vmatpush.xpose.msra.mxu0 0.0
    %5898 = vmatpush.xpose.msra.mxu0 0.0
    %5899 = vmatpush.xpose.msra.mxu0 0.0
    %5900 = vmatpush.xpose.msra.mxu0 0.0
    %5901 = vmatpush.xpose.msra.mxu0 0.0
    %5902 = vmatpush.xpose.msra.mxu0 0.0
    %5903 = vmatpush.xpose.msra.mxu0 0.0
    %5904 = vmatpush.xpose.msra.mxu0 0.0
    %5905 = vmatpush.xpose.msra.mxu0 0.0
    %5906 = vmatpush.xpose.msra.mxu0 0.0
    %5907 = vmatpush.xpose.msra.mxu0 %v5890
    %5908 = vmatmul.f32.gmra.mxu0 %v5887
    %v5909 = vpop.f32.mrf.mxu0
    %v5910 = vadd.f32 0.0, %v5909
    %5911 = vdwg.mxu0
    %v5913 = vsel %vm1767, %v4715, 0
    %v5916 = vsel %vm1767, %v4764, 0
    %5918 = vmatpush.xpose.msra.mxu0 0.0
    %5919 = vmatpush.xpose.msra.mxu0 0.0
    %5920 = vmatpush.xpose.msra.mxu0 0.0
    %5921 = vmatpush.xpose.msra.mxu0 0.0
    %5922 = vmatpush.xpose.msra.mxu0 0.0
    %5923 = vmatpush.xpose.msra.mxu0 0.0
    %5924 = vmatpush.xpose.msra.mxu0 0.0
    %5925 = vmatpush.xpose.msra.mxu0 0.0
    %5926 = vmatpush.xpose.msra.mxu0 0.0
    %5927 = vmatpush.xpose.msra.mxu0 0.0
    %5928 = vmatpush.xpose.msra.mxu0 0.0
    %5929 = vmatpush.xpose.msra.mxu0 0.0
    %5930 = vmatpush.xpose.msra.mxu0 0.0
    %5931 = vmatpush.xpose.msra.mxu0 0.0
    %5932 = vmatpush.xpose.msra.mxu0 0.0
    %5933 = vmatpush.xpose.msra.mxu0 %v5916
    %5934 = vmatmul.f32.gmra.mxu0 %v5913
    %v5935 = vpop.f32.mrf.mxu0
    %v5936 = vadd.f32 0.0, %v5935
    %5937 = vdwg.mxu0
    %v5939 = vsel %vm1767, %v4716, 0
    %v5942 = vsel %vm1767, %v4765, 0
    %5944 = vmatpush.xpose.msra.mxu0 0.0
    %5945 = vmatpush.xpose.msra.mxu0 0.0
    %5946 = vmatpush.xpose.msra.mxu0 0.0
    %5947 = vmatpush.xpose.msra.mxu0 0.0
    %5948 = vmatpush.xpose.msra.mxu0 0.0
    %5949 = vmatpush.xpose.msra.mxu0 0.0
    %5950 = vmatpush.xpose.msra.mxu0 0.0
    %5951 = vmatpush.xpose.msra.mxu0 0.0
    %5952 = vmatpush.xpose.msra.mxu0 0.0
    %5953 = vmatpush.xpose.msra.mxu0 0.0
    %5954 = vmatpush.xpose.msra.mxu0 0.0
    %5955 = vmatpush.xpose.msra.mxu0 0.0
    %5956 = vmatpush.xpose.msra.mxu0 0.0
    %5957 = vmatpush.xpose.msra.mxu0 0.0
    %5958 = vmatpush.xpose.msra.mxu0 0.0
    %5959 = vmatpush.xpose.msra.mxu0 %v5942
    %5960 = vmatmul.f32.gmra.mxu0 %v5939
    %v5961 = vpop.f32.mrf.mxu0
    %v5962 = vadd.f32 0.0, %v5961
    %5963 = vdwg.mxu0
    %v5965 = vsel %vm1767, %v4717, 0
    %v5968 = vsel %vm1767, %v4766, 0
    %5970 = vmatpush.xpose.msra.mxu0 0.0
    %5971 = vmatpush.xpose.msra.mxu0 0.0
    %5972 = vmatpush.xpose.msra.mxu0 0.0
    %5973 = vmatpush.xpose.msra.mxu0 0.0
    %5974 = vmatpush.xpose.msra.mxu0 0.0
    %5975 = vmatpush.xpose.msra.mxu0 0.0
    %5976 = vmatpush.xpose.msra.mxu0 0.0
    %5977 = vmatpush.xpose.msra.mxu0 0.0
    %5978 = vmatpush.xpose.msra.mxu0 0.0
    %5979 = vmatpush.xpose.msra.mxu0 0.0
    %5980 = vmatpush.xpose.msra.mxu0 0.0
    %5981 = vmatpush.xpose.msra.mxu0 0.0
    %5982 = vmatpush.xpose.msra.mxu0 0.0
    %5983 = vmatpush.xpose.msra.mxu0 0.0
    %5984 = vmatpush.xpose.msra.mxu0 0.0
    %5985 = vmatpush.xpose.msra.mxu0 %v5968
    %5986 = vmatmul.f32.gmra.mxu0 %v5965
    %v5987 = vpop.f32.mrf.mxu0
    %v5988 = vadd.f32 0.0, %v5987
    %5989 = vdwg.mxu0
    %v5991 = vsel %vm1767, %v4718, 0
    %v5994 = vsel %vm1767, %v4767, 0
    %5996 = vmatpush.xpose.msra.mxu0 0.0
    %5997 = vmatpush.xpose.msra.mxu0 0.0
    %5998 = vmatpush.xpose.msra.mxu0 0.0
    %5999 = vmatpush.xpose.msra.mxu0 0.0
    %6000 = vmatpush.xpose.msra.mxu0 0.0
    %6001 = vmatpush.xpose.msra.mxu0 0.0
    %6002 = vmatpush.xpose.msra.mxu0 0.0
    %6003 = vmatpush.xpose.msra.mxu0 0.0
    %6004 = vmatpush.xpose.msra.mxu0 0.0
    %6005 = vmatpush.xpose.msra.mxu0 0.0
    %6006 = vmatpush.xpose.msra.mxu0 0.0
    %6007 = vmatpush.xpose.msra.mxu0 0.0
    %6008 = vmatpush.xpose.msra.mxu0 0.0
    %6009 = vmatpush.xpose.msra.mxu0 0.0
    %6010 = vmatpush.xpose.msra.mxu0 0.0
    %6011 = vmatpush.xpose.msra.mxu0 %v5994
    %6012 = vmatmul.f32.gmra.mxu0 %v5991
    %v6013 = vpop.f32.mrf.mxu0
    %v6014 = vadd.f32 0.0, %v6013
    %6015 = vdwg.mxu0
    %v6016 = vsel %vm3016, %v4792, 0.0
    %v6017 = vsel %vm3016, %v4818, 0.0
    %v6018 = vadd.f32 %v6016, %v6017
    %v6019 = vsel %vm3016, %v4844, 0.0
    %v6020 = vadd.f32 %v6018, %v6019
    %v6021 = vsel %vm3016, %v4870, 0.0
    %v6022 = vadd.f32 %v6020, %v6021
    %v6023 = vsel %vm3016, %v4896, 0.0
    %v6024 = vadd.f32 %v6022, %v6023
    %v6025 = vsel %vm3016, %v4922, 0.0
    %v6026 = vadd.f32 %v6024, %v6025
    %v6027 = vsel %vm3016, %v4948, 0.0
    %v6028 = vadd.f32 %v6026, %v6027
    %v6029 = vsel %vm3016, %v4974, 0.0
    %v6030 = vadd.f32 %v6028, %v6029
    %v6031 = vsel %vm3016, %v5000, 0.0
    %v6032 = vadd.f32 %v6030, %v6031
    %v6033 = vsel %vm3016, %v5026, 0.0
    %v6034 = vadd.f32 %v6032, %v6033
    %v6035 = vsel %vm3016, %v5052, 0.0
    %v6036 = vadd.f32 %v6034, %v6035
    %v6037 = vsel %vm3016, %v5078, 0.0
    %v6038 = vadd.f32 %v6036, %v6037
    %v6039 = vsel %vm3016, %v5104, 0.0
    %v6040 = vadd.f32 %v6038, %v6039
    %v6041 = vsel %vm3016, %v5130, 0.0
    %v6042 = vadd.f32 %v6040, %v6041
    %v6043 = vsel %vm3016, %v5156, 0.0
    %v6044 = vadd.f32 %v6042, %v6043
    %v6045 = vsel %vm3016, %v5182, 0.0
    %v6046 = vadd.f32 %v6044, %v6045
    %v6047 = vsel %vm3016, %v5208, 0.0
    %v6048 = vadd.f32 %v6046, %v6047
    %v6049 = vsel %vm3016, %v5234, 0.0
    %v6050 = vadd.f32 %v6048, %v6049
    %v6051 = vsel %vm3016, %v5260, 0.0
    %v6052 = vadd.f32 %v6050, %v6051
    %v6053 = vsel %vm3016, %v5286, 0.0
    %v6054 = vadd.f32 %v6052, %v6053
    %v6055 = vsel %vm3016, %v5312, 0.0
    %v6056 = vadd.f32 %v6054, %v6055
    %v6057 = vsel %vm3016, %v5338, 0.0
    %v6058 = vadd.f32 %v6056, %v6057
    %v6059 = vsel %vm3016, %v5364, 0.0
    %v6060 = vadd.f32 %v6058, %v6059
    %v6061 = vsel %vm3016, %v5390, 0.0
    %v6062 = vadd.f32 %v6060, %v6061
    %v6063 = vsel %vm3016, %v5416, 0.0
    %v6064 = vadd.f32 %v6062, %v6063
    %v6065 = vsel %vm3016, %v5442, 0.0
    %v6066 = vadd.f32 %v6064, %v6065
    %v6067 = vsel %vm3016, %v5468, 0.0
    %v6068 = vadd.f32 %v6066, %v6067
    %v6069 = vsel %vm3016, %v5494, 0.0
    %v6070 = vadd.f32 %v6068, %v6069
    %v6071 = vsel %vm3016, %v5520, 0.0
    %v6072 = vadd.f32 %v6070, %v6071
    %v6073 = vsel %vm3016, %v5546, 0.0
    %v6074 = vadd.f32 %v6072, %v6073
    %v6075 = vsel %vm3016, %v5572, 0.0
    %v6076 = vadd.f32 %v6074, %v6075
    %v6077 = vsel %vm3016, %v5598, 0.0
    %v6078 = vadd.f32 %v6076, %v6077
    %v6079 = vsel %vm3016, %v5624, 0.0
    %v6080 = vadd.f32 %v6078, %v6079
    %v6081 = vsel %vm3016, %v5650, 0.0
    %v6082 = vadd.f32 %v6080, %v6081
    %v6083 = vsel %vm3016, %v5676, 0.0
    %v6084 = vadd.f32 %v6082, %v6083
    %v6085 = vsel %vm3016, %v5702, 0.0
    %v6086 = vadd.f32 %v6084, %v6085
    %v6087 = vsel %vm3016, %v5728, 0.0
    %v6088 = vadd.f32 %v6086, %v6087
    %v6089 = vsel %vm3016, %v5754, 0.0
    %v6090 = vadd.f32 %v6088, %v6089
    %v6091 = vsel %vm3016, %v5780, 0.0
    %v6092 = vadd.f32 %v6090, %v6091
    %v6093 = vsel %vm3016, %v5806, 0.0
    %v6094 = vadd.f32 %v6092, %v6093
    %v6095 = vsel %vm3016, %v5832, 0.0
    %v6096 = vadd.f32 %v6094, %v6095
    %v6097 = vsel %vm3016, %v5858, 0.0
    %v6098 = vadd.f32 %v6096, %v6097
    %v6099 = vsel %vm3016, %v5884, 0.0
    %v6100 = vadd.f32 %v6098, %v6099
    %v6101 = vsel %vm3016, %v5910, 0.0
    %v6102 = vadd.f32 %v6100, %v6101
    %v6103 = vsel %vm3016, %v5936, 0.0
    %v6104 = vadd.f32 %v6102, %v6103
    %v6105 = vsel %vm3016, %v5962, 0.0
    %v6106 = vadd.f32 %v6104, %v6105
    %v6107 = vsel %vm3016, %v5988, 0.0
    %v6108 = vadd.f32 %v6106, %v6107
    %v6109 = vsel %vm3016, %v6014, 0.0
    %v6110 = vadd.f32 %v6108, %v6109
    %v6111 = vadd.f32 %v3112, %v6110
    %s6112 = sld [smem:[#allocation3 + $0x100]]
    %v6113 = vstv %s6112
    %v6114 = vmul.f32 %v6113, %v63
    %v6115 = vmul.f32 %v6113, %v64
    %v6116 = vmul.f32 %v6113, %v65
    %v6117 = vmul.f32 %v6113, %v66
    %v6118 = vmul.f32 %v6113, %v67
    %v6119 = vmul.f32 %v6113, %v68
    %v6120 = vmul.f32 %v6113, %v69
    %v6121 = vmul.f32 %v6113, %v70
    %v6122 = vmul.f32 %v6113, %v71
    %v6123 = vmul.f32 %v6113, %v72
    %v6124 = vmul.f32 %v6113, %v73
    %v6125 = vmul.f32 %v6113, %v74
    %v6126 = vmul.f32 %v6113, %v87
    %v6127 = vmul.f32 %v6113, %v88
    %v6128 = vmul.f32 %v6113, %v89
    %v6129 = vmul.f32 %v6113, %v90
    %v6130 = vmul.f32 %v6113, %v91
    %v6131 = vmul.f32 %v6113, %v92
    %v6132 = vmul.f32 %v6113, %v93
    %v6133 = vmul.f32 %v6113, %v94
    %v6134 = vmul.f32 %v6113, %v95
    %v6135 = vmul.f32 %v6113, %v96
    %v6136 = vmul.f32 %v6113, %v97
    %v6137 = vmul.f32 %v6113, %v98
    %s6138 = sld [smem:[#allocation3 + $0x101]]
    %v6139 = vstv %s6138
    %v6140 = vmul.f32 %v6139, %v63
    %v6141 = vmul.f32 %v6139, %v64
    %v6142 = vmul.f32 %v6139, %v65
    %v6143 = vmul.f32 %v6139, %v66
    %v6144 = vmul.f32 %v6139, %v67
    %v6145 = vmul.f32 %v6139, %v68
    %v6146 = vmul.f32 %v6139, %v69
    %v6147 = vmul.f32 %v6139, %v70
    %v6148 = vmul.f32 %v6139, %v71
    %v6149 = vmul.f32 %v6139, %v72
    %v6150 = vmul.f32 %v6139, %v73
    %v6151 = vmul.f32 %v6139, %v74
    %6164 = vrot.lane.b32.xlu0 %v6140, 127
    %v6165 = vpop.permute.xlu0 %6164
    %6166 = vrot.lane.b32.xlu0 %v6141, 127
    %v6167 = vpop.permute.xlu0 %6166
    %6168 = vrot.lane.b32.xlu0 %v6142, 127
    %v6169 = vpop.permute.xlu0 %6168
    %6170 = vrot.lane.b32.xlu0 %v6143, 127
    %v6171 = vpop.permute.xlu0 %6170
    %6172 = vrot.lane.b32.xlu0 %v6144, 127
    %v6173 = vpop.permute.xlu0 %6172
    %6174 = vrot.lane.b32.xlu0 %v6145, 127
    %v6175 = vpop.permute.xlu0 %6174
    %6176 = vrot.lane.b32.xlu0 %v6146, 127
    %v6177 = vpop.permute.xlu0 %6176
    %6178 = vrot.lane.b32.xlu0 %v6147, 127
    %v6179 = vpop.permute.xlu0 %6178
    %6180 = vrot.lane.b32.xlu0 %v6148, 127
    %v6181 = vpop.permute.xlu0 %6180
    %6182 = vrot.lane.b32.xlu0 %v6149, 127
    %v6183 = vpop.permute.xlu0 %6182
    %6184 = vrot.lane.b32.xlu0 %v6150, 127
    %v6185 = vpop.permute.xlu0 %6184
    %6186 = vrot.lane.b32.xlu0 %v6151, 127
    %v6187 = vpop.permute.xlu0 %6186
    %v6200 = vadd.f32 %v6114, %v6165
    %v6201 = vadd.f32 %v6115, %v6167
    %v6202 = vadd.f32 %v6116, %v6169
    %v6203 = vadd.f32 %v6117, %v6171
    %v6204 = vadd.f32 %v6118, %v6173
    %v6205 = vadd.f32 %v6119, %v6175
    %v6206 = vadd.f32 %v6120, %v6177
    %v6207 = vadd.f32 %v6121, %v6179
    %v6208 = vadd.f32 %v6122, %v6181
    %v6209 = vadd.f32 %v6123, %v6183
    %v6210 = vadd.f32 %v6124, %v6185
    %v6211 = vadd.f32 %v6125, %v6187
    %v6212 = vmul.f32 %v6139, %v87
    %v6213 = vmul.f32 %v6139, %v88
    %v6214 = vmul.f32 %v6139, %v89
    %v6215 = vmul.f32 %v6139, %v90
    %v6216 = vmul.f32 %v6139, %v91
    %v6217 = vmul.f32 %v6139, %v92
    %v6218 = vmul.f32 %v6139, %v93
    %v6219 = vmul.f32 %v6139, %v94
    %v6220 = vmul.f32 %v6139, %v95
    %v6221 = vmul.f32 %v6139, %v96
    %v6222 = vmul.f32 %v6139, %v97
    %v6223 = vmul.f32 %v6139, %v98
    %6236 = vrot.lane.b32.xlu0 %v6212, 127
    %v6237 = vpop.permute.xlu0 %6236
    %6238 = vrot.lane.b32.xlu0 %v6213, 127
    %v6239 = vpop.permute.xlu0 %6238
    %6240 = vrot.lane.b32.xlu0 %v6214, 127
    %v6241 = vpop.permute.xlu0 %6240
    %6242 = vrot.lane.b32.xlu0 %v6215, 127
    %v6243 = vpop.permute.xlu0 %6242
    %6244 = vrot.lane.b32.xlu0 %v6216, 127
    %v6245 = vpop.permute.xlu0 %6244
    %6246 = vrot.lane.b32.xlu0 %v6217, 127
    %v6247 = vpop.permute.xlu0 %6246
    %6248 = vrot.lane.b32.xlu0 %v6218, 127
    %v6249 = vpop.permute.xlu0 %6248
    %6250 = vrot.lane.b32.xlu0 %v6219, 127
    %v6251 = vpop.permute.xlu0 %6250
    %6252 = vrot.lane.b32.xlu0 %v6220, 127
    %v6253 = vpop.permute.xlu0 %6252
    %6254 = vrot.lane.b32.xlu0 %v6221, 127
    %v6255 = vpop.permute.xlu0 %6254
    %6256 = vrot.lane.b32.xlu0 %v6222, 127
    %v6257 = vpop.permute.xlu0 %6256
    %6258 = vrot.lane.b32.xlu0 %v6223, 127
    %v6259 = vpop.permute.xlu0 %6258
    %v6272 = vadd.f32 %v6126, %v6237
    %v6273 = vadd.f32 %v6127, %v6239
    %v6274 = vadd.f32 %v6128, %v6241
    %v6275 = vadd.f32 %v6129, %v6243
    %v6276 = vadd.f32 %v6130, %v6245
    %v6277 = vadd.f32 %v6131, %v6247
    %v6278 = vadd.f32 %v6132, %v6249
    %v6279 = vadd.f32 %v6133, %v6251
    %v6280 = vadd.f32 %v6134, %v6253
    %v6281 = vadd.f32 %v6135, %v6255
    %v6282 = vadd.f32 %v6136, %v6257
    %v6283 = vadd.f32 %v6137, %v6259
    %s6284 = sld [smem:[#allocation3 + $0x102]]
    %v6285 = vstv %s6284
    %v6286 = vmul.f32 %v6285, %v63
    %v6287 = vmul.f32 %v6285, %v64
    %v6288 = vmul.f32 %v6285, %v65
    %v6289 = vmul.f32 %v6285, %v66
    %v6290 = vmul.f32 %v6285, %v67
    %v6291 = vmul.f32 %v6285, %v68
    %v6292 = vmul.f32 %v6285, %v69
    %v6293 = vmul.f32 %v6285, %v70
    %v6294 = vmul.f32 %v6285, %v71
    %v6295 = vmul.f32 %v6285, %v72
    %v6296 = vmul.f32 %v6285, %v73
    %v6297 = vmul.f32 %v6285, %v74
    %6310 = vrot.lane.b32.xlu0 %v6286, 126
    %v6311 = vpop.permute.xlu0 %6310
    %6312 = vrot.lane.b32.xlu0 %v6287, 126
    %v6313 = vpop.permute.xlu0 %6312
    %6314 = vrot.lane.b32.xlu0 %v6288, 126
    %v6315 = vpop.permute.xlu0 %6314
    %6316 = vrot.lane.b32.xlu0 %v6289, 126
    %v6317 = vpop.permute.xlu0 %6316
    %6318 = vrot.lane.b32.xlu0 %v6290, 126
    %v6319 = vpop.permute.xlu0 %6318
    %6320 = vrot.lane.b32.xlu0 %v6291, 126
    %v6321 = vpop.permute.xlu0 %6320
    %6322 = vrot.lane.b32.xlu0 %v6292, 126
    %v6323 = vpop.permute.xlu0 %6322
    %6324 = vrot.lane.b32.xlu0 %v6293, 126
    %v6325 = vpop.permute.xlu0 %6324
    %6326 = vrot.lane.b32.xlu0 %v6294, 126
    %v6327 = vpop.permute.xlu0 %6326
    %6328 = vrot.lane.b32.xlu0 %v6295, 126
    %v6329 = vpop.permute.xlu0 %6328
    %6330 = vrot.lane.b32.xlu0 %v6296, 126
    %v6331 = vpop.permute.xlu0 %6330
    %6332 = vrot.lane.b32.xlu0 %v6297, 126
    %v6333 = vpop.permute.xlu0 %6332
    %v6346 = vadd.f32 %v6200, %v6311
    %v6347 = vadd.f32 %v6201, %v6313
    %v6348 = vadd.f32 %v6202, %v6315
    %v6349 = vadd.f32 %v6203, %v6317
    %v6350 = vadd.f32 %v6204, %v6319
    %v6351 = vadd.f32 %v6205, %v6321
    %v6352 = vadd.f32 %v6206, %v6323
    %v6353 = vadd.f32 %v6207, %v6325
    %v6354 = vadd.f32 %v6208, %v6327
    %v6355 = vadd.f32 %v6209, %v6329
    %v6356 = vadd.f32 %v6210, %v6331
    %v6357 = vadd.f32 %v6211, %v6333
    %v6358 = vmul.f32 %v6285, %v87
    %v6359 = vmul.f32 %v6285, %v88
    %v6360 = vmul.f32 %v6285, %v89
    %v6361 = vmul.f32 %v6285, %v90
    %v6362 = vmul.f32 %v6285, %v91
    %v6363 = vmul.f32 %v6285, %v92
    %v6364 = vmul.f32 %v6285, %v93
    %v6365 = vmul.f32 %v6285, %v94
    %v6366 = vmul.f32 %v6285, %v95
    %v6367 = vmul.f32 %v6285, %v96
    %v6368 = vmul.f32 %v6285, %v97
    %v6369 = vmul.f32 %v6285, %v98
    %6382 = vrot.lane.b32.xlu0 %v6358, 126
    %v6383 = vpop.permute.xlu0 %6382
    %6384 = vrot.lane.b32.xlu0 %v6359, 126
    %v6385 = vpop.permute.xlu0 %6384
    %6386 = vrot.lane.b32.xlu0 %v6360, 126
    %v6387 = vpop.permute.xlu0 %6386
    %6388 = vrot.lane.b32.xlu0 %v6361, 126
    %v6389 = vpop.permute.xlu0 %6388
    %6390 = vrot.lane.b32.xlu0 %v6362, 126
    %v6391 = vpop.permute.xlu0 %6390
    %6392 = vrot.lane.b32.xlu0 %v6363, 126
    %v6393 = vpop.permute.xlu0 %6392
    %6394 = vrot.lane.b32.xlu0 %v6364, 126
    %v6395 = vpop.permute.xlu0 %6394
    %6396 = vrot.lane.b32.xlu0 %v6365, 126
    %v6397 = vpop.permute.xlu0 %6396
    %6398 = vrot.lane.b32.xlu0 %v6366, 126
    %v6399 = vpop.permute.xlu0 %6398
    %6400 = vrot.lane.b32.xlu0 %v6367, 126
    %v6401 = vpop.permute.xlu0 %6400
    %6402 = vrot.lane.b32.xlu0 %v6368, 126
    %v6403 = vpop.permute.xlu0 %6402
    %6404 = vrot.lane.b32.xlu0 %v6369, 126
    %v6405 = vpop.permute.xlu0 %6404
    %v6418 = vadd.f32 %v6272, %v6383
    %v6419 = vadd.f32 %v6273, %v6385
    %v6420 = vadd.f32 %v6274, %v6387
    %v6421 = vadd.f32 %v6275, %v6389
    %v6422 = vadd.f32 %v6276, %v6391
    %v6423 = vadd.f32 %v6277, %v6393
    %v6424 = vadd.f32 %v6278, %v6395
    %v6425 = vadd.f32 %v6279, %v6397
    %v6426 = vadd.f32 %v6280, %v6399
    %v6427 = vadd.f32 %v6281, %v6401
    %v6428 = vadd.f32 %v6282, %v6403
    %v6429 = vadd.f32 %v6283, %v6405
    %s6430 = sld [smem:[#allocation3 + $0x103]]
    %v6431 = vstv %s6430
    %v6432 = vmul.f32 %v6431, %v87
    %v6433 = vmul.f32 %v6431, %v88
    %v6434 = vmul.f32 %v6431, %v89
    %v6435 = vmul.f32 %v6431, %v90
    %v6436 = vmul.f32 %v6431, %v91
    %v6437 = vmul.f32 %v6431, %v92
    %v6438 = vmul.f32 %v6431, %v93
    %v6439 = vmul.f32 %v6431, %v94
    %v6440 = vmul.f32 %v6431, %v95
    %v6441 = vmul.f32 %v6431, %v96
    %v6442 = vmul.f32 %v6431, %v97
    %v6443 = vmul.f32 %v6431, %v98
    %v6444 = vadd.f32 %v6346, %v6432
    %v6445 = vadd.f32 %v6347, %v6433
    %v6446 = vadd.f32 %v6348, %v6434
    %v6447 = vadd.f32 %v6349, %v6435
    %v6448 = vadd.f32 %v6350, %v6436
    %v6449 = vadd.f32 %v6351, %v6437
    %v6450 = vadd.f32 %v6352, %v6438
    %v6451 = vadd.f32 %v6353, %v6439
    %v6452 = vadd.f32 %v6354, %v6440
    %v6453 = vadd.f32 %v6355, %v6441
    %v6454 = vadd.f32 %v6356, %v6442
    %v6455 = vadd.f32 %v6357, %v6443
    %v6456 = vmul.f32 %v6431, %v75
    %v6457 = vmul.f32 %v6431, %v76
    %v6458 = vmul.f32 %v6431, %v77
    %v6459 = vmul.f32 %v6431, %v78
    %v6460 = vmul.f32 %v6431, %v79
    %v6461 = vmul.f32 %v6431, %v80
    %v6462 = vmul.f32 %v6431, %v81
    %v6463 = vmul.f32 %v6431, %v82
    %v6464 = vmul.f32 %v6431, %v83
    %v6465 = vmul.f32 %v6431, %v84
    %v6466 = vmul.f32 %v6431, %v85
    %v6467 = vmul.f32 %v6431, %v86
    %v6468 = vadd.f32 %v6418, %v6456
    %v6469 = vadd.f32 %v6419, %v6457
    %v6470 = vadd.f32 %v6420, %v6458
    %v6471 = vadd.f32 %v6421, %v6459
    %v6472 = vadd.f32 %v6422, %v6460
    %v6473 = vadd.f32 %v6423, %v6461
    %v6474 = vadd.f32 %v6424, %v6462
    %v6475 = vadd.f32 %v6425, %v6463
    %v6476 = vadd.f32 %v6426, %v6464
    %v6477 = vadd.f32 %v6427, %v6465
    %v6478 = vadd.f32 %v6428, %v6466
    %v6479 = vadd.f32 %v6429, %v6467
    %s6480 = sld [smem:[#allocation3 + $0x104]]
    %v6481 = vstv %s6480
    %v6482 = vmul.f32 %v6481, %v87
    %v6483 = vmul.f32 %v6481, %v88
    %v6484 = vmul.f32 %v6481, %v89
    %v6485 = vmul.f32 %v6481, %v90
    %v6486 = vmul.f32 %v6481, %v91
    %v6487 = vmul.f32 %v6481, %v92
    %v6488 = vmul.f32 %v6481, %v93
    %v6489 = vmul.f32 %v6481, %v94
    %v6490 = vmul.f32 %v6481, %v95
    %v6491 = vmul.f32 %v6481, %v96
    %v6492 = vmul.f32 %v6481, %v97
    %v6493 = vmul.f32 %v6481, %v98
    %6506 = vrot.lane.b32.xlu0 %v6482, 127
    %v6507 = vpop.permute.xlu0 %6506
    %6508 = vrot.lane.b32.xlu0 %v6483, 127
    %v6509 = vpop.permute.xlu0 %6508
    %6510 = vrot.lane.b32.xlu0 %v6484, 127
    %v6511 = vpop.permute.xlu0 %6510
    %6512 = vrot.lane.b32.xlu0 %v6485, 127
    %v6513 = vpop.permute.xlu0 %6512
    %6514 = vrot.lane.b32.xlu0 %v6486, 127
    %v6515 = vpop.permute.xlu0 %6514
    %6516 = vrot.lane.b32.xlu0 %v6487, 127
    %v6517 = vpop.permute.xlu0 %6516
    %6518 = vrot.lane.b32.xlu0 %v6488, 127
    %v6519 = vpop.permute.xlu0 %6518
    %6520 = vrot.lane.b32.xlu0 %v6489, 127
    %v6521 = vpop.permute.xlu0 %6520
    %6522 = vrot.lane.b32.xlu0 %v6490, 127
    %v6523 = vpop.permute.xlu0 %6522
    %6524 = vrot.lane.b32.xlu0 %v6491, 127
    %v6525 = vpop.permute.xlu0 %6524
    %6526 = vrot.lane.b32.xlu0 %v6492, 127
    %v6527 = vpop.permute.xlu0 %6526
    %6528 = vrot.lane.b32.xlu0 %v6493, 127
    %v6529 = vpop.permute.xlu0 %6528
    %v6542 = vadd.f32 %v6444, %v6507
    %v6543 = vadd.f32 %v6445, %v6509
    %v6544 = vadd.f32 %v6446, %v6511
    %v6545 = vadd.f32 %v6447, %v6513
    %v6546 = vadd.f32 %v6448, %v6515
    %v6547 = vadd.f32 %v6449, %v6517
    %v6548 = vadd.f32 %v6450, %v6519
    %v6549 = vadd.f32 %v6451, %v6521
    %v6550 = vadd.f32 %v6452, %v6523
    %v6551 = vadd.f32 %v6453, %v6525
    %v6552 = vadd.f32 %v6454, %v6527
    %v6553 = vadd.f32 %v6455, %v6529
    %v6554 = vmul.f32 %v6481, %v75
    %v6555 = vmul.f32 %v6481, %v76
    %v6556 = vmul.f32 %v6481, %v77
    %v6557 = vmul.f32 %v6481, %v78
    %v6558 = vmul.f32 %v6481, %v79
    %v6559 = vmul.f32 %v6481, %v80
    %v6560 = vmul.f32 %v6481, %v81
    %v6561 = vmul.f32 %v6481, %v82
    %v6562 = vmul.f32 %v6481, %v83
    %v6563 = vmul.f32 %v6481, %v84
    %v6564 = vmul.f32 %v6481, %v85
    %v6565 = vmul.f32 %v6481, %v86
    %6578 = vrot.lane.b32.xlu0 %v6554, 127
    %v6579 = vpop.permute.xlu0 %6578
    %6580 = vrot.lane.b32.xlu0 %v6555, 127
    %v6581 = vpop.permute.xlu0 %6580
    %6582 = vrot.lane.b32.xlu0 %v6556, 127
    %v6583 = vpop.permute.xlu0 %6582
    %6584 = vrot.lane.b32.xlu0 %v6557, 127
    %v6585 = vpop.permute.xlu0 %6584
    %6586 = vrot.lane.b32.xlu0 %v6558, 127
    %v6587 = vpop.permute.xlu0 %6586
    %6588 = vrot.lane.b32.xlu0 %v6559, 127
    %v6589 = vpop.permute.xlu0 %6588
    %6590 = vrot.lane.b32.xlu0 %v6560, 127
    %v6591 = vpop.permute.xlu0 %6590
    %6592 = vrot.lane.b32.xlu0 %v6561, 127
    %v6593 = vpop.permute.xlu0 %6592
    %6594 = vrot.lane.b32.xlu0 %v6562, 127
    %v6595 = vpop.permute.xlu0 %6594
    %6596 = vrot.lane.b32.xlu0 %v6563, 127
    %v6597 = vpop.permute.xlu0 %6596
    %6598 = vrot.lane.b32.xlu0 %v6564, 127
    %v6599 = vpop.permute.xlu0 %6598
    %6600 = vrot.lane.b32.xlu0 %v6565, 127
    %v6601 = vpop.permute.xlu0 %6600
    %v6614 = vadd.f32 %v6468, %v6579
    %v6615 = vadd.f32 %v6469, %v6581
    %v6616 = vadd.f32 %v6470, %v6583
    %v6617 = vadd.f32 %v6471, %v6585
    %v6618 = vadd.f32 %v6472, %v6587
    %v6619 = vadd.f32 %v6473, %v6589
    %v6620 = vadd.f32 %v6474, %v6591
    %v6621 = vadd.f32 %v6475, %v6593
    %v6622 = vadd.f32 %v6476, %v6595
    %v6623 = vadd.f32 %v6477, %v6597
    %v6624 = vadd.f32 %v6478, %v6599
    %v6625 = vadd.f32 %v6479, %v6601
    %s6626 = sld [smem:[#allocation3 + $0x105]]
    %v6627 = vstv %s6626
    %v6628 = vmul.f32 %v6627, %v87
    %v6629 = vmul.f32 %v6627, %v88
    %v6630 = vmul.f32 %v6627, %v89
    %v6631 = vmul.f32 %v6627, %v90
    %v6632 = vmul.f32 %v6627, %v91
    %v6633 = vmul.f32 %v6627, %v92
    %v6634 = vmul.f32 %v6627, %v93
    %v6635 = vmul.f32 %v6627, %v94
    %v6636 = vmul.f32 %v6627, %v95
    %v6637 = vmul.f32 %v6627, %v96
    %v6638 = vmul.f32 %v6627, %v97
    %v6639 = vmul.f32 %v6627, %v98
    %6652 = vrot.lane.b32.xlu0 %v6628, 126
    %v6653 = vpop.permute.xlu0 %6652
    %6654 = vrot.lane.b32.xlu0 %v6629, 126
    %v6655 = vpop.permute.xlu0 %6654
    %6656 = vrot.lane.b32.xlu0 %v6630, 126
    %v6657 = vpop.permute.xlu0 %6656
    %6658 = vrot.lane.b32.xlu0 %v6631, 126
    %v6659 = vpop.permute.xlu0 %6658
    %6660 = vrot.lane.b32.xlu0 %v6632, 126
    %v6661 = vpop.permute.xlu0 %6660
    %6662 = vrot.lane.b32.xlu0 %v6633, 126
    %v6663 = vpop.permute.xlu0 %6662
    %6664 = vrot.lane.b32.xlu0 %v6634, 126
    %v6665 = vpop.permute.xlu0 %6664
    %6666 = vrot.lane.b32.xlu0 %v6635, 126
    %v6667 = vpop.permute.xlu0 %6666
    %6668 = vrot.lane.b32.xlu0 %v6636, 126
    %v6669 = vpop.permute.xlu0 %6668
    %6670 = vrot.lane.b32.xlu0 %v6637, 126
    %v6671 = vpop.permute.xlu0 %6670
    %6672 = vrot.lane.b32.xlu0 %v6638, 126
    %v6673 = vpop.permute.xlu0 %6672
    %6674 = vrot.lane.b32.xlu0 %v6639, 126
    %v6675 = vpop.permute.xlu0 %6674
    %v6688 = vadd.f32 %v6542, %v6653
    %v6689 = vadd.f32 %v6543, %v6655
    %v6690 = vadd.f32 %v6544, %v6657
    %v6691 = vadd.f32 %v6545, %v6659
    %v6692 = vadd.f32 %v6546, %v6661
    %v6693 = vadd.f32 %v6547, %v6663
    %v6694 = vadd.f32 %v6548, %v6665
    %v6695 = vadd.f32 %v6549, %v6667
    %v6696 = vadd.f32 %v6550, %v6669
    %v6697 = vadd.f32 %v6551, %v6671
    %v6698 = vadd.f32 %v6552, %v6673
    %v6699 = vadd.f32 %v6553, %v6675
    %v6700 = vmul.f32 %v6627, %v75
    %v6701 = vmul.f32 %v6627, %v76
    %v6702 = vmul.f32 %v6627, %v77
    %v6703 = vmul.f32 %v6627, %v78
    %v6704 = vmul.f32 %v6627, %v79
    %v6705 = vmul.f32 %v6627, %v80
    %v6706 = vmul.f32 %v6627, %v81
    %v6707 = vmul.f32 %v6627, %v82
    %v6708 = vmul.f32 %v6627, %v83
    %v6709 = vmul.f32 %v6627, %v84
    %v6710 = vmul.f32 %v6627, %v85
    %v6711 = vmul.f32 %v6627, %v86
    %6724 = vrot.lane.b32.xlu0 %v6700, 126
    %v6725 = vpop.permute.xlu0 %6724
    %6726 = vrot.lane.b32.xlu0 %v6701, 126
    %v6727 = vpop.permute.xlu0 %6726
    %6728 = vrot.lane.b32.xlu0 %v6702, 126
    %v6729 = vpop.permute.xlu0 %6728
    %6730 = vrot.lane.b32.xlu0 %v6703, 126
    %v6731 = vpop.permute.xlu0 %6730
    %6732 = vrot.lane.b32.xlu0 %v6704, 126
    %v6733 = vpop.permute.xlu0 %6732
    %6734 = vrot.lane.b32.xlu0 %v6705, 126
    %v6735 = vpop.permute.xlu0 %6734
    %6736 = vrot.lane.b32.xlu0 %v6706, 126
    %v6737 = vpop.permute.xlu0 %6736
    %6738 = vrot.lane.b32.xlu0 %v6707, 126
    %v6739 = vpop.permute.xlu0 %6738
    %6740 = vrot.lane.b32.xlu0 %v6708, 126
    %v6741 = vpop.permute.xlu0 %6740
    %6742 = vrot.lane.b32.xlu0 %v6709, 126
    %v6743 = vpop.permute.xlu0 %6742
    %6744 = vrot.lane.b32.xlu0 %v6710, 126
    %v6745 = vpop.permute.xlu0 %6744
    %6746 = vrot.lane.b32.xlu0 %v6711, 126
    %v6747 = vpop.permute.xlu0 %6746
    %v6760 = vadd.f32 %v6614, %v6725
    %v6761 = vadd.f32 %v6615, %v6727
    %v6762 = vadd.f32 %v6616, %v6729
    %v6763 = vadd.f32 %v6617, %v6731
    %v6764 = vadd.f32 %v6618, %v6733
    %v6765 = vadd.f32 %v6619, %v6735
    %v6766 = vadd.f32 %v6620, %v6737
    %v6767 = vadd.f32 %v6621, %v6739
    %v6768 = vadd.f32 %v6622, %v6741
    %v6769 = vadd.f32 %v6623, %v6743
    %v6770 = vadd.f32 %v6624, %v6745
    %v6771 = vadd.f32 %v6625, %v6747
    %s6772 = sld [smem:[#allocation3 + $0x106]]
    %v6773 = vstv %s6772
    %v6774 = vmul.f32 %v6773, %v75
    %v6775 = vmul.f32 %v6773, %v76
    %v6776 = vmul.f32 %v6773, %v77
    %v6777 = vmul.f32 %v6773, %v78
    %v6778 = vmul.f32 %v6773, %v79
    %v6779 = vmul.f32 %v6773, %v80
    %v6780 = vmul.f32 %v6773, %v81
    %v6781 = vmul.f32 %v6773, %v82
    %v6782 = vmul.f32 %v6773, %v83
    %v6783 = vmul.f32 %v6773, %v84
    %v6784 = vmul.f32 %v6773, %v85
    %v6785 = vmul.f32 %v6773, %v86
    %v6786 = vadd.f32 %v6688, %v6774
    %v6787 = vadd.f32 %v6689, %v6775
    %v6788 = vadd.f32 %v6690, %v6776
    %v6789 = vadd.f32 %v6691, %v6777
    %v6790 = vadd.f32 %v6692, %v6778
    %v6791 = vadd.f32 %v6693, %v6779
    %v6792 = vadd.f32 %v6694, %v6780
    %v6793 = vadd.f32 %v6695, %v6781
    %v6794 = vadd.f32 %v6696, %v6782
    %v6795 = vadd.f32 %v6697, %v6783
    %v6796 = vadd.f32 %v6698, %v6784
    %v6797 = vadd.f32 %v6699, %v6785
    %v6798 = vmul.f32 %v6773, %v99
    %v6799 = vmul.f32 %v6773, %v100
    %v6800 = vmul.f32 %v6773, %v101
    %v6801 = vmul.f32 %v6773, %v102
    %v6802 = vmul.f32 %v6773, %v103
    %v6803 = vmul.f32 %v6773, %v104
    %v6804 = vmul.f32 %v6773, %v105
    %v6805 = vmul.f32 %v6773, %v106
    %v6806 = vmul.f32 %v6773, %v107
    %v6807 = vmul.f32 %v6773, %v108
    %v6808 = vmul.f32 %v6773, %v109
    %v6809 = vmul.f32 %v6773, %v110
    %v6810 = vadd.f32 %v6760, %v6798
    %v6811 = vadd.f32 %v6761, %v6799
    %v6812 = vadd.f32 %v6762, %v6800
    %v6813 = vadd.f32 %v6763, %v6801
    %v6814 = vadd.f32 %v6764, %v6802
    %v6815 = vadd.f32 %v6765, %v6803
    %v6816 = vadd.f32 %v6766, %v6804
    %v6817 = vadd.f32 %v6767, %v6805
    %v6818 = vadd.f32 %v6768, %v6806
    %v6819 = vadd.f32 %v6769, %v6807
    %v6820 = vadd.f32 %v6770, %v6808
    %v6821 = vadd.f32 %v6771, %v6809
    %s6822 = sld [smem:[#allocation3 + $0x107]]
    %v6823 = vstv %s6822
    %v6824 = vmul.f32 %v6823, %v75
    %v6825 = vmul.f32 %v6823, %v76
    %v6826 = vmul.f32 %v6823, %v77
    %v6827 = vmul.f32 %v6823, %v78
    %v6828 = vmul.f32 %v6823, %v79
    %v6829 = vmul.f32 %v6823, %v80
    %v6830 = vmul.f32 %v6823, %v81
    %v6831 = vmul.f32 %v6823, %v82
    %v6832 = vmul.f32 %v6823, %v83
    %v6833 = vmul.f32 %v6823, %v84
    %v6834 = vmul.f32 %v6823, %v85
    %v6835 = vmul.f32 %v6823, %v86
    %6848 = vrot.lane.b32.xlu0 %v6824, 127
    %v6849 = vpop.permute.xlu0 %6848
    %6850 = vrot.lane.b32.xlu0 %v6825, 127
    %v6851 = vpop.permute.xlu0 %6850
    %6852 = vrot.lane.b32.xlu0 %v6826, 127
    %v6853 = vpop.permute.xlu0 %6852
    %6854 = vrot.lane.b32.xlu0 %v6827, 127
    %v6855 = vpop.permute.xlu0 %6854
    %6856 = vrot.lane.b32.xlu0 %v6828, 127
    %v6857 = vpop.permute.xlu0 %6856
    %6858 = vrot.lane.b32.xlu0 %v6829, 127
    %v6859 = vpop.permute.xlu0 %6858
    %6860 = vrot.lane.b32.xlu0 %v6830, 127
    %v6861 = vpop.permute.xlu0 %6860
    %6862 = vrot.lane.b32.xlu0 %v6831, 127
    %v6863 = vpop.permute.xlu0 %6862
    %6864 = vrot.lane.b32.xlu0 %v6832, 127
    %v6865 = vpop.permute.xlu0 %6864
    %6866 = vrot.lane.b32.xlu0 %v6833, 127
    %v6867 = vpop.permute.xlu0 %6866
    %6868 = vrot.lane.b32.xlu0 %v6834, 127
    %v6869 = vpop.permute.xlu0 %6868
    %6870 = vrot.lane.b32.xlu0 %v6835, 127
    %v6871 = vpop.permute.xlu0 %6870
    %v6884 = vadd.f32 %v6786, %v6849
    %v6885 = vadd.f32 %v6787, %v6851
    %v6886 = vadd.f32 %v6788, %v6853
    %v6887 = vadd.f32 %v6789, %v6855
    %v6888 = vadd.f32 %v6790, %v6857
    %v6889 = vadd.f32 %v6791, %v6859
    %v6890 = vadd.f32 %v6792, %v6861
    %v6891 = vadd.f32 %v6793, %v6863
    %v6892 = vadd.f32 %v6794, %v6865
    %v6893 = vadd.f32 %v6795, %v6867
    %v6894 = vadd.f32 %v6796, %v6869
    %v6895 = vadd.f32 %v6797, %v6871
    %v6896 = vmul.f32 %v6823, %v99
    %v6897 = vmul.f32 %v6823, %v100
    %v6898 = vmul.f32 %v6823, %v101
    %v6899 = vmul.f32 %v6823, %v102
    %v6900 = vmul.f32 %v6823, %v103
    %v6901 = vmul.f32 %v6823, %v104
    %v6902 = vmul.f32 %v6823, %v105
    %v6903 = vmul.f32 %v6823, %v106
    %v6904 = vmul.f32 %v6823, %v107
    %v6905 = vmul.f32 %v6823, %v108
    %v6906 = vmul.f32 %v6823, %v109
    %v6907 = vmul.f32 %v6823, %v110
    %6920 = vrot.lane.b32.xlu0 %v6896, 127
    %v6921 = vpop.permute.xlu0 %6920
    %6922 = vrot.lane.b32.xlu0 %v6897, 127
    %v6923 = vpop.permute.xlu0 %6922
    %6924 = vrot.lane.b32.xlu0 %v6898, 127
    %v6925 = vpop.permute.xlu0 %6924
    %6926 = vrot.lane.b32.xlu0 %v6899, 127
    %v6927 = vpop.permute.xlu0 %6926
    %6928 = vrot.lane.b32.xlu0 %v6900, 127
    %v6929 = vpop.permute.xlu0 %6928
    %6930 = vrot.lane.b32.xlu0 %v6901, 127
    %v6931 = vpop.permute.xlu0 %6930
    %6932 = vrot.lane.b32.xlu0 %v6902, 127
    %v6933 = vpop.permute.xlu0 %6932
    %6934 = vrot.lane.b32.xlu0 %v6903, 127
    %v6935 = vpop.permute.xlu0 %6934
    %6936 = vrot.lane.b32.xlu0 %v6904, 127
    %v6937 = vpop.permute.xlu0 %6936
    %6938 = vrot.lane.b32.xlu0 %v6905, 127
    %v6939 = vpop.permute.xlu0 %6938
    %6940 = vrot.lane.b32.xlu0 %v6906, 127
    %v6941 = vpop.permute.xlu0 %6940
    %6942 = vrot.lane.b32.xlu0 %v6907, 127
    %v6943 = vpop.permute.xlu0 %6942
    %v6956 = vadd.f32 %v6810, %v6921
    %v6957 = vadd.f32 %v6811, %v6923
    %v6958 = vadd.f32 %v6812, %v6925
    %v6959 = vadd.f32 %v6813, %v6927
    %v6960 = vadd.f32 %v6814, %v6929
    %v6961 = vadd.f32 %v6815, %v6931
    %v6962 = vadd.f32 %v6816, %v6933
    %v6963 = vadd.f32 %v6817, %v6935
    %v6964 = vadd.f32 %v6818, %v6937
    %v6965 = vadd.f32 %v6819, %v6939
    %v6966 = vadd.f32 %v6820, %v6941
    %v6967 = vadd.f32 %v6821, %v6943
    %s6968 = sld [smem:[#allocation3 + $0x108]]
    %v6969 = vstv %s6968
    %v6970 = vmul.f32 %v6969, %v75
    %v6971 = vmul.f32 %v6969, %v76
    %v6972 = vmul.f32 %v6969, %v77
    %v6973 = vmul.f32 %v6969, %v78
    %v6974 = vmul.f32 %v6969, %v79
    %v6975 = vmul.f32 %v6969, %v80
    %v6976 = vmul.f32 %v6969, %v81
    %v6977 = vmul.f32 %v6969, %v82
    %v6978 = vmul.f32 %v6969, %v83
    %v6979 = vmul.f32 %v6969, %v84
    %v6980 = vmul.f32 %v6969, %v85
    %v6981 = vmul.f32 %v6969, %v86
    %6994 = vrot.lane.b32.xlu0 %v6970, 126
    %v6995 = vpop.permute.xlu0 %6994
    %6996 = vrot.lane.b32.xlu0 %v6971, 126
    %v6997 = vpop.permute.xlu0 %6996
    %6998 = vrot.lane.b32.xlu0 %v6972, 126
    %v6999 = vpop.permute.xlu0 %6998
    %7000 = vrot.lane.b32.xlu0 %v6973, 126
    %v7001 = vpop.permute.xlu0 %7000
    %7002 = vrot.lane.b32.xlu0 %v6974, 126
    %v7003 = vpop.permute.xlu0 %7002
    %7004 = vrot.lane.b32.xlu0 %v6975, 126
    %v7005 = vpop.permute.xlu0 %7004
    %7006 = vrot.lane.b32.xlu0 %v6976, 126
    %v7007 = vpop.permute.xlu0 %7006
    %7008 = vrot.lane.b32.xlu0 %v6977, 126
    %v7009 = vpop.permute.xlu0 %7008
    %7010 = vrot.lane.b32.xlu0 %v6978, 126
    %v7011 = vpop.permute.xlu0 %7010
    %7012 = vrot.lane.b32.xlu0 %v6979, 126
    %v7013 = vpop.permute.xlu0 %7012
    %7014 = vrot.lane.b32.xlu0 %v6980, 126
    %v7015 = vpop.permute.xlu0 %7014
    %7016 = vrot.lane.b32.xlu0 %v6981, 126
    %v7017 = vpop.permute.xlu0 %7016
    %v7030 = vadd.f32 %v6884, %v6995
    %v7031 = vadd.f32 %v6885, %v6997
    %v7032 = vadd.f32 %v6886, %v6999
    %v7033 = vadd.f32 %v6887, %v7001
    %v7034 = vadd.f32 %v6888, %v7003
    %v7035 = vadd.f32 %v6889, %v7005
    %v7036 = vadd.f32 %v6890, %v7007
    %v7037 = vadd.f32 %v6891, %v7009
    %v7038 = vadd.f32 %v6892, %v7011
    %v7039 = vadd.f32 %v6893, %v7013
    %v7040 = vadd.f32 %v6894, %v7015
    %v7041 = vadd.f32 %v6895, %v7017
    %v7042 = vmul.f32 %v6969, %v99
    %v7043 = vmul.f32 %v6969, %v100
    %v7044 = vmul.f32 %v6969, %v101
    %v7045 = vmul.f32 %v6969, %v102
    %v7046 = vmul.f32 %v6969, %v103
    %v7047 = vmul.f32 %v6969, %v104
    %v7048 = vmul.f32 %v6969, %v105
    %v7049 = vmul.f32 %v6969, %v106
    %v7050 = vmul.f32 %v6969, %v107
    %v7051 = vmul.f32 %v6969, %v108
    %v7052 = vmul.f32 %v6969, %v109
    %v7053 = vmul.f32 %v6969, %v110
    %7066 = vrot.lane.b32.xlu0 %v7042, 126
    %v7067 = vpop.permute.xlu0 %7066
    %7068 = vrot.lane.b32.xlu0 %v7043, 126
    %v7069 = vpop.permute.xlu0 %7068
    %7070 = vrot.lane.b32.xlu0 %v7044, 126
    %v7071 = vpop.permute.xlu0 %7070
    %7072 = vrot.lane.b32.xlu0 %v7045, 126
    %v7073 = vpop.permute.xlu0 %7072
    %7074 = vrot.lane.b32.xlu0 %v7046, 126
    %v7075 = vpop.permute.xlu0 %7074
    %7076 = vrot.lane.b32.xlu0 %v7047, 126
    %v7077 = vpop.permute.xlu0 %7076
    %7078 = vrot.lane.b32.xlu0 %v7048, 126
    %v7079 = vpop.permute.xlu0 %7078
    %7080 = vrot.lane.b32.xlu0 %v7049, 126
    %v7081 = vpop.permute.xlu0 %7080
    %7082 = vrot.lane.b32.xlu0 %v7050, 126
    %v7083 = vpop.permute.xlu0 %7082
    %7084 = vrot.lane.b32.xlu0 %v7051, 126
    %v7085 = vpop.permute.xlu0 %7084
    %7086 = vrot.lane.b32.xlu0 %v7052, 126
    %v7087 = vpop.permute.xlu0 %7086
    %7088 = vrot.lane.b32.xlu0 %v7053, 126
    %v7089 = vpop.permute.xlu0 %7088
    %v7102 = vadd.f32 %v6956, %v7067
    %v7103 = vadd.f32 %v6957, %v7069
    %v7104 = vadd.f32 %v6958, %v7071
    %v7105 = vadd.f32 %v6959, %v7073
    %v7106 = vadd.f32 %v6960, %v7075
    %v7107 = vadd.f32 %v6961, %v7077
    %v7108 = vadd.f32 %v6962, %v7079
    %v7109 = vadd.f32 %v6963, %v7081
    %v7110 = vadd.f32 %v6964, %v7083
    %v7111 = vadd.f32 %v6965, %v7085
    %v7112 = vadd.f32 %v6966, %v7087
    %v7113 = vadd.f32 %v6967, %v7089
    %v7114 = vadd.f32 %v7030, %v7102
    %v7115 = vadd.f32 %v7031, %v7103
    %v7116 = vadd.f32 %v7032, %v7104
    %v7117 = vadd.f32 %v7033, %v7105
    %v7118 = vadd.f32 %v7034, %v7106
    %v7119 = vadd.f32 %v7035, %v7107
    %v7120 = vadd.f32 %v7036, %v7108
    %v7121 = vadd.f32 %v7037, %v7109
    %v7122 = vadd.f32 %v7038, %v7110
    %v7123 = vadd.f32 %v7039, %v7111
    %v7124 = vadd.f32 %v7040, %v7112
    %v7125 = vadd.f32 %v7041, %v7113
    %v7126 = vsel %vm1125, %v7114, 0.0
    %v7127 = vsel %vm1125, %v7115, 0.0
    %v7128 = vadd.f32 %v7126, %v7127
    %v7129 = vsel %vm1125, %v7116, 0.0
    %v7130 = vadd.f32 %v7128, %v7129
    %v7131 = vsel %vm1125, %v7117, 0.0
    %v7132 = vadd.f32 %v7130, %v7131
    %v7133 = vsel %vm1125, %v7118, 0.0
    %v7134 = vadd.f32 %v7132, %v7133
    %v7135 = vsel %vm1125, %v7119, 0.0
    %v7136 = vadd.f32 %v7134, %v7135
    %v7137 = vsel %vm1125, %v7120, 0.0
    %v7138 = vadd.f32 %v7136, %v7137
    %v7139 = vsel %vm1125, %v7121, 0.0
    %v7140 = vadd.f32 %v7138, %v7139
    %v7141 = vsel %vm1125, %v7122, 0.0
    %v7142 = vadd.f32 %v7140, %v7141
    %v7143 = vsel %vm1125, %v7123, 0.0
    %v7144 = vadd.f32 %v7142, %v7143
    %v7145 = vsel %vm1125, %v7124, 0.0
    %v7146 = vadd.f32 %v7144, %v7145
    %v7147 = vsel %vm1125, %v7125, 0.0
    %v7148 = vadd.f32 %v7146, %v7147
    %7149 = vadd.xlane.f32.xlu0 %v7148
    %v7150 = vpop.xlane.xlu0 %7149
    %v7151 = vrot.slane %v7150, 4
    %v7152 = vadd.f32 %v7150, %v7151
    %v7153 = vrot.slane %v7152, 2
    %v7154 = vadd.f32 %v7152, %v7153
    %v7155 = vrot.slane %v7154, 1
    %v7156 = vadd.f32 %v7154, %v7155
    %s7157 = vtos %v7156
    %v7158 = vmul.f32 %v7030, %v7030
    %v7159 = vmul.f32 %v7031, %v7031
    %v7160 = vmul.f32 %v7032, %v7032
    %v7161 = vmul.f32 %v7033, %v7033
    %v7162 = vmul.f32 %v7034, %v7034
    %v7163 = vmul.f32 %v7035, %v7035
    %v7164 = vmul.f32 %v7036, %v7036
    %v7165 = vmul.f32 %v7037, %v7037
    %v7166 = vmul.f32 %v7038, %v7038
    %v7167 = vmul.f32 %v7039, %v7039
    %v7168 = vmul.f32 %v7040, %v7040
    %v7169 = vmul.f32 %v7041, %v7041
    %v7170 = vmul.f32 %v7102, %v7102
    %v7171 = vmul.f32 %v7103, %v7103
    %v7172 = vmul.f32 %v7104, %v7104
    %v7173 = vmul.f32 %v7105, %v7105
    %v7174 = vmul.f32 %v7106, %v7106
    %v7175 = vmul.f32 %v7107, %v7107
    %v7176 = vmul.f32 %v7108, %v7108
    %v7177 = vmul.f32 %v7109, %v7109
    %v7178 = vmul.f32 %v7110, %v7110
    %v7179 = vmul.f32 %v7111, %v7111
    %v7180 = vmul.f32 %v7112, %v7112
    %v7181 = vmul.f32 %v7113, %v7113
    %v7182 = vadd.f32 %v7158, %v7170
    %v7183 = vadd.f32 %v7159, %v7171
    %v7184 = vadd.f32 %v7160, %v7172
    %v7185 = vadd.f32 %v7161, %v7173
    %v7186 = vadd.f32 %v7162, %v7174
    %v7187 = vadd.f32 %v7163, %v7175
    %v7188 = vadd.f32 %v7164, %v7176
    %v7189 = vadd.f32 %v7165, %v7177
    %v7190 = vadd.f32 %v7166, %v7178
    %v7191 = vadd.f32 %v7167, %v7179
    %v7192 = vadd.f32 %v7168, %v7180
    %v7193 = vadd.f32 %v7169, %v7181
    %v7194 = vsel %vm1125, %v7182, 0.0
    %v7195 = vsel %vm1125, %v7183, 0.0
    %v7196 = vadd.f32 %v7194, %v7195
    %v7197 = vsel %vm1125, %v7184, 0.0
    %v7198 = vadd.f32 %v7196, %v7197
    %v7199 = vsel %vm1125, %v7185, 0.0
    %v7200 = vadd.f32 %v7198, %v7199
    %v7201 = vsel %vm1125, %v7186, 0.0
    %v7202 = vadd.f32 %v7200, %v7201
    %v7203 = vsel %vm1125, %v7187, 0.0
    %v7204 = vadd.f32 %v7202, %v7203
    %v7205 = vsel %vm1125, %v7188, 0.0
    %v7206 = vadd.f32 %v7204, %v7205
    %v7207 = vsel %vm1125, %v7189, 0.0
    %v7208 = vadd.f32 %v7206, %v7207
    %v7209 = vsel %vm1125, %v7190, 0.0
    %v7210 = vadd.f32 %v7208, %v7209
    %v7211 = vsel %vm1125, %v7191, 0.0
    %v7212 = vadd.f32 %v7210, %v7211
    %v7213 = vsel %vm1125, %v7192, 0.0
    %v7214 = vadd.f32 %v7212, %v7213
    %v7215 = vsel %vm1125, %v7193, 0.0
    %v7216 = vadd.f32 %v7214, %v7215
    %7217 = vadd.xlane.f32.xlu0 %v7216
    %v7218 = vpop.xlane.xlu0 %7217
    %v7219 = vrot.slane %v7218, 4
    %v7220 = vadd.f32 %v7218, %v7219
    %v7221 = vrot.slane %v7220, 2
    %v7222 = vadd.f32 %v7220, %v7221
    %v7223 = vrot.slane %v7222, 1
    %v7224 = vadd.f32 %v7222, %v7223
    %s7225 = vtos %v7224
    %s7226 = smul.f32 %s7157, 5.4253473e-05
    %s7227 = smul.f32 %s7225, 5.4253473e-05
    %s7228 = smul.f32 %s7226, %s7226
    %s7229 = ssub.f32 %s7227, %s7228
    %s7230 = sld [smem:[#allocation6 + $0x2]]
    %s7231 = sadd.f32 %s7229, 1e-05
    %v7232 = vstv %s7231
    %v7233 = vrsqrt.pop %v7232
    %v7234 = vmul.f32 %v7233, %v7232
    %v7235 = vmul.f32 %v7234, %v7233
    %v7236 = vmul.f32 0.5, %v7235
    %v7237 = vsub.f32 1.5, %v7236
    %v7238 = vmul.f32 %v7233, %v7237
    %vm7239 = vweird.f32 %v7232
    %vm7240 = vweird.f32 %v7233
    %vm7241 = vmor %vm7239, %vm7240
    %v7242 = vsel %vm7241, %v7233, %v7238
    %s7243 = vtos %v7242
    %s7244 = smul.f32 %s7230, %s7243
    %s7245 = sld [smem:[#allocation8 + $0x2]]
    %s7246 = smul.f32 %s7226, %s7244
    %s7247 = ssub.f32 %s7245, %s7246
    %v7248 = vstv %s7244
    %v7249 = vmul.f32 %v7030, %v7248
    %v7250 = vmul.f32 %v7031, %v7248
    %v7251 = vmul.f32 %v7032, %v7248
    %v7252 = vmul.f32 %v7033, %v7248
    %v7253 = vmul.f32 %v7034, %v7248
    %v7254 = vmul.f32 %v7035, %v7248
    %v7255 = vmul.f32 %v7036, %v7248
    %v7256 = vmul.f32 %v7037, %v7248
    %v7257 = vmul.f32 %v7038, %v7248
    %v7258 = vmul.f32 %v7039, %v7248
    %v7259 = vmul.f32 %v7040, %v7248
    %v7260 = vmul.f32 %v7041, %v7248
    %v7261 = vstv %s7247
    %v7262 = vadd.f32 %v7249, %v7261
    %v7263 = vadd.f32 %v7250, %v7261
    %v7264 = vadd.f32 %v7251, %v7261
    %v7265 = vadd.f32 %v7252, %v7261
    %v7266 = vadd.f32 %v7253, %v7261
    %v7267 = vadd.f32 %v7254, %v7261
    %v7268 = vadd.f32 %v7255, %v7261
    %v7269 = vadd.f32 %v7256, %v7261
    %v7270 = vadd.f32 %v7257, %v7261
    %v7271 = vadd.f32 %v7258, %v7261
    %v7272 = vadd.f32 %v7259, %v7261
    %v7273 = vadd.f32 %v7260, %v7261
    %v7274 = vmax.f32 %v7262, 0.0
    %v7275 = vmax.f32 %v7263, 0.0
    %v7276 = vmax.f32 %v7264, 0.0
    %v7277 = vmax.f32 %v7265, 0.0
    %v7278 = vmax.f32 %v7266, 0.0
    %v7279 = vmax.f32 %v7267, 0.0
    %v7280 = vmax.f32 %v7268, 0.0
    %v7281 = vmax.f32 %v7269, 0.0
    %v7282 = vmax.f32 %v7270, 0.0
    %v7283 = vmax.f32 %v7271, 0.0
    %v7284 = vmax.f32 %v7272, 0.0
    %v7285 = vmax.f32 %v7273, 0.0
    %v7286 = vmul.f32 %v7102, %v7248
    %v7287 = vmul.f32 %v7103, %v7248
    %v7288 = vmul.f32 %v7104, %v7248
    %v7289 = vmul.f32 %v7105, %v7248
    %v7290 = vmul.f32 %v7106, %v7248
    %v7291 = vmul.f32 %v7107, %v7248
    %v7292 = vmul.f32 %v7108, %v7248
    %v7293 = vmul.f32 %v7109, %v7248
    %v7294 = vmul.f32 %v7110, %v7248
    %v7295 = vmul.f32 %v7111, %v7248
    %v7296 = vmul.f32 %v7112, %v7248
    %v7297 = vmul.f32 %v7113, %v7248
    %v7298 = vadd.f32 %v7286, %v7261
    %v7299 = vadd.f32 %v7287, %v7261
    %v7300 = vadd.f32 %v7288, %v7261
    %v7301 = vadd.f32 %v7289, %v7261
    %v7302 = vadd.f32 %v7290, %v7261
    %v7303 = vadd.f32 %v7291, %v7261
    %v7304 = vadd.f32 %v7292, %v7261
    %v7305 = vadd.f32 %v7293, %v7261
    %v7306 = vadd.f32 %v7294, %v7261
    %v7307 = vadd.f32 %v7295, %v7261
    %v7308 = vadd.f32 %v7296, %v7261
    %v7309 = vadd.f32 %v7297, %v7261
    %v7310 = vmax.f32 %v7298, 0.0
    %v7311 = vmax.f32 %v7299, 0.0
    %v7312 = vmax.f32 %v7300, 0.0
    %v7313 = vmax.f32 %v7301, 0.0
    %v7314 = vmax.f32 %v7302, 0.0
    %v7315 = vmax.f32 %v7303, 0.0
    %v7316 = vmax.f32 %v7304, 0.0
    %v7317 = vmax.f32 %v7305, 0.0
    %v7318 = vmax.f32 %v7306, 0.0
    %v7319 = vmax.f32 %v7307, 0.0
    %v7320 = vmax.f32 %v7308, 0.0
    %v7321 = vmax.f32 %v7309, 0.0
    %v7322 = vmax.f32 %v7274, %v7310
    %v7323 = vmax.f32 %v7275, %v7311
    %v7324 = vmax.f32 %v7276, %v7312
    %v7325 = vmax.f32 %v7277, %v7313
    %v7326 = vmax.f32 %v7278, %v7314
    %v7327 = vmax.f32 %v7279, %v7315
    %v7328 = vmax.f32 %v7280, %v7316
    %v7329 = vmax.f32 %v7281, %v7317
    %v7330 = vmax.f32 %v7282, %v7318
    %v7331 = vmax.f32 %v7283, %v7319
    %v7332 = vmax.f32 %v7284, %v7320
    %v7333 = vmax.f32 %v7285, %v7321
    %7346 = vrot.lane.b32.xlu0 %v7322, 127
    %v7347 = vpop.permute.xlu0 %7346
    %7348 = vrot.lane.b32.xlu0 %v7323, 127
    %v7349 = vpop.permute.xlu0 %7348
    %7350 = vrot.lane.b32.xlu0 %v7324, 127
    %v7351 = vpop.permute.xlu0 %7350
    %7352 = vrot.lane.b32.xlu0 %v7325, 127
    %v7353 = vpop.permute.xlu0 %7352
    %7354 = vrot.lane.b32.xlu0 %v7326, 127
    %v7355 = vpop.permute.xlu0 %7354
    %7356 = vrot.lane.b32.xlu0 %v7327, 127
    %v7357 = vpop.permute.xlu0 %7356
    %7358 = vrot.lane.b32.xlu0 %v7328, 127
    %v7359 = vpop.permute.xlu0 %7358
    %7360 = vrot.lane.b32.xlu0 %v7329, 127
    %v7361 = vpop.permute.xlu0 %7360
    %7362 = vrot.lane.b32.xlu0 %v7330, 127
    %v7363 = vpop.permute.xlu0 %7362
    %7364 = vrot.lane.b32.xlu0 %v7331, 127
    %v7365 = vpop.permute.xlu0 %7364
    %7366 = vrot.lane.b32.xlu0 %v7332, 127
    %v7367 = vpop.permute.xlu0 %7366
    %7368 = vrot.lane.b32.xlu0 %v7333, 127
    %v7369 = vpop.permute.xlu0 %7368
    %v7382 = vmax.f32 %v7322, %v7347
    %v7383 = vmax.f32 %v7323, %v7349
    %v7384 = vmax.f32 %v7324, %v7351
    %v7385 = vmax.f32 %v7325, %v7353
    %v7386 = vmax.f32 %v7326, %v7355
    %v7387 = vmax.f32 %v7327, %v7357
    %v7388 = vmax.f32 %v7328, %v7359
    %v7389 = vmax.f32 %v7329, %v7361
    %v7390 = vmax.f32 %v7330, %v7363
    %v7391 = vmax.f32 %v7331, %v7365
    %v7392 = vmax.f32 %v7332, %v7367
    %v7393 = vmax.f32 %v7333, %v7369
    %v7400 = vrot.slane %v7382, 1
    %v7401 = vrot.slane %v7382, 2
    %v7402 = vrot.slane %v7382, 3
    %v7403 = vrot.slane %v7382, 4
    %v7404 = vrot.slane %v7382, 5
    %v7405 = vrot.slane %v7382, 6
    %v7406 = vrot.slane %v7382, 7
    %v7407 = vrot.slane %v7383, 1
    %v7408 = vrot.slane %v7383, 2
    %v7409 = vrot.slane %v7383, 3
    %v7410 = vrot.slane %v7383, 4
    %v7411 = vrot.slane %v7383, 5
    %v7412 = vrot.slane %v7383, 6
    %v7413 = vrot.slane %v7383, 7
    %v7414 = vrot.slane %v7384, 1
    %v7415 = vrot.slane %v7384, 2
    %v7416 = vrot.slane %v7384, 3
    %v7417 = vrot.slane %v7384, 4
    %v7418 = vrot.slane %v7384, 5
    %v7419 = vrot.slane %v7384, 6
    %v7420 = vrot.slane %v7384, 7
    %v7421 = vrot.slane %v7385, 1
    %v7422 = vrot.slane %v7385, 2
    %v7423 = vrot.slane %v7385, 3
    %v7424 = vrot.slane %v7385, 4
    %v7425 = vrot.slane %v7385, 5
    %v7426 = vrot.slane %v7385, 6
    %v7427 = vrot.slane %v7385, 7
    %v7428 = vrot.slane %v7386, 1
    %v7429 = vrot.slane %v7386, 2
    %v7430 = vrot.slane %v7386, 3
    %v7431 = vrot.slane %v7386, 4
    %v7432 = vrot.slane %v7386, 5
    %v7433 = vrot.slane %v7386, 6
    %v7434 = vrot.slane %v7386, 7
    %v7435 = vrot.slane %v7387, 1
    %v7436 = vrot.slane %v7387, 2
    %v7437 = vrot.slane %v7387, 3
    %v7438 = vrot.slane %v7387, 4
    %v7439 = vrot.slane %v7387, 5
    %v7440 = vrot.slane %v7387, 6
    %v7441 = vrot.slane %v7387, 7
    %7484 = vst.msk [vmem:[#allocation2] sm:$0x1] %vm1484, %v7382
    %7485 = vst.msk [vmem:[#allocation2 + $0x2] sm:$0x1] %vm1484, %v7400
    %7486 = vst.msk [vmem:[#allocation2 + $0x4] sm:$0x1] %vm1484, %v7401
    %7487 = vst.msk [vmem:[#allocation2 + $0x6] sm:$0x1] %vm1484, %v7402
    %7488 = vst.msk [vmem:[#allocation2 + $0x8] sm:$0x1] %vm1484, %v7403
    %7489 = vst.msk [vmem:[#allocation2 + $0xa] sm:$0x1] %vm1484, %v7404
    %7490 = vst.msk [vmem:[#allocation2 + $0xc] sm:$0x1] %vm1484, %v7405
    %7491 = vst.msk [vmem:[#allocation2 + $0xe] sm:$0x1] %vm1484, %v7406
    %7492 = vst.msk [vmem:[#allocation2 + $0x10] sm:$0x1] %vm1484, %v7383
    %7493 = vst.msk [vmem:[#allocation2 + $0x12] sm:$0x1] %vm1484, %v7407
    %7494 = vst.msk [vmem:[#allocation2 + $0x14] sm:$0x1] %vm1484, %v7408
    %7495 = vst.msk [vmem:[#allocation2 + $0x16] sm:$0x1] %vm1484, %v7409
    %7496 = vst.msk [vmem:[#allocation2 + $0x18] sm:$0x1] %vm1484, %v7410
    %7497 = vst.msk [vmem:[#allocation2 + $0x1a] sm:$0x1] %vm1484, %v7411
    %7498 = vst.msk [vmem:[#allocation2 + $0x1c] sm:$0x1] %vm1484, %v7412
    %7499 = vst.msk [vmem:[#allocation2 + $0x1e] sm:$0x1] %vm1484, %v7413
    %7500 = vst.msk [vmem:[#allocation2 + $0x20] sm:$0x1] %vm1484, %v7384
    %7501 = vst.msk [vmem:[#allocation2 + $0x22] sm:$0x1] %vm1484, %v7414
    %7502 = vst.msk [vmem:[#allocation2 + $0x24] sm:$0x1] %vm1484, %v7415
    %7503 = vst.msk [vmem:[#allocation2 + $0x26] sm:$0x1] %vm1484, %v7416
    %7504 = vst.msk [vmem:[#allocation2 + $0x28] sm:$0x1] %vm1484, %v7417
    %7505 = vst.msk [vmem:[#allocation2 + $0x2a] sm:$0x1] %vm1484, %v7418
    %7506 = vst.msk [vmem:[#allocation2 + $0x2c] sm:$0x1] %vm1484, %v7419
    %7507 = vst.msk [vmem:[#allocation2 + $0x2e] sm:$0x1] %vm1484, %v7420
    %7508 = vst.msk [vmem:[#allocation2 + $0x30] sm:$0x1] %vm1484, %v7385
    %7509 = vst.msk [vmem:[#allocation2 + $0x32] sm:$0x1] %vm1484, %v7421
    %7510 = vst.msk [vmem:[#allocation2 + $0x34] sm:$0x1] %vm1484, %v7422
    %7511 = vst.msk [vmem:[#allocation2 + $0x36] sm:$0x1] %vm1484, %v7423
    %7512 = vst.msk [vmem:[#allocation2 + $0x38] sm:$0x1] %vm1484, %v7424
    %7513 = vst.msk [vmem:[#allocation2 + $0x3a] sm:$0x1] %vm1484, %v7425
    %7514 = vst.msk [vmem:[#allocation2 + $0x3c] sm:$0x1] %vm1484, %v7426
    %7515 = vst.msk [vmem:[#allocation2 + $0x3e] sm:$0x1] %vm1484, %v7427
    %7516 = vst.msk [vmem:[#allocation2 + $0x40] sm:$0x1] %vm1484, %v7386
    %7517 = vst.msk [vmem:[#allocation2 + $0x42] sm:$0x1] %vm1484, %v7428
    %7518 = vst.msk [vmem:[#allocation2 + $0x44] sm:$0x1] %vm1484, %v7429
    %7519 = vst.msk [vmem:[#allocation2 + $0x46] sm:$0x1] %vm1484, %v7430
    %7520 = vst.msk [vmem:[#allocation2 + $0x48] sm:$0x1] %vm1484, %v7431
    %7521 = vst.msk [vmem:[#allocation2 + $0x4a] sm:$0x1] %vm1484, %v7432
    %7522 = vst.msk [vmem:[#allocation2 + $0x4c] sm:$0x1] %vm1484, %v7433
    %7523 = vst.msk [vmem:[#allocation2 + $0x4e] sm:$0x1] %vm1484, %v7434
    %7524 = vst.msk [vmem:[#allocation2 + $0x50] sm:$0x1] %vm1484, %v7387
    %7525 = vst.msk [vmem:[#allocation2 + $0x52] sm:$0x1] %vm1484, %v7435
    %7526 = vst.msk [vmem:[#allocation2 + $0x54] sm:$0x1] %vm1484, %v7436
    %7527 = vst.msk [vmem:[#allocation2 + $0x56] sm:$0x1] %vm1484, %v7437
    %7528 = vst.msk [vmem:[#allocation2 + $0x58] sm:$0x1] %vm1484, %v7438
    %7529 = vst.msk [vmem:[#allocation2 + $0x5a] sm:$0x1] %vm1484, %v7439
    %7530 = vst.msk [vmem:[#allocation2 + $0x5c] sm:$0x1] %vm1484, %v7440
    %7531 = vst.msk [vmem:[#allocation2 + $0x5e] sm:$0x1] %vm1484, %v7441
    %v7538 = vrot.slane %v7388, 1
    %v7539 = vrot.slane %v7388, 2
    %v7540 = vrot.slane %v7388, 3
    %v7541 = vrot.slane %v7388, 4
    %v7542 = vrot.slane %v7388, 5
    %v7543 = vrot.slane %v7388, 6
    %v7544 = vrot.slane %v7388, 7
    %v7545 = vrot.slane %v7389, 1
    %v7546 = vrot.slane %v7389, 2
    %v7547 = vrot.slane %v7389, 3
    %v7548 = vrot.slane %v7389, 4
    %v7549 = vrot.slane %v7389, 5
    %v7550 = vrot.slane %v7389, 6
    %v7551 = vrot.slane %v7389, 7
    %v7552 = vrot.slane %v7390, 1
    %v7553 = vrot.slane %v7390, 2
    %v7554 = vrot.slane %v7390, 3
    %v7555 = vrot.slane %v7390, 4
    %v7556 = vrot.slane %v7390, 5
    %v7557 = vrot.slane %v7390, 6
    %v7558 = vrot.slane %v7390, 7
    %v7559 = vrot.slane %v7391, 1
    %v7560 = vrot.slane %v7391, 2
    %v7561 = vrot.slane %v7391, 3
    %v7562 = vrot.slane %v7391, 4
    %v7563 = vrot.slane %v7391, 5
    %v7564 = vrot.slane %v7391, 6
    %v7565 = vrot.slane %v7391, 7
    %v7566 = vrot.slane %v7392, 1
    %v7567 = vrot.slane %v7392, 2
    %v7568 = vrot.slane %v7392, 3
    %v7569 = vrot.slane %v7392, 4
    %v7570 = vrot.slane %v7392, 5
    %v7571 = vrot.slane %v7392, 6
    %v7572 = vrot.slane %v7392, 7
    %v7573 = vrot.slane %v7393, 1
    %v7574 = vrot.slane %v7393, 2
    %v7575 = vrot.slane %v7393, 3
    %v7576 = vrot.slane %v7393, 4
    %v7577 = vrot.slane %v7393, 5
    %v7578 = vrot.slane %v7393, 6
    %v7579 = vrot.slane %v7393, 7
    %7622 = vst.msk [vmem:[#allocation2 + $0x1] sm:$0x1] %vm1484, %v7388
    %7623 = vst.msk [vmem:[#allocation2 + $0x3] sm:$0x1] %vm1484, %v7538
    %7624 = vst.msk [vmem:[#allocation2 + $0x5] sm:$0x1] %vm1484, %v7539
    %7625 = vst.msk [vmem:[#allocation2 + $0x7] sm:$0x1] %vm1484, %v7540
    %7626 = vst.msk [vmem:[#allocation2 + $0x9] sm:$0x1] %vm1484, %v7541
    %7627 = vst.msk [vmem:[#allocation2 + $0xb] sm:$0x1] %vm1484, %v7542
    %7628 = vst.msk [vmem:[#allocation2 + $0xd] sm:$0x1] %vm1484, %v7543
    %7629 = vst.msk [vmem:[#allocation2 + $0xf] sm:$0x1] %vm1484, %v7544
    %7630 = vst.msk [vmem:[#allocation2 + $0x11] sm:$0x1] %vm1484, %v7389
    %7631 = vst.msk [vmem:[#allocation2 + $0x13] sm:$0x1] %vm1484, %v7545
    %7632 = vst.msk [vmem:[#allocation2 + $0x15] sm:$0x1] %vm1484, %v7546
    %7633 = vst.msk [vmem:[#allocation2 + $0x17] sm:$0x1] %vm1484, %v7547
    %7634 = vst.msk [vmem:[#allocation2 + $0x19] sm:$0x1] %vm1484, %v7548
    %7635 = vst.msk [vmem:[#allocation2 + $0x1b] sm:$0x1] %vm1484, %v7549
    %7636 = vst.msk [vmem:[#allocation2 + $0x1d] sm:$0x1] %vm1484, %v7550
    %7637 = vst.msk [vmem:[#allocation2 + $0x1f] sm:$0x1] %vm1484, %v7551
    %7638 = vst.msk [vmem:[#allocation2 + $0x21] sm:$0x1] %vm1484, %v7390
    %7639 = vst.msk [vmem:[#allocation2 + $0x23] sm:$0x1] %vm1484, %v7552
    %7640 = vst.msk [vmem:[#allocation2 + $0x25] sm:$0x1] %vm1484, %v7553
    %7641 = vst.msk [vmem:[#allocation2 + $0x27] sm:$0x1] %vm1484, %v7554
    %7642 = vst.msk [vmem:[#allocation2 + $0x29] sm:$0x1] %vm1484, %v7555
    %7643 = vst.msk [vmem:[#allocation2 + $0x2b] sm:$0x1] %vm1484, %v7556
    %7644 = vst.msk [vmem:[#allocation2 + $0x2d] sm:$0x1] %vm1484, %v7557
    %7645 = vst.msk [vmem:[#allocation2 + $0x2f] sm:$0x1] %vm1484, %v7558
    %7646 = vst.msk [vmem:[#allocation2 + $0x31] sm:$0x1] %vm1484, %v7391
    %7647 = vst.msk [vmem:[#allocation2 + $0x33] sm:$0x1] %vm1484, %v7559
    %7648 = vst.msk [vmem:[#allocation2 + $0x35] sm:$0x1] %vm1484, %v7560
    %7649 = vst.msk [vmem:[#allocation2 + $0x37] sm:$0x1] %vm1484, %v7561
    %7650 = vst.msk [vmem:[#allocation2 + $0x39] sm:$0x1] %vm1484, %v7562
    %7651 = vst.msk [vmem:[#allocation2 + $0x3b] sm:$0x1] %vm1484, %v7563
    %7652 = vst.msk [vmem:[#allocation2 + $0x3d] sm:$0x1] %vm1484, %v7564
    %7653 = vst.msk [vmem:[#allocation2 + $0x3f] sm:$0x1] %vm1484, %v7565
    %7654 = vst.msk [vmem:[#allocation2 + $0x41] sm:$0x1] %vm1484, %v7392
    %7655 = vst.msk [vmem:[#allocation2 + $0x43] sm:$0x1] %vm1484, %v7566
    %7656 = vst.msk [vmem:[#allocation2 + $0x45] sm:$0x1] %vm1484, %v7567
    %7657 = vst.msk [vmem:[#allocation2 + $0x47] sm:$0x1] %vm1484, %v7568
    %7658 = vst.msk [vmem:[#allocation2 + $0x49] sm:$0x1] %vm1484, %v7569
    %7659 = vst.msk [vmem:[#allocation2 + $0x4b] sm:$0x1] %vm1484, %v7570
    %7660 = vst.msk [vmem:[#allocation2 + $0x4d] sm:$0x1] %vm1484, %v7571
    %7661 = vst.msk [vmem:[#allocation2 + $0x4f] sm:$0x1] %vm1484, %v7572
    %7662 = vst.msk [vmem:[#allocation2 + $0x51] sm:$0x1] %vm1484, %v7393
    %7663 = vst.msk [vmem:[#allocation2 + $0x53] sm:$0x1] %vm1484, %v7573
    %7664 = vst.msk [vmem:[#allocation2 + $0x55] sm:$0x1] %vm1484, %v7574
    %7665 = vst.msk [vmem:[#allocation2 + $0x57] sm:$0x1] %vm1484, %v7575
    %7666 = vst.msk [vmem:[#allocation2 + $0x59] sm:$0x1] %vm1484, %v7576
    %7667 = vst.msk [vmem:[#allocation2 + $0x5b] sm:$0x1] %vm1484, %v7577
    %7668 = vst.msk [vmem:[#allocation2 + $0x5d] sm:$0x1] %vm1484, %v7578
    %7669 = vst.msk [vmem:[#allocation2 + $0x5f] sm:$0x1] %vm1484, %v7579
    %v7670 = vld [vmem:[#allocation2] sm:$0x3]
    %v7671 = vld [vmem:[#allocation2 + $0x2] sm:$0x3]
    %v7672 = vld [vmem:[#allocation2 + $0x4] sm:$0x3]
    %v7673 = vld [vmem:[#allocation2 + $0x6] sm:$0x3]
    %v7674 = vld [vmem:[#allocation2 + $0x8] sm:$0x3]
    %v7675 = vld [vmem:[#allocation2 + $0xa] sm:$0x3]
    %v7676 = vld [vmem:[#allocation2 + $0xc] sm:$0x3]
    %v7677 = vld [vmem:[#allocation2 + $0xe] sm:$0x3]
    %v7678 = vld [vmem:[#allocation2 + $0x10] sm:$0x3]
    %v7679 = vld [vmem:[#allocation2 + $0x12] sm:$0x3]
    %v7680 = vld [vmem:[#allocation2 + $0x14] sm:$0x3]
    %v7681 = vld [vmem:[#allocation2 + $0x16] sm:$0x3]
    %v7682 = vld [vmem:[#allocation2 + $0x18] sm:$0x3]
    %v7683 = vld [vmem:[#allocation2 + $0x1a] sm:$0x3]
    %v7684 = vld [vmem:[#allocation2 + $0x1c] sm:$0x3]
    %v7685 = vld [vmem:[#allocation2 + $0x1e] sm:$0x3]
    %v7686 = vld [vmem:[#allocation2 + $0x20] sm:$0x3]
    %v7687 = vld [vmem:[#allocation2 + $0x22] sm:$0x3]
    %v7688 = vld [vmem:[#allocation2 + $0x24] sm:$0x3]
    %v7689 = vld [vmem:[#allocation2 + $0x26] sm:$0x3]
    %v7690 = vld [vmem:[#allocation2 + $0x28] sm:$0x3]
    %v7691 = vld [vmem:[#allocation2 + $0x2a] sm:$0x3]
    %v7692 = vld [vmem:[#allocation2 + $0x2c] sm:$0x3]
    %v7693 = vld [vmem:[#allocation2 + $0x2e] sm:$0x3]
    %v7694 = vld [vmem:[#allocation2 + $0x30] sm:$0x3]
    %v7695 = vld [vmem:[#allocation2 + $0x32] sm:$0x3]
    %v7696 = vld [vmem:[#allocation2 + $0x34] sm:$0x3]
    %v7697 = vld [vmem:[#allocation2 + $0x36] sm:$0x3]
    %v7698 = vld [vmem:[#allocation2 + $0x38] sm:$0x3]
    %v7699 = vld [vmem:[#allocation2 + $0x3a] sm:$0x3]
    %v7700 = vld [vmem:[#allocation2 + $0x3c] sm:$0x3]
    %v7701 = vld [vmem:[#allocation2 + $0x3e] sm:$0x3]
    %v7702 = vld [vmem:[#allocation2 + $0x40] sm:$0x3]
    %v7703 = vld [vmem:[#allocation2 + $0x42] sm:$0x3]
    %v7704 = vld [vmem:[#allocation2 + $0x44] sm:$0x3]
    %v7705 = vld [vmem:[#allocation2 + $0x46] sm:$0x3]
    %v7706 = vld [vmem:[#allocation2 + $0x48] sm:$0x3]
    %v7707 = vld [vmem:[#allocation2 + $0x4a] sm:$0x3]
    %v7708 = vld [vmem:[#allocation2 + $0x4c] sm:$0x3]
    %v7709 = vld [vmem:[#allocation2 + $0x4e] sm:$0x3]
    %v7710 = vld [vmem:[#allocation2 + $0x50] sm:$0x3]
    %v7711 = vld [vmem:[#allocation2 + $0x52] sm:$0x3]
    %v7712 = vld [vmem:[#allocation2 + $0x54] sm:$0x3]
    %v7713 = vld [vmem:[#allocation2 + $0x56] sm:$0x3]
    %v7714 = vld [vmem:[#allocation2 + $0x58] sm:$0x3]
    %v7715 = vld [vmem:[#allocation2 + $0x5a] sm:$0x3]
    %v7716 = vld [vmem:[#allocation2 + $0x5c] sm:$0x3]
    %v7717 = vld [vmem:[#allocation2 + $0x5e] sm:$0x3]
    %s7718 = scalar_lea.vmem %s5, 768
    %v7719 = vld [vmem:[%s7718] sm:$0x1f]
    %v7720 = vld [vmem:[%s7718 + $0x8] sm:$0x1f]
    %v7721 = vld [vmem:[%s7718 + $0x10] sm:$0x1f]
    %v7722 = vld [vmem:[%s7718 + $0x18] sm:$0x1f]
    %v7723 = vld [vmem:[%s7718 + $0x20] sm:$0x1f]
    %v7724 = vld [vmem:[%s7718 + $0x28] sm:$0x1f]
    %v7725 = vld [vmem:[%s7718 + $0x30] sm:$0x1f]
    %v7726 = vld [vmem:[%s7718 + $0x38] sm:$0x1f]
    %v7727 = vld [vmem:[%s7718 + $0x40] sm:$0x1f]
    %v7728 = vld [vmem:[%s7718 + $0x48] sm:$0x1f]
    %v7729 = vld [vmem:[%s7718 + $0x50] sm:$0x1f]
    %v7730 = vld [vmem:[%s7718 + $0x58] sm:$0x1f]
    %v7731 = vld [vmem:[%s7718 + $0x60] sm:$0x1f]
    %v7732 = vld [vmem:[%s7718 + $0x68] sm:$0x1f]
    %v7733 = vld [vmem:[%s7718 + $0x70] sm:$0x1f]
    %v7734 = vld [vmem:[%s7718 + $0x78] sm:$0x1f]
    %v7735 = vld [vmem:[%s7718 + $0x80] sm:$0x1f]
    %v7736 = vld [vmem:[%s7718 + $0x88] sm:$0x1f]
    %v7737 = vld [vmem:[%s7718 + $0x90] sm:$0x1f]
    %v7738 = vld [vmem:[%s7718 + $0x98] sm:$0x1f]
    %v7739 = vld [vmem:[%s7718 + $0xa0] sm:$0x1f]
    %v7740 = vld [vmem:[%s7718 + $0xa8] sm:$0x1f]
    %v7741 = vld [vmem:[%s7718 + $0xb0] sm:$0x1f]
    %v7742 = vld [vmem:[%s7718 + $0xb8] sm:$0x1f]
    %v7743 = vld [vmem:[%s7718 + $0xc0] sm:$0x1f]
    %v7744 = vld [vmem:[%s7718 + $0xc8] sm:$0x1f]
    %v7745 = vld [vmem:[%s7718 + $0xd0] sm:$0x1f]
    %v7746 = vld [vmem:[%s7718 + $0xd8] sm:$0x1f]
    %v7747 = vld [vmem:[%s7718 + $0xe0] sm:$0x1f]
    %v7748 = vld [vmem:[%s7718 + $0xe8] sm:$0x1f]
    %v7749 = vld [vmem:[%s7718 + $0xf0] sm:$0x1f]
    %v7750 = vld [vmem:[%s7718 + $0xf8] sm:$0x1f]
    %v7751 = vld [vmem:[%s7718 + $0x100] sm:$0x1f]
    %v7752 = vld [vmem:[%s7718 + $0x108] sm:$0x1f]
    %v7753 = vld [vmem:[%s7718 + $0x110] sm:$0x1f]
    %v7754 = vld [vmem:[%s7718 + $0x118] sm:$0x1f]
    %v7755 = vld [vmem:[%s7718 + $0x120] sm:$0x1f]
    %v7756 = vld [vmem:[%s7718 + $0x128] sm:$0x1f]
    %v7757 = vld [vmem:[%s7718 + $0x130] sm:$0x1f]
    %v7758 = vld [vmem:[%s7718 + $0x138] sm:$0x1f]
    %v7759 = vld [vmem:[%s7718 + $0x140] sm:$0x1f]
    %v7760 = vld [vmem:[%s7718 + $0x148] sm:$0x1f]
    %v7761 = vld [vmem:[%s7718 + $0x150] sm:$0x1f]
    %v7762 = vld [vmem:[%s7718 + $0x158] sm:$0x1f]
    %v7763 = vld [vmem:[%s7718 + $0x160] sm:$0x1f]
    %v7764 = vld [vmem:[%s7718 + $0x168] sm:$0x1f]
    %v7765 = vld [vmem:[%s7718 + $0x170] sm:$0x1f]
    %v7766 = vld [vmem:[%s7718 + $0x178] sm:$0x1f]
    %v7768 = vsel %vm1767, %v7670, 0
    %v7771 = vsel %vm1767, %v7719, 0
    %7773 = vmatpush.xpose.msra.mxu0 0.0
    %7774 = vmatpush.xpose.msra.mxu0 0.0
    %7775 = vmatpush.xpose.msra.mxu0 0.0
    %7776 = vmatpush.xpose.msra.mxu0 0.0
    %7777 = vmatpush.xpose.msra.mxu0 0.0
    %7778 = vmatpush.xpose.msra.mxu0 0.0
    %7779 = vmatpush.xpose.msra.mxu0 0.0
    %7780 = vmatpush.xpose.msra.mxu0 0.0
    %7781 = vmatpush.xpose.msra.mxu0 0.0
    %7782 = vmatpush.xpose.msra.mxu0 0.0
    %7783 = vmatpush.xpose.msra.mxu0 0.0
    %7784 = vmatpush.xpose.msra.mxu0 0.0
    %7785 = vmatpush.xpose.msra.mxu0 0.0
    %7786 = vmatpush.xpose.msra.mxu0 0.0
    %7787 = vmatpush.xpose.msra.mxu0 0.0
    %7788 = vmatpush.xpose.msra.mxu0 %v7771
    %7789 = vmatmul.f32.gmra.mxu0 %v7768
    %v7790 = vpop.f32.mrf.mxu0
    %v7791 = vadd.f32 0.0, %v7790
    %7792 = vdwg.mxu0
    %v7794 = vsel %vm1767, %v7671, 0
    %v7797 = vsel %vm1767, %v7720, 0
    %7799 = vmatpush.xpose.msra.mxu0 0.0
    %7800 = vmatpush.xpose.msra.mxu0 0.0
    %7801 = vmatpush.xpose.msra.mxu0 0.0
    %7802 = vmatpush.xpose.msra.mxu0 0.0
    %7803 = vmatpush.xpose.msra.mxu0 0.0
    %7804 = vmatpush.xpose.msra.mxu0 0.0
    %7805 = vmatpush.xpose.msra.mxu0 0.0
    %7806 = vmatpush.xpose.msra.mxu0 0.0
    %7807 = vmatpush.xpose.msra.mxu0 0.0
    %7808 = vmatpush.xpose.msra.mxu0 0.0
    %7809 = vmatpush.xpose.msra.mxu0 0.0
    %7810 = vmatpush.xpose.msra.mxu0 0.0
    %7811 = vmatpush.xpose.msra.mxu0 0.0
    %7812 = vmatpush.xpose.msra.mxu0 0.0
    %7813 = vmatpush.xpose.msra.mxu0 0.0
    %7814 = vmatpush.xpose.msra.mxu0 %v7797
    %7815 = vmatmul.f32.gmra.mxu0 %v7794
    %v7816 = vpop.f32.mrf.mxu0
    %v7817 = vadd.f32 0.0, %v7816
    %7818 = vdwg.mxu0
    %v7820 = vsel %vm1767, %v7672, 0
    %v7823 = vsel %vm1767, %v7721, 0
    %7825 = vmatpush.xpose.msra.mxu0 0.0
    %7826 = vmatpush.xpose.msra.mxu0 0.0
    %7827 = vmatpush.xpose.msra.mxu0 0.0
    %7828 = vmatpush.xpose.msra.mxu0 0.0
    %7829 = vmatpush.xpose.msra.mxu0 0.0
    %7830 = vmatpush.xpose.msra.mxu0 0.0
    %7831 = vmatpush.xpose.msra.mxu0 0.0
    %7832 = vmatpush.xpose.msra.mxu0 0.0
    %7833 = vmatpush.xpose.msra.mxu0 0.0
    %7834 = vmatpush.xpose.msra.mxu0 0.0
    %7835 = vmatpush.xpose.msra.mxu0 0.0
    %7836 = vmatpush.xpose.msra.mxu0 0.0
    %7837 = vmatpush.xpose.msra.mxu0 0.0
    %7838 = vmatpush.xpose.msra.mxu0 0.0
    %7839 = vmatpush.xpose.msra.mxu0 0.0
    %7840 = vmatpush.xpose.msra.mxu0 %v7823
    %7841 = vmatmul.f32.gmra.mxu0 %v7820
    %v7842 = vpop.f32.mrf.mxu0
    %v7843 = vadd.f32 0.0, %v7842
    %7844 = vdwg.mxu0
    %v7846 = vsel %vm1767, %v7673, 0
    %v7849 = vsel %vm1767, %v7722, 0
    %7851 = vmatpush.xpose.msra.mxu0 0.0
    %7852 = vmatpush.xpose.msra.mxu0 0.0
    %7853 = vmatpush.xpose.msra.mxu0 0.0
    %7854 = vmatpush.xpose.msra.mxu0 0.0
    %7855 = vmatpush.xpose.msra.mxu0 0.0
    %7856 = vmatpush.xpose.msra.mxu0 0.0
    %7857 = vmatpush.xpose.msra.mxu0 0.0
    %7858 = vmatpush.xpose.msra.mxu0 0.0
    %7859 = vmatpush.xpose.msra.mxu0 0.0
    %7860 = vmatpush.xpose.msra.mxu0 0.0
    %7861 = vmatpush.xpose.msra.mxu0 0.0
    %7862 = vmatpush.xpose.msra.mxu0 0.0
    %7863 = vmatpush.xpose.msra.mxu0 0.0
    %7864 = vmatpush.xpose.msra.mxu0 0.0
    %7865 = vmatpush.xpose.msra.mxu0 0.0
    %7866 = vmatpush.xpose.msra.mxu0 %v7849
    %7867 = vmatmul.f32.gmra.mxu0 %v7846
    %v7868 = vpop.f32.mrf.mxu0
    %v7869 = vadd.f32 0.0, %v7868
    %7870 = vdwg.mxu0
    %v7872 = vsel %vm1767, %v7674, 0
    %v7875 = vsel %vm1767, %v7723, 0
    %7877 = vmatpush.xpose.msra.mxu0 0.0
    %7878 = vmatpush.xpose.msra.mxu0 0.0
    %7879 = vmatpush.xpose.msra.mxu0 0.0
    %7880 = vmatpush.xpose.msra.mxu0 0.0
    %7881 = vmatpush.xpose.msra.mxu0 0.0
    %7882 = vmatpush.xpose.msra.mxu0 0.0
    %7883 = vmatpush.xpose.msra.mxu0 0.0
    %7884 = vmatpush.xpose.msra.mxu0 0.0
    %7885 = vmatpush.xpose.msra.mxu0 0.0
    %7886 = vmatpush.xpose.msra.mxu0 0.0
    %7887 = vmatpush.xpose.msra.mxu0 0.0
    %7888 = vmatpush.xpose.msra.mxu0 0.0
    %7889 = vmatpush.xpose.msra.mxu0 0.0
    %7890 = vmatpush.xpose.msra.mxu0 0.0
    %7891 = vmatpush.xpose.msra.mxu0 0.0
    %7892 = vmatpush.xpose.msra.mxu0 %v7875
    %7893 = vmatmul.f32.gmra.mxu0 %v7872
    %v7894 = vpop.f32.mrf.mxu0
    %v7895 = vadd.f32 0.0, %v7894
    %7896 = vdwg.mxu0
    %v7898 = vsel %vm1767, %v7675, 0
    %v7901 = vsel %vm1767, %v7724, 0
    %7903 = vmatpush.xpose.msra.mxu0 0.0
    %7904 = vmatpush.xpose.msra.mxu0 0.0
    %7905 = vmatpush.xpose.msra.mxu0 0.0
    %7906 = vmatpush.xpose.msra.mxu0 0.0
    %7907 = vmatpush.xpose.msra.mxu0 0.0
    %7908 = vmatpush.xpose.msra.mxu0 0.0
    %7909 = vmatpush.xpose.msra.mxu0 0.0
    %7910 = vmatpush.xpose.msra.mxu0 0.0
    %7911 = vmatpush.xpose.msra.mxu0 0.0
    %7912 = vmatpush.xpose.msra.mxu0 0.0
    %7913 = vmatpush.xpose.msra.mxu0 0.0
    %7914 = vmatpush.xpose.msra.mxu0 0.0
    %7915 = vmatpush.xpose.msra.mxu0 0.0
    %7916 = vmatpush.xpose.msra.mxu0 0.0
    %7917 = vmatpush.xpose.msra.mxu0 0.0
    %7918 = vmatpush.xpose.msra.mxu0 %v7901
    %7919 = vmatmul.f32.gmra.mxu0 %v7898
    %v7920 = vpop.f32.mrf.mxu0
    %v7921 = vadd.f32 0.0, %v7920
    %7922 = vdwg.mxu0
    %v7924 = vsel %vm1767, %v7676, 0
    %v7927 = vsel %vm1767, %v7725, 0
    %7929 = vmatpush.xpose.msra.mxu0 0.0
    %7930 = vmatpush.xpose.msra.mxu0 0.0
    %7931 = vmatpush.xpose.msra.mxu0 0.0
    %7932 = vmatpush.xpose.msra.mxu0 0.0
    %7933 = vmatpush.xpose.msra.mxu0 0.0
    %7934 = vmatpush.xpose.msra.mxu0 0.0
    %7935 = vmatpush.xpose.msra.mxu0 0.0
    %7936 = vmatpush.xpose.msra.mxu0 0.0
    %7937 = vmatpush.xpose.msra.mxu0 0.0
    %7938 = vmatpush.xpose.msra.mxu0 0.0
    %7939 = vmatpush.xpose.msra.mxu0 0.0
    %7940 = vmatpush.xpose.msra.mxu0 0.0
    %7941 = vmatpush.xpose.msra.mxu0 0.0
    %7942 = vmatpush.xpose.msra.mxu0 0.0
    %7943 = vmatpush.xpose.msra.mxu0 0.0
    %7944 = vmatpush.xpose.msra.mxu0 %v7927
    %7945 = vmatmul.f32.gmra.mxu0 %v7924
    %v7946 = vpop.f32.mrf.mxu0
    %v7947 = vadd.f32 0.0, %v7946
    %7948 = vdwg.mxu0
    %v7950 = vsel %vm1767, %v7677, 0
    %v7953 = vsel %vm1767, %v7726, 0
    %7955 = vmatpush.xpose.msra.mxu0 0.0
    %7956 = vmatpush.xpose.msra.mxu0 0.0
    %7957 = vmatpush.xpose.msra.mxu0 0.0
    %7958 = vmatpush.xpose.msra.mxu0 0.0
    %7959 = vmatpush.xpose.msra.mxu0 0.0
    %7960 = vmatpush.xpose.msra.mxu0 0.0
    %7961 = vmatpush.xpose.msra.mxu0 0.0
    %7962 = vmatpush.xpose.msra.mxu0 0.0
    %7963 = vmatpush.xpose.msra.mxu0 0.0
    %7964 = vmatpush.xpose.msra.mxu0 0.0
    %7965 = vmatpush.xpose.msra.mxu0 0.0
    %7966 = vmatpush.xpose.msra.mxu0 0.0
    %7967 = vmatpush.xpose.msra.mxu0 0.0
    %7968 = vmatpush.xpose.msra.mxu0 0.0
    %7969 = vmatpush.xpose.msra.mxu0 0.0
    %7970 = vmatpush.xpose.msra.mxu0 %v7953
    %7971 = vmatmul.f32.gmra.mxu0 %v7950
    %v7972 = vpop.f32.mrf.mxu0
    %v7973 = vadd.f32 0.0, %v7972
    %7974 = vdwg.mxu0
    %v7976 = vsel %vm1767, %v7678, 0
    %v7979 = vsel %vm1767, %v7727, 0
    %7981 = vmatpush.xpose.msra.mxu0 0.0
    %7982 = vmatpush.xpose.msra.mxu0 0.0
    %7983 = vmatpush.xpose.msra.mxu0 0.0
    %7984 = vmatpush.xpose.msra.mxu0 0.0
    %7985 = vmatpush.xpose.msra.mxu0 0.0
    %7986 = vmatpush.xpose.msra.mxu0 0.0
    %7987 = vmatpush.xpose.msra.mxu0 0.0
    %7988 = vmatpush.xpose.msra.mxu0 0.0
    %7989 = vmatpush.xpose.msra.mxu0 0.0
    %7990 = vmatpush.xpose.msra.mxu0 0.0
    %7991 = vmatpush.xpose.msra.mxu0 0.0
    %7992 = vmatpush.xpose.msra.mxu0 0.0
    %7993 = vmatpush.xpose.msra.mxu0 0.0
    %7994 = vmatpush.xpose.msra.mxu0 0.0
    %7995 = vmatpush.xpose.msra.mxu0 0.0
    %7996 = vmatpush.xpose.msra.mxu0 %v7979
    %7997 = vmatmul.f32.gmra.mxu0 %v7976
    %v7998 = vpop.f32.mrf.mxu0
    %v7999 = vadd.f32 0.0, %v7998
    %8000 = vdwg.mxu0
    %v8002 = vsel %vm1767, %v7679, 0
    %v8005 = vsel %vm1767, %v7728, 0
    %8007 = vmatpush.xpose.msra.mxu0 0.0
    %8008 = vmatpush.xpose.msra.mxu0 0.0
    %8009 = vmatpush.xpose.msra.mxu0 0.0
    %8010 = vmatpush.xpose.msra.mxu0 0.0
    %8011 = vmatpush.xpose.msra.mxu0 0.0
    %8012 = vmatpush.xpose.msra.mxu0 0.0
    %8013 = vmatpush.xpose.msra.mxu0 0.0
    %8014 = vmatpush.xpose.msra.mxu0 0.0
    %8015 = vmatpush.xpose.msra.mxu0 0.0
    %8016 = vmatpush.xpose.msra.mxu0 0.0
    %8017 = vmatpush.xpose.msra.mxu0 0.0
    %8018 = vmatpush.xpose.msra.mxu0 0.0
    %8019 = vmatpush.xpose.msra.mxu0 0.0
    %8020 = vmatpush.xpose.msra.mxu0 0.0
    %8021 = vmatpush.xpose.msra.mxu0 0.0
    %8022 = vmatpush.xpose.msra.mxu0 %v8005
    %8023 = vmatmul.f32.gmra.mxu0 %v8002
    %v8024 = vpop.f32.mrf.mxu0
    %v8025 = vadd.f32 0.0, %v8024
    %8026 = vdwg.mxu0
    %v8028 = vsel %vm1767, %v7680, 0
    %v8031 = vsel %vm1767, %v7729, 0
    %8033 = vmatpush.xpose.msra.mxu0 0.0
    %8034 = vmatpush.xpose.msra.mxu0 0.0
    %8035 = vmatpush.xpose.msra.mxu0 0.0
    %8036 = vmatpush.xpose.msra.mxu0 0.0
    %8037 = vmatpush.xpose.msra.mxu0 0.0
    %8038 = vmatpush.xpose.msra.mxu0 0.0
    %8039 = vmatpush.xpose.msra.mxu0 0.0
    %8040 = vmatpush.xpose.msra.mxu0 0.0
    %8041 = vmatpush.xpose.msra.mxu0 0.0
    %8042 = vmatpush.xpose.msra.mxu0 0.0
    %8043 = vmatpush.xpose.msra.mxu0 0.0
    %8044 = vmatpush.xpose.msra.mxu0 0.0
    %8045 = vmatpush.xpose.msra.mxu0 0.0
    %8046 = vmatpush.xpose.msra.mxu0 0.0
    %8047 = vmatpush.xpose.msra.mxu0 0.0
    %8048 = vmatpush.xpose.msra.mxu0 %v8031
    %8049 = vmatmul.f32.gmra.mxu0 %v8028
    %v8050 = vpop.f32.mrf.mxu0
    %v8051 = vadd.f32 0.0, %v8050
    %8052 = vdwg.mxu0
    %v8054 = vsel %vm1767, %v7681, 0
    %v8057 = vsel %vm1767, %v7730, 0
    %8059 = vmatpush.xpose.msra.mxu0 0.0
    %8060 = vmatpush.xpose.msra.mxu0 0.0
    %8061 = vmatpush.xpose.msra.mxu0 0.0
    %8062 = vmatpush.xpose.msra.mxu0 0.0
    %8063 = vmatpush.xpose.msra.mxu0 0.0
    %8064 = vmatpush.xpose.msra.mxu0 0.0
    %8065 = vmatpush.xpose.msra.mxu0 0.0
    %8066 = vmatpush.xpose.msra.mxu0 0.0
    %8067 = vmatpush.xpose.msra.mxu0 0.0
    %8068 = vmatpush.xpose.msra.mxu0 0.0
    %8069 = vmatpush.xpose.msra.mxu0 0.0
    %8070 = vmatpush.xpose.msra.mxu0 0.0
    %8071 = vmatpush.xpose.msra.mxu0 0.0
    %8072 = vmatpush.xpose.msra.mxu0 0.0
    %8073 = vmatpush.xpose.msra.mxu0 0.0
    %8074 = vmatpush.xpose.msra.mxu0 %v8057
    %8075 = vmatmul.f32.gmra.mxu0 %v8054
    %v8076 = vpop.f32.mrf.mxu0
    %v8077 = vadd.f32 0.0, %v8076
    %8078 = vdwg.mxu0
    %v8080 = vsel %vm1767, %v7682, 0
    %v8083 = vsel %vm1767, %v7731, 0
    %8085 = vmatpush.xpose.msra.mxu0 0.0
    %8086 = vmatpush.xpose.msra.mxu0 0.0
    %8087 = vmatpush.xpose.msra.mxu0 0.0
    %8088 = vmatpush.xpose.msra.mxu0 0.0
    %8089 = vmatpush.xpose.msra.mxu0 0.0
    %8090 = vmatpush.xpose.msra.mxu0 0.0
    %8091 = vmatpush.xpose.msra.mxu0 0.0
    %8092 = vmatpush.xpose.msra.mxu0 0.0
    %8093 = vmatpush.xpose.msra.mxu0 0.0
    %8094 = vmatpush.xpose.msra.mxu0 0.0
    %8095 = vmatpush.xpose.msra.mxu0 0.0
    %8096 = vmatpush.xpose.msra.mxu0 0.0
    %8097 = vmatpush.xpose.msra.mxu0 0.0
    %8098 = vmatpush.xpose.msra.mxu0 0.0
    %8099 = vmatpush.xpose.msra.mxu0 0.0
    %8100 = vmatpush.xpose.msra.mxu0 %v8083
    %8101 = vmatmul.f32.gmra.mxu0 %v8080
    %v8102 = vpop.f32.mrf.mxu0
    %v8103 = vadd.f32 0.0, %v8102
    %8104 = vdwg.mxu0
    %v8106 = vsel %vm1767, %v7683, 0
    %v8109 = vsel %vm1767, %v7732, 0
    %8111 = vmatpush.xpose.msra.mxu0 0.0
    %8112 = vmatpush.xpose.msra.mxu0 0.0
    %8113 = vmatpush.xpose.msra.mxu0 0.0
    %8114 = vmatpush.xpose.msra.mxu0 0.0
    %8115 = vmatpush.xpose.msra.mxu0 0.0
    %8116 = vmatpush.xpose.msra.mxu0 0.0
    %8117 = vmatpush.xpose.msra.mxu0 0.0
    %8118 = vmatpush.xpose.msra.mxu0 0.0
    %8119 = vmatpush.xpose.msra.mxu0 0.0
    %8120 = vmatpush.xpose.msra.mxu0 0.0
    %8121 = vmatpush.xpose.msra.mxu0 0.0
    %8122 = vmatpush.xpose.msra.mxu0 0.0
    %8123 = vmatpush.xpose.msra.mxu0 0.0
    %8124 = vmatpush.xpose.msra.mxu0 0.0
    %8125 = vmatpush.xpose.msra.mxu0 0.0
    %8126 = vmatpush.xpose.msra.mxu0 %v8109
    %8127 = vmatmul.f32.gmra.mxu0 %v8106
    %v8128 = vpop.f32.mrf.mxu0
    %v8129 = vadd.f32 0.0, %v8128
    %8130 = vdwg.mxu0
    %v8132 = vsel %vm1767, %v7684, 0
    %v8135 = vsel %vm1767, %v7733, 0
    %8137 = vmatpush.xpose.msra.mxu0 0.0
    %8138 = vmatpush.xpose.msra.mxu0 0.0
    %8139 = vmatpush.xpose.msra.mxu0 0.0
    %8140 = vmatpush.xpose.msra.mxu0 0.0
    %8141 = vmatpush.xpose.msra.mxu0 0.0
    %8142 = vmatpush.xpose.msra.mxu0 0.0
    %8143 = vmatpush.xpose.msra.mxu0 0.0
    %8144 = vmatpush.xpose.msra.mxu0 0.0
    %8145 = vmatpush.xpose.msra.mxu0 0.0
    %8146 = vmatpush.xpose.msra.mxu0 0.0
    %8147 = vmatpush.xpose.msra.mxu0 0.0
    %8148 = vmatpush.xpose.msra.mxu0 0.0
    %8149 = vmatpush.xpose.msra.mxu0 0.0
    %8150 = vmatpush.xpose.msra.mxu0 0.0
    %8151 = vmatpush.xpose.msra.mxu0 0.0
    %8152 = vmatpush.xpose.msra.mxu0 %v8135
    %8153 = vmatmul.f32.gmra.mxu0 %v8132
    %v8154 = vpop.f32.mrf.mxu0
    %v8155 = vadd.f32 0.0, %v8154
    %8156 = vdwg.mxu0
    %v8158 = vsel %vm1767, %v7685, 0
    %v8161 = vsel %vm1767, %v7734, 0
    %8163 = vmatpush.xpose.msra.mxu0 0.0
    %8164 = vmatpush.xpose.msra.mxu0 0.0
    %8165 = vmatpush.xpose.msra.mxu0 0.0
    %8166 = vmatpush.xpose.msra.mxu0 0.0
    %8167 = vmatpush.xpose.msra.mxu0 0.0
    %8168 = vmatpush.xpose.msra.mxu0 0.0
    %8169 = vmatpush.xpose.msra.mxu0 0.0
    %8170 = vmatpush.xpose.msra.mxu0 0.0
    %8171 = vmatpush.xpose.msra.mxu0 0.0
    %8172 = vmatpush.xpose.msra.mxu0 0.0
    %8173 = vmatpush.xpose.msra.mxu0 0.0
    %8174 = vmatpush.xpose.msra.mxu0 0.0
    %8175 = vmatpush.xpose.msra.mxu0 0.0
    %8176 = vmatpush.xpose.msra.mxu0 0.0
    %8177 = vmatpush.xpose.msra.mxu0 0.0
    %8178 = vmatpush.xpose.msra.mxu0 %v8161
    %8179 = vmatmul.f32.gmra.mxu0 %v8158
    %v8180 = vpop.f32.mrf.mxu0
    %v8181 = vadd.f32 0.0, %v8180
    %8182 = vdwg.mxu0
    %v8184 = vsel %vm1767, %v7686, 0
    %v8187 = vsel %vm1767, %v7735, 0
    %8189 = vmatpush.xpose.msra.mxu0 0.0
    %8190 = vmatpush.xpose.msra.mxu0 0.0
    %8191 = vmatpush.xpose.msra.mxu0 0.0
    %8192 = vmatpush.xpose.msra.mxu0 0.0
    %8193 = vmatpush.xpose.msra.mxu0 0.0
    %8194 = vmatpush.xpose.msra.mxu0 0.0
    %8195 = vmatpush.xpose.msra.mxu0 0.0
    %8196 = vmatpush.xpose.msra.mxu0 0.0
    %8197 = vmatpush.xpose.msra.mxu0 0.0
    %8198 = vmatpush.xpose.msra.mxu0 0.0
    %8199 = vmatpush.xpose.msra.mxu0 0.0
    %8200 = vmatpush.xpose.msra.mxu0 0.0
    %8201 = vmatpush.xpose.msra.mxu0 0.0
    %8202 = vmatpush.xpose.msra.mxu0 0.0
    %8203 = vmatpush.xpose.msra.mxu0 0.0
    %8204 = vmatpush.xpose.msra.mxu0 %v8187
    %8205 = vmatmul.f32.gmra.mxu0 %v8184
    %v8206 = vpop.f32.mrf.mxu0
    %v8207 = vadd.f32 0.0, %v8206
    %8208 = vdwg.mxu0
    %v8210 = vsel %vm1767, %v7687, 0
    %v8213 = vsel %vm1767, %v7736, 0
    %8215 = vmatpush.xpose.msra.mxu0 0.0
    %8216 = vmatpush.xpose.msra.mxu0 0.0
    %8217 = vmatpush.xpose.msra.mxu0 0.0
    %8218 = vmatpush.xpose.msra.mxu0 0.0
    %8219 = vmatpush.xpose.msra.mxu0 0.0
    %8220 = vmatpush.xpose.msra.mxu0 0.0
    %8221 = vmatpush.xpose.msra.mxu0 0.0
    %8222 = vmatpush.xpose.msra.mxu0 0.0
    %8223 = vmatpush.xpose.msra.mxu0 0.0
    %8224 = vmatpush.xpose.msra.mxu0 0.0
    %8225 = vmatpush.xpose.msra.mxu0 0.0
    %8226 = vmatpush.xpose.msra.mxu0 0.0
    %8227 = vmatpush.xpose.msra.mxu0 0.0
    %8228 = vmatpush.xpose.msra.mxu0 0.0
    %8229 = vmatpush.xpose.msra.mxu0 0.0
    %8230 = vmatpush.xpose.msra.mxu0 %v8213
    %8231 = vmatmul.f32.gmra.mxu0 %v8210
    %v8232 = vpop.f32.mrf.mxu0
    %v8233 = vadd.f32 0.0, %v8232
    %8234 = vdwg.mxu0
    %v8236 = vsel %vm1767, %v7688, 0
    %v8239 = vsel %vm1767, %v7737, 0
    %8241 = vmatpush.xpose.msra.mxu0 0.0
    %8242 = vmatpush.xpose.msra.mxu0 0.0
    %8243 = vmatpush.xpose.msra.mxu0 0.0
    %8244 = vmatpush.xpose.msra.mxu0 0.0
    %8245 = vmatpush.xpose.msra.mxu0 0.0
    %8246 = vmatpush.xpose.msra.mxu0 0.0
    %8247 = vmatpush.xpose.msra.mxu0 0.0
    %8248 = vmatpush.xpose.msra.mxu0 0.0
    %8249 = vmatpush.xpose.msra.mxu0 0.0
    %8250 = vmatpush.xpose.msra.mxu0 0.0
    %8251 = vmatpush.xpose.msra.mxu0 0.0
    %8252 = vmatpush.xpose.msra.mxu0 0.0
    %8253 = vmatpush.xpose.msra.mxu0 0.0
    %8254 = vmatpush.xpose.msra.mxu0 0.0
    %8255 = vmatpush.xpose.msra.mxu0 0.0
    %8256 = vmatpush.xpose.msra.mxu0 %v8239
    %8257 = vmatmul.f32.gmra.mxu0 %v8236
    %v8258 = vpop.f32.mrf.mxu0
    %v8259 = vadd.f32 0.0, %v8258
    %8260 = vdwg.mxu0
    %v8262 = vsel %vm1767, %v7689, 0
    %v8265 = vsel %vm1767, %v7738, 0
    %8267 = vmatpush.xpose.msra.mxu0 0.0
    %8268 = vmatpush.xpose.msra.mxu0 0.0
    %8269 = vmatpush.xpose.msra.mxu0 0.0
    %8270 = vmatpush.xpose.msra.mxu0 0.0
    %8271 = vmatpush.xpose.msra.mxu0 0.0
    %8272 = vmatpush.xpose.msra.mxu0 0.0
    %8273 = vmatpush.xpose.msra.mxu0 0.0
    %8274 = vmatpush.xpose.msra.mxu0 0.0
    %8275 = vmatpush.xpose.msra.mxu0 0.0
    %8276 = vmatpush.xpose.msra.mxu0 0.0
    %8277 = vmatpush.xpose.msra.mxu0 0.0
    %8278 = vmatpush.xpose.msra.mxu0 0.0
    %8279 = vmatpush.xpose.msra.mxu0 0.0
    %8280 = vmatpush.xpose.msra.mxu0 0.0
    %8281 = vmatpush.xpose.msra.mxu0 0.0
    %8282 = vmatpush.xpose.msra.mxu0 %v8265
    %8283 = vmatmul.f32.gmra.mxu0 %v8262
    %v8284 = vpop.f32.mrf.mxu0
    %v8285 = vadd.f32 0.0, %v8284
    %8286 = vdwg.mxu0
    %v8288 = vsel %vm1767, %v7690, 0
    %v8291 = vsel %vm1767, %v7739, 0
    %8293 = vmatpush.xpose.msra.mxu0 0.0
    %8294 = vmatpush.xpose.msra.mxu0 0.0
    %8295 = vmatpush.xpose.msra.mxu0 0.0
    %8296 = vmatpush.xpose.msra.mxu0 0.0
    %8297 = vmatpush.xpose.msra.mxu0 0.0
    %8298 = vmatpush.xpose.msra.mxu0 0.0
    %8299 = vmatpush.xpose.msra.mxu0 0.0
    %8300 = vmatpush.xpose.msra.mxu0 0.0
    %8301 = vmatpush.xpose.msra.mxu0 0.0
    %8302 = vmatpush.xpose.msra.mxu0 0.0
    %8303 = vmatpush.xpose.msra.mxu0 0.0
    %8304 = vmatpush.xpose.msra.mxu0 0.0
    %8305 = vmatpush.xpose.msra.mxu0 0.0
    %8306 = vmatpush.xpose.msra.mxu0 0.0
    %8307 = vmatpush.xpose.msra.mxu0 0.0
    %8308 = vmatpush.xpose.msra.mxu0 %v8291
    %8309 = vmatmul.f32.gmra.mxu0 %v8288
    %v8310 = vpop.f32.mrf.mxu0
    %v8311 = vadd.f32 0.0, %v8310
    %8312 = vdwg.mxu0
    %v8314 = vsel %vm1767, %v7691, 0
    %v8317 = vsel %vm1767, %v7740, 0
    %8319 = vmatpush.xpose.msra.mxu0 0.0
    %8320 = vmatpush.xpose.msra.mxu0 0.0
    %8321 = vmatpush.xpose.msra.mxu0 0.0
    %8322 = vmatpush.xpose.msra.mxu0 0.0
    %8323 = vmatpush.xpose.msra.mxu0 0.0
    %8324 = vmatpush.xpose.msra.mxu0 0.0
    %8325 = vmatpush.xpose.msra.mxu0 0.0
    %8326 = vmatpush.xpose.msra.mxu0 0.0
    %8327 = vmatpush.xpose.msra.mxu0 0.0
    %8328 = vmatpush.xpose.msra.mxu0 0.0
    %8329 = vmatpush.xpose.msra.mxu0 0.0
    %8330 = vmatpush.xpose.msra.mxu0 0.0
    %8331 = vmatpush.xpose.msra.mxu0 0.0
    %8332 = vmatpush.xpose.msra.mxu0 0.0
    %8333 = vmatpush.xpose.msra.mxu0 0.0
    %8334 = vmatpush.xpose.msra.mxu0 %v8317
    %8335 = vmatmul.f32.gmra.mxu0 %v8314
    %v8336 = vpop.f32.mrf.mxu0
    %v8337 = vadd.f32 0.0, %v8336
    %8338 = vdwg.mxu0
    %v8340 = vsel %vm1767, %v7692, 0
    %v8343 = vsel %vm1767, %v7741, 0
    %8345 = vmatpush.xpose.msra.mxu0 0.0
    %8346 = vmatpush.xpose.msra.mxu0 0.0
    %8347 = vmatpush.xpose.msra.mxu0 0.0
    %8348 = vmatpush.xpose.msra.mxu0 0.0
    %8349 = vmatpush.xpose.msra.mxu0 0.0
    %8350 = vmatpush.xpose.msra.mxu0 0.0
    %8351 = vmatpush.xpose.msra.mxu0 0.0
    %8352 = vmatpush.xpose.msra.mxu0 0.0
    %8353 = vmatpush.xpose.msra.mxu0 0.0
    %8354 = vmatpush.xpose.msra.mxu0 0.0
    %8355 = vmatpush.xpose.msra.mxu0 0.0
    %8356 = vmatpush.xpose.msra.mxu0 0.0
    %8357 = vmatpush.xpose.msra.mxu0 0.0
    %8358 = vmatpush.xpose.msra.mxu0 0.0
    %8359 = vmatpush.xpose.msra.mxu0 0.0
    %8360 = vmatpush.xpose.msra.mxu0 %v8343
    %8361 = vmatmul.f32.gmra.mxu0 %v8340
    %v8362 = vpop.f32.mrf.mxu0
    %v8363 = vadd.f32 0.0, %v8362
    %8364 = vdwg.mxu0
    %v8366 = vsel %vm1767, %v7693, 0
    %v8369 = vsel %vm1767, %v7742, 0
    %8371 = vmatpush.xpose.msra.mxu0 0.0
    %8372 = vmatpush.xpose.msra.mxu0 0.0
    %8373 = vmatpush.xpose.msra.mxu0 0.0
    %8374 = vmatpush.xpose.msra.mxu0 0.0
    %8375 = vmatpush.xpose.msra.mxu0 0.0
    %8376 = vmatpush.xpose.msra.mxu0 0.0
    %8377 = vmatpush.xpose.msra.mxu0 0.0
    %8378 = vmatpush.xpose.msra.mxu0 0.0
    %8379 = vmatpush.xpose.msra.mxu0 0.0
    %8380 = vmatpush.xpose.msra.mxu0 0.0
    %8381 = vmatpush.xpose.msra.mxu0 0.0
    %8382 = vmatpush.xpose.msra.mxu0 0.0
    %8383 = vmatpush.xpose.msra.mxu0 0.0
    %8384 = vmatpush.xpose.msra.mxu0 0.0
    %8385 = vmatpush.xpose.msra.mxu0 0.0
    %8386 = vmatpush.xpose.msra.mxu0 %v8369
    %8387 = vmatmul.f32.gmra.mxu0 %v8366
    %v8388 = vpop.f32.mrf.mxu0
    %v8389 = vadd.f32 0.0, %v8388
    %8390 = vdwg.mxu0
    %v8392 = vsel %vm1767, %v7694, 0
    %v8395 = vsel %vm1767, %v7743, 0
    %8397 = vmatpush.xpose.msra.mxu0 0.0
    %8398 = vmatpush.xpose.msra.mxu0 0.0
    %8399 = vmatpush.xpose.msra.mxu0 0.0
    %8400 = vmatpush.xpose.msra.mxu0 0.0
    %8401 = vmatpush.xpose.msra.mxu0 0.0
    %8402 = vmatpush.xpose.msra.mxu0 0.0
    %8403 = vmatpush.xpose.msra.mxu0 0.0
    %8404 = vmatpush.xpose.msra.mxu0 0.0
    %8405 = vmatpush.xpose.msra.mxu0 0.0
    %8406 = vmatpush.xpose.msra.mxu0 0.0
    %8407 = vmatpush.xpose.msra.mxu0 0.0
    %8408 = vmatpush.xpose.msra.mxu0 0.0
    %8409 = vmatpush.xpose.msra.mxu0 0.0
    %8410 = vmatpush.xpose.msra.mxu0 0.0
    %8411 = vmatpush.xpose.msra.mxu0 0.0
    %8412 = vmatpush.xpose.msra.mxu0 %v8395
    %8413 = vmatmul.f32.gmra.mxu0 %v8392
    %v8414 = vpop.f32.mrf.mxu0
    %v8415 = vadd.f32 0.0, %v8414
    %8416 = vdwg.mxu0
    %v8418 = vsel %vm1767, %v7695, 0
    %v8421 = vsel %vm1767, %v7744, 0
    %8423 = vmatpush.xpose.msra.mxu0 0.0
    %8424 = vmatpush.xpose.msra.mxu0 0.0
    %8425 = vmatpush.xpose.msra.mxu0 0.0
    %8426 = vmatpush.xpose.msra.mxu0 0.0
    %8427 = vmatpush.xpose.msra.mxu0 0.0
    %8428 = vmatpush.xpose.msra.mxu0 0.0
    %8429 = vmatpush.xpose.msra.mxu0 0.0
    %8430 = vmatpush.xpose.msra.mxu0 0.0
    %8431 = vmatpush.xpose.msra.mxu0 0.0
    %8432 = vmatpush.xpose.msra.mxu0 0.0
    %8433 = vmatpush.xpose.msra.mxu0 0.0
    %8434 = vmatpush.xpose.msra.mxu0 0.0
    %8435 = vmatpush.xpose.msra.mxu0 0.0
    %8436 = vmatpush.xpose.msra.mxu0 0.0
    %8437 = vmatpush.xpose.msra.mxu0 0.0
    %8438 = vmatpush.xpose.msra.mxu0 %v8421
    %8439 = vmatmul.f32.gmra.mxu0 %v8418
    %v8440 = vpop.f32.mrf.mxu0
    %v8441 = vadd.f32 0.0, %v8440
    %8442 = vdwg.mxu0
    %v8444 = vsel %vm1767, %v7696, 0
    %v8447 = vsel %vm1767, %v7745, 0
    %8449 = vmatpush.xpose.msra.mxu0 0.0
    %8450 = vmatpush.xpose.msra.mxu0 0.0
    %8451 = vmatpush.xpose.msra.mxu0 0.0
    %8452 = vmatpush.xpose.msra.mxu0 0.0
    %8453 = vmatpush.xpose.msra.mxu0 0.0
    %8454 = vmatpush.xpose.msra.mxu0 0.0
    %8455 = vmatpush.xpose.msra.mxu0 0.0
    %8456 = vmatpush.xpose.msra.mxu0 0.0
    %8457 = vmatpush.xpose.msra.mxu0 0.0
    %8458 = vmatpush.xpose.msra.mxu0 0.0
    %8459 = vmatpush.xpose.msra.mxu0 0.0
    %8460 = vmatpush.xpose.msra.mxu0 0.0
    %8461 = vmatpush.xpose.msra.mxu0 0.0
    %8462 = vmatpush.xpose.msra.mxu0 0.0
    %8463 = vmatpush.xpose.msra.mxu0 0.0
    %8464 = vmatpush.xpose.msra.mxu0 %v8447
    %8465 = vmatmul.f32.gmra.mxu0 %v8444
    %v8466 = vpop.f32.mrf.mxu0
    %v8467 = vadd.f32 0.0, %v8466
    %8468 = vdwg.mxu0
    %v8470 = vsel %vm1767, %v7697, 0
    %v8473 = vsel %vm1767, %v7746, 0
    %8475 = vmatpush.xpose.msra.mxu0 0.0
    %8476 = vmatpush.xpose.msra.mxu0 0.0
    %8477 = vmatpush.xpose.msra.mxu0 0.0
    %8478 = vmatpush.xpose.msra.mxu0 0.0
    %8479 = vmatpush.xpose.msra.mxu0 0.0
    %8480 = vmatpush.xpose.msra.mxu0 0.0
    %8481 = vmatpush.xpose.msra.mxu0 0.0
    %8482 = vmatpush.xpose.msra.mxu0 0.0
    %8483 = vmatpush.xpose.msra.mxu0 0.0
    %8484 = vmatpush.xpose.msra.mxu0 0.0
    %8485 = vmatpush.xpose.msra.mxu0 0.0
    %8486 = vmatpush.xpose.msra.mxu0 0.0
    %8487 = vmatpush.xpose.msra.mxu0 0.0
    %8488 = vmatpush.xpose.msra.mxu0 0.0
    %8489 = vmatpush.xpose.msra.mxu0 0.0
    %8490 = vmatpush.xpose.msra.mxu0 %v8473
    %8491 = vmatmul.f32.gmra.mxu0 %v8470
    %v8492 = vpop.f32.mrf.mxu0
    %v8493 = vadd.f32 0.0, %v8492
    %8494 = vdwg.mxu0
    %v8496 = vsel %vm1767, %v7698, 0
    %v8499 = vsel %vm1767, %v7747, 0
    %8501 = vmatpush.xpose.msra.mxu0 0.0
    %8502 = vmatpush.xpose.msra.mxu0 0.0
    %8503 = vmatpush.xpose.msra.mxu0 0.0
    %8504 = vmatpush.xpose.msra.mxu0 0.0
    %8505 = vmatpush.xpose.msra.mxu0 0.0
    %8506 = vmatpush.xpose.msra.mxu0 0.0
    %8507 = vmatpush.xpose.msra.mxu0 0.0
    %8508 = vmatpush.xpose.msra.mxu0 0.0
    %8509 = vmatpush.xpose.msra.mxu0 0.0
    %8510 = vmatpush.xpose.msra.mxu0 0.0
    %8511 = vmatpush.xpose.msra.mxu0 0.0
    %8512 = vmatpush.xpose.msra.mxu0 0.0
    %8513 = vmatpush.xpose.msra.mxu0 0.0
    %8514 = vmatpush.xpose.msra.mxu0 0.0
    %8515 = vmatpush.xpose.msra.mxu0 0.0
    %8516 = vmatpush.xpose.msra.mxu0 %v8499
    %8517 = vmatmul.f32.gmra.mxu0 %v8496
    %v8518 = vpop.f32.mrf.mxu0
    %v8519 = vadd.f32 0.0, %v8518
    %8520 = vdwg.mxu0
    %v8522 = vsel %vm1767, %v7699, 0
    %v8525 = vsel %vm1767, %v7748, 0
    %8527 = vmatpush.xpose.msra.mxu0 0.0
    %8528 = vmatpush.xpose.msra.mxu0 0.0
    %8529 = vmatpush.xpose.msra.mxu0 0.0
    %8530 = vmatpush.xpose.msra.mxu0 0.0
    %8531 = vmatpush.xpose.msra.mxu0 0.0
    %8532 = vmatpush.xpose.msra.mxu0 0.0
    %8533 = vmatpush.xpose.msra.mxu0 0.0
    %8534 = vmatpush.xpose.msra.mxu0 0.0
    %8535 = vmatpush.xpose.msra.mxu0 0.0
    %8536 = vmatpush.xpose.msra.mxu0 0.0
    %8537 = vmatpush.xpose.msra.mxu0 0.0
    %8538 = vmatpush.xpose.msra.mxu0 0.0
    %8539 = vmatpush.xpose.msra.mxu0 0.0
    %8540 = vmatpush.xpose.msra.mxu0 0.0
    %8541 = vmatpush.xpose.msra.mxu0 0.0
    %8542 = vmatpush.xpose.msra.mxu0 %v8525
    %8543 = vmatmul.f32.gmra.mxu0 %v8522
    %v8544 = vpop.f32.mrf.mxu0
    %v8545 = vadd.f32 0.0, %v8544
    %8546 = vdwg.mxu0
    %v8548 = vsel %vm1767, %v7700, 0
    %v8551 = vsel %vm1767, %v7749, 0
    %8553 = vmatpush.xpose.msra.mxu0 0.0
    %8554 = vmatpush.xpose.msra.mxu0 0.0
    %8555 = vmatpush.xpose.msra.mxu0 0.0
    %8556 = vmatpush.xpose.msra.mxu0 0.0
    %8557 = vmatpush.xpose.msra.mxu0 0.0
    %8558 = vmatpush.xpose.msra.mxu0 0.0
    %8559 = vmatpush.xpose.msra.mxu0 0.0
    %8560 = vmatpush.xpose.msra.mxu0 0.0
    %8561 = vmatpush.xpose.msra.mxu0 0.0
    %8562 = vmatpush.xpose.msra.mxu0 0.0
    %8563 = vmatpush.xpose.msra.mxu0 0.0
    %8564 = vmatpush.xpose.msra.mxu0 0.0
    %8565 = vmatpush.xpose.msra.mxu0 0.0
    %8566 = vmatpush.xpose.msra.mxu0 0.0
    %8567 = vmatpush.xpose.msra.mxu0 0.0
    %8568 = vmatpush.xpose.msra.mxu0 %v8551
    %8569 = vmatmul.f32.gmra.mxu0 %v8548
    %v8570 = vpop.f32.mrf.mxu0
    %v8571 = vadd.f32 0.0, %v8570
    %8572 = vdwg.mxu0
    %v8574 = vsel %vm1767, %v7701, 0
    %v8577 = vsel %vm1767, %v7750, 0
    %8579 = vmatpush.xpose.msra.mxu0 0.0
    %8580 = vmatpush.xpose.msra.mxu0 0.0
    %8581 = vmatpush.xpose.msra.mxu0 0.0
    %8582 = vmatpush.xpose.msra.mxu0 0.0
    %8583 = vmatpush.xpose.msra.mxu0 0.0
    %8584 = vmatpush.xpose.msra.mxu0 0.0
    %8585 = vmatpush.xpose.msra.mxu0 0.0
    %8586 = vmatpush.xpose.msra.mxu0 0.0
    %8587 = vmatpush.xpose.msra.mxu0 0.0
    %8588 = vmatpush.xpose.msra.mxu0 0.0
    %8589 = vmatpush.xpose.msra.mxu0 0.0
    %8590 = vmatpush.xpose.msra.mxu0 0.0
    %8591 = vmatpush.xpose.msra.mxu0 0.0
    %8592 = vmatpush.xpose.msra.mxu0 0.0
    %8593 = vmatpush.xpose.msra.mxu0 0.0
    %8594 = vmatpush.xpose.msra.mxu0 %v8577
    %8595 = vmatmul.f32.gmra.mxu0 %v8574
    %v8596 = vpop.f32.mrf.mxu0
    %v8597 = vadd.f32 0.0, %v8596
    %8598 = vdwg.mxu0
    %v8600 = vsel %vm1767, %v7702, 0
    %v8603 = vsel %vm1767, %v7751, 0
    %8605 = vmatpush.xpose.msra.mxu0 0.0
    %8606 = vmatpush.xpose.msra.mxu0 0.0
    %8607 = vmatpush.xpose.msra.mxu0 0.0
    %8608 = vmatpush.xpose.msra.mxu0 0.0
    %8609 = vmatpush.xpose.msra.mxu0 0.0
    %8610 = vmatpush.xpose.msra.mxu0 0.0
    %8611 = vmatpush.xpose.msra.mxu0 0.0
    %8612 = vmatpush.xpose.msra.mxu0 0.0
    %8613 = vmatpush.xpose.msra.mxu0 0.0
    %8614 = vmatpush.xpose.msra.mxu0 0.0
    %8615 = vmatpush.xpose.msra.mxu0 0.0
    %8616 = vmatpush.xpose.msra.mxu0 0.0
    %8617 = vmatpush.xpose.msra.mxu0 0.0
    %8618 = vmatpush.xpose.msra.mxu0 0.0
    %8619 = vmatpush.xpose.msra.mxu0 0.0
    %8620 = vmatpush.xpose.msra.mxu0 %v8603
    %8621 = vmatmul.f32.gmra.mxu0 %v8600
    %v8622 = vpop.f32.mrf.mxu0
    %v8623 = vadd.f32 0.0, %v8622
    %8624 = vdwg.mxu0
    %v8626 = vsel %vm1767, %v7703, 0
    %v8629 = vsel %vm1767, %v7752, 0
    %8631 = vmatpush.xpose.msra.mxu0 0.0
    %8632 = vmatpush.xpose.msra.mxu0 0.0
    %8633 = vmatpush.xpose.msra.mxu0 0.0
    %8634 = vmatpush.xpose.msra.mxu0 0.0
    %8635 = vmatpush.xpose.msra.mxu0 0.0
    %8636 = vmatpush.xpose.msra.mxu0 0.0
    %8637 = vmatpush.xpose.msra.mxu0 0.0
    %8638 = vmatpush.xpose.msra.mxu0 0.0
    %8639 = vmatpush.xpose.msra.mxu0 0.0
    %8640 = vmatpush.xpose.msra.mxu0 0.0
    %8641 = vmatpush.xpose.msra.mxu0 0.0
    %8642 = vmatpush.xpose.msra.mxu0 0.0
    %8643 = vmatpush.xpose.msra.mxu0 0.0
    %8644 = vmatpush.xpose.msra.mxu0 0.0
    %8645 = vmatpush.xpose.msra.mxu0 0.0
    %8646 = vmatpush.xpose.msra.mxu0 %v8629
    %8647 = vmatmul.f32.gmra.mxu0 %v8626
    %v8648 = vpop.f32.mrf.mxu0
    %v8649 = vadd.f32 0.0, %v8648
    %8650 = vdwg.mxu0
    %v8652 = vsel %vm1767, %v7704, 0
    %v8655 = vsel %vm1767, %v7753, 0
    %8657 = vmatpush.xpose.msra.mxu0 0.0
    %8658 = vmatpush.xpose.msra.mxu0 0.0
    %8659 = vmatpush.xpose.msra.mxu0 0.0
    %8660 = vmatpush.xpose.msra.mxu0 0.0
    %8661 = vmatpush.xpose.msra.mxu0 0.0
    %8662 = vmatpush.xpose.msra.mxu0 0.0
    %8663 = vmatpush.xpose.msra.mxu0 0.0
    %8664 = vmatpush.xpose.msra.mxu0 0.0
    %8665 = vmatpush.xpose.msra.mxu0 0.0
    %8666 = vmatpush.xpose.msra.mxu0 0.0
    %8667 = vmatpush.xpose.msra.mxu0 0.0
    %8668 = vmatpush.xpose.msra.mxu0 0.0
    %8669 = vmatpush.xpose.msra.mxu0 0.0
    %8670 = vmatpush.xpose.msra.mxu0 0.0
    %8671 = vmatpush.xpose.msra.mxu0 0.0
    %8672 = vmatpush.xpose.msra.mxu0 %v8655
    %8673 = vmatmul.f32.gmra.mxu0 %v8652
    %v8674 = vpop.f32.mrf.mxu0
    %v8675 = vadd.f32 0.0, %v8674
    %8676 = vdwg.mxu0
    %v8678 = vsel %vm1767, %v7705, 0
    %v8681 = vsel %vm1767, %v7754, 0
    %8683 = vmatpush.xpose.msra.mxu0 0.0
    %8684 = vmatpush.xpose.msra.mxu0 0.0
    %8685 = vmatpush.xpose.msra.mxu0 0.0
    %8686 = vmatpush.xpose.msra.mxu0 0.0
    %8687 = vmatpush.xpose.msra.mxu0 0.0
    %8688 = vmatpush.xpose.msra.mxu0 0.0
    %8689 = vmatpush.xpose.msra.mxu0 0.0
    %8690 = vmatpush.xpose.msra.mxu0 0.0
    %8691 = vmatpush.xpose.msra.mxu0 0.0
    %8692 = vmatpush.xpose.msra.mxu0 0.0
    %8693 = vmatpush.xpose.msra.mxu0 0.0
    %8694 = vmatpush.xpose.msra.mxu0 0.0
    %8695 = vmatpush.xpose.msra.mxu0 0.0
    %8696 = vmatpush.xpose.msra.mxu0 0.0
    %8697 = vmatpush.xpose.msra.mxu0 0.0
    %8698 = vmatpush.xpose.msra.mxu0 %v8681
    %8699 = vmatmul.f32.gmra.mxu0 %v8678
    %v8700 = vpop.f32.mrf.mxu0
    %v8701 = vadd.f32 0.0, %v8700
    %8702 = vdwg.mxu0
    %v8704 = vsel %vm1767, %v7706, 0
    %v8707 = vsel %vm1767, %v7755, 0
    %8709 = vmatpush.xpose.msra.mxu0 0.0
    %8710 = vmatpush.xpose.msra.mxu0 0.0
    %8711 = vmatpush.xpose.msra.mxu0 0.0
    %8712 = vmatpush.xpose.msra.mxu0 0.0
    %8713 = vmatpush.xpose.msra.mxu0 0.0
    %8714 = vmatpush.xpose.msra.mxu0 0.0
    %8715 = vmatpush.xpose.msra.mxu0 0.0
    %8716 = vmatpush.xpose.msra.mxu0 0.0
    %8717 = vmatpush.xpose.msra.mxu0 0.0
    %8718 = vmatpush.xpose.msra.mxu0 0.0
    %8719 = vmatpush.xpose.msra.mxu0 0.0
    %8720 = vmatpush.xpose.msra.mxu0 0.0
    %8721 = vmatpush.xpose.msra.mxu0 0.0
    %8722 = vmatpush.xpose.msra.mxu0 0.0
    %8723 = vmatpush.xpose.msra.mxu0 0.0
    %8724 = vmatpush.xpose.msra.mxu0 %v8707
    %8725 = vmatmul.f32.gmra.mxu0 %v8704
    %v8726 = vpop.f32.mrf.mxu0
    %v8727 = vadd.f32 0.0, %v8726
    %8728 = vdwg.mxu0
    %v8730 = vsel %vm1767, %v7707, 0
    %v8733 = vsel %vm1767, %v7756, 0
    %8735 = vmatpush.xpose.msra.mxu0 0.0
    %8736 = vmatpush.xpose.msra.mxu0 0.0
    %8737 = vmatpush.xpose.msra.mxu0 0.0
    %8738 = vmatpush.xpose.msra.mxu0 0.0
    %8739 = vmatpush.xpose.msra.mxu0 0.0
    %8740 = vmatpush.xpose.msra.mxu0 0.0
    %8741 = vmatpush.xpose.msra.mxu0 0.0
    %8742 = vmatpush.xpose.msra.mxu0 0.0
    %8743 = vmatpush.xpose.msra.mxu0 0.0
    %8744 = vmatpush.xpose.msra.mxu0 0.0
    %8745 = vmatpush.xpose.msra.mxu0 0.0
    %8746 = vmatpush.xpose.msra.mxu0 0.0
    %8747 = vmatpush.xpose.msra.mxu0 0.0
    %8748 = vmatpush.xpose.msra.mxu0 0.0
    %8749 = vmatpush.xpose.msra.mxu0 0.0
    %8750 = vmatpush.xpose.msra.mxu0 %v8733
    %8751 = vmatmul.f32.gmra.mxu0 %v8730
    %v8752 = vpop.f32.mrf.mxu0
    %v8753 = vadd.f32 0.0, %v8752
    %8754 = vdwg.mxu0
    %v8756 = vsel %vm1767, %v7708, 0
    %v8759 = vsel %vm1767, %v7757, 0
    %8761 = vmatpush.xpose.msra.mxu0 0.0
    %8762 = vmatpush.xpose.msra.mxu0 0.0
    %8763 = vmatpush.xpose.msra.mxu0 0.0
    %8764 = vmatpush.xpose.msra.mxu0 0.0
    %8765 = vmatpush.xpose.msra.mxu0 0.0
    %8766 = vmatpush.xpose.msra.mxu0 0.0
    %8767 = vmatpush.xpose.msra.mxu0 0.0
    %8768 = vmatpush.xpose.msra.mxu0 0.0
    %8769 = vmatpush.xpose.msra.mxu0 0.0
    %8770 = vmatpush.xpose.msra.mxu0 0.0
    %8771 = vmatpush.xpose.msra.mxu0 0.0
    %8772 = vmatpush.xpose.msra.mxu0 0.0
    %8773 = vmatpush.xpose.msra.mxu0 0.0
    %8774 = vmatpush.xpose.msra.mxu0 0.0
    %8775 = vmatpush.xpose.msra.mxu0 0.0
    %8776 = vmatpush.xpose.msra.mxu0 %v8759
    %8777 = vmatmul.f32.gmra.mxu0 %v8756
    %v8778 = vpop.f32.mrf.mxu0
    %v8779 = vadd.f32 0.0, %v8778
    %8780 = vdwg.mxu0
    %v8782 = vsel %vm1767, %v7709, 0
    %v8785 = vsel %vm1767, %v7758, 0
    %8787 = vmatpush.xpose.msra.mxu0 0.0
    %8788 = vmatpush.xpose.msra.mxu0 0.0
    %8789 = vmatpush.xpose.msra.mxu0 0.0
    %8790 = vmatpush.xpose.msra.mxu0 0.0
    %8791 = vmatpush.xpose.msra.mxu0 0.0
    %8792 = vmatpush.xpose.msra.mxu0 0.0
    %8793 = vmatpush.xpose.msra.mxu0 0.0
    %8794 = vmatpush.xpose.msra.mxu0 0.0
    %8795 = vmatpush.xpose.msra.mxu0 0.0
    %8796 = vmatpush.xpose.msra.mxu0 0.0
    %8797 = vmatpush.xpose.msra.mxu0 0.0
    %8798 = vmatpush.xpose.msra.mxu0 0.0
    %8799 = vmatpush.xpose.msra.mxu0 0.0
    %8800 = vmatpush.xpose.msra.mxu0 0.0
    %8801 = vmatpush.xpose.msra.mxu0 0.0
    %8802 = vmatpush.xpose.msra.mxu0 %v8785
    %8803 = vmatmul.f32.gmra.mxu0 %v8782
    %v8804 = vpop.f32.mrf.mxu0
    %v8805 = vadd.f32 0.0, %v8804
    %8806 = vdwg.mxu0
    %v8808 = vsel %vm1767, %v7710, 0
    %v8811 = vsel %vm1767, %v7759, 0
    %8813 = vmatpush.xpose.msra.mxu0 0.0
    %8814 = vmatpush.xpose.msra.mxu0 0.0
    %8815 = vmatpush.xpose.msra.mxu0 0.0
    %8816 = vmatpush.xpose.msra.mxu0 0.0
    %8817 = vmatpush.xpose.msra.mxu0 0.0
    %8818 = vmatpush.xpose.msra.mxu0 0.0
    %8819 = vmatpush.xpose.msra.mxu0 0.0
    %8820 = vmatpush.xpose.msra.mxu0 0.0
    %8821 = vmatpush.xpose.msra.mxu0 0.0
    %8822 = vmatpush.xpose.msra.mxu0 0.0
    %8823 = vmatpush.xpose.msra.mxu0 0.0
    %8824 = vmatpush.xpose.msra.mxu0 0.0
    %8825 = vmatpush.xpose.msra.mxu0 0.0
    %8826 = vmatpush.xpose.msra.mxu0 0.0
    %8827 = vmatpush.xpose.msra.mxu0 0.0
    %8828 = vmatpush.xpose.msra.mxu0 %v8811
    %8829 = vmatmul.f32.gmra.mxu0 %v8808
    %v8830 = vpop.f32.mrf.mxu0
    %v8831 = vadd.f32 0.0, %v8830
    %8832 = vdwg.mxu0
    %v8834 = vsel %vm1767, %v7711, 0
    %v8837 = vsel %vm1767, %v7760, 0
    %8839 = vmatpush.xpose.msra.mxu0 0.0
    %8840 = vmatpush.xpose.msra.mxu0 0.0
    %8841 = vmatpush.xpose.msra.mxu0 0.0
    %8842 = vmatpush.xpose.msra.mxu0 0.0
    %8843 = vmatpush.xpose.msra.mxu0 0.0
    %8844 = vmatpush.xpose.msra.mxu0 0.0
    %8845 = vmatpush.xpose.msra.mxu0 0.0
    %8846 = vmatpush.xpose.msra.mxu0 0.0
    %8847 = vmatpush.xpose.msra.mxu0 0.0
    %8848 = vmatpush.xpose.msra.mxu0 0.0
    %8849 = vmatpush.xpose.msra.mxu0 0.0
    %8850 = vmatpush.xpose.msra.mxu0 0.0
    %8851 = vmatpush.xpose.msra.mxu0 0.0
    %8852 = vmatpush.xpose.msra.mxu0 0.0
    %8853 = vmatpush.xpose.msra.mxu0 0.0
    %8854 = vmatpush.xpose.msra.mxu0 %v8837
    %8855 = vmatmul.f32.gmra.mxu0 %v8834
    %v8856 = vpop.f32.mrf.mxu0
    %v8857 = vadd.f32 0.0, %v8856
    %8858 = vdwg.mxu0
    %v8860 = vsel %vm1767, %v7712, 0
    %v8863 = vsel %vm1767, %v7761, 0
    %8865 = vmatpush.xpose.msra.mxu0 0.0
    %8866 = vmatpush.xpose.msra.mxu0 0.0
    %8867 = vmatpush.xpose.msra.mxu0 0.0
    %8868 = vmatpush.xpose.msra.mxu0 0.0
    %8869 = vmatpush.xpose.msra.mxu0 0.0
    %8870 = vmatpush.xpose.msra.mxu0 0.0
    %8871 = vmatpush.xpose.msra.mxu0 0.0
    %8872 = vmatpush.xpose.msra.mxu0 0.0
    %8873 = vmatpush.xpose.msra.mxu0 0.0
    %8874 = vmatpush.xpose.msra.mxu0 0.0
    %8875 = vmatpush.xpose.msra.mxu0 0.0
    %8876 = vmatpush.xpose.msra.mxu0 0.0
    %8877 = vmatpush.xpose.msra.mxu0 0.0
    %8878 = vmatpush.xpose.msra.mxu0 0.0
    %8879 = vmatpush.xpose.msra.mxu0 0.0
    %8880 = vmatpush.xpose.msra.mxu0 %v8863
    %8881 = vmatmul.f32.gmra.mxu0 %v8860
    %v8882 = vpop.f32.mrf.mxu0
    %v8883 = vadd.f32 0.0, %v8882
    %8884 = vdwg.mxu0
    %v8886 = vsel %vm1767, %v7713, 0
    %v8889 = vsel %vm1767, %v7762, 0
    %8891 = vmatpush.xpose.msra.mxu0 0.0
    %8892 = vmatpush.xpose.msra.mxu0 0.0
    %8893 = vmatpush.xpose.msra.mxu0 0.0
    %8894 = vmatpush.xpose.msra.mxu0 0.0
    %8895 = vmatpush.xpose.msra.mxu0 0.0
    %8896 = vmatpush.xpose.msra.mxu0 0.0
    %8897 = vmatpush.xpose.msra.mxu0 0.0
    %8898 = vmatpush.xpose.msra.mxu0 0.0
    %8899 = vmatpush.xpose.msra.mxu0 0.0
    %8900 = vmatpush.xpose.msra.mxu0 0.0
    %8901 = vmatpush.xpose.msra.mxu0 0.0
    %8902 = vmatpush.xpose.msra.mxu0 0.0
    %8903 = vmatpush.xpose.msra.mxu0 0.0
    %8904 = vmatpush.xpose.msra.mxu0 0.0
    %8905 = vmatpush.xpose.msra.mxu0 0.0
    %8906 = vmatpush.xpose.msra.mxu0 %v8889
    %8907 = vmatmul.f32.gmra.mxu0 %v8886
    %v8908 = vpop.f32.mrf.mxu0
    %v8909 = vadd.f32 0.0, %v8908
    %8910 = vdwg.mxu0
    %v8912 = vsel %vm1767, %v7714, 0
    %v8915 = vsel %vm1767, %v7763, 0
    %8917 = vmatpush.xpose.msra.mxu0 0.0
    %8918 = vmatpush.xpose.msra.mxu0 0.0
    %8919 = vmatpush.xpose.msra.mxu0 0.0
    %8920 = vmatpush.xpose.msra.mxu0 0.0
    %8921 = vmatpush.xpose.msra.mxu0 0.0
    %8922 = vmatpush.xpose.msra.mxu0 0.0
    %8923 = vmatpush.xpose.msra.mxu0 0.0
    %8924 = vmatpush.xpose.msra.mxu0 0.0
    %8925 = vmatpush.xpose.msra.mxu0 0.0
    %8926 = vmatpush.xpose.msra.mxu0 0.0
    %8927 = vmatpush.xpose.msra.mxu0 0.0
    %8928 = vmatpush.xpose.msra.mxu0 0.0
    %8929 = vmatpush.xpose.msra.mxu0 0.0
    %8930 = vmatpush.xpose.msra.mxu0 0.0
    %8931 = vmatpush.xpose.msra.mxu0 0.0
    %8932 = vmatpush.xpose.msra.mxu0 %v8915
    %8933 = vmatmul.f32.gmra.mxu0 %v8912
    %v8934 = vpop.f32.mrf.mxu0
    %v8935 = vadd.f32 0.0, %v8934
    %8936 = vdwg.mxu0
    %v8938 = vsel %vm1767, %v7715, 0
    %v8941 = vsel %vm1767, %v7764, 0
    %8943 = vmatpush.xpose.msra.mxu0 0.0
    %8944 = vmatpush.xpose.msra.mxu0 0.0
    %8945 = vmatpush.xpose.msra.mxu0 0.0
    %8946 = vmatpush.xpose.msra.mxu0 0.0
    %8947 = vmatpush.xpose.msra.mxu0 0.0
    %8948 = vmatpush.xpose.msra.mxu0 0.0
    %8949 = vmatpush.xpose.msra.mxu0 0.0
    %8950 = vmatpush.xpose.msra.mxu0 0.0
    %8951 = vmatpush.xpose.msra.mxu0 0.0
    %8952 = vmatpush.xpose.msra.mxu0 0.0
    %8953 = vmatpush.xpose.msra.mxu0 0.0
    %8954 = vmatpush.xpose.msra.mxu0 0.0
    %8955 = vmatpush.xpose.msra.mxu0 0.0
    %8956 = vmatpush.xpose.msra.mxu0 0.0
    %8957 = vmatpush.xpose.msra.mxu0 0.0
    %8958 = vmatpush.xpose.msra.mxu0 %v8941
    %8959 = vmatmul.f32.gmra.mxu0 %v8938
    %v8960 = vpop.f32.mrf.mxu0
    %v8961 = vadd.f32 0.0, %v8960
    %8962 = vdwg.mxu0
    %v8964 = vsel %vm1767, %v7716, 0
    %v8967 = vsel %vm1767, %v7765, 0
    %8969 = vmatpush.xpose.msra.mxu0 0.0
    %8970 = vmatpush.xpose.msra.mxu0 0.0
    %8971 = vmatpush.xpose.msra.mxu0 0.0
    %8972 = vmatpush.xpose.msra.mxu0 0.0
    %8973 = vmatpush.xpose.msra.mxu0 0.0
    %8974 = vmatpush.xpose.msra.mxu0 0.0
    %8975 = vmatpush.xpose.msra.mxu0 0.0
    %8976 = vmatpush.xpose.msra.mxu0 0.0
    %8977 = vmatpush.xpose.msra.mxu0 0.0
    %8978 = vmatpush.xpose.msra.mxu0 0.0
    %8979 = vmatpush.xpose.msra.mxu0 0.0
    %8980 = vmatpush.xpose.msra.mxu0 0.0
    %8981 = vmatpush.xpose.msra.mxu0 0.0
    %8982 = vmatpush.xpose.msra.mxu0 0.0
    %8983 = vmatpush.xpose.msra.mxu0 0.0
    %8984 = vmatpush.xpose.msra.mxu0 %v8967
    %8985 = vmatmul.f32.gmra.mxu0 %v8964
    %v8986 = vpop.f32.mrf.mxu0
    %v8987 = vadd.f32 0.0, %v8986
    %8988 = vdwg.mxu0
    %v8990 = vsel %vm1767, %v7717, 0
    %v8993 = vsel %vm1767, %v7766, 0
    %8995 = vmatpush.xpose.msra.mxu0 0.0
    %8996 = vmatpush.xpose.msra.mxu0 0.0
    %8997 = vmatpush.xpose.msra.mxu0 0.0
    %8998 = vmatpush.xpose.msra.mxu0 0.0
    %8999 = vmatpush.xpose.msra.mxu0 0.0
    %9000 = vmatpush.xpose.msra.mxu0 0.0
    %9001 = vmatpush.xpose.msra.mxu0 0.0
    %9002 = vmatpush.xpose.msra.mxu0 0.0
    %9003 = vmatpush.xpose.msra.mxu0 0.0
    %9004 = vmatpush.xpose.msra.mxu0 0.0
    %9005 = vmatpush.xpose.msra.mxu0 0.0
    %9006 = vmatpush.xpose.msra.mxu0 0.0
    %9007 = vmatpush.xpose.msra.mxu0 0.0
    %9008 = vmatpush.xpose.msra.mxu0 0.0
    %9009 = vmatpush.xpose.msra.mxu0 0.0
    %9010 = vmatpush.xpose.msra.mxu0 %v8993
    %9011 = vmatmul.f32.gmra.mxu0 %v8990
    %v9012 = vpop.f32.mrf.mxu0
    %v9013 = vadd.f32 0.0, %v9012
    %9014 = vdwg.mxu0
    %v9015 = vsel %vm3016, %v7791, 0.0
    %v9016 = vsel %vm3016, %v7817, 0.0
    %v9017 = vadd.f32 %v9015, %v9016
    %v9018 = vsel %vm3016, %v7843, 0.0
    %v9019 = vadd.f32 %v9017, %v9018
    %v9020 = vsel %vm3016, %v7869, 0.0
    %v9021 = vadd.f32 %v9019, %v9020
    %v9022 = vsel %vm3016, %v7895, 0.0
    %v9023 = vadd.f32 %v9021, %v9022
    %v9024 = vsel %vm3016, %v7921, 0.0
    %v9025 = vadd.f32 %v9023, %v9024
    %v9026 = vsel %vm3016, %v7947, 0.0
    %v9027 = vadd.f32 %v9025, %v9026
    %v9028 = vsel %vm3016, %v7973, 0.0
    %v9029 = vadd.f32 %v9027, %v9028
    %v9030 = vsel %vm3016, %v7999, 0.0
    %v9031 = vadd.f32 %v9029, %v9030
    %v9032 = vsel %vm3016, %v8025, 0.0
    %v9033 = vadd.f32 %v9031, %v9032
    %v9034 = vsel %vm3016, %v8051, 0.0
    %v9035 = vadd.f32 %v9033, %v9034
    %v9036 = vsel %vm3016, %v8077, 0.0
    %v9037 = vadd.f32 %v9035, %v9036
    %v9038 = vsel %vm3016, %v8103, 0.0
    %v9039 = vadd.f32 %v9037, %v9038
    %v9040 = vsel %vm3016, %v8129, 0.0
    %v9041 = vadd.f32 %v9039, %v9040
    %v9042 = vsel %vm3016, %v8155, 0.0
    %v9043 = vadd.f32 %v9041, %v9042
    %v9044 = vsel %vm3016, %v8181, 0.0
    %v9045 = vadd.f32 %v9043, %v9044
    %v9046 = vsel %vm3016, %v8207, 0.0
    %v9047 = vadd.f32 %v9045, %v9046
    %v9048 = vsel %vm3016, %v8233, 0.0
    %v9049 = vadd.f32 %v9047, %v9048
    %v9050 = vsel %vm3016, %v8259, 0.0
    %v9051 = vadd.f32 %v9049, %v9050
    %v9052 = vsel %vm3016, %v8285, 0.0
    %v9053 = vadd.f32 %v9051, %v9052
    %v9054 = vsel %vm3016, %v8311, 0.0
    %v9055 = vadd.f32 %v9053, %v9054
    %v9056 = vsel %vm3016, %v8337, 0.0
    %v9057 = vadd.f32 %v9055, %v9056
    %v9058 = vsel %vm3016, %v8363, 0.0
    %v9059 = vadd.f32 %v9057, %v9058
    %v9060 = vsel %vm3016, %v8389, 0.0
    %v9061 = vadd.f32 %v9059, %v9060
    %v9062 = vsel %vm3016, %v8415, 0.0
    %v9063 = vadd.f32 %v9061, %v9062
    %v9064 = vsel %vm3016, %v8441, 0.0
    %v9065 = vadd.f32 %v9063, %v9064
    %v9066 = vsel %vm3016, %v8467, 0.0
    %v9067 = vadd.f32 %v9065, %v9066
    %v9068 = vsel %vm3016, %v8493, 0.0
    %v9069 = vadd.f32 %v9067, %v9068
    %v9070 = vsel %vm3016, %v8519, 0.0
    %v9071 = vadd.f32 %v9069, %v9070
    %v9072 = vsel %vm3016, %v8545, 0.0
    %v9073 = vadd.f32 %v9071, %v9072
    %v9074 = vsel %vm3016, %v8571, 0.0
    %v9075 = vadd.f32 %v9073, %v9074
    %v9076 = vsel %vm3016, %v8597, 0.0
    %v9077 = vadd.f32 %v9075, %v9076
    %v9078 = vsel %vm3016, %v8623, 0.0
    %v9079 = vadd.f32 %v9077, %v9078
    %v9080 = vsel %vm3016, %v8649, 0.0
    %v9081 = vadd.f32 %v9079, %v9080
    %v9082 = vsel %vm3016, %v8675, 0.0
    %v9083 = vadd.f32 %v9081, %v9082
    %v9084 = vsel %vm3016, %v8701, 0.0
    %v9085 = vadd.f32 %v9083, %v9084
    %v9086 = vsel %vm3016, %v8727, 0.0
    %v9087 = vadd.f32 %v9085, %v9086
    %v9088 = vsel %vm3016, %v8753, 0.0
    %v9089 = vadd.f32 %v9087, %v9088
    %v9090 = vsel %vm3016, %v8779, 0.0
    %v9091 = vadd.f32 %v9089, %v9090
    %v9092 = vsel %vm3016, %v8805, 0.0
    %v9093 = vadd.f32 %v9091, %v9092
    %v9094 = vsel %vm3016, %v8831, 0.0
    %v9095 = vadd.f32 %v9093, %v9094
    %v9096 = vsel %vm3016, %v8857, 0.0
    %v9097 = vadd.f32 %v9095, %v9096
    %v9098 = vsel %vm3016, %v8883, 0.0
    %v9099 = vadd.f32 %v9097, %v9098
    %v9100 = vsel %vm3016, %v8909, 0.0
    %v9101 = vadd.f32 %v9099, %v9100
    %v9102 = vsel %vm3016, %v8935, 0.0
    %v9103 = vadd.f32 %v9101, %v9102
    %v9104 = vsel %vm3016, %v8961, 0.0
    %v9105 = vadd.f32 %v9103, %v9104
    %v9106 = vsel %vm3016, %v8987, 0.0
    %v9107 = vadd.f32 %v9105, %v9106
    %v9108 = vsel %vm3016, %v9013, 0.0
    %v9109 = vadd.f32 %v9107, %v9108
    %v9110 = vadd.f32 %v6111, %v9109
    %s9111 = sld [smem:[#allocation3 + $0x180]]
    %v9112 = vstv %s9111
    %v9113 = vmul.f32 %v9112, %v63
    %v9114 = vmul.f32 %v9112, %v64
    %v9115 = vmul.f32 %v9112, %v65
    %v9116 = vmul.f32 %v9112, %v66
    %v9117 = vmul.f32 %v9112, %v67
    %v9118 = vmul.f32 %v9112, %v68
    %v9119 = vmul.f32 %v9112, %v69
    %v9120 = vmul.f32 %v9112, %v70
    %v9121 = vmul.f32 %v9112, %v71
    %v9122 = vmul.f32 %v9112, %v72
    %v9123 = vmul.f32 %v9112, %v73
    %v9124 = vmul.f32 %v9112, %v74
    %v9125 = vmul.f32 %v9112, %v87
    %v9126 = vmul.f32 %v9112, %v88
    %v9127 = vmul.f32 %v9112, %v89
    %v9128 = vmul.f32 %v9112, %v90
    %v9129 = vmul.f32 %v9112, %v91
    %v9130 = vmul.f32 %v9112, %v92
    %v9131 = vmul.f32 %v9112, %v93
    %v9132 = vmul.f32 %v9112, %v94
    %v9133 = vmul.f32 %v9112, %v95
    %v9134 = vmul.f32 %v9112, %v96
    %v9135 = vmul.f32 %v9112, %v97
    %v9136 = vmul.f32 %v9112, %v98
    %s9137 = sld [smem:[#allocation3 + $0x181]]
    %v9138 = vstv %s9137
    %v9139 = vmul.f32 %v9138, %v63
    %v9140 = vmul.f32 %v9138, %v64
    %v9141 = vmul.f32 %v9138, %v65
    %v9142 = vmul.f32 %v9138, %v66
    %v9143 = vmul.f32 %v9138, %v67
    %v9144 = vmul.f32 %v9138, %v68
    %v9145 = vmul.f32 %v9138, %v69
    %v9146 = vmul.f32 %v9138, %v70
    %v9147 = vmul.f32 %v9138, %v71
    %v9148 = vmul.f32 %v9138, %v72
    %v9149 = vmul.f32 %v9138, %v73
    %v9150 = vmul.f32 %v9138, %v74
    %9163 = vrot.lane.b32.xlu0 %v9139, 127
    %v9164 = vpop.permute.xlu0 %9163
    %9165 = vrot.lane.b32.xlu0 %v9140, 127
    %v9166 = vpop.permute.xlu0 %9165
    %9167 = vrot.lane.b32.xlu0 %v9141, 127
    %v9168 = vpop.permute.xlu0 %9167
    %9169 = vrot.lane.b32.xlu0 %v9142, 127
    %v9170 = vpop.permute.xlu0 %9169
    %9171 = vrot.lane.b32.xlu0 %v9143, 127
    %v9172 = vpop.permute.xlu0 %9171
    %9173 = vrot.lane.b32.xlu0 %v9144, 127
    %v9174 = vpop.permute.xlu0 %9173
    %9175 = vrot.lane.b32.xlu0 %v9145, 127
    %v9176 = vpop.permute.xlu0 %9175
    %9177 = vrot.lane.b32.xlu0 %v9146, 127
    %v9178 = vpop.permute.xlu0 %9177
    %9179 = vrot.lane.b32.xlu0 %v9147, 127
    %v9180 = vpop.permute.xlu0 %9179
    %9181 = vrot.lane.b32.xlu0 %v9148, 127
    %v9182 = vpop.permute.xlu0 %9181
    %9183 = vrot.lane.b32.xlu0 %v9149, 127
    %v9184 = vpop.permute.xlu0 %9183
    %9185 = vrot.lane.b32.xlu0 %v9150, 127
    %v9186 = vpop.permute.xlu0 %9185
    %v9199 = vadd.f32 %v9113, %v9164
    %v9200 = vadd.f32 %v9114, %v9166
    %v9201 = vadd.f32 %v9115, %v9168
    %v9202 = vadd.f32 %v9116, %v9170
    %v9203 = vadd.f32 %v9117, %v9172
    %v9204 = vadd.f32 %v9118, %v9174
    %v9205 = vadd.f32 %v9119, %v9176
    %v9206 = vadd.f32 %v9120, %v9178
    %v9207 = vadd.f32 %v9121, %v9180
    %v9208 = vadd.f32 %v9122, %v9182
    %v9209 = vadd.f32 %v9123, %v9184
    %v9210 = vadd.f32 %v9124, %v9186
    %v9211 = vmul.f32 %v9138, %v87
    %v9212 = vmul.f32 %v9138, %v88
    %v9213 = vmul.f32 %v9138, %v89
    %v9214 = vmul.f32 %v9138, %v90
    %v9215 = vmul.f32 %v9138, %v91
    %v9216 = vmul.f32 %v9138, %v92
    %v9217 = vmul.f32 %v9138, %v93
    %v9218 = vmul.f32 %v9138, %v94
    %v9219 = vmul.f32 %v9138, %v95
    %v9220 = vmul.f32 %v9138, %v96
    %v9221 = vmul.f32 %v9138, %v97
    %v9222 = vmul.f32 %v9138, %v98
    %9235 = vrot.lane.b32.xlu0 %v9211, 127
    %v9236 = vpop.permute.xlu0 %9235
    %9237 = vrot.lane.b32.xlu0 %v9212, 127
    %v9238 = vpop.permute.xlu0 %9237
    %9239 = vrot.lane.b32.xlu0 %v9213, 127
    %v9240 = vpop.permute.xlu0 %9239
    %9241 = vrot.lane.b32.xlu0 %v9214, 127
    %v9242 = vpop.permute.xlu0 %9241
    %9243 = vrot.lane.b32.xlu0 %v9215, 127
    %v9244 = vpop.permute.xlu0 %9243
    %9245 = vrot.lane.b32.xlu0 %v9216, 127
    %v9246 = vpop.permute.xlu0 %9245
    %9247 = vrot.lane.b32.xlu0 %v9217, 127
    %v9248 = vpop.permute.xlu0 %9247
    %9249 = vrot.lane.b32.xlu0 %v9218, 127
    %v9250 = vpop.permute.xlu0 %9249
    %9251 = vrot.lane.b32.xlu0 %v9219, 127
    %v9252 = vpop.permute.xlu0 %9251
    %9253 = vrot.lane.b32.xlu0 %v9220, 127
    %v9254 = vpop.permute.xlu0 %9253
    %9255 = vrot.lane.b32.xlu0 %v9221, 127
    %v9256 = vpop.permute.xlu0 %9255
    %9257 = vrot.lane.b32.xlu0 %v9222, 127
    %v9258 = vpop.permute.xlu0 %9257
    %v9271 = vadd.f32 %v9125, %v9236
    %v9272 = vadd.f32 %v9126, %v9238
    %v9273 = vadd.f32 %v9127, %v9240
    %v9274 = vadd.f32 %v9128, %v9242
    %v9275 = vadd.f32 %v9129, %v9244
    %v9276 = vadd.f32 %v9130, %v9246
    %v9277 = vadd.f32 %v9131, %v9248
    %v9278 = vadd.f32 %v9132, %v9250
    %v9279 = vadd.f32 %v9133, %v9252
    %v9280 = vadd.f32 %v9134, %v9254
    %v9281 = vadd.f32 %v9135, %v9256
    %v9282 = vadd.f32 %v9136, %v9258
    %s9283 = sld [smem:[#allocation3 + $0x182]]
    %v9284 = vstv %s9283
    %v9285 = vmul.f32 %v9284, %v63
    %v9286 = vmul.f32 %v9284, %v64
    %v9287 = vmul.f32 %v9284, %v65
    %v9288 = vmul.f32 %v9284, %v66
    %v9289 = vmul.f32 %v9284, %v67
    %v9290 = vmul.f32 %v9284, %v68
    %v9291 = vmul.f32 %v9284, %v69
    %v9292 = vmul.f32 %v9284, %v70
    %v9293 = vmul.f32 %v9284, %v71
    %v9294 = vmul.f32 %v9284, %v72
    %v9295 = vmul.f32 %v9284, %v73
    %v9296 = vmul.f32 %v9284, %v74
    %9309 = vrot.lane.b32.xlu0 %v9285, 126
    %v9310 = vpop.permute.xlu0 %9309
    %9311 = vrot.lane.b32.xlu0 %v9286, 126
    %v9312 = vpop.permute.xlu0 %9311
    %9313 = vrot.lane.b32.xlu0 %v9287, 126
    %v9314 = vpop.permute.xlu0 %9313
    %9315 = vrot.lane.b32.xlu0 %v9288, 126
    %v9316 = vpop.permute.xlu0 %9315
    %9317 = vrot.lane.b32.xlu0 %v9289, 126
    %v9318 = vpop.permute.xlu0 %9317
    %9319 = vrot.lane.b32.xlu0 %v9290, 126
    %v9320 = vpop.permute.xlu0 %9319
    %9321 = vrot.lane.b32.xlu0 %v9291, 126
    %v9322 = vpop.permute.xlu0 %9321
    %9323 = vrot.lane.b32.xlu0 %v9292, 126
    %v9324 = vpop.permute.xlu0 %9323
    %9325 = vrot.lane.b32.xlu0 %v9293, 126
    %v9326 = vpop.permute.xlu0 %9325
    %9327 = vrot.lane.b32.xlu0 %v9294, 126
    %v9328 = vpop.permute.xlu0 %9327
    %9329 = vrot.lane.b32.xlu0 %v9295, 126
    %v9330 = vpop.permute.xlu0 %9329
    %9331 = vrot.lane.b32.xlu0 %v9296, 126
    %v9332 = vpop.permute.xlu0 %9331
    %v9345 = vadd.f32 %v9199, %v9310
    %v9346 = vadd.f32 %v9200, %v9312
    %v9347 = vadd.f32 %v9201, %v9314
    %v9348 = vadd.f32 %v9202, %v9316
    %v9349 = vadd.f32 %v9203, %v9318
    %v9350 = vadd.f32 %v9204, %v9320
    %v9351 = vadd.f32 %v9205, %v9322
    %v9352 = vadd.f32 %v9206, %v9324
    %v9353 = vadd.f32 %v9207, %v9326
    %v9354 = vadd.f32 %v9208, %v9328
    %v9355 = vadd.f32 %v9209, %v9330
    %v9356 = vadd.f32 %v9210, %v9332
    %v9357 = vmul.f32 %v9284, %v87
    %v9358 = vmul.f32 %v9284, %v88
    %v9359 = vmul.f32 %v9284, %v89
    %v9360 = vmul.f32 %v9284, %v90
    %v9361 = vmul.f32 %v9284, %v91
    %v9362 = vmul.f32 %v9284, %v92
    %v9363 = vmul.f32 %v9284, %v93
    %v9364 = vmul.f32 %v9284, %v94
    %v9365 = vmul.f32 %v9284, %v95
    %v9366 = vmul.f32 %v9284, %v96
    %v9367 = vmul.f32 %v9284, %v97
    %v9368 = vmul.f32 %v9284, %v98
    %9381 = vrot.lane.b32.xlu0 %v9357, 126
    %v9382 = vpop.permute.xlu0 %9381
    %9383 = vrot.lane.b32.xlu0 %v9358, 126
    %v9384 = vpop.permute.xlu0 %9383
    %9385 = vrot.lane.b32.xlu0 %v9359, 126
    %v9386 = vpop.permute.xlu0 %9385
    %9387 = vrot.lane.b32.xlu0 %v9360, 126
    %v9388 = vpop.permute.xlu0 %9387
    %9389 = vrot.lane.b32.xlu0 %v9361, 126
    %v9390 = vpop.permute.xlu0 %9389
    %9391 = vrot.lane.b32.xlu0 %v9362, 126
    %v9392 = vpop.permute.xlu0 %9391
    %9393 = vrot.lane.b32.xlu0 %v9363, 126
    %v9394 = vpop.permute.xlu0 %9393
    %9395 = vrot.lane.b32.xlu0 %v9364, 126
    %v9396 = vpop.permute.xlu0 %9395
    %9397 = vrot.lane.b32.xlu0 %v9365, 126
    %v9398 = vpop.permute.xlu0 %9397
    %9399 = vrot.lane.b32.xlu0 %v9366, 126
    %v9400 = vpop.permute.xlu0 %9399
    %9401 = vrot.lane.b32.xlu0 %v9367, 126
    %v9402 = vpop.permute.xlu0 %9401
    %9403 = vrot.lane.b32.xlu0 %v9368, 126
    %v9404 = vpop.permute.xlu0 %9403
    %v9417 = vadd.f32 %v9271, %v9382
    %v9418 = vadd.f32 %v9272, %v9384
    %v9419 = vadd.f32 %v9273, %v9386
    %v9420 = vadd.f32 %v9274, %v9388
    %v9421 = vadd.f32 %v9275, %v9390
    %v9422 = vadd.f32 %v9276, %v9392
    %v9423 = vadd.f32 %v9277, %v9394
    %v9424 = vadd.f32 %v9278, %v9396
    %v9425 = vadd.f32 %v9279, %v9398
    %v9426 = vadd.f32 %v9280, %v9400
    %v9427 = vadd.f32 %v9281, %v9402
    %v9428 = vadd.f32 %v9282, %v9404
    %s9429 = sld [smem:[#allocation3 + $0x183]]
    %v9430 = vstv %s9429
    %v9431 = vmul.f32 %v9430, %v87
    %v9432 = vmul.f32 %v9430, %v88
    %v9433 = vmul.f32 %v9430, %v89
    %v9434 = vmul.f32 %v9430, %v90
    %v9435 = vmul.f32 %v9430, %v91
    %v9436 = vmul.f32 %v9430, %v92
    %v9437 = vmul.f32 %v9430, %v93
    %v9438 = vmul.f32 %v9430, %v94
    %v9439 = vmul.f32 %v9430, %v95
    %v9440 = vmul.f32 %v9430, %v96
    %v9441 = vmul.f32 %v9430, %v97
    %v9442 = vmul.f32 %v9430, %v98
    %v9443 = vadd.f32 %v9345, %v9431
    %v9444 = vadd.f32 %v9346, %v9432
    %v9445 = vadd.f32 %v9347, %v9433
    %v9446 = vadd.f32 %v9348, %v9434
    %v9447 = vadd.f32 %v9349, %v9435
    %v9448 = vadd.f32 %v9350, %v9436
    %v9449 = vadd.f32 %v9351, %v9437
    %v9450 = vadd.f32 %v9352, %v9438
    %v9451 = vadd.f32 %v9353, %v9439
    %v9452 = vadd.f32 %v9354, %v9440
    %v9453 = vadd.f32 %v9355, %v9441
    %v9454 = vadd.f32 %v9356, %v9442
    %v9455 = vmul.f32 %v9430, %v75
    %v9456 = vmul.f32 %v9430, %v76
    %v9457 = vmul.f32 %v9430, %v77
    %v9458 = vmul.f32 %v9430, %v78
    %v9459 = vmul.f32 %v9430, %v79
    %v9460 = vmul.f32 %v9430, %v80
    %v9461 = vmul.f32 %v9430, %v81
    %v9462 = vmul.f32 %v9430, %v82
    %v9463 = vmul.f32 %v9430, %v83
    %v9464 = vmul.f32 %v9430, %v84
    %v9465 = vmul.f32 %v9430, %v85
    %v9466 = vmul.f32 %v9430, %v86
    %v9467 = vadd.f32 %v9417, %v9455
    %v9468 = vadd.f32 %v9418, %v9456
    %v9469 = vadd.f32 %v9419, %v9457
    %v9470 = vadd.f32 %v9420, %v9458
    %v9471 = vadd.f32 %v9421, %v9459
    %v9472 = vadd.f32 %v9422, %v9460
    %v9473 = vadd.f32 %v9423, %v9461
    %v9474 = vadd.f32 %v9424, %v9462
    %v9475 = vadd.f32 %v9425, %v9463
    %v9476 = vadd.f32 %v9426, %v9464
    %v9477 = vadd.f32 %v9427, %v9465
    %v9478 = vadd.f32 %v9428, %v9466
    %s9479 = sld [smem:[#allocation3 + $0x184]]
    %v9480 = vstv %s9479
    %v9481 = vmul.f32 %v9480, %v87
    %v9482 = vmul.f32 %v9480, %v88
    %v9483 = vmul.f32 %v9480, %v89
    %v9484 = vmul.f32 %v9480, %v90
    %v9485 = vmul.f32 %v9480, %v91
    %v9486 = vmul.f32 %v9480, %v92
    %v9487 = vmul.f32 %v9480, %v93
    %v9488 = vmul.f32 %v9480, %v94
    %v9489 = vmul.f32 %v9480, %v95
    %v9490 = vmul.f32 %v9480, %v96
    %v9491 = vmul.f32 %v9480, %v97
    %v9492 = vmul.f32 %v9480, %v98
    %9505 = vrot.lane.b32.xlu0 %v9481, 127
    %v9506 = vpop.permute.xlu0 %9505
    %9507 = vrot.lane.b32.xlu0 %v9482, 127
    %v9508 = vpop.permute.xlu0 %9507
    %9509 = vrot.lane.b32.xlu0 %v9483, 127
    %v9510 = vpop.permute.xlu0 %9509
    %9511 = vrot.lane.b32.xlu0 %v9484, 127
    %v9512 = vpop.permute.xlu0 %9511
    %9513 = vrot.lane.b32.xlu0 %v9485, 127
    %v9514 = vpop.permute.xlu0 %9513
    %9515 = vrot.lane.b32.xlu0 %v9486, 127
    %v9516 = vpop.permute.xlu0 %9515
    %9517 = vrot.lane.b32.xlu0 %v9487, 127
    %v9518 = vpop.permute.xlu0 %9517
    %9519 = vrot.lane.b32.xlu0 %v9488, 127
    %v9520 = vpop.permute.xlu0 %9519
    %9521 = vrot.lane.b32.xlu0 %v9489, 127
    %v9522 = vpop.permute.xlu0 %9521
    %9523 = vrot.lane.b32.xlu0 %v9490, 127
    %v9524 = vpop.permute.xlu0 %9523
    %9525 = vrot.lane.b32.xlu0 %v9491, 127
    %v9526 = vpop.permute.xlu0 %9525
    %9527 = vrot.lane.b32.xlu0 %v9492, 127
    %v9528 = vpop.permute.xlu0 %9527
    %v9541 = vadd.f32 %v9443, %v9506
    %v9542 = vadd.f32 %v9444, %v9508
    %v9543 = vadd.f32 %v9445, %v9510
    %v9544 = vadd.f32 %v9446, %v9512
    %v9545 = vadd.f32 %v9447, %v9514
    %v9546 = vadd.f32 %v9448, %v9516
    %v9547 = vadd.f32 %v9449, %v9518
    %v9548 = vadd.f32 %v9450, %v9520
    %v9549 = vadd.f32 %v9451, %v9522
    %v9550 = vadd.f32 %v9452, %v9524
    %v9551 = vadd.f32 %v9453, %v9526
    %v9552 = vadd.f32 %v9454, %v9528
    %v9553 = vmul.f32 %v9480, %v75
    %v9554 = vmul.f32 %v9480, %v76
    %v9555 = vmul.f32 %v9480, %v77
    %v9556 = vmul.f32 %v9480, %v78
    %v9557 = vmul.f32 %v9480, %v79
    %v9558 = vmul.f32 %v9480, %v80
    %v9559 = vmul.f32 %v9480, %v81
    %v9560 = vmul.f32 %v9480, %v82
    %v9561 = vmul.f32 %v9480, %v83
    %v9562 = vmul.f32 %v9480, %v84
    %v9563 = vmul.f32 %v9480, %v85
    %v9564 = vmul.f32 %v9480, %v86
    %9577 = vrot.lane.b32.xlu0 %v9553, 127
    %v9578 = vpop.permute.xlu0 %9577
    %9579 = vrot.lane.b32.xlu0 %v9554, 127
    %v9580 = vpop.permute.xlu0 %9579
    %9581 = vrot.lane.b32.xlu0 %v9555, 127
    %v9582 = vpop.permute.xlu0 %9581
    %9583 = vrot.lane.b32.xlu0 %v9556, 127
    %v9584 = vpop.permute.xlu0 %9583
    %9585 = vrot.lane.b32.xlu0 %v9557, 127
    %v9586 = vpop.permute.xlu0 %9585
    %9587 = vrot.lane.b32.xlu0 %v9558, 127
    %v9588 = vpop.permute.xlu0 %9587
    %9589 = vrot.lane.b32.xlu0 %v9559, 127
    %v9590 = vpop.permute.xlu0 %9589
    %9591 = vrot.lane.b32.xlu0 %v9560, 127
    %v9592 = vpop.permute.xlu0 %9591
    %9593 = vrot.lane.b32.xlu0 %v9561, 127
    %v9594 = vpop.permute.xlu0 %9593
    %9595 = vrot.lane.b32.xlu0 %v9562, 127
    %v9596 = vpop.permute.xlu0 %9595
    %9597 = vrot.lane.b32.xlu0 %v9563, 127
    %v9598 = vpop.permute.xlu0 %9597
    %9599 = vrot.lane.b32.xlu0 %v9564, 127
    %v9600 = vpop.permute.xlu0 %9599
    %v9613 = vadd.f32 %v9467, %v9578
    %v9614 = vadd.f32 %v9468, %v9580
    %v9615 = vadd.f32 %v9469, %v9582
    %v9616 = vadd.f32 %v9470, %v9584
    %v9617 = vadd.f32 %v9471, %v9586
    %v9618 = vadd.f32 %v9472, %v9588
    %v9619 = vadd.f32 %v9473, %v9590
    %v9620 = vadd.f32 %v9474, %v9592
    %v9621 = vadd.f32 %v9475, %v9594
    %v9622 = vadd.f32 %v9476, %v9596
    %v9623 = vadd.f32 %v9477, %v9598
    %v9624 = vadd.f32 %v9478, %v9600
    %s9625 = sld [smem:[#allocation3 + $0x185]]
    %v9626 = vstv %s9625
    %v9627 = vmul.f32 %v9626, %v87
    %v9628 = vmul.f32 %v9626, %v88
    %v9629 = vmul.f32 %v9626, %v89
    %v9630 = vmul.f32 %v9626, %v90
    %v9631 = vmul.f32 %v9626, %v91
    %v9632 = vmul.f32 %v9626, %v92
    %v9633 = vmul.f32 %v9626, %v93
    %v9634 = vmul.f32 %v9626, %v94
    %v9635 = vmul.f32 %v9626, %v95
    %v9636 = vmul.f32 %v9626, %v96
    %v9637 = vmul.f32 %v9626, %v97
    %v9638 = vmul.f32 %v9626, %v98
    %9651 = vrot.lane.b32.xlu0 %v9627, 126
    %v9652 = vpop.permute.xlu0 %9651
    %9653 = vrot.lane.b32.xlu0 %v9628, 126
    %v9654 = vpop.permute.xlu0 %9653
    %9655 = vrot.lane.b32.xlu0 %v9629, 126
    %v9656 = vpop.permute.xlu0 %9655
    %9657 = vrot.lane.b32.xlu0 %v9630, 126
    %v9658 = vpop.permute.xlu0 %9657
    %9659 = vrot.lane.b32.xlu0 %v9631, 126
    %v9660 = vpop.permute.xlu0 %9659
    %9661 = vrot.lane.b32.xlu0 %v9632, 126
    %v9662 = vpop.permute.xlu0 %9661
    %9663 = vrot.lane.b32.xlu0 %v9633, 126
    %v9664 = vpop.permute.xlu0 %9663
    %9665 = vrot.lane.b32.xlu0 %v9634, 126
    %v9666 = vpop.permute.xlu0 %9665
    %9667 = vrot.lane.b32.xlu0 %v9635, 126
    %v9668 = vpop.permute.xlu0 %9667
    %9669 = vrot.lane.b32.xlu0 %v9636, 126
    %v9670 = vpop.permute.xlu0 %9669
    %9671 = vrot.lane.b32.xlu0 %v9637, 126
    %v9672 = vpop.permute.xlu0 %9671
    %9673 = vrot.lane.b32.xlu0 %v9638, 126
    %v9674 = vpop.permute.xlu0 %9673
    %v9687 = vadd.f32 %v9541, %v9652
    %v9688 = vadd.f32 %v9542, %v9654
    %v9689 = vadd.f32 %v9543, %v9656
    %v9690 = vadd.f32 %v9544, %v9658
    %v9691 = vadd.f32 %v9545, %v9660
    %v9692 = vadd.f32 %v9546, %v9662
    %v9693 = vadd.f32 %v9547, %v9664
    %v9694 = vadd.f32 %v9548, %v9666
    %v9695 = vadd.f32 %v9549, %v9668
    %v9696 = vadd.f32 %v9550, %v9670
    %v9697 = vadd.f32 %v9551, %v9672
    %v9698 = vadd.f32 %v9552, %v9674
    %v9699 = vmul.f32 %v9626, %v75
    %v9700 = vmul.f32 %v9626, %v76
    %v9701 = vmul.f32 %v9626, %v77
    %v9702 = vmul.f32 %v9626, %v78
    %v9703 = vmul.f32 %v9626, %v79
    %v9704 = vmul.f32 %v9626, %v80
    %v9705 = vmul.f32 %v9626, %v81
    %v9706 = vmul.f32 %v9626, %v82
    %v9707 = vmul.f32 %v9626, %v83
    %v9708 = vmul.f32 %v9626, %v84
    %v9709 = vmul.f32 %v9626, %v85
    %v9710 = vmul.f32 %v9626, %v86
    %9723 = vrot.lane.b32.xlu0 %v9699, 126
    %v9724 = vpop.permute.xlu0 %9723
    %9725 = vrot.lane.b32.xlu0 %v9700, 126
    %v9726 = vpop.permute.xlu0 %9725
    %9727 = vrot.lane.b32.xlu0 %v9701, 126
    %v9728 = vpop.permute.xlu0 %9727
    %9729 = vrot.lane.b32.xlu0 %v9702, 126
    %v9730 = vpop.permute.xlu0 %9729
    %9731 = vrot.lane.b32.xlu0 %v9703, 126
    %v9732 = vpop.permute.xlu0 %9731
    %9733 = vrot.lane.b32.xlu0 %v9704, 126
    %v9734 = vpop.permute.xlu0 %9733
    %9735 = vrot.lane.b32.xlu0 %v9705, 126
    %v9736 = vpop.permute.xlu0 %9735
    %9737 = vrot.lane.b32.xlu0 %v9706, 126
    %v9738 = vpop.permute.xlu0 %9737
    %9739 = vrot.lane.b32.xlu0 %v9707, 126
    %v9740 = vpop.permute.xlu0 %9739
    %9741 = vrot.lane.b32.xlu0 %v9708, 126
    %v9742 = vpop.permute.xlu0 %9741
    %9743 = vrot.lane.b32.xlu0 %v9709, 126
    %v9744 = vpop.permute.xlu0 %9743
    %9745 = vrot.lane.b32.xlu0 %v9710, 126
    %v9746 = vpop.permute.xlu0 %9745
    %v9759 = vadd.f32 %v9613, %v9724
    %v9760 = vadd.f32 %v9614, %v9726
    %v9761 = vadd.f32 %v9615, %v9728
    %v9762 = vadd.f32 %v9616, %v9730
    %v9763 = vadd.f32 %v9617, %v9732
    %v9764 = vadd.f32 %v9618, %v9734
    %v9765 = vadd.f32 %v9619, %v9736
    %v9766 = vadd.f32 %v9620, %v9738
    %v9767 = vadd.f32 %v9621, %v9740
    %v9768 = vadd.f32 %v9622, %v9742
    %v9769 = vadd.f32 %v9623, %v9744
    %v9770 = vadd.f32 %v9624, %v9746
    %s9771 = sld [smem:[#allocation3 + $0x186]]
    %v9772 = vstv %s9771
    %v9773 = vmul.f32 %v9772, %v75
    %v9774 = vmul.f32 %v9772, %v76
    %v9775 = vmul.f32 %v9772, %v77
    %v9776 = vmul.f32 %v9772, %v78
    %v9777 = vmul.f32 %v9772, %v79
    %v9778 = vmul.f32 %v9772, %v80
    %v9779 = vmul.f32 %v9772, %v81
    %v9780 = vmul.f32 %v9772, %v82
    %v9781 = vmul.f32 %v9772, %v83
    %v9782 = vmul.f32 %v9772, %v84
    %v9783 = vmul.f32 %v9772, %v85
    %v9784 = vmul.f32 %v9772, %v86
    %v9785 = vadd.f32 %v9687, %v9773
    %v9786 = vadd.f32 %v9688, %v9774
    %v9787 = vadd.f32 %v9689, %v9775
    %v9788 = vadd.f32 %v9690, %v9776
    %v9789 = vadd.f32 %v9691, %v9777
    %v9790 = vadd.f32 %v9692, %v9778
    %v9791 = vadd.f32 %v9693, %v9779
    %v9792 = vadd.f32 %v9694, %v9780
    %v9793 = vadd.f32 %v9695, %v9781
    %v9794 = vadd.f32 %v9696, %v9782
    %v9795 = vadd.f32 %v9697, %v9783
    %v9796 = vadd.f32 %v9698, %v9784
    %v9797 = vmul.f32 %v9772, %v99
    %v9798 = vmul.f32 %v9772, %v100
    %v9799 = vmul.f32 %v9772, %v101
    %v9800 = vmul.f32 %v9772, %v102
    %v9801 = vmul.f32 %v9772, %v103
    %v9802 = vmul.f32 %v9772, %v104
    %v9803 = vmul.f32 %v9772, %v105
    %v9804 = vmul.f32 %v9772, %v106
    %v9805 = vmul.f32 %v9772, %v107
    %v9806 = vmul.f32 %v9772, %v108
    %v9807 = vmul.f32 %v9772, %v109
    %v9808 = vmul.f32 %v9772, %v110
    %v9809 = vadd.f32 %v9759, %v9797
    %v9810 = vadd.f32 %v9760, %v9798
    %v9811 = vadd.f32 %v9761, %v9799
    %v9812 = vadd.f32 %v9762, %v9800
    %v9813 = vadd.f32 %v9763, %v9801
    %v9814 = vadd.f32 %v9764, %v9802
    %v9815 = vadd.f32 %v9765, %v9803
    %v9816 = vadd.f32 %v9766, %v9804
    %v9817 = vadd.f32 %v9767, %v9805
    %v9818 = vadd.f32 %v9768, %v9806
    %v9819 = vadd.f32 %v9769, %v9807
    %v9820 = vadd.f32 %v9770, %v9808
    %s9821 = sld [smem:[#allocation3 + $0x187]]
    %v9822 = vstv %s9821
    %v9823 = vmul.f32 %v9822, %v75
    %v9824 = vmul.f32 %v9822, %v76
    %v9825 = vmul.f32 %v9822, %v77
    %v9826 = vmul.f32 %v9822, %v78
    %v9827 = vmul.f32 %v9822, %v79
    %v9828 = vmul.f32 %v9822, %v80
    %v9829 = vmul.f32 %v9822, %v81
    %v9830 = vmul.f32 %v9822, %v82
    %v9831 = vmul.f32 %v9822, %v83
    %v9832 = vmul.f32 %v9822, %v84
    %v9833 = vmul.f32 %v9822, %v85
    %v9834 = vmul.f32 %v9822, %v86
    %9847 = vrot.lane.b32.xlu0 %v9823, 127
    %v9848 = vpop.permute.xlu0 %9847
    %9849 = vrot.lane.b32.xlu0 %v9824, 127
    %v9850 = vpop.permute.xlu0 %9849
    %9851 = vrot.lane.b32.xlu0 %v9825, 127
    %v9852 = vpop.permute.xlu0 %9851
    %9853 = vrot.lane.b32.xlu0 %v9826, 127
    %v9854 = vpop.permute.xlu0 %9853
    %9855 = vrot.lane.b32.xlu0 %v9827, 127
    %v9856 = vpop.permute.xlu0 %9855
    %9857 = vrot.lane.b32.xlu0 %v9828, 127
    %v9858 = vpop.permute.xlu0 %9857
    %9859 = vrot.lane.b32.xlu0 %v9829, 127
    %v9860 = vpop.permute.xlu0 %9859
    %9861 = vrot.lane.b32.xlu0 %v9830, 127
    %v9862 = vpop.permute.xlu0 %9861
    %9863 = vrot.lane.b32.xlu0 %v9831, 127
    %v9864 = vpop.permute.xlu0 %9863
    %9865 = vrot.lane.b32.xlu0 %v9832, 127
    %v9866 = vpop.permute.xlu0 %9865
    %9867 = vrot.lane.b32.xlu0 %v9833, 127
    %v9868 = vpop.permute.xlu0 %9867
    %9869 = vrot.lane.b32.xlu0 %v9834, 127
    %v9870 = vpop.permute.xlu0 %9869
    %v9883 = vadd.f32 %v9785, %v9848
    %v9884 = vadd.f32 %v9786, %v9850
    %v9885 = vadd.f32 %v9787, %v9852
    %v9886 = vadd.f32 %v9788, %v9854
    %v9887 = vadd.f32 %v9789, %v9856
    %v9888 = vadd.f32 %v9790, %v9858
    %v9889 = vadd.f32 %v9791, %v9860
    %v9890 = vadd.f32 %v9792, %v9862
    %v9891 = vadd.f32 %v9793, %v9864
    %v9892 = vadd.f32 %v9794, %v9866
    %v9893 = vadd.f32 %v9795, %v9868
    %v9894 = vadd.f32 %v9796, %v9870
    %v9895 = vmul.f32 %v9822, %v99
    %v9896 = vmul.f32 %v9822, %v100
    %v9897 = vmul.f32 %v9822, %v101
    %v9898 = vmul.f32 %v9822, %v102
    %v9899 = vmul.f32 %v9822, %v103
    %v9900 = vmul.f32 %v9822, %v104
    %v9901 = vmul.f32 %v9822, %v105
    %v9902 = vmul.f32 %v9822, %v106
    %v9903 = vmul.f32 %v9822, %v107
    %v9904 = vmul.f32 %v9822, %v108
    %v9905 = vmul.f32 %v9822, %v109
    %v9906 = vmul.f32 %v9822, %v110
    %9919 = vrot.lane.b32.xlu0 %v9895, 127
    %v9920 = vpop.permute.xlu0 %9919
    %9921 = vrot.lane.b32.xlu0 %v9896, 127
    %v9922 = vpop.permute.xlu0 %9921
    %9923 = vrot.lane.b32.xlu0 %v9897, 127
    %v9924 = vpop.permute.xlu0 %9923
    %9925 = vrot.lane.b32.xlu0 %v9898, 127
    %v9926 = vpop.permute.xlu0 %9925
    %9927 = vrot.lane.b32.xlu0 %v9899, 127
    %v9928 = vpop.permute.xlu0 %9927
    %9929 = vrot.lane.b32.xlu0 %v9900, 127
    %v9930 = vpop.permute.xlu0 %9929
    %9931 = vrot.lane.b32.xlu0 %v9901, 127
    %v9932 = vpop.permute.xlu0 %9931
    %9933 = vrot.lane.b32.xlu0 %v9902, 127
    %v9934 = vpop.permute.xlu0 %9933
    %9935 = vrot.lane.b32.xlu0 %v9903, 127
    %v9936 = vpop.permute.xlu0 %9935
    %9937 = vrot.lane.b32.xlu0 %v9904, 127
    %v9938 = vpop.permute.xlu0 %9937
    %9939 = vrot.lane.b32.xlu0 %v9905, 127
    %v9940 = vpop.permute.xlu0 %9939
    %9941 = vrot.lane.b32.xlu0 %v9906, 127
    %v9942 = vpop.permute.xlu0 %9941
    %v9955 = vadd.f32 %v9809, %v9920
    %v9956 = vadd.f32 %v9810, %v9922
    %v9957 = vadd.f32 %v9811, %v9924
    %v9958 = vadd.f32 %v9812, %v9926
    %v9959 = vadd.f32 %v9813, %v9928
    %v9960 = vadd.f32 %v9814, %v9930
    %v9961 = vadd.f32 %v9815, %v9932
    %v9962 = vadd.f32 %v9816, %v9934
    %v9963 = vadd.f32 %v9817, %v9936
    %v9964 = vadd.f32 %v9818, %v9938
    %v9965 = vadd.f32 %v9819, %v9940
    %v9966 = vadd.f32 %v9820, %v9942
    %s9967 = sld [smem:[#allocation3 + $0x188]]
    %v9968 = vstv %s9967
    %v9969 = vmul.f32 %v9968, %v75
    %v9970 = vmul.f32 %v9968, %v76
    %v9971 = vmul.f32 %v9968, %v77
    %v9972 = vmul.f32 %v9968, %v78
    %v9973 = vmul.f32 %v9968, %v79
    %v9974 = vmul.f32 %v9968, %v80
    %v9975 = vmul.f32 %v9968, %v81
    %v9976 = vmul.f32 %v9968, %v82
    %v9977 = vmul.f32 %v9968, %v83
    %v9978 = vmul.f32 %v9968, %v84
    %v9979 = vmul.f32 %v9968, %v85
    %v9980 = vmul.f32 %v9968, %v86
    %9993 = vrot.lane.b32.xlu0 %v9969, 126
    %v9994 = vpop.permute.xlu0 %9993
    %9995 = vrot.lane.b32.xlu0 %v9970, 126
    %v9996 = vpop.permute.xlu0 %9995
    %9997 = vrot.lane.b32.xlu0 %v9971, 126
    %v9998 = vpop.permute.xlu0 %9997
    %9999 = vrot.lane.b32.xlu0 %v9972, 126
    %v10000 = vpop.permute.xlu0 %9999
    %10001 = vrot.lane.b32.xlu0 %v9973, 126
    %v10002 = vpop.permute.xlu0 %10001
    %10003 = vrot.lane.b32.xlu0 %v9974, 126
    %v10004 = vpop.permute.xlu0 %10003
    %10005 = vrot.lane.b32.xlu0 %v9975, 126
    %v10006 = vpop.permute.xlu0 %10005
    %10007 = vrot.lane.b32.xlu0 %v9976, 126
    %v10008 = vpop.permute.xlu0 %10007
    %10009 = vrot.lane.b32.xlu0 %v9977, 126
    %v10010 = vpop.permute.xlu0 %10009
    %10011 = vrot.lane.b32.xlu0 %v9978, 126
    %v10012 = vpop.permute.xlu0 %10011
    %10013 = vrot.lane.b32.xlu0 %v9979, 126
    %v10014 = vpop.permute.xlu0 %10013
    %10015 = vrot.lane.b32.xlu0 %v9980, 126
    %v10016 = vpop.permute.xlu0 %10015
    %v10029 = vadd.f32 %v9883, %v9994
    %v10030 = vadd.f32 %v9884, %v9996
    %v10031 = vadd.f32 %v9885, %v9998
    %v10032 = vadd.f32 %v9886, %v10000
    %v10033 = vadd.f32 %v9887, %v10002
    %v10034 = vadd.f32 %v9888, %v10004
    %v10035 = vadd.f32 %v9889, %v10006
    %v10036 = vadd.f32 %v9890, %v10008
    %v10037 = vadd.f32 %v9891, %v10010
    %v10038 = vadd.f32 %v9892, %v10012
    %v10039 = vadd.f32 %v9893, %v10014
    %v10040 = vadd.f32 %v9894, %v10016
    %v10041 = vmul.f32 %v9968, %v99
    %v10042 = vmul.f32 %v9968, %v100
    %v10043 = vmul.f32 %v9968, %v101
    %v10044 = vmul.f32 %v9968, %v102
    %v10045 = vmul.f32 %v9968, %v103
    %v10046 = vmul.f32 %v9968, %v104
    %v10047 = vmul.f32 %v9968, %v105
    %v10048 = vmul.f32 %v9968, %v106
    %v10049 = vmul.f32 %v9968, %v107
    %v10050 = vmul.f32 %v9968, %v108
    %v10051 = vmul.f32 %v9968, %v109
    %v10052 = vmul.f32 %v9968, %v110
    %10065 = vrot.lane.b32.xlu0 %v10041, 126
    %v10066 = vpop.permute.xlu0 %10065
    %10067 = vrot.lane.b32.xlu0 %v10042, 126
    %v10068 = vpop.permute.xlu0 %10067
    %10069 = vrot.lane.b32.xlu0 %v10043, 126
    %v10070 = vpop.permute.xlu0 %10069
    %10071 = vrot.lane.b32.xlu0 %v10044, 126
    %v10072 = vpop.permute.xlu0 %10071
    %10073 = vrot.lane.b32.xlu0 %v10045, 126
    %v10074 = vpop.permute.xlu0 %10073
    %10075 = vrot.lane.b32.xlu0 %v10046, 126
    %v10076 = vpop.permute.xlu0 %10075
    %10077 = vrot.lane.b32.xlu0 %v10047, 126
    %v10078 = vpop.permute.xlu0 %10077
    %10079 = vrot.lane.b32.xlu0 %v10048, 126
    %v10080 = vpop.permute.xlu0 %10079
    %10081 = vrot.lane.b32.xlu0 %v10049, 126
    %v10082 = vpop.permute.xlu0 %10081
    %10083 = vrot.lane.b32.xlu0 %v10050, 126
    %v10084 = vpop.permute.xlu0 %10083
    %10085 = vrot.lane.b32.xlu0 %v10051, 126
    %v10086 = vpop.permute.xlu0 %10085
    %10087 = vrot.lane.b32.xlu0 %v10052, 126
    %v10088 = vpop.permute.xlu0 %10087
    %v10101 = vadd.f32 %v9955, %v10066
    %v10102 = vadd.f32 %v9956, %v10068
    %v10103 = vadd.f32 %v9957, %v10070
    %v10104 = vadd.f32 %v9958, %v10072
    %v10105 = vadd.f32 %v9959, %v10074
    %v10106 = vadd.f32 %v9960, %v10076
    %v10107 = vadd.f32 %v9961, %v10078
    %v10108 = vadd.f32 %v9962, %v10080
    %v10109 = vadd.f32 %v9963, %v10082
    %v10110 = vadd.f32 %v9964, %v10084
    %v10111 = vadd.f32 %v9965, %v10086
    %v10112 = vadd.f32 %v9966, %v10088
    %v10113 = vadd.f32 %v10029, %v10101
    %v10114 = vadd.f32 %v10030, %v10102
    %v10115 = vadd.f32 %v10031, %v10103
    %v10116 = vadd.f32 %v10032, %v10104
    %v10117 = vadd.f32 %v10033, %v10105
    %v10118 = vadd.f32 %v10034, %v10106
    %v10119 = vadd.f32 %v10035, %v10107
    %v10120 = vadd.f32 %v10036, %v10108
    %v10121 = vadd.f32 %v10037, %v10109
    %v10122 = vadd.f32 %v10038, %v10110
    %v10123 = vadd.f32 %v10039, %v10111
    %v10124 = vadd.f32 %v10040, %v10112
    %v10125 = vsel %vm1125, %v10113, 0.0
    %v10126 = vsel %vm1125, %v10114, 0.0
    %v10127 = vadd.f32 %v10125, %v10126
    %v10128 = vsel %vm1125, %v10115, 0.0
    %v10129 = vadd.f32 %v10127, %v10128
    %v10130 = vsel %vm1125, %v10116, 0.0
    %v10131 = vadd.f32 %v10129, %v10130
    %v10132 = vsel %vm1125, %v10117, 0.0
    %v10133 = vadd.f32 %v10131, %v10132
    %v10134 = vsel %vm1125, %v10118, 0.0
    %v10135 = vadd.f32 %v10133, %v10134
    %v10136 = vsel %vm1125, %v10119, 0.0
    %v10137 = vadd.f32 %v10135, %v10136
    %v10138 = vsel %vm1125, %v10120, 0.0
    %v10139 = vadd.f32 %v10137, %v10138
    %v10140 = vsel %vm1125, %v10121, 0.0
    %v10141 = vadd.f32 %v10139, %v10140
    %v10142 = vsel %vm1125, %v10122, 0.0
    %v10143 = vadd.f32 %v10141, %v10142
    %v10144 = vsel %vm1125, %v10123, 0.0
    %v10145 = vadd.f32 %v10143, %v10144
    %v10146 = vsel %vm1125, %v10124, 0.0
    %v10147 = vadd.f32 %v10145, %v10146
    %10148 = vadd.xlane.f32.xlu0 %v10147
    %v10149 = vpop.xlane.xlu0 %10148
    %v10150 = vrot.slane %v10149, 4
    %v10151 = vadd.f32 %v10149, %v10150
    %v10152 = vrot.slane %v10151, 2
    %v10153 = vadd.f32 %v10151, %v10152
    %v10154 = vrot.slane %v10153, 1
    %v10155 = vadd.f32 %v10153, %v10154
    %s10156 = vtos %v10155
    %v10157 = vmul.f32 %v10029, %v10029
    %v10158 = vmul.f32 %v10030, %v10030
    %v10159 = vmul.f32 %v10031, %v10031
    %v10160 = vmul.f32 %v10032, %v10032
    %v10161 = vmul.f32 %v10033, %v10033
    %v10162 = vmul.f32 %v10034, %v10034
    %v10163 = vmul.f32 %v10035, %v10035
    %v10164 = vmul.f32 %v10036, %v10036
    %v10165 = vmul.f32 %v10037, %v10037
    %v10166 = vmul.f32 %v10038, %v10038
    %v10167 = vmul.f32 %v10039, %v10039
    %v10168 = vmul.f32 %v10040, %v10040
    %v10169 = vmul.f32 %v10101, %v10101
    %v10170 = vmul.f32 %v10102, %v10102
    %v10171 = vmul.f32 %v10103, %v10103
    %v10172 = vmul.f32 %v10104, %v10104
    %v10173 = vmul.f32 %v10105, %v10105
    %v10174 = vmul.f32 %v10106, %v10106
    %v10175 = vmul.f32 %v10107, %v10107
    %v10176 = vmul.f32 %v10108, %v10108
    %v10177 = vmul.f32 %v10109, %v10109
    %v10178 = vmul.f32 %v10110, %v10110
    %v10179 = vmul.f32 %v10111, %v10111
    %v10180 = vmul.f32 %v10112, %v10112
    %v10181 = vadd.f32 %v10157, %v10169
    %v10182 = vadd.f32 %v10158, %v10170
    %v10183 = vadd.f32 %v10159, %v10171
    %v10184 = vadd.f32 %v10160, %v10172
    %v10185 = vadd.f32 %v10161, %v10173
    %v10186 = vadd.f32 %v10162, %v10174
    %v10187 = vadd.f32 %v10163, %v10175
    %v10188 = vadd.f32 %v10164, %v10176
    %v10189 = vadd.f32 %v10165, %v10177
    %v10190 = vadd.f32 %v10166, %v10178
    %v10191 = vadd.f32 %v10167, %v10179
    %v10192 = vadd.f32 %v10168, %v10180
    %v10193 = vsel %vm1125, %v10181, 0.0
    %v10194 = vsel %vm1125, %v10182, 0.0
    %v10195 = vadd.f32 %v10193, %v10194
    %v10196 = vsel %vm1125, %v10183, 0.0
    %v10197 = vadd.f32 %v10195, %v10196
    %v10198 = vsel %vm1125, %v10184, 0.0
    %v10199 = vadd.f32 %v10197, %v10198
    %v10200 = vsel %vm1125, %v10185, 0.0
    %v10201 = vadd.f32 %v10199, %v10200
    %v10202 = vsel %vm1125, %v10186, 0.0
    %v10203 = vadd.f32 %v10201, %v10202
    %v10204 = vsel %vm1125, %v10187, 0.0
    %v10205 = vadd.f32 %v10203, %v10204
    %v10206 = vsel %vm1125, %v10188, 0.0
    %v10207 = vadd.f32 %v10205, %v10206
    %v10208 = vsel %vm1125, %v10189, 0.0
    %v10209 = vadd.f32 %v10207, %v10208
    %v10210 = vsel %vm1125, %v10190, 0.0
    %v10211 = vadd.f32 %v10209, %v10210
    %v10212 = vsel %vm1125, %v10191, 0.0
    %v10213 = vadd.f32 %v10211, %v10212
    %v10214 = vsel %vm1125, %v10192, 0.0
    %v10215 = vadd.f32 %v10213, %v10214
    %10216 = vadd.xlane.f32.xlu0 %v10215
    %v10217 = vpop.xlane.xlu0 %10216
    %v10218 = vrot.slane %v10217, 4
    %v10219 = vadd.f32 %v10217, %v10218
    %v10220 = vrot.slane %v10219, 2
    %v10221 = vadd.f32 %v10219, %v10220
    %v10222 = vrot.slane %v10221, 1
    %v10223 = vadd.f32 %v10221, %v10222
    %s10224 = vtos %v10223
    %s10225 = smul.f32 %s10156, 5.4253473e-05
    %s10226 = smul.f32 %s10224, 5.4253473e-05
    %s10227 = smul.f32 %s10225, %s10225
    %s10228 = ssub.f32 %s10226, %s10227
    %s10229 = sld [smem:[#allocation6 + $0x3]]
    %s10230 = sadd.f32 %s10228, 1e-05
    %v10231 = vstv %s10230
    %v10232 = vrsqrt.pop %v10231
    %v10233 = vmul.f32 %v10232, %v10231
    %v10234 = vmul.f32 %v10233, %v10232
    %v10235 = vmul.f32 0.5, %v10234
    %v10236 = vsub.f32 1.5, %v10235
    %v10237 = vmul.f32 %v10232, %v10236
    %vm10238 = vweird.f32 %v10231
    %vm10239 = vweird.f32 %v10232
    %vm10240 = vmor %vm10238, %vm10239
    %v10241 = vsel %vm10240, %v10232, %v10237
    %s10242 = vtos %v10241
    %s10243 = smul.f32 %s10229, %s10242
    %s10244 = sld [smem:[#allocation8 + $0x3]]
    %s10245 = smul.f32 %s10225, %s10243
    %s10246 = ssub.f32 %s10244, %s10245
    %v10247 = vstv %s10243
    %v10248 = vmul.f32 %v10029, %v10247
    %v10249 = vmul.f32 %v10030, %v10247
    %v10250 = vmul.f32 %v10031, %v10247
    %v10251 = vmul.f32 %v10032, %v10247
    %v10252 = vmul.f32 %v10033, %v10247
    %v10253 = vmul.f32 %v10034, %v10247
    %v10254 = vmul.f32 %v10035, %v10247
    %v10255 = vmul.f32 %v10036, %v10247
    %v10256 = vmul.f32 %v10037, %v10247
    %v10257 = vmul.f32 %v10038, %v10247
    %v10258 = vmul.f32 %v10039, %v10247
    %v10259 = vmul.f32 %v10040, %v10247
    %v10260 = vstv %s10246
    %v10261 = vadd.f32 %v10248, %v10260
    %v10262 = vadd.f32 %v10249, %v10260
    %v10263 = vadd.f32 %v10250, %v10260
    %v10264 = vadd.f32 %v10251, %v10260
    %v10265 = vadd.f32 %v10252, %v10260
    %v10266 = vadd.f32 %v10253, %v10260
    %v10267 = vadd.f32 %v10254, %v10260
    %v10268 = vadd.f32 %v10255, %v10260
    %v10269 = vadd.f32 %v10256, %v10260
    %v10270 = vadd.f32 %v10257, %v10260
    %v10271 = vadd.f32 %v10258, %v10260
    %v10272 = vadd.f32 %v10259, %v10260
    %v10273 = vmax.f32 %v10261, 0.0
    %v10274 = vmax.f32 %v10262, 0.0
    %v10275 = vmax.f32 %v10263, 0.0
    %v10276 = vmax.f32 %v10264, 0.0
    %v10277 = vmax.f32 %v10265, 0.0
    %v10278 = vmax.f32 %v10266, 0.0
    %v10279 = vmax.f32 %v10267, 0.0
    %v10280 = vmax.f32 %v10268, 0.0
    %v10281 = vmax.f32 %v10269, 0.0
    %v10282 = vmax.f32 %v10270, 0.0
    %v10283 = vmax.f32 %v10271, 0.0
    %v10284 = vmax.f32 %v10272, 0.0
    %v10285 = vmul.f32 %v10101, %v10247
    %v10286 = vmul.f32 %v10102, %v10247
    %v10287 = vmul.f32 %v10103, %v10247
    %v10288 = vmul.f32 %v10104, %v10247
    %v10289 = vmul.f32 %v10105, %v10247
    %v10290 = vmul.f32 %v10106, %v10247
    %v10291 = vmul.f32 %v10107, %v10247
    %v10292 = vmul.f32 %v10108, %v10247
    %v10293 = vmul.f32 %v10109, %v10247
    %v10294 = vmul.f32 %v10110, %v10247
    %v10295 = vmul.f32 %v10111, %v10247
    %v10296 = vmul.f32 %v10112, %v10247
    %v10297 = vadd.f32 %v10285, %v10260
    %v10298 = vadd.f32 %v10286, %v10260
    %v10299 = vadd.f32 %v10287, %v10260
    %v10300 = vadd.f32 %v10288, %v10260
    %v10301 = vadd.f32 %v10289, %v10260
    %v10302 = vadd.f32 %v10290, %v10260
    %v10303 = vadd.f32 %v10291, %v10260
    %v10304 = vadd.f32 %v10292, %v10260
    %v10305 = vadd.f32 %v10293, %v10260
    %v10306 = vadd.f32 %v10294, %v10260
    %v10307 = vadd.f32 %v10295, %v10260
    %v10308 = vadd.f32 %v10296, %v10260
    %v10309 = vmax.f32 %v10297, 0.0
    %v10310 = vmax.f32 %v10298, 0.0
    %v10311 = vmax.f32 %v10299, 0.0
    %v10312 = vmax.f32 %v10300, 0.0
    %v10313 = vmax.f32 %v10301, 0.0
    %v10314 = vmax.f32 %v10302, 0.0
    %v10315 = vmax.f32 %v10303, 0.0
    %v10316 = vmax.f32 %v10304, 0.0
    %v10317 = vmax.f32 %v10305, 0.0
    %v10318 = vmax.f32 %v10306, 0.0
    %v10319 = vmax.f32 %v10307, 0.0
    %v10320 = vmax.f32 %v10308, 0.0
    %v10321 = vmax.f32 %v10273, %v10309
    %v10322 = vmax.f32 %v10274, %v10310
    %v10323 = vmax.f32 %v10275, %v10311
    %v10324 = vmax.f32 %v10276, %v10312
    %v10325 = vmax.f32 %v10277, %v10313
    %v10326 = vmax.f32 %v10278, %v10314
    %v10327 = vmax.f32 %v10279, %v10315
    %v10328 = vmax.f32 %v10280, %v10316
    %v10329 = vmax.f32 %v10281, %v10317
    %v10330 = vmax.f32 %v10282, %v10318
    %v10331 = vmax.f32 %v10283, %v10319
    %v10332 = vmax.f32 %v10284, %v10320
    %10345 = vrot.lane.b32.xlu0 %v10321, 127
    %v10346 = vpop.permute.xlu0 %10345
    %10347 = vrot.lane.b32.xlu0 %v10322, 127
    %v10348 = vpop.permute.xlu0 %10347
    %10349 = vrot.lane.b32.xlu0 %v10323, 127
    %v10350 = vpop.permute.xlu0 %10349
    %10351 = vrot.lane.b32.xlu0 %v10324, 127
    %v10352 = vpop.permute.xlu0 %10351
    %10353 = vrot.lane.b32.xlu0 %v10325, 127
    %v10354 = vpop.permute.xlu0 %10353
    %10355 = vrot.lane.b32.xlu0 %v10326, 127
    %v10356 = vpop.permute.xlu0 %10355
    %10357 = vrot.lane.b32.xlu0 %v10327, 127
    %v10358 = vpop.permute.xlu0 %10357
    %10359 = vrot.lane.b32.xlu0 %v10328, 127
    %v10360 = vpop.permute.xlu0 %10359
    %10361 = vrot.lane.b32.xlu0 %v10329, 127
    %v10362 = vpop.permute.xlu0 %10361
    %10363 = vrot.lane.b32.xlu0 %v10330, 127
    %v10364 = vpop.permute.xlu0 %10363
    %10365 = vrot.lane.b32.xlu0 %v10331, 127
    %v10366 = vpop.permute.xlu0 %10365
    %10367 = vrot.lane.b32.xlu0 %v10332, 127
    %v10368 = vpop.permute.xlu0 %10367
    %v10381 = vmax.f32 %v10321, %v10346
    %v10382 = vmax.f32 %v10322, %v10348
    %v10383 = vmax.f32 %v10323, %v10350
    %v10384 = vmax.f32 %v10324, %v10352
    %v10385 = vmax.f32 %v10325, %v10354
    %v10386 = vmax.f32 %v10326, %v10356
    %v10387 = vmax.f32 %v10327, %v10358
    %v10388 = vmax.f32 %v10328, %v10360
    %v10389 = vmax.f32 %v10329, %v10362
    %v10390 = vmax.f32 %v10330, %v10364
    %v10391 = vmax.f32 %v10331, %v10366
    %v10392 = vmax.f32 %v10332, %v10368
    %v10399 = vrot.slane %v10381, 1
    %v10400 = vrot.slane %v10381, 2
    %v10401 = vrot.slane %v10381, 3
    %v10402 = vrot.slane %v10381, 4
    %v10403 = vrot.slane %v10381, 5
    %v10404 = vrot.slane %v10381, 6
    %v10405 = vrot.slane %v10381, 7
    %v10406 = vrot.slane %v10382, 1
    %v10407 = vrot.slane %v10382, 2
    %v10408 = vrot.slane %v10382, 3
    %v10409 = vrot.slane %v10382, 4
    %v10410 = vrot.slane %v10382, 5
    %v10411 = vrot.slane %v10382, 6
    %v10412 = vrot.slane %v10382, 7
    %v10413 = vrot.slane %v10383, 1
    %v10414 = vrot.slane %v10383, 2
    %v10415 = vrot.slane %v10383, 3
    %v10416 = vrot.slane %v10383, 4
    %v10417 = vrot.slane %v10383, 5
    %v10418 = vrot.slane %v10383, 6
    %v10419 = vrot.slane %v10383, 7
    %v10420 = vrot.slane %v10384, 1
    %v10421 = vrot.slane %v10384, 2
    %v10422 = vrot.slane %v10384, 3
    %v10423 = vrot.slane %v10384, 4
    %v10424 = vrot.slane %v10384, 5
    %v10425 = vrot.slane %v10384, 6
    %v10426 = vrot.slane %v10384, 7
    %v10427 = vrot.slane %v10385, 1
    %v10428 = vrot.slane %v10385, 2
    %v10429 = vrot.slane %v10385, 3
    %v10430 = vrot.slane %v10385, 4
    %v10431 = vrot.slane %v10385, 5
    %v10432 = vrot.slane %v10385, 6
    %v10433 = vrot.slane %v10385, 7
    %v10434 = vrot.slane %v10386, 1
    %v10435 = vrot.slane %v10386, 2
    %v10436 = vrot.slane %v10386, 3
    %v10437 = vrot.slane %v10386, 4
    %v10438 = vrot.slane %v10386, 5
    %v10439 = vrot.slane %v10386, 6
    %v10440 = vrot.slane %v10386, 7
    %10483 = vst.msk [vmem:[#allocation2] sm:$0x1] %vm1484, %v10381
    %10484 = vst.msk [vmem:[#allocation2 + $0x2] sm:$0x1] %vm1484, %v10399
    %10485 = vst.msk [vmem:[#allocation2 + $0x4] sm:$0x1] %vm1484, %v10400
    %10486 = vst.msk [vmem:[#allocation2 + $0x6] sm:$0x1] %vm1484, %v10401
    %10487 = vst.msk [vmem:[#allocation2 + $0x8] sm:$0x1] %vm1484, %v10402
    %10488 = vst.msk [vmem:[#allocation2 + $0xa] sm:$0x1] %vm1484, %v10403
    %10489 = vst.msk [vmem:[#allocation2 + $0xc] sm:$0x1] %vm1484, %v10404
    %10490 = vst.msk [vmem:[#allocation2 + $0xe] sm:$0x1] %vm1484, %v10405
    %10491 = vst.msk [vmem:[#allocation2 + $0x10] sm:$0x1] %vm1484, %v10382
    %10492 = vst.msk [vmem:[#allocation2 + $0x12] sm:$0x1] %vm1484, %v10406
    %10493 = vst.msk [vmem:[#allocation2 + $0x14] sm:$0x1] %vm1484, %v10407
    %10494 = vst.msk [vmem:[#allocation2 + $0x16] sm:$0x1] %vm1484, %v10408
    %10495 = vst.msk [vmem:[#allocation2 + $0x18] sm:$0x1] %vm1484, %v10409
    %10496 = vst.msk [vmem:[#allocation2 + $0x1a] sm:$0x1] %vm1484, %v10410
    %10497 = vst.msk [vmem:[#allocation2 + $0x1c] sm:$0x1] %vm1484, %v10411
    %10498 = vst.msk [vmem:[#allocation2 + $0x1e] sm:$0x1] %vm1484, %v10412
    %10499 = vst.msk [vmem:[#allocation2 + $0x20] sm:$0x1] %vm1484, %v10383
    %10500 = vst.msk [vmem:[#allocation2 + $0x22] sm:$0x1] %vm1484, %v10413
    %10501 = vst.msk [vmem:[#allocation2 + $0x24] sm:$0x1] %vm1484, %v10414
    %10502 = vst.msk [vmem:[#allocation2 + $0x26] sm:$0x1] %vm1484, %v10415
    %10503 = vst.msk [vmem:[#allocation2 + $0x28] sm:$0x1] %vm1484, %v10416
    %10504 = vst.msk [vmem:[#allocation2 + $0x2a] sm:$0x1] %vm1484, %v10417
    %10505 = vst.msk [vmem:[#allocation2 + $0x2c] sm:$0x1] %vm1484, %v10418
    %10506 = vst.msk [vmem:[#allocation2 + $0x2e] sm:$0x1] %vm1484, %v10419
    %10507 = vst.msk [vmem:[#allocation2 + $0x30] sm:$0x1] %vm1484, %v10384
    %10508 = vst.msk [vmem:[#allocation2 + $0x32] sm:$0x1] %vm1484, %v10420
    %10509 = vst.msk [vmem:[#allocation2 + $0x34] sm:$0x1] %vm1484, %v10421
    %10510 = vst.msk [vmem:[#allocation2 + $0x36] sm:$0x1] %vm1484, %v10422
    %10511 = vst.msk [vmem:[#allocation2 + $0x38] sm:$0x1] %vm1484, %v10423
    %10512 = vst.msk [vmem:[#allocation2 + $0x3a] sm:$0x1] %vm1484, %v10424
    %10513 = vst.msk [vmem:[#allocation2 + $0x3c] sm:$0x1] %vm1484, %v10425
    %10514 = vst.msk [vmem:[#allocation2 + $0x3e] sm:$0x1] %vm1484, %v10426
    %10515 = vst.msk [vmem:[#allocation2 + $0x40] sm:$0x1] %vm1484, %v10385
    %10516 = vst.msk [vmem:[#allocation2 + $0x42] sm:$0x1] %vm1484, %v10427
    %10517 = vst.msk [vmem:[#allocation2 + $0x44] sm:$0x1] %vm1484, %v10428
    %10518 = vst.msk [vmem:[#allocation2 + $0x46] sm:$0x1] %vm1484, %v10429
    %10519 = vst.msk [vmem:[#allocation2 + $0x48] sm:$0x1] %vm1484, %v10430
    %10520 = vst.msk [vmem:[#allocation2 + $0x4a] sm:$0x1] %vm1484, %v10431
    %10521 = vst.msk [vmem:[#allocation2 + $0x4c] sm:$0x1] %vm1484, %v10432
    %10522 = vst.msk [vmem:[#allocation2 + $0x4e] sm:$0x1] %vm1484, %v10433
    %10523 = vst.msk [vmem:[#allocation2 + $0x50] sm:$0x1] %vm1484, %v10386
    %10524 = vst.msk [vmem:[#allocation2 + $0x52] sm:$0x1] %vm1484, %v10434
    %10525 = vst.msk [vmem:[#allocation2 + $0x54] sm:$0x1] %vm1484, %v10435
    %10526 = vst.msk [vmem:[#allocation2 + $0x56] sm:$0x1] %vm1484, %v10436
    %10527 = vst.msk [vmem:[#allocation2 + $0x58] sm:$0x1] %vm1484, %v10437
    %10528 = vst.msk [vmem:[#allocation2 + $0x5a] sm:$0x1] %vm1484, %v10438
    %10529 = vst.msk [vmem:[#allocation2 + $0x5c] sm:$0x1] %vm1484, %v10439
    %10530 = vst.msk [vmem:[#allocation2 + $0x5e] sm:$0x1] %vm1484, %v10440
    %v10537 = vrot.slane %v10387, 1
    %v10538 = vrot.slane %v10387, 2
    %v10539 = vrot.slane %v10387, 3
    %v10540 = vrot.slane %v10387, 4
    %v10541 = vrot.slane %v10387, 5
    %v10542 = vrot.slane %v10387, 6
    %v10543 = vrot.slane %v10387, 7
    %v10544 = vrot.slane %v10388, 1
    %v10545 = vrot.slane %v10388, 2
    %v10546 = vrot.slane %v10388, 3
    %v10547 = vrot.slane %v10388, 4
    %v10548 = vrot.slane %v10388, 5
    %v10549 = vrot.slane %v10388, 6
    %v10550 = vrot.slane %v10388, 7
    %v10551 = vrot.slane %v10389, 1
    %v10552 = vrot.slane %v10389, 2
    %v10553 = vrot.slane %v10389, 3
    %v10554 = vrot.slane %v10389, 4
    %v10555 = vrot.slane %v10389, 5
    %v10556 = vrot.slane %v10389, 6
    %v10557 = vrot.slane %v10389, 7
    %v10558 = vrot.slane %v10390, 1
    %v10559 = vrot.slane %v10390, 2
    %v10560 = vrot.slane %v10390, 3
    %v10561 = vrot.slane %v10390, 4
    %v10562 = vrot.slane %v10390, 5
    %v10563 = vrot.slane %v10390, 6
    %v10564 = vrot.slane %v10390, 7
    %v10565 = vrot.slane %v10391, 1
    %v10566 = vrot.slane %v10391, 2
    %v10567 = vrot.slane %v10391, 3
    %v10568 = vrot.slane %v10391, 4
    %v10569 = vrot.slane %v10391, 5
    %v10570 = vrot.slane %v10391, 6
    %v10571 = vrot.slane %v10391, 7
    %v10572 = vrot.slane %v10392, 1
    %v10573 = vrot.slane %v10392, 2
    %v10574 = vrot.slane %v10392, 3
    %v10575 = vrot.slane %v10392, 4
    %v10576 = vrot.slane %v10392, 5
    %v10577 = vrot.slane %v10392, 6
    %v10578 = vrot.slane %v10392, 7
    %10621 = vst.msk [vmem:[#allocation2 + $0x1] sm:$0x1] %vm1484, %v10387
    %10622 = vst.msk [vmem:[#allocation2 + $0x3] sm:$0x1] %vm1484, %v10537
    %10623 = vst.msk [vmem:[#allocation2 + $0x5] sm:$0x1] %vm1484, %v10538
    %10624 = vst.msk [vmem:[#allocation2 + $0x7] sm:$0x1] %vm1484, %v10539
    %10625 = vst.msk [vmem:[#allocation2 + $0x9] sm:$0x1] %vm1484, %v10540
    %10626 = vst.msk [vmem:[#allocation2 + $0xb] sm:$0x1] %vm1484, %v10541
    %10627 = vst.msk [vmem:[#allocation2 + $0xd] sm:$0x1] %vm1484, %v10542
    %10628 = vst.msk [vmem:[#allocation2 + $0xf] sm:$0x1] %vm1484, %v10543
    %10629 = vst.msk [vmem:[#allocation2 + $0x11] sm:$0x1] %vm1484, %v10388
    %10630 = vst.msk [vmem:[#allocation2 + $0x13] sm:$0x1] %vm1484, %v10544
    %10631 = vst.msk [vmem:[#allocation2 + $0x15] sm:$0x1] %vm1484, %v10545
    %10632 = vst.msk [vmem:[#allocation2 + $0x17] sm:$0x1] %vm1484, %v10546
    %10633 = vst.msk [vmem:[#allocation2 + $0x19] sm:$0x1] %vm1484, %v10547
    %10634 = vst.msk [vmem:[#allocation2 + $0x1b] sm:$0x1] %vm1484, %v10548
    %10635 = vst.msk [vmem:[#allocation2 + $0x1d] sm:$0x1] %vm1484, %v10549
    %10636 = vst.msk [vmem:[#allocation2 + $0x1f] sm:$0x1] %vm1484, %v10550
    %10637 = vst.msk [vmem:[#allocation2 + $0x21] sm:$0x1] %vm1484, %v10389
    %10638 = vst.msk [vmem:[#allocation2 + $0x23] sm:$0x1] %vm1484, %v10551
    %10639 = vst.msk [vmem:[#allocation2 + $0x25] sm:$0x1] %vm1484, %v10552
    %10640 = vst.msk [vmem:[#allocation2 + $0x27] sm:$0x1] %vm1484, %v10553
    %10641 = vst.msk [vmem:[#allocation2 + $0x29] sm:$0x1] %vm1484, %v10554
    %10642 = vst.msk [vmem:[#allocation2 + $0x2b] sm:$0x1] %vm1484, %v10555
    %10643 = vst.msk [vmem:[#allocation2 + $0x2d] sm:$0x1] %vm1484, %v10556
    %10644 = vst.msk [vmem:[#allocation2 + $0x2f] sm:$0x1] %vm1484, %v10557
    %10645 = vst.msk [vmem:[#allocation2 + $0x31] sm:$0x1] %vm1484, %v10390
    %10646 = vst.msk [vmem:[#allocation2 + $0x33] sm:$0x1] %vm1484, %v10558
    %10647 = vst.msk [vmem:[#allocation2 + $0x35] sm:$0x1] %vm1484, %v10559
    %10648 = vst.msk [vmem:[#allocation2 + $0x37] sm:$0x1] %vm1484, %v10560
    %10649 = vst.msk [vmem:[#allocation2 + $0x39] sm:$0x1] %vm1484, %v10561
    %10650 = vst.msk [vmem:[#allocation2 + $0x3b] sm:$0x1] %vm1484, %v10562
    %10651 = vst.msk [vmem:[#allocation2 + $0x3d] sm:$0x1] %vm1484, %v10563
    %10652 = vst.msk [vmem:[#allocation2 + $0x3f] sm:$0x1] %vm1484, %v10564
    %10653 = vst.msk [vmem:[#allocation2 + $0x41] sm:$0x1] %vm1484, %v10391
    %10654 = vst.msk [vmem:[#allocation2 + $0x43] sm:$0x1] %vm1484, %v10565
    %10655 = vst.msk [vmem:[#allocation2 + $0x45] sm:$0x1] %vm1484, %v10566
    %10656 = vst.msk [vmem:[#allocation2 + $0x47] sm:$0x1] %vm1484, %v10567
    %10657 = vst.msk [vmem:[#allocation2 + $0x49] sm:$0x1] %vm1484, %v10568
    %10658 = vst.msk [vmem:[#allocation2 + $0x4b] sm:$0x1] %vm1484, %v10569
    %10659 = vst.msk [vmem:[#allocation2 + $0x4d] sm:$0x1] %vm1484, %v10570
    %10660 = vst.msk [vmem:[#allocation2 + $0x4f] sm:$0x1] %vm1484, %v10571
    %10661 = vst.msk [vmem:[#allocation2 + $0x51] sm:$0x1] %vm1484, %v10392
    %10662 = vst.msk [vmem:[#allocation2 + $0x53] sm:$0x1] %vm1484, %v10572
    %10663 = vst.msk [vmem:[#allocation2 + $0x55] sm:$0x1] %vm1484, %v10573
    %10664 = vst.msk [vmem:[#allocation2 + $0x57] sm:$0x1] %vm1484, %v10574
    %10665 = vst.msk [vmem:[#allocation2 + $0x59] sm:$0x1] %vm1484, %v10575
    %10666 = vst.msk [vmem:[#allocation2 + $0x5b] sm:$0x1] %vm1484, %v10576
    %10667 = vst.msk [vmem:[#allocation2 + $0x5d] sm:$0x1] %vm1484, %v10577
    %10668 = vst.msk [vmem:[#allocation2 + $0x5f] sm:$0x1] %vm1484, %v10578
    %v10669 = vld [vmem:[#allocation2] sm:$0x3]
    %v10670 = vld [vmem:[#allocation2 + $0x2] sm:$0x3]
    %v10671 = vld [vmem:[#allocation2 + $0x4] sm:$0x3]
    %v10672 = vld [vmem:[#allocation2 + $0x6] sm:$0x3]
    %v10673 = vld [vmem:[#allocation2 + $0x8] sm:$0x3]
    %v10674 = vld [vmem:[#allocation2 + $0xa] sm:$0x3]
    %v10675 = vld [vmem:[#allocation2 + $0xc] sm:$0x3]
    %v10676 = vld [vmem:[#allocation2 + $0xe] sm:$0x3]
    %v10677 = vld [vmem:[#allocation2 + $0x10] sm:$0x3]
    %v10678 = vld [vmem:[#allocation2 + $0x12] sm:$0x3]
    %v10679 = vld [vmem:[#allocation2 + $0x14] sm:$0x3]
    %v10680 = vld [vmem:[#allocation2 + $0x16] sm:$0x3]
    %v10681 = vld [vmem:[#allocation2 + $0x18] sm:$0x3]
    %v10682 = vld [vmem:[#allocation2 + $0x1a] sm:$0x3]
    %v10683 = vld [vmem:[#allocation2 + $0x1c] sm:$0x3]
    %v10684 = vld [vmem:[#allocation2 + $0x1e] sm:$0x3]
    %v10685 = vld [vmem:[#allocation2 + $0x20] sm:$0x3]
    %v10686 = vld [vmem:[#allocation2 + $0x22] sm:$0x3]
    %v10687 = vld [vmem:[#allocation2 + $0x24] sm:$0x3]
    %v10688 = vld [vmem:[#allocation2 + $0x26] sm:$0x3]
    %v10689 = vld [vmem:[#allocation2 + $0x28] sm:$0x3]
    %v10690 = vld [vmem:[#allocation2 + $0x2a] sm:$0x3]
    %v10691 = vld [vmem:[#allocation2 + $0x2c] sm:$0x3]
    %v10692 = vld [vmem:[#allocation2 + $0x2e] sm:$0x3]
    %v10693 = vld [vmem:[#allocation2 + $0x30] sm:$0x3]
    %v10694 = vld [vmem:[#allocation2 + $0x32] sm:$0x3]
    %v10695 = vld [vmem:[#allocation2 + $0x34] sm:$0x3]
    %v10696 = vld [vmem:[#allocation2 + $0x36] sm:$0x3]
    %v10697 = vld [vmem:[#allocation2 + $0x38] sm:$0x3]
    %v10698 = vld [vmem:[#allocation2 + $0x3a] sm:$0x3]
    %v10699 = vld [vmem:[#allocation2 + $0x3c] sm:$0x3]
    %v10700 = vld [vmem:[#allocation2 + $0x3e] sm:$0x3]
    %v10701 = vld [vmem:[#allocation2 + $0x40] sm:$0x3]
    %v10702 = vld [vmem:[#allocation2 + $0x42] sm:$0x3]
    %v10703 = vld [vmem:[#allocation2 + $0x44] sm:$0x3]
    %v10704 = vld [vmem:[#allocation2 + $0x46] sm:$0x3]
    %v10705 = vld [vmem:[#allocation2 + $0x48] sm:$0x3]
    %v10706 = vld [vmem:[#allocation2 + $0x4a] sm:$0x3]
    %v10707 = vld [vmem:[#allocation2 + $0x4c] sm:$0x3]
    %v10708 = vld [vmem:[#allocation2 + $0x4e] sm:$0x3]
    %v10709 = vld [vmem:[#allocation2 + $0x50] sm:$0x3]
    %v10710 = vld [vmem:[#allocation2 + $0x52] sm:$0x3]
    %v10711 = vld [vmem:[#allocation2 + $0x54] sm:$0x3]
    %v10712 = vld [vmem:[#allocation2 + $0x56] sm:$0x3]
    %v10713 = vld [vmem:[#allocation2 + $0x58] sm:$0x3]
    %v10714 = vld [vmem:[#allocation2 + $0x5a] sm:$0x3]
    %v10715 = vld [vmem:[#allocation2 + $0x5c] sm:$0x3]
    %v10716 = vld [vmem:[#allocation2 + $0x5e] sm:$0x3]
    %s10717 = scalar_lea.vmem %s5, 1152
    %v10718 = vld [vmem:[%s10717] sm:$0x1f]
    %v10719 = vld [vmem:[%s10717 + $0x8] sm:$0x1f]
    %v10720 = vld [vmem:[%s10717 + $0x10] sm:$0x1f]
    %v10721 = vld [vmem:[%s10717 + $0x18] sm:$0x1f]
    %v10722 = vld [vmem:[%s10717 + $0x20] sm:$0x1f]
    %v10723 = vld [vmem:[%s10717 + $0x28] sm:$0x1f]
    %v10724 = vld [vmem:[%s10717 + $0x30] sm:$0x1f]
    %v10725 = vld [vmem:[%s10717 + $0x38] sm:$0x1f]
    %v10726 = vld [vmem:[%s10717 + $0x40] sm:$0x1f]
    %v10727 = vld [vmem:[%s10717 + $0x48] sm:$0x1f]
    %v10728 = vld [vmem:[%s10717 + $0x50] sm:$0x1f]
    %v10729 = vld [vmem:[%s10717 + $0x58] sm:$0x1f]
    %v10730 = vld [vmem:[%s10717 + $0x60] sm:$0x1f]
    %v10731 = vld [vmem:[%s10717 + $0x68] sm:$0x1f]
    %v10732 = vld [vmem:[%s10717 + $0x70] sm:$0x1f]
    %v10733 = vld [vmem:[%s10717 + $0x78] sm:$0x1f]
    %v10734 = vld [vmem:[%s10717 + $0x80] sm:$0x1f]
    %v10735 = vld [vmem:[%s10717 + $0x88] sm:$0x1f]
    %v10736 = vld [vmem:[%s10717 + $0x90] sm:$0x1f]
    %v10737 = vld [vmem:[%s10717 + $0x98] sm:$0x1f]
    %v10738 = vld [vmem:[%s10717 + $0xa0] sm:$0x1f]
    %v10739 = vld [vmem:[%s10717 + $0xa8] sm:$0x1f]
    %v10740 = vld [vmem:[%s10717 + $0xb0] sm:$0x1f]
    %v10741 = vld [vmem:[%s10717 + $0xb8] sm:$0x1f]
    %v10742 = vld [vmem:[%s10717 + $0xc0] sm:$0x1f]
    %v10743 = vld [vmem:[%s10717 + $0xc8] sm:$0x1f]
    %v10744 = vld [vmem:[%s10717 + $0xd0] sm:$0x1f]
    %v10745 = vld [vmem:[%s10717 + $0xd8] sm:$0x1f]
    %v10746 = vld [vmem:[%s10717 + $0xe0] sm:$0x1f]
    %v10747 = vld [vmem:[%s10717 + $0xe8] sm:$0x1f]
    %v10748 = vld [vmem:[%s10717 + $0xf0] sm:$0x1f]
    %v10749 = vld [vmem:[%s10717 + $0xf8] sm:$0x1f]
    %v10750 = vld [vmem:[%s10717 + $0x100] sm:$0x1f]
    %v10751 = vld [vmem:[%s10717 + $0x108] sm:$0x1f]
    %v10752 = vld [vmem:[%s10717 + $0x110] sm:$0x1f]
    %v10753 = vld [vmem:[%s10717 + $0x118] sm:$0x1f]
    %v10754 = vld [vmem:[%s10717 + $0x120] sm:$0x1f]
    %v10755 = vld [vmem:[%s10717 + $0x128] sm:$0x1f]
    %v10756 = vld [vmem:[%s10717 + $0x130] sm:$0x1f]
    %v10757 = vld [vmem:[%s10717 + $0x138] sm:$0x1f]
    %v10758 = vld [vmem:[%s10717 + $0x140] sm:$0x1f]
    %v10759 = vld [vmem:[%s10717 + $0x148] sm:$0x1f]
    %v10760 = vld [vmem:[%s10717 + $0x150] sm:$0x1f]
    %v10761 = vld [vmem:[%s10717 + $0x158] sm:$0x1f]
    %v10762 = vld [vmem:[%s10717 + $0x160] sm:$0x1f]
    %v10763 = vld [vmem:[%s10717 + $0x168] sm:$0x1f]
    %v10764 = vld [vmem:[%s10717 + $0x170] sm:$0x1f]
    %v10765 = vld [vmem:[%s10717 + $0x178] sm:$0x1f]
    %v10767 = vsel %vm1767, %v10669, 0
    %v10770 = vsel %vm1767, %v10718, 0
    %10772 = vmatpush.xpose.msra.mxu0 0.0
    %10773 = vmatpush.xpose.msra.mxu0 0.0
    %10774 = vmatpush.xpose.msra.mxu0 0.0
    %10775 = vmatpush.xpose.msra.mxu0 0.0
    %10776 = vmatpush.xpose.msra.mxu0 0.0
    %10777 = vmatpush.xpose.msra.mxu0 0.0
    %10778 = vmatpush.xpose.msra.mxu0 0.0
    %10779 = vmatpush.xpose.msra.mxu0 0.0
    %10780 = vmatpush.xpose.msra.mxu0 0.0
    %10781 = vmatpush.xpose.msra.mxu0 0.0
    %10782 = vmatpush.xpose.msra.mxu0 0.0
    %10783 = vmatpush.xpose.msra.mxu0 0.0
    %10784 = vmatpush.xpose.msra.mxu0 0.0
    %10785 = vmatpush.xpose.msra.mxu0 0.0
    %10786 = vmatpush.xpose.msra.mxu0 0.0
    %10787 = vmatpush.xpose.msra.mxu0 %v10770
    %10788 = vmatmul.f32.gmra.mxu0 %v10767
    %v10789 = vpop.f32.mrf.mxu0
    %v10790 = vadd.f32 0.0, %v10789
    %10791 = vdwg.mxu0
    %v10793 = vsel %vm1767, %v10670, 0
    %v10796 = vsel %vm1767, %v10719, 0
    %10798 = vmatpush.xpose.msra.mxu0 0.0
    %10799 = vmatpush.xpose.msra.mxu0 0.0
    %10800 = vmatpush.xpose.msra.mxu0 0.0
    %10801 = vmatpush.xpose.msra.mxu0 0.0
    %10802 = vmatpush.xpose.msra.mxu0 0.0
    %10803 = vmatpush.xpose.msra.mxu0 0.0
    %10804 = vmatpush.xpose.msra.mxu0 0.0
    %10805 = vmatpush.xpose.msra.mxu0 0.0
    %10806 = vmatpush.xpose.msra.mxu0 0.0
    %10807 = vmatpush.xpose.msra.mxu0 0.0
    %10808 = vmatpush.xpose.msra.mxu0 0.0
    %10809 = vmatpush.xpose.msra.mxu0 0.0
    %10810 = vmatpush.xpose.msra.mxu0 0.0
    %10811 = vmatpush.xpose.msra.mxu0 0.0
    %10812 = vmatpush.xpose.msra.mxu0 0.0
    %10813 = vmatpush.xpose.msra.mxu0 %v10796
    %10814 = vmatmul.f32.gmra.mxu0 %v10793
    %v10815 = vpop.f32.mrf.mxu0
    %v10816 = vadd.f32 0.0, %v10815
    %10817 = vdwg.mxu0
    %v10819 = vsel %vm1767, %v10671, 0
    %v10822 = vsel %vm1767, %v10720, 0
    %10824 = vmatpush.xpose.msra.mxu0 0.0
    %10825 = vmatpush.xpose.msra.mxu0 0.0
    %10826 = vmatpush.xpose.msra.mxu0 0.0
    %10827 = vmatpush.xpose.msra.mxu0 0.0
    %10828 = vmatpush.xpose.msra.mxu0 0.0
    %10829 = vmatpush.xpose.msra.mxu0 0.0
    %10830 = vmatpush.xpose.msra.mxu0 0.0
    %10831 = vmatpush.xpose.msra.mxu0 0.0
    %10832 = vmatpush.xpose.msra.mxu0 0.0
    %10833 = vmatpush.xpose.msra.mxu0 0.0
    %10834 = vmatpush.xpose.msra.mxu0 0.0
    %10835 = vmatpush.xpose.msra.mxu0 0.0
    %10836 = vmatpush.xpose.msra.mxu0 0.0
    %10837 = vmatpush.xpose.msra.mxu0 0.0
    %10838 = vmatpush.xpose.msra.mxu0 0.0
    %10839 = vmatpush.xpose.msra.mxu0 %v10822
    %10840 = vmatmul.f32.gmra.mxu0 %v10819
    %v10841 = vpop.f32.mrf.mxu0
    %v10842 = vadd.f32 0.0, %v10841
    %10843 = vdwg.mxu0
    %v10845 = vsel %vm1767, %v10672, 0
    %v10848 = vsel %vm1767, %v10721, 0
    %10850 = vmatpush.xpose.msra.mxu0 0.0
    %10851 = vmatpush.xpose.msra.mxu0 0.0
    %10852 = vmatpush.xpose.msra.mxu0 0.0
    %10853 = vmatpush.xpose.msra.mxu0 0.0
    %10854 = vmatpush.xpose.msra.mxu0 0.0
    %10855 = vmatpush.xpose.msra.mxu0 0.0
    %10856 = vmatpush.xpose.msra.mxu0 0.0
    %10857 = vmatpush.xpose.msra.mxu0 0.0
    %10858 = vmatpush.xpose.msra.mxu0 0.0
    %10859 = vmatpush.xpose.msra.mxu0 0.0
    %10860 = vmatpush.xpose.msra.mxu0 0.0
    %10861 = vmatpush.xpose.msra.mxu0 0.0
    %10862 = vmatpush.xpose.msra.mxu0 0.0
    %10863 = vmatpush.xpose.msra.mxu0 0.0
    %10864 = vmatpush.xpose.msra.mxu0 0.0
    %10865 = vmatpush.xpose.msra.mxu0 %v10848
    %10866 = vmatmul.f32.gmra.mxu0 %v10845
    %v10867 = vpop.f32.mrf.mxu0
    %v10868 = vadd.f32 0.0, %v10867
    %10869 = vdwg.mxu0
    %v10871 = vsel %vm1767, %v10673, 0
    %v10874 = vsel %vm1767, %v10722, 0
    %10876 = vmatpush.xpose.msra.mxu0 0.0
    %10877 = vmatpush.xpose.msra.mxu0 0.0
    %10878 = vmatpush.xpose.msra.mxu0 0.0
    %10879 = vmatpush.xpose.msra.mxu0 0.0
    %10880 = vmatpush.xpose.msra.mxu0 0.0
    %10881 = vmatpush.xpose.msra.mxu0 0.0
    %10882 = vmatpush.xpose.msra.mxu0 0.0
    %10883 = vmatpush.xpose.msra.mxu0 0.0
    %10884 = vmatpush.xpose.msra.mxu0 0.0
    %10885 = vmatpush.xpose.msra.mxu0 0.0
    %10886 = vmatpush.xpose.msra.mxu0 0.0
    %10887 = vmatpush.xpose.msra.mxu0 0.0
    %10888 = vmatpush.xpose.msra.mxu0 0.0
    %10889 = vmatpush.xpose.msra.mxu0 0.0
    %10890 = vmatpush.xpose.msra.mxu0 0.0
    %10891 = vmatpush.xpose.msra.mxu0 %v10874
    %10892 = vmatmul.f32.gmra.mxu0 %v10871
    %v10893 = vpop.f32.mrf.mxu0
    %v10894 = vadd.f32 0.0, %v10893
    %10895 = vdwg.mxu0
    %v10897 = vsel %vm1767, %v10674, 0
    %v10900 = vsel %vm1767, %v10723, 0
    %10902 = vmatpush.xpose.msra.mxu0 0.0
    %10903 = vmatpush.xpose.msra.mxu0 0.0
    %10904 = vmatpush.xpose.msra.mxu0 0.0
    %10905 = vmatpush.xpose.msra.mxu0 0.0
    %10906 = vmatpush.xpose.msra.mxu0 0.0
    %10907 = vmatpush.xpose.msra.mxu0 0.0
    %10908 = vmatpush.xpose.msra.mxu0 0.0
    %10909 = vmatpush.xpose.msra.mxu0 0.0
    %10910 = vmatpush.xpose.msra.mxu0 0.0
    %10911 = vmatpush.xpose.msra.mxu0 0.0
    %10912 = vmatpush.xpose.msra.mxu0 0.0
    %10913 = vmatpush.xpose.msra.mxu0 0.0
    %10914 = vmatpush.xpose.msra.mxu0 0.0
    %10915 = vmatpush.xpose.msra.mxu0 0.0
    %10916 = vmatpush.xpose.msra.mxu0 0.0
    %10917 = vmatpush.xpose.msra.mxu0 %v10900
    %10918 = vmatmul.f32.gmra.mxu0 %v10897
    %v10919 = vpop.f32.mrf.mxu0
    %v10920 = vadd.f32 0.0, %v10919
    %10921 = vdwg.mxu0
    %v10923 = vsel %vm1767, %v10675, 0
    %v10926 = vsel %vm1767, %v10724, 0
    %10928 = vmatpush.xpose.msra.mxu0 0.0
    %10929 = vmatpush.xpose.msra.mxu0 0.0
    %10930 = vmatpush.xpose.msra.mxu0 0.0
    %10931 = vmatpush.xpose.msra.mxu0 0.0
    %10932 = vmatpush.xpose.msra.mxu0 0.0
    %10933 = vmatpush.xpose.msra.mxu0 0.0
    %10934 = vmatpush.xpose.msra.mxu0 0.0
    %10935 = vmatpush.xpose.msra.mxu0 0.0
    %10936 = vmatpush.xpose.msra.mxu0 0.0
    %10937 = vmatpush.xpose.msra.mxu0 0.0
    %10938 = vmatpush.xpose.msra.mxu0 0.0
    %10939 = vmatpush.xpose.msra.mxu0 0.0
    %10940 = vmatpush.xpose.msra.mxu0 0.0
    %10941 = vmatpush.xpose.msra.mxu0 0.0
    %10942 = vmatpush.xpose.msra.mxu0 0.0
    %10943 = vmatpush.xpose.msra.mxu0 %v10926
    %10944 = vmatmul.f32.gmra.mxu0 %v10923
    %v10945 = vpop.f32.mrf.mxu0
    %v10946 = vadd.f32 0.0, %v10945
    %10947 = vdwg.mxu0
    %v10949 = vsel %vm1767, %v10676, 0
    %v10952 = vsel %vm1767, %v10725, 0
    %10954 = vmatpush.xpose.msra.mxu0 0.0
    %10955 = vmatpush.xpose.msra.mxu0 0.0
    %10956 = vmatpush.xpose.msra.mxu0 0.0
    %10957 = vmatpush.xpose.msra.mxu0 0.0
    %10958 = vmatpush.xpose.msra.mxu0 0.0
    %10959 = vmatpush.xpose.msra.mxu0 0.0
    %10960 = vmatpush.xpose.msra.mxu0 0.0
    %10961 = vmatpush.xpose.msra.mxu0 0.0
    %10962 = vmatpush.xpose.msra.mxu0 0.0
    %10963 = vmatpush.xpose.msra.mxu0 0.0
    %10964 = vmatpush.xpose.msra.mxu0 0.0
    %10965 = vmatpush.xpose.msra.mxu0 0.0
    %10966 = vmatpush.xpose.msra.mxu0 0.0
    %10967 = vmatpush.xpose.msra.mxu0 0.0
    %10968 = vmatpush.xpose.msra.mxu0 0.0
    %10969 = vmatpush.xpose.msra.mxu0 %v10952
    %10970 = vmatmul.f32.gmra.mxu0 %v10949
    %v10971 = vpop.f32.mrf.mxu0
    %v10972 = vadd.f32 0.0, %v10971
    %10973 = vdwg.mxu0
    %v10975 = vsel %vm1767, %v10677, 0
    %v10978 = vsel %vm1767, %v10726, 0
    %10980 = vmatpush.xpose.msra.mxu0 0.0
    %10981 = vmatpush.xpose.msra.mxu0 0.0
    %10982 = vmatpush.xpose.msra.mxu0 0.0
    %10983 = vmatpush.xpose.msra.mxu0 0.0
    %10984 = vmatpush.xpose.msra.mxu0 0.0
    %10985 = vmatpush.xpose.msra.mxu0 0.0
    %10986 = vmatpush.xpose.msra.mxu0 0.0
    %10987 = vmatpush.xpose.msra.mxu0 0.0
    %10988 = vmatpush.xpose.msra.mxu0 0.0
    %10989 = vmatpush.xpose.msra.mxu0 0.0
    %10990 = vmatpush.xpose.msra.mxu0 0.0
    %10991 = vmatpush.xpose.msra.mxu0 0.0
    %10992 = vmatpush.xpose.msra.mxu0 0.0
    %10993 = vmatpush.xpose.msra.mxu0 0.0
    %10994 = vmatpush.xpose.msra.mxu0 0.0
    %10995 = vmatpush.xpose.msra.mxu0 %v10978
    %10996 = vmatmul.f32.gmra.mxu0 %v10975
    %v10997 = vpop.f32.mrf.mxu0
    %v10998 = vadd.f32 0.0, %v10997
    %10999 = vdwg.mxu0
    %v11001 = vsel %vm1767, %v10678, 0
    %v11004 = vsel %vm1767, %v10727, 0
    %11006 = vmatpush.xpose.msra.mxu0 0.0
    %11007 = vmatpush.xpose.msra.mxu0 0.0
    %11008 = vmatpush.xpose.msra.mxu0 0.0
    %11009 = vmatpush.xpose.msra.mxu0 0.0
    %11010 = vmatpush.xpose.msra.mxu0 0.0
    %11011 = vmatpush.xpose.msra.mxu0 0.0
    %11012 = vmatpush.xpose.msra.mxu0 0.0
    %11013 = vmatpush.xpose.msra.mxu0 0.0
    %11014 = vmatpush.xpose.msra.mxu0 0.0
    %11015 = vmatpush.xpose.msra.mxu0 0.0
    %11016 = vmatpush.xpose.msra.mxu0 0.0
    %11017 = vmatpush.xpose.msra.mxu0 0.0
    %11018 = vmatpush.xpose.msra.mxu0 0.0
    %11019 = vmatpush.xpose.msra.mxu0 0.0
    %11020 = vmatpush.xpose.msra.mxu0 0.0
    %11021 = vmatpush.xpose.msra.mxu0 %v11004
    %11022 = vmatmul.f32.gmra.mxu0 %v11001
    %v11023 = vpop.f32.mrf.mxu0
    %v11024 = vadd.f32 0.0, %v11023
    %11025 = vdwg.mxu0
    %v11027 = vsel %vm1767, %v10679, 0
    %v11030 = vsel %vm1767, %v10728, 0
    %11032 = vmatpush.xpose.msra.mxu0 0.0
    %11033 = vmatpush.xpose.msra.mxu0 0.0
    %11034 = vmatpush.xpose.msra.mxu0 0.0
    %11035 = vmatpush.xpose.msra.mxu0 0.0
    %11036 = vmatpush.xpose.msra.mxu0 0.0
    %11037 = vmatpush.xpose.msra.mxu0 0.0
    %11038 = vmatpush.xpose.msra.mxu0 0.0
    %11039 = vmatpush.xpose.msra.mxu0 0.0
    %11040 = vmatpush.xpose.msra.mxu0 0.0
    %11041 = vmatpush.xpose.msra.mxu0 0.0
    %11042 = vmatpush.xpose.msra.mxu0 0.0
    %11043 = vmatpush.xpose.msra.mxu0 0.0
    %11044 = vmatpush.xpose.msra.mxu0 0.0
    %11045 = vmatpush.xpose.msra.mxu0 0.0
    %11046 = vmatpush.xpose.msra.mxu0 0.0
    %11047 = vmatpush.xpose.msra.mxu0 %v11030
    %11048 = vmatmul.f32.gmra.mxu0 %v11027
    %v11049 = vpop.f32.mrf.mxu0
    %v11050 = vadd.f32 0.0, %v11049
    %11051 = vdwg.mxu0
    %v11053 = vsel %vm1767, %v10680, 0
    %v11056 = vsel %vm1767, %v10729, 0
    %11058 = vmatpush.xpose.msra.mxu0 0.0
    %11059 = vmatpush.xpose.msra.mxu0 0.0
    %11060 = vmatpush.xpose.msra.mxu0 0.0
    %11061 = vmatpush.xpose.msra.mxu0 0.0
    %11062 = vmatpush.xpose.msra.mxu0 0.0
    %11063 = vmatpush.xpose.msra.mxu0 0.0
    %11064 = vmatpush.xpose.msra.mxu0 0.0
    %11065 = vmatpush.xpose.msra.mxu0 0.0
    %11066 = vmatpush.xpose.msra.mxu0 0.0
    %11067 = vmatpush.xpose.msra.mxu0 0.0
    %11068 = vmatpush.xpose.msra.mxu0 0.0
    %11069 = vmatpush.xpose.msra.mxu0 0.0
    %11070 = vmatpush.xpose.msra.mxu0 0.0
    %11071 = vmatpush.xpose.msra.mxu0 0.0
    %11072 = vmatpush.xpose.msra.mxu0 0.0
    %11073 = vmatpush.xpose.msra.mxu0 %v11056
    %11074 = vmatmul.f32.gmra.mxu0 %v11053
    %v11075 = vpop.f32.mrf.mxu0
    %v11076 = vadd.f32 0.0, %v11075
    %11077 = vdwg.mxu0
    %v11079 = vsel %vm1767, %v10681, 0
    %v11082 = vsel %vm1767, %v10730, 0
    %11084 = vmatpush.xpose.msra.mxu0 0.0
    %11085 = vmatpush.xpose.msra.mxu0 0.0
    %11086 = vmatpush.xpose.msra.mxu0 0.0
    %11087 = vmatpush.xpose.msra.mxu0 0.0
    %11088 = vmatpush.xpose.msra.mxu0 0.0
    %11089 = vmatpush.xpose.msra.mxu0 0.0
    %11090 = vmatpush.xpose.msra.mxu0 0.0
    %11091 = vmatpush.xpose.msra.mxu0 0.0
    %11092 = vmatpush.xpose.msra.mxu0 0.0
    %11093 = vmatpush.xpose.msra.mxu0 0.0
    %11094 = vmatpush.xpose.msra.mxu0 0.0
    %11095 = vmatpush.xpose.msra.mxu0 0.0
    %11096 = vmatpush.xpose.msra.mxu0 0.0
    %11097 = vmatpush.xpose.msra.mxu0 0.0
    %11098 = vmatpush.xpose.msra.mxu0 0.0
    %11099 = vmatpush.xpose.msra.mxu0 %v11082
    %11100 = vmatmul.f32.gmra.mxu0 %v11079
    %v11101 = vpop.f32.mrf.mxu0
    %v11102 = vadd.f32 0.0, %v11101
    %11103 = vdwg.mxu0
    %v11105 = vsel %vm1767, %v10682, 0
    %v11108 = vsel %vm1767, %v10731, 0
    %11110 = vmatpush.xpose.msra.mxu0 0.0
    %11111 = vmatpush.xpose.msra.mxu0 0.0
    %11112 = vmatpush.xpose.msra.mxu0 0.0
    %11113 = vmatpush.xpose.msra.mxu0 0.0
    %11114 = vmatpush.xpose.msra.mxu0 0.0
    %11115 = vmatpush.xpose.msra.mxu0 0.0
    %11116 = vmatpush.xpose.msra.mxu0 0.0
    %11117 = vmatpush.xpose.msra.mxu0 0.0
    %11118 = vmatpush.xpose.msra.mxu0 0.0
    %11119 = vmatpush.xpose.msra.mxu0 0.0
    %11120 = vmatpush.xpose.msra.mxu0 0.0
    %11121 = vmatpush.xpose.msra.mxu0 0.0
    %11122 = vmatpush.xpose.msra.mxu0 0.0
    %11123 = vmatpush.xpose.msra.mxu0 0.0
    %11124 = vmatpush.xpose.msra.mxu0 0.0
    %11125 = vmatpush.xpose.msra.mxu0 %v11108
    %11126 = vmatmul.f32.gmra.mxu0 %v11105
    %v11127 = vpop.f32.mrf.mxu0
    %v11128 = vadd.f32 0.0, %v11127
    %11129 = vdwg.mxu0
    %v11131 = vsel %vm1767, %v10683, 0
    %v11134 = vsel %vm1767, %v10732, 0
    %11136 = vmatpush.xpose.msra.mxu0 0.0
    %11137 = vmatpush.xpose.msra.mxu0 0.0
    %11138 = vmatpush.xpose.msra.mxu0 0.0
    %11139 = vmatpush.xpose.msra.mxu0 0.0
    %11140 = vmatpush.xpose.msra.mxu0 0.0
    %11141 = vmatpush.xpose.msra.mxu0 0.0
    %11142 = vmatpush.xpose.msra.mxu0 0.0
    %11143 = vmatpush.xpose.msra.mxu0 0.0
    %11144 = vmatpush.xpose.msra.mxu0 0.0
    %11145 = vmatpush.xpose.msra.mxu0 0.0
    %11146 = vmatpush.xpose.msra.mxu0 0.0
    %11147 = vmatpush.xpose.msra.mxu0 0.0
    %11148 = vmatpush.xpose.msra.mxu0 0.0
    %11149 = vmatpush.xpose.msra.mxu0 0.0
    %11150 = vmatpush.xpose.msra.mxu0 0.0
    %11151 = vmatpush.xpose.msra.mxu0 %v11134
    %11152 = vmatmul.f32.gmra.mxu0 %v11131
    %v11153 = vpop.f32.mrf.mxu0
    %v11154 = vadd.f32 0.0, %v11153
    %11155 = vdwg.mxu0
    %v11157 = vsel %vm1767, %v10684, 0
    %v11160 = vsel %vm1767, %v10733, 0
    %11162 = vmatpush.xpose.msra.mxu0 0.0
    %11163 = vmatpush.xpose.msra.mxu0 0.0
    %11164 = vmatpush.xpose.msra.mxu0 0.0
    %11165 = vmatpush.xpose.msra.mxu0 0.0
    %11166 = vmatpush.xpose.msra.mxu0 0.0
    %11167 = vmatpush.xpose.msra.mxu0 0.0
    %11168 = vmatpush.xpose.msra.mxu0 0.0
    %11169 = vmatpush.xpose.msra.mxu0 0.0
    %11170 = vmatpush.xpose.msra.mxu0 0.0
    %11171 = vmatpush.xpose.msra.mxu0 0.0
    %11172 = vmatpush.xpose.msra.mxu0 0.0
    %11173 = vmatpush.xpose.msra.mxu0 0.0
    %11174 = vmatpush.xpose.msra.mxu0 0.0
    %11175 = vmatpush.xpose.msra.mxu0 0.0
    %11176 = vmatpush.xpose.msra.mxu0 0.0
    %11177 = vmatpush.xpose.msra.mxu0 %v11160
    %11178 = vmatmul.f32.gmra.mxu0 %v11157
    %v11179 = vpop.f32.mrf.mxu0
    %v11180 = vadd.f32 0.0, %v11179
    %11181 = vdwg.mxu0
    %v11183 = vsel %vm1767, %v10685, 0
    %v11186 = vsel %vm1767, %v10734, 0
    %11188 = vmatpush.xpose.msra.mxu0 0.0
    %11189 = vmatpush.xpose.msra.mxu0 0.0
    %11190 = vmatpush.xpose.msra.mxu0 0.0
    %11191 = vmatpush.xpose.msra.mxu0 0.0
    %11192 = vmatpush.xpose.msra.mxu0 0.0
    %11193 = vmatpush.xpose.msra.mxu0 0.0
    %11194 = vmatpush.xpose.msra.mxu0 0.0
    %11195 = vmatpush.xpose.msra.mxu0 0.0
    %11196 = vmatpush.xpose.msra.mxu0 0.0
    %11197 = vmatpush.xpose.msra.mxu0 0.0
    %11198 = vmatpush.xpose.msra.mxu0 0.0
    %11199 = vmatpush.xpose.msra.mxu0 0.0
    %11200 = vmatpush.xpose.msra.mxu0 0.0
    %11201 = vmatpush.xpose.msra.mxu0 0.0
    %11202 = vmatpush.xpose.msra.mxu0 0.0
    %11203 = vmatpush.xpose.msra.mxu0 %v11186
    %11204 = vmatmul.f32.gmra.mxu0 %v11183
    %v11205 = vpop.f32.mrf.mxu0
    %v11206 = vadd.f32 0.0, %v11205
    %11207 = vdwg.mxu0
    %v11209 = vsel %vm1767, %v10686, 0
    %v11212 = vsel %vm1767, %v10735, 0
    %11214 = vmatpush.xpose.msra.mxu0 0.0
    %11215 = vmatpush.xpose.msra.mxu0 0.0
    %11216 = vmatpush.xpose.msra.mxu0 0.0
    %11217 = vmatpush.xpose.msra.mxu0 0.0
    %11218 = vmatpush.xpose.msra.mxu0 0.0
    %11219 = vmatpush.xpose.msra.mxu0 0.0
    %11220 = vmatpush.xpose.msra.mxu0 0.0
    %11221 = vmatpush.xpose.msra.mxu0 0.0
    %11222 = vmatpush.xpose.msra.mxu0 0.0
    %11223 = vmatpush.xpose.msra.mxu0 0.0
    %11224 = vmatpush.xpose.msra.mxu0 0.0
    %11225 = vmatpush.xpose.msra.mxu0 0.0
    %11226 = vmatpush.xpose.msra.mxu0 0.0
    %11227 = vmatpush.xpose.msra.mxu0 0.0
    %11228 = vmatpush.xpose.msra.mxu0 0.0
    %11229 = vmatpush.xpose.msra.mxu0 %v11212
    %11230 = vmatmul.f32.gmra.mxu0 %v11209
    %v11231 = vpop.f32.mrf.mxu0
    %v11232 = vadd.f32 0.0, %v11231
    %11233 = vdwg.mxu0
    %v11235 = vsel %vm1767, %v10687, 0
    %v11238 = vsel %vm1767, %v10736, 0
    %11240 = vmatpush.xpose.msra.mxu0 0.0
    %11241 = vmatpush.xpose.msra.mxu0 0.0
    %11242 = vmatpush.xpose.msra.mxu0 0.0
    %11243 = vmatpush.xpose.msra.mxu0 0.0
    %11244 = vmatpush.xpose.msra.mxu0 0.0
    %11245 = vmatpush.xpose.msra.mxu0 0.0
    %11246 = vmatpush.xpose.msra.mxu0 0.0
    %11247 = vmatpush.xpose.msra.mxu0 0.0
    %11248 = vmatpush.xpose.msra.mxu0 0.0
    %11249 = vmatpush.xpose.msra.mxu0 0.0
    %11250 = vmatpush.xpose.msra.mxu0 0.0
    %11251 = vmatpush.xpose.msra.mxu0 0.0
    %11252 = vmatpush.xpose.msra.mxu0 0.0
    %11253 = vmatpush.xpose.msra.mxu0 0.0
    %11254 = vmatpush.xpose.msra.mxu0 0.0
    %11255 = vmatpush.xpose.msra.mxu0 %v11238
    %11256 = vmatmul.f32.gmra.mxu0 %v11235
    %v11257 = vpop.f32.mrf.mxu0
    %v11258 = vadd.f32 0.0, %v11257
    %11259 = vdwg.mxu0
    %v11261 = vsel %vm1767, %v10688, 0
    %v11264 = vsel %vm1767, %v10737, 0
    %11266 = vmatpush.xpose.msra.mxu0 0.0
    %11267 = vmatpush.xpose.msra.mxu0 0.0
    %11268 = vmatpush.xpose.msra.mxu0 0.0
    %11269 = vmatpush.xpose.msra.mxu0 0.0
    %11270 = vmatpush.xpose.msra.mxu0 0.0
    %11271 = vmatpush.xpose.msra.mxu0 0.0
    %11272 = vmatpush.xpose.msra.mxu0 0.0
    %11273 = vmatpush.xpose.msra.mxu0 0.0
    %11274 = vmatpush.xpose.msra.mxu0 0.0
    %11275 = vmatpush.xpose.msra.mxu0 0.0
    %11276 = vmatpush.xpose.msra.mxu0 0.0
    %11277 = vmatpush.xpose.msra.mxu0 0.0
    %11278 = vmatpush.xpose.msra.mxu0 0.0
    %11279 = vmatpush.xpose.msra.mxu0 0.0
    %11280 = vmatpush.xpose.msra.mxu0 0.0
    %11281 = vmatpush.xpose.msra.mxu0 %v11264
    %11282 = vmatmul.f32.gmra.mxu0 %v11261
    %v11283 = vpop.f32.mrf.mxu0
    %v11284 = vadd.f32 0.0, %v11283
    %11285 = vdwg.mxu0
    %v11287 = vsel %vm1767, %v10689, 0
    %v11290 = vsel %vm1767, %v10738, 0
    %11292 = vmatpush.xpose.msra.mxu0 0.0
    %11293 = vmatpush.xpose.msra.mxu0 0.0
    %11294 = vmatpush.xpose.msra.mxu0 0.0
    %11295 = vmatpush.xpose.msra.mxu0 0.0
    %11296 = vmatpush.xpose.msra.mxu0 0.0
    %11297 = vmatpush.xpose.msra.mxu0 0.0
    %11298 = vmatpush.xpose.msra.mxu0 0.0
    %11299 = vmatpush.xpose.msra.mxu0 0.0
    %11300 = vmatpush.xpose.msra.mxu0 0.0
    %11301 = vmatpush.xpose.msra.mxu0 0.0
    %11302 = vmatpush.xpose.msra.mxu0 0.0
    %11303 = vmatpush.xpose.msra.mxu0 0.0
    %11304 = vmatpush.xpose.msra.mxu0 0.0
    %11305 = vmatpush.xpose.msra.mxu0 0.0
    %11306 = vmatpush.xpose.msra.mxu0 0.0
    %11307 = vmatpush.xpose.msra.mxu0 %v11290
    %11308 = vmatmul.f32.gmra.mxu0 %v11287
    %v11309 = vpop.f32.mrf.mxu0
    %v11310 = vadd.f32 0.0, %v11309
    %11311 = vdwg.mxu0
    %v11313 = vsel %vm1767, %v10690, 0
    %v11316 = vsel %vm1767, %v10739, 0
    %11318 = vmatpush.xpose.msra.mxu0 0.0
    %11319 = vmatpush.xpose.msra.mxu0 0.0
    %11320 = vmatpush.xpose.msra.mxu0 0.0
    %11321 = vmatpush.xpose.msra.mxu0 0.0
    %11322 = vmatpush.xpose.msra.mxu0 0.0
    %11323 = vmatpush.xpose.msra.mxu0 0.0
    %11324 = vmatpush.xpose.msra.mxu0 0.0
    %11325 = vmatpush.xpose.msra.mxu0 0.0
    %11326 = vmatpush.xpose.msra.mxu0 0.0
    %11327 = vmatpush.xpose.msra.mxu0 0.0
    %11328 = vmatpush.xpose.msra.mxu0 0.0
    %11329 = vmatpush.xpose.msra.mxu0 0.0
    %11330 = vmatpush.xpose.msra.mxu0 0.0
    %11331 = vmatpush.xpose.msra.mxu0 0.0
    %11332 = vmatpush.xpose.msra.mxu0 0.0
    %11333 = vmatpush.xpose.msra.mxu0 %v11316
    %11334 = vmatmul.f32.gmra.mxu0 %v11313
    %v11335 = vpop.f32.mrf.mxu0
    %v11336 = vadd.f32 0.0, %v11335
    %11337 = vdwg.mxu0
    %v11339 = vsel %vm1767, %v10691, 0
    %v11342 = vsel %vm1767, %v10740, 0
    %11344 = vmatpush.xpose.msra.mxu0 0.0
    %11345 = vmatpush.xpose.msra.mxu0 0.0
    %11346 = vmatpush.xpose.msra.mxu0 0.0
    %11347 = vmatpush.xpose.msra.mxu0 0.0
    %11348 = vmatpush.xpose.msra.mxu0 0.0
    %11349 = vmatpush.xpose.msra.mxu0 0.0
    %11350 = vmatpush.xpose.msra.mxu0 0.0
    %11351 = vmatpush.xpose.msra.mxu0 0.0
    %11352 = vmatpush.xpose.msra.mxu0 0.0
    %11353 = vmatpush.xpose.msra.mxu0 0.0
    %11354 = vmatpush.xpose.msra.mxu0 0.0
    %11355 = vmatpush.xpose.msra.mxu0 0.0
    %11356 = vmatpush.xpose.msra.mxu0 0.0
    %11357 = vmatpush.xpose.msra.mxu0 0.0
    %11358 = vmatpush.xpose.msra.mxu0 0.0
    %11359 = vmatpush.xpose.msra.mxu0 %v11342
    %11360 = vmatmul.f32.gmra.mxu0 %v11339
    %v11361 = vpop.f32.mrf.mxu0
    %v11362 = vadd.f32 0.0, %v11361
    %11363 = vdwg.mxu0
    %v11365 = vsel %vm1767, %v10692, 0
    %v11368 = vsel %vm1767, %v10741, 0
    %11370 = vmatpush.xpose.msra.mxu0 0.0
    %11371 = vmatpush.xpose.msra.mxu0 0.0
    %11372 = vmatpush.xpose.msra.mxu0 0.0
    %11373 = vmatpush.xpose.msra.mxu0 0.0
    %11374 = vmatpush.xpose.msra.mxu0 0.0
    %11375 = vmatpush.xpose.msra.mxu0 0.0
    %11376 = vmatpush.xpose.msra.mxu0 0.0
    %11377 = vmatpush.xpose.msra.mxu0 0.0
    %11378 = vmatpush.xpose.msra.mxu0 0.0
    %11379 = vmatpush.xpose.msra.mxu0 0.0
    %11380 = vmatpush.xpose.msra.mxu0 0.0
    %11381 = vmatpush.xpose.msra.mxu0 0.0
    %11382 = vmatpush.xpose.msra.mxu0 0.0
    %11383 = vmatpush.xpose.msra.mxu0 0.0
    %11384 = vmatpush.xpose.msra.mxu0 0.0
    %11385 = vmatpush.xpose.msra.mxu0 %v11368
    %11386 = vmatmul.f32.gmra.mxu0 %v11365
    %v11387 = vpop.f32.mrf.mxu0
    %v11388 = vadd.f32 0.0, %v11387
    %11389 = vdwg.mxu0
    %v11391 = vsel %vm1767, %v10693, 0
    %v11394 = vsel %vm1767, %v10742, 0
    %11396 = vmatpush.xpose.msra.mxu0 0.0
    %11397 = vmatpush.xpose.msra.mxu0 0.0
    %11398 = vmatpush.xpose.msra.mxu0 0.0
    %11399 = vmatpush.xpose.msra.mxu0 0.0
    %11400 = vmatpush.xpose.msra.mxu0 0.0
    %11401 = vmatpush.xpose.msra.mxu0 0.0
    %11402 = vmatpush.xpose.msra.mxu0 0.0
    %11403 = vmatpush.xpose.msra.mxu0 0.0
    %11404 = vmatpush.xpose.msra.mxu0 0.0
    %11405 = vmatpush.xpose.msra.mxu0 0.0
    %11406 = vmatpush.xpose.msra.mxu0 0.0
    %11407 = vmatpush.xpose.msra.mxu0 0.0
    %11408 = vmatpush.xpose.msra.mxu0 0.0
    %11409 = vmatpush.xpose.msra.mxu0 0.0
    %11410 = vmatpush.xpose.msra.mxu0 0.0
    %11411 = vmatpush.xpose.msra.mxu0 %v11394
    %11412 = vmatmul.f32.gmra.mxu0 %v11391
    %v11413 = vpop.f32.mrf.mxu0
    %v11414 = vadd.f32 0.0, %v11413
    %11415 = vdwg.mxu0
    %v11417 = vsel %vm1767, %v10694, 0
    %v11420 = vsel %vm1767, %v10743, 0
    %11422 = vmatpush.xpose.msra.mxu0 0.0
    %11423 = vmatpush.xpose.msra.mxu0 0.0
    %11424 = vmatpush.xpose.msra.mxu0 0.0
    %11425 = vmatpush.xpose.msra.mxu0 0.0
    %11426 = vmatpush.xpose.msra.mxu0 0.0
    %11427 = vmatpush.xpose.msra.mxu0 0.0
    %11428 = vmatpush.xpose.msra.mxu0 0.0
    %11429 = vmatpush.xpose.msra.mxu0 0.0
    %11430 = vmatpush.xpose.msra.mxu0 0.0
    %11431 = vmatpush.xpose.msra.mxu0 0.0
    %11432 = vmatpush.xpose.msra.mxu0 0.0
    %11433 = vmatpush.xpose.msra.mxu0 0.0
    %11434 = vmatpush.xpose.msra.mxu0 0.0
    %11435 = vmatpush.xpose.msra.mxu0 0.0
    %11436 = vmatpush.xpose.msra.mxu0 0.0
    %11437 = vmatpush.xpose.msra.mxu0 %v11420
    %11438 = vmatmul.f32.gmra.mxu0 %v11417
    %v11439 = vpop.f32.mrf.mxu0
    %v11440 = vadd.f32 0.0, %v11439
    %11441 = vdwg.mxu0
    %v11443 = vsel %vm1767, %v10695, 0
    %v11446 = vsel %vm1767, %v10744, 0
    %11448 = vmatpush.xpose.msra.mxu0 0.0
    %11449 = vmatpush.xpose.msra.mxu0 0.0
    %11450 = vmatpush.xpose.msra.mxu0 0.0
    %11451 = vmatpush.xpose.msra.mxu0 0.0
    %11452 = vmatpush.xpose.msra.mxu0 0.0
    %11453 = vmatpush.xpose.msra.mxu0 0.0
    %11454 = vmatpush.xpose.msra.mxu0 0.0
    %11455 = vmatpush.xpose.msra.mxu0 0.0
    %11456 = vmatpush.xpose.msra.mxu0 0.0
    %11457 = vmatpush.xpose.msra.mxu0 0.0
    %11458 = vmatpush.xpose.msra.mxu0 0.0
    %11459 = vmatpush.xpose.msra.mxu0 0.0
    %11460 = vmatpush.xpose.msra.mxu0 0.0
    %11461 = vmatpush.xpose.msra.mxu0 0.0
    %11462 = vmatpush.xpose.msra.mxu0 0.0
    %11463 = vmatpush.xpose.msra.mxu0 %v11446
    %11464 = vmatmul.f32.gmra.mxu0 %v11443
    %v11465 = vpop.f32.mrf.mxu0
    %v11466 = vadd.f32 0.0, %v11465
    %11467 = vdwg.mxu0
    %v11469 = vsel %vm1767, %v10696, 0
    %v11472 = vsel %vm1767, %v10745, 0
    %11474 = vmatpush.xpose.msra.mxu0 0.0
    %11475 = vmatpush.xpose.msra.mxu0 0.0
    %11476 = vmatpush.xpose.msra.mxu0 0.0
    %11477 = vmatpush.xpose.msra.mxu0 0.0
    %11478 = vmatpush.xpose.msra.mxu0 0.0
    %11479 = vmatpush.xpose.msra.mxu0 0.0
    %11480 = vmatpush.xpose.msra.mxu0 0.0
    %11481 = vmatpush.xpose.msra.mxu0 0.0
    %11482 = vmatpush.xpose.msra.mxu0 0.0
    %11483 = vmatpush.xpose.msra.mxu0 0.0
    %11484 = vmatpush.xpose.msra.mxu0 0.0
    %11485 = vmatpush.xpose.msra.mxu0 0.0
    %11486 = vmatpush.xpose.msra.mxu0 0.0
    %11487 = vmatpush.xpose.msra.mxu0 0.0
    %11488 = vmatpush.xpose.msra.mxu0 0.0
    %11489 = vmatpush.xpose.msra.mxu0 %v11472
    %11490 = vmatmul.f32.gmra.mxu0 %v11469
    %v11491 = vpop.f32.mrf.mxu0
    %v11492 = vadd.f32 0.0, %v11491
    %11493 = vdwg.mxu0
    %v11495 = vsel %vm1767, %v10697, 0
    %v11498 = vsel %vm1767, %v10746, 0
    %11500 = vmatpush.xpose.msra.mxu0 0.0
    %11501 = vmatpush.xpose.msra.mxu0 0.0
    %11502 = vmatpush.xpose.msra.mxu0 0.0
    %11503 = vmatpush.xpose.msra.mxu0 0.0
    %11504 = vmatpush.xpose.msra.mxu0 0.0
    %11505 = vmatpush.xpose.msra.mxu0 0.0
    %11506 = vmatpush.xpose.msra.mxu0 0.0
    %11507 = vmatpush.xpose.msra.mxu0 0.0
    %11508 = vmatpush.xpose.msra.mxu0 0.0
    %11509 = vmatpush.xpose.msra.mxu0 0.0
    %11510 = vmatpush.xpose.msra.mxu0 0.0
    %11511 = vmatpush.xpose.msra.mxu0 0.0
    %11512 = vmatpush.xpose.msra.mxu0 0.0
    %11513 = vmatpush.xpose.msra.mxu0 0.0
    %11514 = vmatpush.xpose.msra.mxu0 0.0
    %11515 = vmatpush.xpose.msra.mxu0 %v11498
    %11516 = vmatmul.f32.gmra.mxu0 %v11495
    %v11517 = vpop.f32.mrf.mxu0
    %v11518 = vadd.f32 0.0, %v11517
    %11519 = vdwg.mxu0
    %v11521 = vsel %vm1767, %v10698, 0
    %v11524 = vsel %vm1767, %v10747, 0
    %11526 = vmatpush.xpose.msra.mxu0 0.0
    %11527 = vmatpush.xpose.msra.mxu0 0.0
    %11528 = vmatpush.xpose.msra.mxu0 0.0
    %11529 = vmatpush.xpose.msra.mxu0 0.0
    %11530 = vmatpush.xpose.msra.mxu0 0.0
    %11531 = vmatpush.xpose.msra.mxu0 0.0
    %11532 = vmatpush.xpose.msra.mxu0 0.0
    %11533 = vmatpush.xpose.msra.mxu0 0.0
    %11534 = vmatpush.xpose.msra.mxu0 0.0
    %11535 = vmatpush.xpose.msra.mxu0 0.0
    %11536 = vmatpush.xpose.msra.mxu0 0.0
    %11537 = vmatpush.xpose.msra.mxu0 0.0
    %11538 = vmatpush.xpose.msra.mxu0 0.0
    %11539 = vmatpush.xpose.msra.mxu0 0.0
    %11540 = vmatpush.xpose.msra.mxu0 0.0
    %11541 = vmatpush.xpose.msra.mxu0 %v11524
    %11542 = vmatmul.f32.gmra.mxu0 %v11521
    %v11543 = vpop.f32.mrf.mxu0
    %v11544 = vadd.f32 0.0, %v11543
    %11545 = vdwg.mxu0
    %v11547 = vsel %vm1767, %v10699, 0
    %v11550 = vsel %vm1767, %v10748, 0
    %11552 = vmatpush.xpose.msra.mxu0 0.0
    %11553 = vmatpush.xpose.msra.mxu0 0.0
    %11554 = vmatpush.xpose.msra.mxu0 0.0
    %11555 = vmatpush.xpose.msra.mxu0 0.0
    %11556 = vmatpush.xpose.msra.mxu0 0.0
    %11557 = vmatpush.xpose.msra.mxu0 0.0
    %11558 = vmatpush.xpose.msra.mxu0 0.0
    %11559 = vmatpush.xpose.msra.mxu0 0.0
    %11560 = vmatpush.xpose.msra.mxu0 0.0
    %11561 = vmatpush.xpose.msra.mxu0 0.0
    %11562 = vmatpush.xpose.msra.mxu0 0.0
    %11563 = vmatpush.xpose.msra.mxu0 0.0
    %11564 = vmatpush.xpose.msra.mxu0 0.0
    %11565 = vmatpush.xpose.msra.mxu0 0.0
    %11566 = vmatpush.xpose.msra.mxu0 0.0
    %11567 = vmatpush.xpose.msra.mxu0 %v11550
    %11568 = vmatmul.f32.gmra.mxu0 %v11547
    %v11569 = vpop.f32.mrf.mxu0
    %v11570 = vadd.f32 0.0, %v11569
    %11571 = vdwg.mxu0
    %v11573 = vsel %vm1767, %v10700, 0
    %v11576 = vsel %vm1767, %v10749, 0
    %11578 = vmatpush.xpose.msra.mxu0 0.0
    %11579 = vmatpush.xpose.msra.mxu0 0.0
    %11580 = vmatpush.xpose.msra.mxu0 0.0
    %11581 = vmatpush.xpose.msra.mxu0 0.0
    %11582 = vmatpush.xpose.msra.mxu0 0.0
    %11583 = vmatpush.xpose.msra.mxu0 0.0
    %11584 = vmatpush.xpose.msra.mxu0 0.0
    %11585 = vmatpush.xpose.msra.mxu0 0.0
    %11586 = vmatpush.xpose.msra.mxu0 0.0
    %11587 = vmatpush.xpose.msra.mxu0 0.0
    %11588 = vmatpush.xpose.msra.mxu0 0.0
    %11589 = vmatpush.xpose.msra.mxu0 0.0
    %11590 = vmatpush.xpose.msra.mxu0 0.0
    %11591 = vmatpush.xpose.msra.mxu0 0.0
    %11592 = vmatpush.xpose.msra.mxu0 0.0
    %11593 = vmatpush.xpose.msra.mxu0 %v11576
    %11594 = vmatmul.f32.gmra.mxu0 %v11573
    %v11595 = vpop.f32.mrf.mxu0
    %v11596 = vadd.f32 0.0, %v11595
    %11597 = vdwg.mxu0
    %v11599 = vsel %vm1767, %v10701, 0
    %v11602 = vsel %vm1767, %v10750, 0
    %11604 = vmatpush.xpose.msra.mxu0 0.0
    %11605 = vmatpush.xpose.msra.mxu0 0.0
    %11606 = vmatpush.xpose.msra.mxu0 0.0
    %11607 = vmatpush.xpose.msra.mxu0 0.0
    %11608 = vmatpush.xpose.msra.mxu0 0.0
    %11609 = vmatpush.xpose.msra.mxu0 0.0
    %11610 = vmatpush.xpose.msra.mxu0 0.0
    %11611 = vmatpush.xpose.msra.mxu0 0.0
    %11612 = vmatpush.xpose.msra.mxu0 0.0
    %11613 = vmatpush.xpose.msra.mxu0 0.0
    %11614 = vmatpush.xpose.msra.mxu0 0.0
    %11615 = vmatpush.xpose.msra.mxu0 0.0
    %11616 = vmatpush.xpose.msra.mxu0 0.0
    %11617 = vmatpush.xpose.msra.mxu0 0.0
    %11618 = vmatpush.xpose.msra.mxu0 0.0
    %11619 = vmatpush.xpose.msra.mxu0 %v11602
    %11620 = vmatmul.f32.gmra.mxu0 %v11599
    %v11621 = vpop.f32.mrf.mxu0
    %v11622 = vadd.f32 0.0, %v11621
    %11623 = vdwg.mxu0
    %v11625 = vsel %vm1767, %v10702, 0
    %v11628 = vsel %vm1767, %v10751, 0
    %11630 = vmatpush.xpose.msra.mxu0 0.0
    %11631 = vmatpush.xpose.msra.mxu0 0.0
    %11632 = vmatpush.xpose.msra.mxu0 0.0
    %11633 = vmatpush.xpose.msra.mxu0 0.0
    %11634 = vmatpush.xpose.msra.mxu0 0.0
    %11635 = vmatpush.xpose.msra.mxu0 0.0
    %11636 = vmatpush.xpose.msra.mxu0 0.0
    %11637 = vmatpush.xpose.msra.mxu0 0.0
    %11638 = vmatpush.xpose.msra.mxu0 0.0
    %11639 = vmatpush.xpose.msra.mxu0 0.0
    %11640 = vmatpush.xpose.msra.mxu0 0.0
    %11641 = vmatpush.xpose.msra.mxu0 0.0
    %11642 = vmatpush.xpose.msra.mxu0 0.0
    %11643 = vmatpush.xpose.msra.mxu0 0.0
    %11644 = vmatpush.xpose.msra.mxu0 0.0
    %11645 = vmatpush.xpose.msra.mxu0 %v11628
    %11646 = vmatmul.f32.gmra.mxu0 %v11625
    %v11647 = vpop.f32.mrf.mxu0
    %v11648 = vadd.f32 0.0, %v11647
    %11649 = vdwg.mxu0
    %v11651 = vsel %vm1767, %v10703, 0
    %v11654 = vsel %vm1767, %v10752, 0
    %11656 = vmatpush.xpose.msra.mxu0 0.0
    %11657 = vmatpush.xpose.msra.mxu0 0.0
    %11658 = vmatpush.xpose.msra.mxu0 0.0
    %11659 = vmatpush.xpose.msra.mxu0 0.0
    %11660 = vmatpush.xpose.msra.mxu0 0.0
    %11661 = vmatpush.xpose.msra.mxu0 0.0
    %11662 = vmatpush.xpose.msra.mxu0 0.0
    %11663 = vmatpush.xpose.msra.mxu0 0.0
    %11664 = vmatpush.xpose.msra.mxu0 0.0
    %11665 = vmatpush.xpose.msra.mxu0 0.0
    %11666 = vmatpush.xpose.msra.mxu0 0.0
    %11667 = vmatpush.xpose.msra.mxu0 0.0
    %11668 = vmatpush.xpose.msra.mxu0 0.0
    %11669 = vmatpush.xpose.msra.mxu0 0.0
    %11670 = vmatpush.xpose.msra.mxu0 0.0
    %11671 = vmatpush.xpose.msra.mxu0 %v11654
    %11672 = vmatmul.f32.gmra.mxu0 %v11651
    %v11673 = vpop.f32.mrf.mxu0
    %v11674 = vadd.f32 0.0, %v11673
    %11675 = vdwg.mxu0
    %v11677 = vsel %vm1767, %v10704, 0
    %v11680 = vsel %vm1767, %v10753, 0
    %11682 = vmatpush.xpose.msra.mxu0 0.0
    %11683 = vmatpush.xpose.msra.mxu0 0.0
    %11684 = vmatpush.xpose.msra.mxu0 0.0
    %11685 = vmatpush.xpose.msra.mxu0 0.0
    %11686 = vmatpush.xpose.msra.mxu0 0.0
    %11687 = vmatpush.xpose.msra.mxu0 0.0
    %11688 = vmatpush.xpose.msra.mxu0 0.0
    %11689 = vmatpush.xpose.msra.mxu0 0.0
    %11690 = vmatpush.xpose.msra.mxu0 0.0
    %11691 = vmatpush.xpose.msra.mxu0 0.0
    %11692 = vmatpush.xpose.msra.mxu0 0.0
    %11693 = vmatpush.xpose.msra.mxu0 0.0
    %11694 = vmatpush.xpose.msra.mxu0 0.0
    %11695 = vmatpush.xpose.msra.mxu0 0.0
    %11696 = vmatpush.xpose.msra.mxu0 0.0
    %11697 = vmatpush.xpose.msra.mxu0 %v11680
    %11698 = vmatmul.f32.gmra.mxu0 %v11677
    %v11699 = vpop.f32.mrf.mxu0
    %v11700 = vadd.f32 0.0, %v11699
    %11701 = vdwg.mxu0
    %v11703 = vsel %vm1767, %v10705, 0
    %v11706 = vsel %vm1767, %v10754, 0
    %11708 = vmatpush.xpose.msra.mxu0 0.0
    %11709 = vmatpush.xpose.msra.mxu0 0.0
    %11710 = vmatpush.xpose.msra.mxu0 0.0
    %11711 = vmatpush.xpose.msra.mxu0 0.0
    %11712 = vmatpush.xpose.msra.mxu0 0.0
    %11713 = vmatpush.xpose.msra.mxu0 0.0
    %11714 = vmatpush.xpose.msra.mxu0 0.0
    %11715 = vmatpush.xpose.msra.mxu0 0.0
    %11716 = vmatpush.xpose.msra.mxu0 0.0
    %11717 = vmatpush.xpose.msra.mxu0 0.0
    %11718 = vmatpush.xpose.msra.mxu0 0.0
    %11719 = vmatpush.xpose.msra.mxu0 0.0
    %11720 = vmatpush.xpose.msra.mxu0 0.0
    %11721 = vmatpush.xpose.msra.mxu0 0.0
    %11722 = vmatpush.xpose.msra.mxu0 0.0
    %11723 = vmatpush.xpose.msra.mxu0 %v11706
    %11724 = vmatmul.f32.gmra.mxu0 %v11703
    %v11725 = vpop.f32.mrf.mxu0
    %v11726 = vadd.f32 0.0, %v11725
    %11727 = vdwg.mxu0
    %v11729 = vsel %vm1767, %v10706, 0
    %v11732 = vsel %vm1767, %v10755, 0
    %11734 = vmatpush.xpose.msra.mxu0 0.0
    %11735 = vmatpush.xpose.msra.mxu0 0.0
    %11736 = vmatpush.xpose.msra.mxu0 0.0
    %11737 = vmatpush.xpose.msra.mxu0 0.0
    %11738 = vmatpush.xpose.msra.mxu0 0.0
    %11739 = vmatpush.xpose.msra.mxu0 0.0
    %11740 = vmatpush.xpose.msra.mxu0 0.0
    %11741 = vmatpush.xpose.msra.mxu0 0.0
    %11742 = vmatpush.xpose.msra.mxu0 0.0
    %11743 = vmatpush.xpose.msra.mxu0 0.0
    %11744 = vmatpush.xpose.msra.mxu0 0.0
    %11745 = vmatpush.xpose.msra.mxu0 0.0
    %11746 = vmatpush.xpose.msra.mxu0 0.0
    %11747 = vmatpush.xpose.msra.mxu0 0.0
    %11748 = vmatpush.xpose.msra.mxu0 0.0
    %11749 = vmatpush.xpose.msra.mxu0 %v11732
    %11750 = vmatmul.f32.gmra.mxu0 %v11729
    %v11751 = vpop.f32.mrf.mxu0
    %v11752 = vadd.f32 0.0, %v11751
    %11753 = vdwg.mxu0
    %v11755 = vsel %vm1767, %v10707, 0
    %v11758 = vsel %vm1767, %v10756, 0
    %11760 = vmatpush.xpose.msra.mxu0 0.0
    %11761 = vmatpush.xpose.msra.mxu0 0.0
    %11762 = vmatpush.xpose.msra.mxu0 0.0
    %11763 = vmatpush.xpose.msra.mxu0 0.0
    %11764 = vmatpush.xpose.msra.mxu0 0.0
    %11765 = vmatpush.xpose.msra.mxu0 0.0
    %11766 = vmatpush.xpose.msra.mxu0 0.0
    %11767 = vmatpush.xpose.msra.mxu0 0.0
    %11768 = vmatpush.xpose.msra.mxu0 0.0
    %11769 = vmatpush.xpose.msra.mxu0 0.0
    %11770 = vmatpush.xpose.msra.mxu0 0.0
    %11771 = vmatpush.xpose.msra.mxu0 0.0
    %11772 = vmatpush.xpose.msra.mxu0 0.0
    %11773 = vmatpush.xpose.msra.mxu0 0.0
    %11774 = vmatpush.xpose.msra.mxu0 0.0
    %11775 = vmatpush.xpose.msra.mxu0 %v11758
    %11776 = vmatmul.f32.gmra.mxu0 %v11755
    %v11777 = vpop.f32.mrf.mxu0
    %v11778 = vadd.f32 0.0, %v11777
    %11779 = vdwg.mxu0
    %v11781 = vsel %vm1767, %v10708, 0
    %v11784 = vsel %vm1767, %v10757, 0
    %11786 = vmatpush.xpose.msra.mxu0 0.0
    %11787 = vmatpush.xpose.msra.mxu0 0.0
    %11788 = vmatpush.xpose.msra.mxu0 0.0
    %11789 = vmatpush.xpose.msra.mxu0 0.0
    %11790 = vmatpush.xpose.msra.mxu0 0.0
    %11791 = vmatpush.xpose.msra.mxu0 0.0
    %11792 = vmatpush.xpose.msra.mxu0 0.0
    %11793 = vmatpush.xpose.msra.mxu0 0.0
    %11794 = vmatpush.xpose.msra.mxu0 0.0
    %11795 = vmatpush.xpose.msra.mxu0 0.0
    %11796 = vmatpush.xpose.msra.mxu0 0.0
    %11797 = vmatpush.xpose.msra.mxu0 0.0
    %11798 = vmatpush.xpose.msra.mxu0 0.0
    %11799 = vmatpush.xpose.msra.mxu0 0.0
    %11800 = vmatpush.xpose.msra.mxu0 0.0
    %11801 = vmatpush.xpose.msra.mxu0 %v11784
    %11802 = vmatmul.f32.gmra.mxu0 %v11781
    %v11803 = vpop.f32.mrf.mxu0
    %v11804 = vadd.f32 0.0, %v11803
    %11805 = vdwg.mxu0
    %v11807 = vsel %vm1767, %v10709, 0
    %v11810 = vsel %vm1767, %v10758, 0
    %11812 = vmatpush.xpose.msra.mxu0 0.0
    %11813 = vmatpush.xpose.msra.mxu0 0.0
    %11814 = vmatpush.xpose.msra.mxu0 0.0
    %11815 = vmatpush.xpose.msra.mxu0 0.0
    %11816 = vmatpush.xpose.msra.mxu0 0.0
    %11817 = vmatpush.xpose.msra.mxu0 0.0
    %11818 = vmatpush.xpose.msra.mxu0 0.0
    %11819 = vmatpush.xpose.msra.mxu0 0.0
    %11820 = vmatpush.xpose.msra.mxu0 0.0
    %11821 = vmatpush.xpose.msra.mxu0 0.0
    %11822 = vmatpush.xpose.msra.mxu0 0.0
    %11823 = vmatpush.xpose.msra.mxu0 0.0
    %11824 = vmatpush.xpose.msra.mxu0 0.0
    %11825 = vmatpush.xpose.msra.mxu0 0.0
    %11826 = vmatpush.xpose.msra.mxu0 0.0
    %11827 = vmatpush.xpose.msra.mxu0 %v11810
    %11828 = vmatmul.f32.gmra.mxu0 %v11807
    %v11829 = vpop.f32.mrf.mxu0
    %v11830 = vadd.f32 0.0, %v11829
    %11831 = vdwg.mxu0
    %v11833 = vsel %vm1767, %v10710, 0
    %v11836 = vsel %vm1767, %v10759, 0
    %11838 = vmatpush.xpose.msra.mxu0 0.0
    %11839 = vmatpush.xpose.msra.mxu0 0.0
    %11840 = vmatpush.xpose.msra.mxu0 0.0
    %11841 = vmatpush.xpose.msra.mxu0 0.0
    %11842 = vmatpush.xpose.msra.mxu0 0.0
    %11843 = vmatpush.xpose.msra.mxu0 0.0
    %11844 = vmatpush.xpose.msra.mxu0 0.0
    %11845 = vmatpush.xpose.msra.mxu0 0.0
    %11846 = vmatpush.xpose.msra.mxu0 0.0
    %11847 = vmatpush.xpose.msra.mxu0 0.0
    %11848 = vmatpush.xpose.msra.mxu0 0.0
    %11849 = vmatpush.xpose.msra.mxu0 0.0
    %11850 = vmatpush.xpose.msra.mxu0 0.0
    %11851 = vmatpush.xpose.msra.mxu0 0.0
    %11852 = vmatpush.xpose.msra.mxu0 0.0
    %11853 = vmatpush.xpose.msra.mxu0 %v11836
    %11854 = vmatmul.f32.gmra.mxu0 %v11833
    %v11855 = vpop.f32.mrf.mxu0
    %v11856 = vadd.f32 0.0, %v11855
    %11857 = vdwg.mxu0
    %v11859 = vsel %vm1767, %v10711, 0
    %v11862 = vsel %vm1767, %v10760, 0
    %11864 = vmatpush.xpose.msra.mxu0 0.0
    %11865 = vmatpush.xpose.msra.mxu0 0.0
    %11866 = vmatpush.xpose.msra.mxu0 0.0
    %11867 = vmatpush.xpose.msra.mxu0 0.0
    %11868 = vmatpush.xpose.msra.mxu0 0.0
    %11869 = vmatpush.xpose.msra.mxu0 0.0
    %11870 = vmatpush.xpose.msra.mxu0 0.0
    %11871 = vmatpush.xpose.msra.mxu0 0.0
    %11872 = vmatpush.xpose.msra.mxu0 0.0
    %11873 = vmatpush.xpose.msra.mxu0 0.0
    %11874 = vmatpush.xpose.msra.mxu0 0.0
    %11875 = vmatpush.xpose.msra.mxu0 0.0
    %11876 = vmatpush.xpose.msra.mxu0 0.0
    %11877 = vmatpush.xpose.msra.mxu0 0.0
    %11878 = vmatpush.xpose.msra.mxu0 0.0
    %11879 = vmatpush.xpose.msra.mxu0 %v11862
    %11880 = vmatmul.f32.gmra.mxu0 %v11859
    %v11881 = vpop.f32.mrf.mxu0
    %v11882 = vadd.f32 0.0, %v11881
    %11883 = vdwg.mxu0
    %v11885 = vsel %vm1767, %v10712, 0
    %v11888 = vsel %vm1767, %v10761, 0
    %11890 = vmatpush.xpose.msra.mxu0 0.0
    %11891 = vmatpush.xpose.msra.mxu0 0.0
    %11892 = vmatpush.xpose.msra.mxu0 0.0
    %11893 = vmatpush.xpose.msra.mxu0 0.0
    %11894 = vmatpush.xpose.msra.mxu0 0.0
    %11895 = vmatpush.xpose.msra.mxu0 0.0
    %11896 = vmatpush.xpose.msra.mxu0 0.0
    %11897 = vmatpush.xpose.msra.mxu0 0.0
    %11898 = vmatpush.xpose.msra.mxu0 0.0
    %11899 = vmatpush.xpose.msra.mxu0 0.0
    %11900 = vmatpush.xpose.msra.mxu0 0.0
    %11901 = vmatpush.xpose.msra.mxu0 0.0
    %11902 = vmatpush.xpose.msra.mxu0 0.0
    %11903 = vmatpush.xpose.msra.mxu0 0.0
    %11904 = vmatpush.xpose.msra.mxu0 0.0
    %11905 = vmatpush.xpose.msra.mxu0 %v11888
    %11906 = vmatmul.f32.gmra.mxu0 %v11885
    %v11907 = vpop.f32.mrf.mxu0
    %v11908 = vadd.f32 0.0, %v11907
    %11909 = vdwg.mxu0
    %v11911 = vsel %vm1767, %v10713, 0
    %v11914 = vsel %vm1767, %v10762, 0
    %11916 = vmatpush.xpose.msra.mxu0 0.0
    %11917 = vmatpush.xpose.msra.mxu0 0.0
    %11918 = vmatpush.xpose.msra.mxu0 0.0
    %11919 = vmatpush.xpose.msra.mxu0 0.0
    %11920 = vmatpush.xpose.msra.mxu0 0.0
    %11921 = vmatpush.xpose.msra.mxu0 0.0
    %11922 = vmatpush.xpose.msra.mxu0 0.0
    %11923 = vmatpush.xpose.msra.mxu0 0.0
    %11924 = vmatpush.xpose.msra.mxu0 0.0
    %11925 = vmatpush.xpose.msra.mxu0 0.0
    %11926 = vmatpush.xpose.msra.mxu0 0.0
    %11927 = vmatpush.xpose.msra.mxu0 0.0
    %11928 = vmatpush.xpose.msra.mxu0 0.0
    %11929 = vmatpush.xpose.msra.mxu0 0.0
    %11930 = vmatpush.xpose.msra.mxu0 0.0
    %11931 = vmatpush.xpose.msra.mxu0 %v11914
    %11932 = vmatmul.f32.gmra.mxu0 %v11911
    %v11933 = vpop.f32.mrf.mxu0
    %v11934 = vadd.f32 0.0, %v11933
    %11935 = vdwg.mxu0
    %v11937 = vsel %vm1767, %v10714, 0
    %v11940 = vsel %vm1767, %v10763, 0
    %11942 = vmatpush.xpose.msra.mxu0 0.0
    %11943 = vmatpush.xpose.msra.mxu0 0.0
    %11944 = vmatpush.xpose.msra.mxu0 0.0
    %11945 = vmatpush.xpose.msra.mxu0 0.0
    %11946 = vmatpush.xpose.msra.mxu0 0.0
    %11947 = vmatpush.xpose.msra.mxu0 0.0
    %11948 = vmatpush.xpose.msra.mxu0 0.0
    %11949 = vmatpush.xpose.msra.mxu0 0.0
    %11950 = vmatpush.xpose.msra.mxu0 0.0
    %11951 = vmatpush.xpose.msra.mxu0 0.0
    %11952 = vmatpush.xpose.msra.mxu0 0.0
    %11953 = vmatpush.xpose.msra.mxu0 0.0
    %11954 = vmatpush.xpose.msra.mxu0 0.0
    %11955 = vmatpush.xpose.msra.mxu0 0.0
    %11956 = vmatpush.xpose.msra.mxu0 0.0
    %11957 = vmatpush.xpose.msra.mxu0 %v11940
    %11958 = vmatmul.f32.gmra.mxu0 %v11937
    %v11959 = vpop.f32.mrf.mxu0
    %v11960 = vadd.f32 0.0, %v11959
    %11961 = vdwg.mxu0
    %v11963 = vsel %vm1767, %v10715, 0
    %v11966 = vsel %vm1767, %v10764, 0
    %11968 = vmatpush.xpose.msra.mxu0 0.0
    %11969 = vmatpush.xpose.msra.mxu0 0.0
    %11970 = vmatpush.xpose.msra.mxu0 0.0
    %11971 = vmatpush.xpose.msra.mxu0 0.0
    %11972 = vmatpush.xpose.msra.mxu0 0.0
    %11973 = vmatpush.xpose.msra.mxu0 0.0
    %11974 = vmatpush.xpose.msra.mxu0 0.0
    %11975 = vmatpush.xpose.msra.mxu0 0.0
    %11976 = vmatpush.xpose.msra.mxu0 0.0
    %11977 = vmatpush.xpose.msra.mxu0 0.0
    %11978 = vmatpush.xpose.msra.mxu0 0.0
    %11979 = vmatpush.xpose.msra.mxu0 0.0
    %11980 = vmatpush.xpose.msra.mxu0 0.0
    %11981 = vmatpush.xpose.msra.mxu0 0.0
    %11982 = vmatpush.xpose.msra.mxu0 0.0
    %11983 = vmatpush.xpose.msra.mxu0 %v11966
    %11984 = vmatmul.f32.gmra.mxu0 %v11963
    %v11985 = vpop.f32.mrf.mxu0
    %v11986 = vadd.f32 0.0, %v11985
    %11987 = vdwg.mxu0
    %v11989 = vsel %vm1767, %v10716, 0
    %v11992 = vsel %vm1767, %v10765, 0
    %11994 = vmatpush.xpose.msra.mxu0 0.0
    %11995 = vmatpush.xpose.msra.mxu0 0.0
    %11996 = vmatpush.xpose.msra.mxu0 0.0
    %11997 = vmatpush.xpose.msra.mxu0 0.0
    %11998 = vmatpush.xpose.msra.mxu0 0.0
    %11999 = vmatpush.xpose.msra.mxu0 0.0
    %12000 = vmatpush.xpose.msra.mxu0 0.0
    %12001 = vmatpush.xpose.msra.mxu0 0.0
    %12002 = vmatpush.xpose.msra.mxu0 0.0
    %12003 = vmatpush.xpose.msra.mxu0 0.0
    %12004 = vmatpush.xpose.msra.mxu0 0.0
    %12005 = vmatpush.xpose.msra.mxu0 0.0
    %12006 = vmatpush.xpose.msra.mxu0 0.0
    %12007 = vmatpush.xpose.msra.mxu0 0.0
    %12008 = vmatpush.xpose.msra.mxu0 0.0
    %12009 = vmatpush.xpose.msra.mxu0 %v11992
    %12010 = vmatmul.f32.gmra.mxu0 %v11989
    %v12011 = vpop.f32.mrf.mxu0
    %v12012 = vadd.f32 0.0, %v12011
    %12013 = vdwg.mxu0
    %v12014 = vsel %vm3016, %v10790, 0.0
    %v12015 = vsel %vm3016, %v10816, 0.0
    %v12016 = vadd.f32 %v12014, %v12015
    %v12017 = vsel %vm3016, %v10842, 0.0
    %v12018 = vadd.f32 %v12016, %v12017
    %v12019 = vsel %vm3016, %v10868, 0.0
    %v12020 = vadd.f32 %v12018, %v12019
    %v12021 = vsel %vm3016, %v10894, 0.0
    %v12022 = vadd.f32 %v12020, %v12021
    %v12023 = vsel %vm3016, %v10920, 0.0
    %v12024 = vadd.f32 %v12022, %v12023
    %v12025 = vsel %vm3016, %v10946, 0.0
    %v12026 = vadd.f32 %v12024, %v12025
    %v12027 = vsel %vm3016, %v10972, 0.0
    %v12028 = vadd.f32 %v12026, %v12027
    %v12029 = vsel %vm3016, %v10998, 0.0
    %v12030 = vadd.f32 %v12028, %v12029
    %v12031 = vsel %vm3016, %v11024, 0.0
    %v12032 = vadd.f32 %v12030, %v12031
    %v12033 = vsel %vm3016, %v11050, 0.0
    %v12034 = vadd.f32 %v12032, %v12033
    %v12035 = vsel %vm3016, %v11076, 0.0
    %v12036 = vadd.f32 %v12034, %v12035
    %v12037 = vsel %vm3016, %v11102, 0.0
    %v12038 = vadd.f32 %v12036, %v12037
    %v12039 = vsel %vm3016, %v11128, 0.0
    %v12040 = vadd.f32 %v12038, %v12039
    %v12041 = vsel %vm3016, %v11154, 0.0
    %v12042 = vadd.f32 %v12040, %v12041
    %v12043 = vsel %vm3016, %v11180, 0.0
    %v12044 = vadd.f32 %v12042, %v12043
    %v12045 = vsel %vm3016, %v11206, 0.0
    %v12046 = vadd.f32 %v12044, %v12045
    %v12047 = vsel %vm3016, %v11232, 0.0
    %v12048 = vadd.f32 %v12046, %v12047
    %v12049 = vsel %vm3016, %v11258, 0.0
    %v12050 = vadd.f32 %v12048, %v12049
    %v12051 = vsel %vm3016, %v11284, 0.0
    %v12052 = vadd.f32 %v12050, %v12051
    %v12053 = vsel %vm3016, %v11310, 0.0
    %v12054 = vadd.f32 %v12052, %v12053
    %v12055 = vsel %vm3016, %v11336, 0.0
    %v12056 = vadd.f32 %v12054, %v12055
    %v12057 = vsel %vm3016, %v11362, 0.0
    %v12058 = vadd.f32 %v12056, %v12057
    %v12059 = vsel %vm3016, %v11388, 0.0
    %v12060 = vadd.f32 %v12058, %v12059
    %v12061 = vsel %vm3016, %v11414, 0.0
    %v12062 = vadd.f32 %v12060, %v12061
    %v12063 = vsel %vm3016, %v11440, 0.0
    %v12064 = vadd.f32 %v12062, %v12063
    %v12065 = vsel %vm3016, %v11466, 0.0
    %v12066 = vadd.f32 %v12064, %v12065
    %v12067 = vsel %vm3016, %v11492, 0.0
    %v12068 = vadd.f32 %v12066, %v12067
    %v12069 = vsel %vm3016, %v11518, 0.0
    %v12070 = vadd.f32 %v12068, %v12069
    %v12071 = vsel %vm3016, %v11544, 0.0
    %v12072 = vadd.f32 %v12070, %v12071
    %v12073 = vsel %vm3016, %v11570, 0.0
    %v12074 = vadd.f32 %v12072, %v12073
    %v12075 = vsel %vm3016, %v11596, 0.0
    %v12076 = vadd.f32 %v12074, %v12075
    %v12077 = vsel %vm3016, %v11622, 0.0
    %v12078 = vadd.f32 %v12076, %v12077
    %v12079 = vsel %vm3016, %v11648, 0.0
    %v12080 = vadd.f32 %v12078, %v12079
    %v12081 = vsel %vm3016, %v11674, 0.0
    %v12082 = vadd.f32 %v12080, %v12081
    %v12083 = vsel %vm3016, %v11700, 0.0
    %v12084 = vadd.f32 %v12082, %v12083
    %v12085 = vsel %vm3016, %v11726, 0.0
    %v12086 = vadd.f32 %v12084, %v12085
    %v12087 = vsel %vm3016, %v11752, 0.0
    %v12088 = vadd.f32 %v12086, %v12087
    %v12089 = vsel %vm3016, %v11778, 0.0
    %v12090 = vadd.f32 %v12088, %v12089
    %v12091 = vsel %vm3016, %v11804, 0.0
    %v12092 = vadd.f32 %v12090, %v12091
    %v12093 = vsel %vm3016, %v11830, 0.0
    %v12094 = vadd.f32 %v12092, %v12093
    %v12095 = vsel %vm3016, %v11856, 0.0
    %v12096 = vadd.f32 %v12094, %v12095
    %v12097 = vsel %vm3016, %v11882, 0.0
    %v12098 = vadd.f32 %v12096, %v12097
    %v12099 = vsel %vm3016, %v11908, 0.0
    %v12100 = vadd.f32 %v12098, %v12099
    %v12101 = vsel %vm3016, %v11934, 0.0
    %v12102 = vadd.f32 %v12100, %v12101
    %v12103 = vsel %vm3016, %v11960, 0.0
    %v12104 = vadd.f32 %v12102, %v12103
    %v12105 = vsel %vm3016, %v11986, 0.0
    %v12106 = vadd.f32 %v12104, %v12105
    %v12107 = vsel %vm3016, %v12012, 0.0
    %v12108 = vadd.f32 %v12106, %v12107
    %v12109 = vadd.f32 %v9110, %v12108
    %v12110 = vld [vmem:[%s6] sm:$0x1]
    %v12112 = vperm.slane %v12110, 0
    %v12114 = vadd.f32 %v12109, %v12112
    %12115 = vst.msk [vmem:[#allocation9] sm:$0x3] %vm3016, %v12114
    // Predicated region
    $region42: #{cnn_forward.1} parent=1 // pred_check
      _
    $region43: #{cnn_forward.1} parent=1 // pred_check_branch
      %12117 = sbr.rel (0) target = $region45
    $region44: #{cnn_forward.1} parent=1 // pred_region
      %12119 = vsyncadd [#allocation4], 0
      %s12121 = sshll.u32 [#allocation9], 4
      %s12122 = int_to_ptr.vmem [resolvable:$true] %s12121
      %s12123 = sshll.u32 %s7, 4
      %s12124 = int_to_ptr.hbm [resolvable:$true] %s12123
      %12126 = dma.vmem_to_hbm [thread:$0]  %s12122, 32, %s12124, [#allocation4]
    $region45: #{cnn_forward.1} parent=1 // pred_fallthru
      _
    // Predicated region
    $region46: #{cnn_forward.1} parent=1 // pred_check
      _
    $region47: #{cnn_forward.1} parent=1 // pred_check_branch
      %12128 = sbr.rel (0) target = $region49
    $region48: #{cnn_forward.1} parent=1 // pred_region
      %12130 = dma.done [#allocation4], 32
    $region49: #{cnn_forward.1} parent=1 // pred_fallthru
      _
    %12131 = vsyncpa [#allocation4], 1
    %12132 = vsyncpa [#allocation5], 1
    %12133 = vsyncpa [#allocation7], 1

</llo_original>
